<compile_context>
chip_gen: v7x
topology: tpu7x:2x2x1
jax: 0.10.0
libtpu: 0.0.40
codegen_flags: <defaults>
</compile_context>

<pallas_src>
import functools

import jax
import jax.numpy as jnp
from jax import lax
from jax.experimental import pallas as pl
from jax.experimental.pallas import tpu as pltpu


def _round_up(x, m):
    return (x + m - 1) // m * m


def _pick_tn(npad):
    if npad <= 512:
        return npad
    for cand in (512, 256, 128):
        if npad % cand == 0:
            return cand
    return 128


# --------------- kernel 1: fused (prev-BN+LeakyReLU) -> conv -> BN stats -----
def _conv_kernel(x_ref, w_ref, s_ref, b_ref, y_ref, sum_ref, ssq_ref,
                 *, H, W, KH, KW, fuse_act, neg_slope):
    """Grid (B, Nblk).
      x_ref:   (1, HP, WP, Cp)  bf16   HP=H+KH-1, WP=W+KW-1 (zero halo for 3x3)
      w_ref:   (KH*KW, Cp, TN)  bf16   tap-major weights
      s_ref:   (1, Cp)          f32    prev-layer BN scale (fused prologue)
      b_ref:   (1, Cp)          f32    prev-layer BN bias
      y_ref:   (1, H*W, TN)     bf16   RAW conv output (pre-BN)
      sum_ref: (1, 1, TN)       f32    per-channel partial sum over this batch
      ssq_ref: (1, 1, TN)       f32    per-channel partial sum of squares
    """
    HP = H + KH - 1
    WP = W + KW - 1
    x = x_ref[0]                                       # (HP, WP, Cp) bf16

    if fuse_act:
        # Apply previous layer's BatchNorm (scale/bias pre-folded) + LeakyReLU.
        s = s_ref[...].reshape(1, 1, -1)
        b = b_ref[...].reshape(1, 1, -1)
        v = x.astype(jnp.float32) * s + b
        v = jnp.where(v > 0, v, neg_slope * v)
        if KH > 1 or KW > 1:
            # The spatial zero-halo must stay exactly 0 after the affine+act
            # (PyTorch pads the POST-activation map), so mask the border.
            r = lax.broadcasted_iota(jnp.int32, (HP, WP, 1), 0)
            c = lax.broadcasted_iota(jnp.int32, (HP, WP, 1), 1)
            ph = (KH - 1) // 2
            pw = (KW - 1) // 2
            interior = ((r >= ph) & (r < ph + H) & (c >= pw) & (c < pw + W))
            v = jnp.where(interior, v, 0.0)
        x = v.astype(jnp.bfloat16)

    # Conv = sum over taps of shifted-window matmuls (MXU, f32 accumulation).
    acc = None
    for t in range(KH * KW):
        dy, dx = divmod(t, KW)
        win = x[dy:dy + H, dx:dx + W, :].reshape(H * W, x.shape[-1])
        part = jnp.dot(win, w_ref[t], preferred_element_type=jnp.float32)
        acc = part if acc is None else acc + part

    y_ref[...] = acc.astype(y_ref.dtype).reshape(y_ref.shape)
    # Partial BN statistics for this (batch, Cout-block).
    sum_ref[...] = jnp.sum(acc, axis=0, keepdims=True).reshape(sum_ref.shape)
    ssq_ref[...] = jnp.sum(acc * acc, axis=0, keepdims=True).reshape(ssq_ref.shape)


def _conv_layer(x_sp, w3, s_in, b_in, *, KH, KW, fuse_act, neg_slope, tn):
    B, HP, WP, Cp = x_sp.shape
    H = HP - (KH - 1)
    W = WP - (KW - 1)
    M = H * W
    Npad = w3.shape[-1]
    grid = (B, Npad // tn)

    kernel = functools.partial(_conv_kernel, H=H, W=W, KH=KH, KW=KW,
                               fuse_act=fuse_act, neg_slope=neg_slope)
    return pl.pallas_call(
        kernel,
        out_shape=(
            jax.ShapeDtypeStruct((B, M, Npad), jnp.bfloat16),
            jax.ShapeDtypeStruct((B, 1, Npad), jnp.float32),
            jax.ShapeDtypeStruct((B, 1, Npad), jnp.float32),
        ),
        grid_spec=pltpu.PrefetchScalarGridSpec(
            num_scalar_prefetch=0,
            grid=grid,
            in_specs=[
                pl.BlockSpec((1, HP, WP, Cp), lambda b, j: (b, 0, 0, 0)),
                pl.BlockSpec((KH * KW, Cp, tn), lambda b, j: (0, 0, j)),
                pl.BlockSpec((1, Cp), lambda b, j: (0, 0)),
                pl.BlockSpec((1, Cp), lambda b, j: (0, 0)),
            ],
            out_specs=[
                pl.BlockSpec((1, M, tn), lambda b, j: (b, 0, j)),
                pl.BlockSpec((1, 1, tn), lambda b, j: (b, 0, j)),
                pl.BlockSpec((1, 1, tn), lambda b, j: (b, 0, j)),
            ],
        ),
        compiler_params=pltpu.CompilerParams(
            dimension_semantics=("parallel", "parallel"),
            vmem_limit_bytes=64 * 1024 * 1024,
        ),
    )(x_sp, w3, s_in, b_in)


# --------------- kernel 2: standalone BN(apply) + LeakyReLU (final layer) ----
def _bn_lrelu_kernel(y_ref, s_ref, b_ref, o_ref, *, neg_slope):
    y = y_ref[...].astype(jnp.float32)
    v = y * s_ref[...].reshape(1, 1, -1) + b_ref[...].reshape(1, 1, -1)
    o_ref[...] = jnp.where(v > 0, v, neg_slope * v).astype(o_ref.dtype)


def _bn_lrelu(y, scale, bias, *, tn, neg_slope):
    B, M, Npad = y.shape
    kernel = functools.partial(_bn_lrelu_kernel, neg_slope=neg_slope)
    return pl.pallas_call(
        kernel,
        out_shape=jax.ShapeDtypeStruct((B, M, Npad), jnp.bfloat16),
        grid_spec=pltpu.PrefetchScalarGridSpec(
            num_scalar_prefetch=0,
            grid=(B, Npad // tn),
            in_specs=[
                pl.BlockSpec((1, M, tn), lambda b, j: (b, 0, j)),
                pl.BlockSpec((1, tn), lambda b, j: (0, j)),
                pl.BlockSpec((1, tn), lambda b, j: (0, j)),
            ],
            out_specs=pl.BlockSpec((1, M, tn), lambda b, j: (b, 0, j)),
        ),
        compiler_params=pltpu.CompilerParams(
            dimension_semantics=("parallel", "parallel"),
            vmem_limit_bytes=64 * 1024 * 1024,
        ),
    )(y, scale, bias)


# ------------------------------- JAX glue ------------------------------------
def cblx5_forward(x_nchw, params_list, *, eps=1e-5, neg_slope=0.1):
    B, Cin0, H, W = x_nchw.shape
    x = jnp.transpose(x_nchw, (0, 2, 3, 1))            # NHWC f32
    Cp = _round_up(Cin0, 128)                           # lane-dense channels
    x = jnp.pad(x, ((0, 0), (0, 0), (0, 0), (0, Cp - Cin0))).astype(jnp.bfloat16)

    cur = x.reshape(B, H * W, Cp)   # raw ("already activated") layer input
    pending_scale = None            # BN scale/bias of the previous layer,
    pending_bias = None             # applied lazily in the next conv prologue
    count = float(B * H * W)

    for p in params_list:
        w = p["w"]                                      # (Cout, Cin, KH, KW)
        Cout, Cin_l, KH, KW = w.shape
        Npad = _round_up(Cout, 128)
        tn = _pick_tn(Npad)

        # Weights: (Cout,Cin,KH,KW) -> (KH,KW,Cin,Cout) -> (taps, Cp, Npad) bf16.
        w3 = jnp.transpose(w, (2, 3, 1, 0)).reshape(KH * KW, Cin_l, Cout)
        w3 = jnp.pad(w3, ((0, 0), (0, Cp - Cin_l), (0, Npad - Cout)))
        w3 = w3.astype(jnp.bfloat16)

        if pending_scale is None:
            fuse_act = False
            s_in = jnp.ones((1, Cp), jnp.float32)
            b_in = jnp.zeros((1, Cp), jnp.float32)
        else:
            fuse_act = True
            s_in = pending_scale.reshape(1, Cp)
            b_in = pending_bias.reshape(1, Cp)

        # Spatial layout + zero halo for 3x3 ('same', stride 1).
        x_sp = cur.reshape(B, H, W, Cp)
        if KH > 1 or KW > 1:
            ph, pw = (KH - 1) // 2, (KW - 1) // 2
            x_sp = jnp.pad(x_sp, ((0, 0), (ph, KH - 1 - ph),
                                  (pw, KW - 1 - pw), (0, 0)))

        y_raw, psum, pssq = _conv_layer(x_sp, w3, s_in, b_in, KH=KH, KW=KW,
                                        fuse_act=fuse_act,
                                        neg_slope=neg_slope, tn=tn)

        # Finish training-mode batch statistics (biased variance) and fold
        # gamma / rsqrt(var+eps) into a per-channel scale/bias for next layer.
        sum_c = jnp.sum(psum, axis=(0, 1))
        ssq_c = jnp.sum(pssq, axis=(0, 1))
        mean = sum_c / count
        var = jnp.maximum(ssq_c / count - mean * mean, 0.0)
        gamma = jnp.pad(p["gamma"].astype(jnp.float32), (0, Npad - Cout))
        beta = jnp.pad(p["beta"].astype(jnp.float32), (0, Npad - Cout))
        scale = gamma * lax.rsqrt(var + eps)
        bias = beta - mean * scale

        pending_scale, pending_bias = scale, bias
        cur = y_raw
        Cp = Npad

    # Final layer's BN + LeakyReLU has no "next conv" to fuse into.
    out = _bn_lrelu(cur, pending_scale.reshape(1, Cp), pending_bias.reshape(1, Cp),
                    tn=_pick_tn(Cp), neg_slope=neg_slope)

    Cout_last = params_list[-1]["w"].shape[0]
    out = out[:, :, :Cout_last].reshape(B, H, W, Cout_last)
    return jnp.transpose(out, (0, 3, 1, 2)).astype(jnp.float32)


# ------------------------------- params --------------------------------------
def init_cbl_params(key, in_channels, out_channels, ksize):
    kh, kw = ksize
    w = 0.05 * jax.random.normal(
        key, (out_channels, in_channels, kh, kw), jnp.float32)
    # PyTorch BatchNorm2d default init: gamma=1, beta=0.
    return {"w": w,
            "gamma": jnp.ones((out_channels,), jnp.float32),
            "beta": jnp.zeros((out_channels,), jnp.float32)}


def init_cblx5_params(key, in_channels, out_channels):
    tmp_channels = out_channels * 2
    layer_cfg = [
        (in_channels, out_channels, (1, 1)),
        (out_channels, tmp_channels, (3, 3)),
        (tmp_channels, out_channels, (1, 1)),
        (out_channels, tmp_channels, (3, 3)),
        (tmp_channels, out_channels, (1, 1)),
    ]
    keys = jax.random.split(key, len(layer_cfg))
    return [init_cbl_params(k, ci, co, ks)
            for k, (ci, co, ks) in zip(keys, layer_cfg)]


# --------------------------------- main --------------------------------------
if __name__ == "__main__":
    key = jax.random.PRNGKey(0)
    k_x, k_p = jax.random.split(key)

    B, Cin, H, W = 2, 4, 16, 16
    out_channels = 4

    x = jax.random.normal(k_x, (B, Cin, H, W), jnp.float32)
    params = init_cblx5_params(k_p, Cin, out_channels)

    fwd = jax.jit(cblx5_forward)
    y = jax.block_until_ready(fwd(x, params))

    assert y.shape == (B, out_channels, H, W), y.shape
    assert bool(jnp.all(jnp.isfinite(y)))
    print("KERNEL_OK")
</pallas_src>

<mosaic_0001>
module attributes {stable_mosaic.version = 11 : i64} {
  func.func @_conv_kernel(%arg0: i32, %arg1: i32, %arg2: memref<1x16x16x128xbf16, #tpu.memory_space<vmem>>, %arg3: memref<1x128x128xbf16, #tpu.memory_space<vmem>>, %arg4: memref<1x128xf32, #tpu.memory_space<vmem>>, %arg5: memref<1x128xf32, #tpu.memory_space<vmem>>, %arg6: memref<1x256x128xbf16, #tpu.memory_space<vmem>>, %arg7: memref<1x1x128xf32, #tpu.memory_space<vmem>>, %arg8: memref<1x1x128xf32, #tpu.memory_space<vmem>>) attributes {dimension_semantics = [#tpu.dimension_semantics<parallel>, #tpu.dimension_semantics<parallel>], iteration_bounds = array<i64: 2, 1>, scalar_prefetch = 0 : i64, scratch_operands = 0 : i64, tpu.core_type = #tpu.core_type<tc>, window_params = [{transform_indices = @transform_0, window_bounds = array<i64: 1, 16, 16, 128>}, {transform_indices = @transform_1, window_bounds = array<i64: 1, 128, 128>}, {pipeline_mode = #tpu.pipeline_mode<synchronous>, transform_indices = @transform_2, window_bounds = array<i64: 1, 128>}, {pipeline_mode = #tpu.pipeline_mode<synchronous>, transform_indices = @transform_3, window_bounds = array<i64: 1, 128>}, {transform_indices = @transform_4, window_bounds = array<i64: 1, 256, 128>}, {transform_indices = @transform_5, window_bounds = array<i64: 1, 1, 128>}, {transform_indices = @transform_6, window_bounds = array<i64: 1, 1, 128>}]} {
    %c0 = arith.constant 0 : index
    %c0_0 = arith.constant 0 : index
    %c0_1 = arith.constant 0 : index
    %c0_2 = arith.constant 0 : index
    %0 = vector.load %arg2[%c0, %c0_0, %c0_1, %c0_2] : memref<1x16x16x128xbf16, #tpu.memory_space<vmem>>, vector<1x16x16x128xbf16>
    %1 = vector.shape_cast %0 : vector<1x16x16x128xbf16> to vector<16x16x128xbf16>
    %2 = vector.shape_cast %1 : vector<16x16x128xbf16> to vector<256x128xbf16>
    %c0_3 = arith.constant 0 : index
    %c0_4 = arith.constant 0 : index
    %c0_5 = arith.constant 0 : index
    %3 = vector.load %arg3[%c0_3, %c0_4, %c0_5] : memref<1x128x128xbf16, #tpu.memory_space<vmem>>, vector<1x128x128xbf16>
    %4 = vector.shape_cast %3 : vector<1x128x128xbf16> to vector<128x128xbf16>
    %cst = arith.constant dense<0.000000e+00> : vector<256x128xf32>
    %5 = tpu.matmul %2, %4, %cst {dimension_numbers = #tpu.dot_dimension_numbers<[1], [0], [0], [1], [0, 0, 1, 1], [], []>} : vector<256x128xbf16>, vector<128x128xbf16>, vector<256x128xf32> -> vector<256x128xf32>
    %6 = arith.truncf %5 : vector<256x128xf32> to vector<256x128xbf16>
    %7 = vector.shape_cast %6 : vector<256x128xbf16> to vector<1x256x128xbf16>
    %c0_6 = arith.constant 0 : index
    %c0_7 = arith.constant 0 : index
    %c0_8 = arith.constant 0 : index
    %8 = vector.load %arg6[%c0_6, %c0_7, %c0_8] : memref<1x256x128xbf16, #tpu.memory_space<vmem>>, vector<1x256x128xbf16>
    tpu.vector_store %arg6[%c0_6, %c0_7, %c0_8], %7 {strides = array<i32>} : memref<1x256x128xbf16, #tpu.memory_space<vmem>>, vector<1x256x128xbf16>,
    %cst_9 = arith.constant dense<0.000000e+00> : vector<128xf32>
    %9 = vector.multi_reduction <add>, %5, %cst_9 [0] : vector<256x128xf32> to vector<128xf32>
    %10 = vector.shape_cast %9 : vector<128xf32> to vector<1x128xf32>
    %11 = vector.shape_cast %10 : vector<1x128xf32> to vector<1x1x128xf32>
    %c0_10 = arith.constant 0 : index
    %c0_11 = arith.constant 0 : index
    %c0_12 = arith.constant 0 : index
    %12 = vector.load %arg7[%c0_10, %c0_11, %c0_12] : memref<1x1x128xf32, #tpu.memory_space<vmem>>, vector<1x1x128xf32>
    tpu.vector_store %arg7[%c0_10, %c0_11, %c0_12], %11 {strides = array<i32>} : memref<1x1x128xf32, #tpu.memory_space<vmem>>, vector<1x1x128xf32>,
    %13 = arith.mulf %5, %5 : vector<256x128xf32>
    %cst_13 = arith.constant dense<0.000000e+00> : vector<128xf32>
    %14 = vector.multi_reduction <add>, %13, %cst_13 [0] : vector<256x128xf32> to vector<128xf32>
    %15 = vector.shape_cast %14 : vector<128xf32> to vector<1x128xf32>
    %16 = vector.shape_cast %15 : vector<1x128xf32> to vector<1x1x128xf32>
    %c0_14 = arith.constant 0 : index
    %c0_15 = arith.constant 0 : index
    %c0_16 = arith.constant 0 : index
    %17 = vector.load %arg8[%c0_14, %c0_15, %c0_16] : memref<1x1x128xf32, #tpu.memory_space<vmem>>, vector<1x1x128xf32>
    tpu.vector_store %arg8[%c0_14, %c0_15, %c0_16], %16 {strides = array<i32>} : memref<1x1x128xf32, #tpu.memory_space<vmem>>, vector<1x1x128xf32>,
    return
  }
  func.func @transform_0(%arg0: i32, %arg1: i32) -> (i32, i32, i32, i32) {
    %c0_i32 = arith.constant 0 : i32
    %c0_i32_0 = arith.constant 0 : i32
    %c0_i32_1 = arith.constant 0 : i32
    %c0_i32_2 = arith.constant 0 : i32
    return %arg0, %c0_i32, %c0_i32_0, %c0_i32_1 : i32, i32, i32, i32
  }
  func.func @transform_1(%arg0: i32, %arg1: i32) -> (i32, i32, i32) {
    %c0_i32 = arith.constant 0 : i32
    %c0_i32_0 = arith.constant 0 : i32
    %c0_i32_1 = arith.constant 0 : i32
    return %c0_i32, %c0_i32_0, %arg1 : i32, i32, i32
  }
  func.func @transform_2(%arg0: i32, %arg1: i32) -> (i32, i32) {
    %c0_i32 = arith.constant 0 : i32
    %c0_i32_0 = arith.constant 0 : i32
    %c0_i32_1 = arith.constant 0 : i32
    return %c0_i32, %c0_i32_0 : i32, i32
  }
  func.func @transform_3(%arg0: i32, %arg1: i32) -> (i32, i32) {
    %c0_i32 = arith.constant 0 : i32
    %c0_i32_0 = arith.constant 0 : i32
    %c0_i32_1 = arith.constant 0 : i32
    return %c0_i32, %c0_i32_0 : i32, i32
  }
  func.func @transform_4(%arg0: i32, %arg1: i32) -> (i32, i32, i32) {
    %c0_i32 = arith.constant 0 : i32
    %c0_i32_0 = arith.constant 0 : i32
    return %arg0, %c0_i32, %arg1 : i32, i32, i32
  }
  func.func @transform_5(%arg0: i32, %arg1: i32) -> (i32, i32, i32) {
    %c0_i32 = arith.constant 0 : i32
    %c0_i32_0 = arith.constant 0 : i32
    return %arg0, %c0_i32, %arg1 : i32, i32, i32
  }
  func.func @transform_6(%arg0: i32, %arg1: i32) -> (i32, i32, i32) {
    %c0_i32 = arith.constant 0 : i32
    %c0_i32_0 = arith.constant 0 : i32
    return %arg0, %c0_i32, %arg1 : i32, i32, i32
  }
}

module attributes {stable_mosaic.version = 11 : i64} {
  func.func @_conv_kernel(%arg0: i32, %arg1: i32, %arg2: memref<1x18x18x128xbf16, #tpu.memory_space<vmem>>, %arg3: memref<9x128x128xbf16, #tpu.memory_space<vmem>>, %arg4: memref<1x128xf32, #tpu.memory_space<vmem>>, %arg5: memref<1x128xf32, #tpu.memory_space<vmem>>, %arg6: memref<1x256x128xbf16, #tpu.memory_space<vmem>>, %arg7: memref<1x1x128xf32, #tpu.memory_space<vmem>>, %arg8: memref<1x1x128xf32, #tpu.memory_space<vmem>>) attributes {dimension_semantics = [#tpu.dimension_semantics<parallel>, #tpu.dimension_semantics<parallel>], iteration_bounds = array<i64: 2, 1>, scalar_prefetch = 0 : i64, scratch_operands = 0 : i64, tpu.core_type = #tpu.core_type<tc>, window_params = [{transform_indices = @transform_0, window_bounds = array<i64: 1, 18, 18, 128>}, {transform_indices = @transform_1, window_bounds = array<i64: 9, 128, 128>}, {pipeline_mode = #tpu.pipeline_mode<synchronous>, transform_indices = @transform_2, window_bounds = array<i64: 1, 128>}, {pipeline_mode = #tpu.pipeline_mode<synchronous>, transform_indices = @transform_3, window_bounds = array<i64: 1, 128>}, {transform_indices = @transform_4, window_bounds = array<i64: 1, 256, 128>}, {transform_indices = @transform_5, window_bounds = array<i64: 1, 1, 128>}, {transform_indices = @transform_6, window_bounds = array<i64: 1, 1, 128>}]} {
    %c0 = arith.constant 0 : index
    %c0_0 = arith.constant 0 : index
    %c0_1 = arith.constant 0 : index
    %c0_2 = arith.constant 0 : index
    %0 = vector.load %arg2[%c0, %c0_0, %c0_1, %c0_2] : memref<1x18x18x128xbf16, #tpu.memory_space<vmem>>, vector<1x18x18x128xbf16>
    %1 = vector.shape_cast %0 : vector<1x18x18x128xbf16> to vector<18x18x128xbf16>
    %c0_3 = arith.constant 0 : index
    %c0_4 = arith.constant 0 : index
    %2 = vector.load %arg4[%c0_3, %c0_4] : memref<1x128xf32, #tpu.memory_space<vmem>>, vector<1x128xf32>
    %3 = vector.shape_cast %2 : vector<1x128xf32> to vector<1x1x128xf32>
    %c0_5 = arith.constant 0 : index
    %c0_6 = arith.constant 0 : index
    %4 = vector.load %arg5[%c0_5, %c0_6] : memref<1x128xf32, #tpu.memory_space<vmem>>, vector<1x128xf32>
    %5 = vector.shape_cast %4 : vector<1x128xf32> to vector<1x1x128xf32>
    %6 = arith.extf %1 : vector<18x18x128xbf16> to vector<18x18x128xf32>
    %7 = vector.broadcast %3 : vector<1x1x128xf32> to vector<18x18x128xf32>
    %8 = arith.mulf %6, %7 : vector<18x18x128xf32>
    %9 = vector.broadcast %5 : vector<1x1x128xf32> to vector<18x18x128xf32>
    %10 = arith.addf %8, %9 : vector<18x18x128xf32>
    %cst = arith.constant 0.000000e+00 : f32
    %11 = vector.broadcast %cst : f32 to vector<18x18x128xf32>
    %12 = arith.cmpf ogt, %10, %11 : vector<18x18x128xf32>
    %cst_7 = arith.constant 1.000000e-01 : f32
    %13 = vector.broadcast %cst_7 : f32 to vector<18x18x128xf32>
    %14 = arith.mulf %13, %10 : vector<18x18x128xf32>
    %15 = arith.select %12, %10, %14 : vector<18x18x128xi1>, vector<18x18x128xf32>
    %16 = tpu.iota {dimensions = array<i32: 0>} : vector<18x18x1xi32>
    %17 = tpu.iota {dimensions = array<i32: 1>} : vector<18x18x1xi32>
    %c1_i32 = arith.constant 1 : i32
    %18 = vector.broadcast %c1_i32 : i32 to vector<18x18x1xi32>
    %19 = arith.cmpi sge, %16, %18 : vector<18x18x1xi32>
    %c17_i32 = arith.constant 17 : i32
    %20 = vector.broadcast %c17_i32 : i32 to vector<18x18x1xi32>
    %21 = arith.cmpi slt, %16, %20 : vector<18x18x1xi32>
    %22 = arith.andi %19, %21 : vector<18x18x1xi1>
    %c1_i32_8 = arith.constant 1 : i32
    %23 = vector.broadcast %c1_i32_8 : i32 to vector<18x18x1xi32>
    %24 = arith.cmpi sge, %17, %23 : vector<18x18x1xi32>
    %25 = arith.andi %22, %24 : vector<18x18x1xi1>
    %c17_i32_9 = arith.constant 17 : i32
    %26 = vector.broadcast %c17_i32_9 : i32 to vector<18x18x1xi32>
    %27 = arith.cmpi slt, %17, %26 : vector<18x18x1xi32>
    %28 = arith.andi %25, %27 : vector<18x18x1xi1>
    %cst_10 = arith.constant 0.000000e+00 : f32
    %29 = vector.shape_cast %28 : vector<18x18x1xi1> to vector<18x18x1xi1>
    %30 = vector.broadcast %29 : vector<18x18x1xi1> to vector<18x18x128xi1>
    %31 = vector.broadcast %cst_10 : f32 to vector<18x18x128xf32>
    %32 = arith.select %30, %15, %31 : vector<18x18x128xi1>, vector<18x18x128xf32>
    %33 = arith.truncf %32 : vector<18x18x128xf32> to vector<18x18x128xbf16>
    %34 = vector.extract_strided_slice %33 {offsets = [0, 0, 0], sizes = [16, 16, 128], strides = [1, 1, 1]} : vector<18x18x128xbf16> to vector<16x16x128xbf16>
    %35 = vector.shape_cast %34 : vector<16x16x128xbf16> to vector<256x128xbf16>
    %c0_11 = arith.constant 0 : index
    %c0_12 = arith.constant 0 : index
    %c0_13 = arith.constant 0 : index
    %36 = vector.load %arg3[%c0_11, %c0_12, %c0_13] : memref<9x128x128xbf16, #tpu.memory_space<vmem>>, vector<1x128x128xbf16>
    %37 = vector.shape_cast %36 : vector<1x128x128xbf16> to vector<128x128xbf16>
    %cst_14 = arith.constant dense<0.000000e+00> : vector<256x128xf32>
    %38 = tpu.matmul %35, %37, %cst_14 {dimension_numbers = #tpu.dot_dimension_numbers<[1], [0], [0], [1], [0, 0, 1, 1], [], []>} : vector<256x128xbf16>, vector<128x128xbf16>, vector<256x128xf32> -> vector<256x128xf32>
    %39 = vector.extract_strided_slice %33 {offsets = [0, 1, 0], sizes = [16, 16, 128], strides = [1, 1, 1]} : vector<18x18x128xbf16> to vector<16x16x128xbf16>
    %40 = vector.shape_cast %39 : vector<16x16x128xbf16> to vector<256x128xbf16>
    %c1 = arith.constant 1 : index
    %c0_15 = arith.constant 0 : index
    %c0_16 = arith.constant 0 : index
    %41 = vector.load %arg3[%c1, %c0_15, %c0_16] : memref<9x128x128xbf16, #tpu.memory_space<vmem>>, vector<1x128x128xbf16>
    %42 = vector.shape_cast %41 : vector<1x128x128xbf16> to vector<128x128xbf16>
    %cst_17 = arith.constant dense<0.000000e+00> : vector<256x128xf32>
    %43 = tpu.matmul %40, %42, %cst_17 {dimension_numbers = #tpu.dot_dimension_numbers<[1], [0], [0], [1], [0, 0, 1, 1], [], []>} : vector<256x128xbf16>, vector<128x128xbf16>, vector<256x128xf32> -> vector<256x128xf32>
    %44 = arith.addf %38, %43 : vector<256x128xf32>
    %45 = vector.extract_strided_slice %33 {offsets = [0, 2, 0], sizes = [16, 16, 128], strides = [1, 1, 1]} : vector<18x18x128xbf16> to vector<16x16x128xbf16>
    %46 = vector.shape_cast %45 : vector<16x16x128xbf16> to vector<256x128xbf16>
    %c2 = arith.constant 2 : index
    %c0_18 = arith.constant 0 : index
    %c0_19 = arith.constant 0 : index
    %47 = vector.load %arg3[%c2, %c0_18, %c0_19] : memref<9x128x128xbf16, #tpu.memory_space<vmem>>, vector<1x128x128xbf16>
    %48 = vector.shape_cast %47 : vector<1x128x128xbf16> to vector<128x128xbf16>
    %cst_20 = arith.constant dense<0.000000e+00> : vector<256x128xf32>
    %49 = tpu.matmul %46, %48, %cst_20 {dimension_numbers = #tpu.dot_dimension_numbers<[1], [0], [0], [1], [0, 0, 1, 1], [], []>} : vector<256x128xbf16>, vector<128x128xbf16>, vector<256x128xf32> -> vector<256x128xf32>
    %50 = arith.addf %44, %49 : vector<256x128xf32>
    %51 = vector.extract_strided_slice %33 {offsets = [1, 0, 0], sizes = [16, 16, 128], strides = [1, 1, 1]} : vector<18x18x128xbf16> to vector<16x16x128xbf16>
    %52 = vector.shape_cast %51 : vector<16x16x128xbf16> to vector<256x128xbf16>
    %c3 = arith.constant 3 : index
    %c0_21 = arith.constant 0 : index
    %c0_22 = arith.constant 0 : index
    %53 = vector.load %arg3[%c3, %c0_21, %c0_22] : memref<9x128x128xbf16, #tpu.memory_space<vmem>>, vector<1x128x128xbf16>
    %54 = vector.shape_cast %53 : vector<1x128x128xbf16> to vector<128x128xbf16>
    %cst_23 = arith.constant dense<0.000000e+00> : vector<256x128xf32>
    %55 = tpu.matmul %52, %54, %cst_23 {dimension_numbers = #tpu.dot_dimension_numbers<[1], [0], [0], [1], [0, 0, 1, 1], [], []>} : vector<256x128xbf16>, vector<128x128xbf16>, vector<256x128xf32> -> vector<256x128xf32>
    %56 = arith.addf %50, %55 : vector<256x128xf32>
    %57 = vector.extract_strided_slice %33 {offsets = [1, 1, 0], sizes = [16, 16, 128], strides = [1, 1, 1]} : vector<18x18x128xbf16> to vector<16x16x128xbf16>
    %58 = vector.shape_cast %57 : vector<16x16x128xbf16> to vector<256x128xbf16>
    %c4 = arith.constant 4 : index
    %c0_24 = arith.constant 0 : index
    %c0_25 = arith.constant 0 : index
    %59 = vector.load %arg3[%c4, %c0_24, %c0_25] : memref<9x128x128xbf16, #tpu.memory_space<vmem>>, vector<1x128x128xbf16>
    %60 = vector.shape_cast %59 : vector<1x128x128xbf16> to vector<128x128xbf16>
    %cst_26 = arith.constant dense<0.000000e+00> : vector<256x128xf32>
    %61 = tpu.matmul %58, %60, %cst_26 {dimension_numbers = #tpu.dot_dimension_numbers<[1], [0], [0], [1], [0, 0, 1, 1], [], []>} : vector<256x128xbf16>, vector<128x128xbf16>, vector<256x128xf32> -> vector<256x128xf32>
    %62 = arith.addf %56, %61 : vector<256x128xf32>
    %63 = vector.extract_strided_slice %33 {offsets = [1, 2, 0], sizes = [16, 16, 128], strides = [1, 1, 1]} : vector<18x18x128xbf16> to vector<16x16x128xbf16>
    %64 = vector.shape_cast %63 : vector<16x16x128xbf16> to vector<256x128xbf16>
    %c5 = arith.constant 5 : index
    %c0_27 = arith.constant 0 : index
    %c0_28 = arith.constant 0 : index
    %65 = vector.load %arg3[%c5, %c0_27, %c0_28] : memref<9x128x128xbf16, #tpu.memory_space<vmem>>, vector<1x128x128xbf16>
    %66 = vector.shape_cast %65 : vector<1x128x128xbf16> to vector<128x128xbf16>
    %cst_29 = arith.constant dense<0.000000e+00> : vector<256x128xf32>
    %67 = tpu.matmul %64, %66, %cst_29 {dimension_numbers = #tpu.dot_dimension_numbers<[1], [0], [0], [1], [0, 0, 1, 1], [], []>} : vector<256x128xbf16>, vector<128x128xbf16>, vector<256x128xf32> -> vector<256x128xf32>
    %68 = arith.addf %62, %67 : vector<256x128xf32>
    %69 = vector.extract_strided_slice %33 {offsets = [2, 0, 0], sizes = [16, 16, 128], strides = [1, 1, 1]} : vector<18x18x128xbf16> to vector<16x16x128xbf16>
    %70 = vector.shape_cast %69 : vector<16x16x128xbf16> to vector<256x128xbf16>
    %c6 = arith.constant 6 : index
    %c0_30 = arith.constant 0 : index
    %c0_31 = arith.constant 0 : index
    %71 = vector.load %arg3[%c6, %c0_30, %c0_31] : memref<9x128x128xbf16, #tpu.memory_space<vmem>>, vector<1x128x128xbf16>
    %72 = vector.shape_cast %71 : vector<1x128x128xbf16> to vector<128x128xbf16>
    %cst_32 = arith.constant dense<0.000000e+00> : vector<256x128xf32>
    %73 = tpu.matmul %70, %72, %cst_32 {dimension_numbers = #tpu.dot_dimension_numbers<[1], [0], [0], [1], [0, 0, 1, 1], [], []>} : vector<256x128xbf16>, vector<128x128xbf16>, vector<256x128xf32> -> vector<256x128xf32>
    %74 = arith.addf %68, %73 : vector<256x128xf32>
    %75 = vector.extract_strided_slice %33 {offsets = [2, 1, 0], sizes = [16, 16, 128], strides = [1, 1, 1]} : vector<18x18x128xbf16> to vector<16x16x128xbf16>
    %76 = vector.shape_cast %75 : vector<16x16x128xbf16> to vector<256x128xbf16>
    %c7 = arith.constant 7 : index
    %c0_33 = arith.constant 0 : index
    %c0_34 = arith.constant 0 : index
    %77 = vector.load %arg3[%c7, %c0_33, %c0_34] : memref<9x128x128xbf16, #tpu.memory_space<vmem>>, vector<1x128x128xbf16>
    %78 = vector.shape_cast %77 : vector<1x128x128xbf16> to vector<128x128xbf16>
    %cst_35 = arith.constant dense<0.000000e+00> : vector<256x128xf32>
    %79 = tpu.matmul %76, %78, %cst_35 {dimension_numbers = #tpu.dot_dimension_numbers<[1], [0], [0], [1], [0, 0, 1, 1], [], []>} : vector<256x128xbf16>, vector<128x128xbf16>, vector<256x128xf32> -> vector<256x128xf32>
    %80 = arith.addf %74, %79 : vector<256x128xf32>
    %81 = vector.extract_strided_slice %33 {offsets = [2, 2, 0], sizes = [16, 16, 128], strides = [1, 1, 1]} : vector<18x18x128xbf16> to vector<16x16x128xbf16>
    %82 = vector.shape_cast %81 : vector<16x16x128xbf16> to vector<256x128xbf16>
    %c8 = arith.constant 8 : index
    %c0_36 = arith.constant 0 : index
    %c0_37 = arith.constant 0 : index
    %83 = vector.load %arg3[%c8, %c0_36, %c0_37] : memref<9x128x128xbf16, #tpu.memory_space<vmem>>, vector<1x128x128xbf16>
    %84 = vector.shape_cast %83 : vector<1x128x128xbf16> to vector<128x128xbf16>
    %cst_38 = arith.constant dense<0.000000e+00> : vector<256x128xf32>
    %85 = tpu.matmul %82, %84, %cst_38 {dimension_numbers = #tpu.dot_dimension_numbers<[1], [0], [0], [1], [0, 0, 1, 1], [], []>} : vector<256x128xbf16>, vector<128x128xbf16>, vector<256x128xf32> -> vector<256x128xf32>
    %86 = arith.addf %80, %85 : vector<256x128xf32>
    %87 = arith.truncf %86 : vector<256x128xf32> to vector<256x128xbf16>
    %88 = vector.shape_cast %87 : vector<256x128xbf16> to vector<1x256x128xbf16>
    %c0_39 = arith.constant 0 : index
    %c0_40 = arith.constant 0 : index
    %c0_41 = arith.constant 0 : index
    %89 = vector.load %arg6[%c0_39, %c0_40, %c0_41] : memref<1x256x128xbf16, #tpu.memory_space<vmem>>, vector<1x256x128xbf16>
    tpu.vector_store %arg6[%c0_39, %c0_40, %c0_41], %88 {strides = array<i32>} : memref<1x256x128xbf16, #tpu.memory_space<vmem>>, vector<1x256x128xbf16>,
    %cst_42 = arith.constant dense<0.000000e+00> : vector<128xf32>
    %90 = vector.multi_reduction <add>, %86, %cst_42 [0] : vector<256x128xf32> to vector<128xf32>
    %91 = vector.shape_cast %90 : vector<128xf32> to vector<1x128xf32>
    %92 = vector.shape_cast %91 : vector<1x128xf32> to vector<1x1x128xf32>
    %c0_43 = arith.constant 0 : index
    %c0_44 = arith.constant 0 : index
    %c0_45 = arith.constant 0 : index
    %93 = vector.load %arg7[%c0_43, %c0_44, %c0_45] : memref<1x1x128xf32, #tpu.memory_space<vmem>>, vector<1x1x128xf32>
    tpu.vector_store %arg7[%c0_43, %c0_44, %c0_45], %92 {strides = array<i32>} : memref<1x1x128xf32, #tpu.memory_space<vmem>>, vector<1x1x128xf32>,
    %94 = arith.mulf %86, %86 : vector<256x128xf32>
    %cst_46 = arith.constant dense<0.000000e+00> : vector<128xf32>
    %95 = vector.multi_reduction <add>, %94, %cst_46 [0] : vector<256x128xf32> to vector<128xf32>
    %96 = vector.shape_cast %95 : vector<128xf32> to vector<1x128xf32>
    %97 = vector.shape_cast %96 : vector<1x128xf32> to vector<1x1x128xf32>
    %c0_47 = arith.constant 0 : index
    %c0_48 = arith.constant 0 : index
    %c0_49 = arith.constant 0 : index
    %98 = vector.load %arg8[%c0_47, %c0_48, %c0_49] : memref<1x1x128xf32, #tpu.memory_space<vmem>>, vector<1x1x128xf32>
    tpu.vector_store %arg8[%c0_47, %c0_48, %c0_49], %97 {strides = array<i32>} : memref<1x1x128xf32, #tpu.memory_space<vmem>>, vector<1x1x128xf32>,
    return
  }
  func.func @transform_0(%arg0: i32, %arg1: i32) -> (i32, i32, i32, i32) {
    %c0_i32 = arith.constant 0 : i32
    %c0_i32_0 = arith.constant 0 : i32
    %c0_i32_1 = arith.constant 0 : i32
    %c0_i32_2 = arith.constant 0 : i32
    return %arg0, %c0_i32, %c0_i32_0, %c0_i32_1 : i32, i32, i32, i32
  }
  func.func @transform_1(%arg0: i32, %arg1: i32) -> (i32, i32, i32) {
    %c0_i32 = arith.constant 0 : i32
    %c0_i32_0 = arith.constant 0 : i32
    %c0_i32_1 = arith.constant 0 : i32
    return %c0_i32, %c0_i32_0, %arg1 : i32, i32, i32
  }
  func.func @transform_2(%arg0: i32, %arg1: i32) -> (i32, i32) {
    %c0_i32 = arith.constant 0 : i32
    %c0_i32_0 = arith.constant 0 : i32
    %c0_i32_1 = arith.constant 0 : i32
    return %c0_i32, %c0_i32_0 : i32, i32
  }
  func.func @transform_3(%arg0: i32, %arg1: i32) -> (i32, i32) {
    %c0_i32 = arith.constant 0 : i32
    %c0_i32_0 = arith.constant 0 : i32
    %c0_i32_1 = arith.constant 0 : i32
    return %c0_i32, %c0_i32_0 : i32, i32
  }
  func.func @transform_4(%arg0: i32, %arg1: i32) -> (i32, i32, i32) {
    %c0_i32 = arith.constant 0 : i32
    %c0_i32_0 = arith.constant 0 : i32
    return %arg0, %c0_i32, %arg1 : i32, i32, i32
  }
  func.func @transform_5(%arg0: i32, %arg1: i32) -> (i32, i32, i32) {
    %c0_i32 = arith.constant 0 : i32
    %c0_i32_0 = arith.constant 0 : i32
    return %arg0, %c0_i32, %arg1 : i32, i32, i32
  }
  func.func @transform_6(%arg0: i32, %arg1: i32) -> (i32, i32, i32) {
    %c0_i32 = arith.constant 0 : i32
    %c0_i32_0 = arith.constant 0 : i32
    return %arg0, %c0_i32, %arg1 : i32, i32, i32
  }
}

module attributes {stable_mosaic.version = 11 : i64} {
  func.func @_conv_kernel(%arg0: i32, %arg1: i32, %arg2: memref<1x16x16x128xbf16, #tpu.memory_space<vmem>>, %arg3: memref<1x128x128xbf16, #tpu.memory_space<vmem>>, %arg4: memref<1x128xf32, #tpu.memory_space<vmem>>, %arg5: memref<1x128xf32, #tpu.memory_space<vmem>>, %arg6: memref<1x256x128xbf16, #tpu.memory_space<vmem>>, %arg7: memref<1x1x128xf32, #tpu.memory_space<vmem>>, %arg8: memref<1x1x128xf32, #tpu.memory_space<vmem>>) attributes {dimension_semantics = [#tpu.dimension_semantics<parallel>, #tpu.dimension_semantics<parallel>], iteration_bounds = array<i64: 2, 1>, scalar_prefetch = 0 : i64, scratch_operands = 0 : i64, tpu.core_type = #tpu.core_type<tc>, window_params = [{transform_indices = @transform_0, window_bounds = array<i64: 1, 16, 16, 128>}, {transform_indices = @transform_1, window_bounds = array<i64: 1, 128, 128>}, {pipeline_mode = #tpu.pipeline_mode<synchronous>, transform_indices = @transform_2, window_bounds = array<i64: 1, 128>}, {pipeline_mode = #tpu.pipeline_mode<synchronous>, transform_indices = @transform_3, window_bounds = array<i64: 1, 128>}, {transform_indices = @transform_4, window_bounds = array<i64: 1, 256, 128>}, {transform_indices = @transform_5, window_bounds = array<i64: 1, 1, 128>}, {transform_indices = @transform_6, window_bounds = array<i64: 1, 1, 128>}]} {
    %c0 = arith.constant 0 : index
    %c0_0 = arith.constant 0 : index
    %c0_1 = arith.constant 0 : index
    %c0_2 = arith.constant 0 : index
    %0 = vector.load %arg2[%c0, %c0_0, %c0_1, %c0_2] : memref<1x16x16x128xbf16, #tpu.memory_space<vmem>>, vector<1x16x16x128xbf16>
    %1 = vector.shape_cast %0 : vector<1x16x16x128xbf16> to vector<16x16x128xbf16>
    %c0_3 = arith.constant 0 : index
    %c0_4 = arith.constant 0 : index
    %2 = vector.load %arg4[%c0_3, %c0_4] : memref<1x128xf32, #tpu.memory_space<vmem>>, vector<1x128xf32>
    %3 = vector.shape_cast %2 : vector<1x128xf32> to vector<1x1x128xf32>
    %c0_5 = arith.constant 0 : index
    %c0_6 = arith.constant 0 : index
    %4 = vector.load %arg5[%c0_5, %c0_6] : memref<1x128xf32, #tpu.memory_space<vmem>>, vector<1x128xf32>
    %5 = vector.shape_cast %4 : vector<1x128xf32> to vector<1x1x128xf32>
    %6 = arith.extf %1 : vector<16x16x128xbf16> to vector<16x16x128xf32>
    %7 = vector.broadcast %3 : vector<1x1x128xf32> to vector<16x16x128xf32>
    %8 = arith.mulf %6, %7 : vector<16x16x128xf32>
    %9 = vector.broadcast %5 : vector<1x1x128xf32> to vector<16x16x128xf32>
    %10 = arith.addf %8, %9 : vector<16x16x128xf32>
    %cst = arith.constant 0.000000e+00 : f32
    %11 = vector.broadcast %cst : f32 to vector<16x16x128xf32>
    %12 = arith.cmpf ogt, %10, %11 : vector<16x16x128xf32>
    %cst_7 = arith.constant 1.000000e-01 : f32
    %13 = vector.broadcast %cst_7 : f32 to vector<16x16x128xf32>
    %14 = arith.mulf %13, %10 : vector<16x16x128xf32>
    %15 = arith.select %12, %10, %14 : vector<16x16x128xi1>, vector<16x16x128xf32>
    %16 = arith.truncf %15 : vector<16x16x128xf32> to vector<16x16x128xbf16>
    %17 = vector.shape_cast %16 : vector<16x16x128xbf16> to vector<256x128xbf16>
    %c0_8 = arith.constant 0 : index
    %c0_9 = arith.constant 0 : index
    %c0_10 = arith.constant 0 : index
    %18 = vector.load %arg3[%c0_8, %c0_9, %c0_10] : memref<1x128x128xbf16, #tpu.memory_space<vmem>>, vector<1x128x128xbf16>
    %19 = vector.shape_cast %18 : vector<1x128x128xbf16> to vector<128x128xbf16>
    %cst_11 = arith.constant dense<0.000000e+00> : vector<256x128xf32>
    %20 = tpu.matmul %17, %19, %cst_11 {dimension_numbers = #tpu.dot_dimension_numbers<[1], [0], [0], [1], [0, 0, 1, 1], [], []>} : vector<256x128xbf16>, vector<128x128xbf16>, vector<256x128xf32> -> vector<256x128xf32>
    %21 = arith.truncf %20 : vector<256x128xf32> to vector<256x128xbf16>
    %22 = vector.shape_cast %21 : vector<256x128xbf16> to vector<1x256x128xbf16>
    %c0_12 = arith.constant 0 : index
    %c0_13 = arith.constant 0 : index
    %c0_14 = arith.constant 0 : index
    %23 = vector.load %arg6[%c0_12, %c0_13, %c0_14] : memref<1x256x128xbf16, #tpu.memory_space<vmem>>, vector<1x256x128xbf16>
    tpu.vector_store %arg6[%c0_12, %c0_13, %c0_14], %22 {strides = array<i32>} : memref<1x256x128xbf16, #tpu.memory_space<vmem>>, vector<1x256x128xbf16>,
    %cst_15 = arith.constant dense<0.000000e+00> : vector<128xf32>
    %24 = vector.multi_reduction <add>, %20, %cst_15 [0] : vector<256x128xf32> to vector<128xf32>
    %25 = vector.shape_cast %24 : vector<128xf32> to vector<1x128xf32>
    %26 = vector.shape_cast %25 : vector<1x128xf32> to vector<1x1x128xf32>
    %c0_16 = arith.constant 0 : index
    %c0_17 = arith.constant 0 : index
    %c0_18 = arith.constant 0 : index
    %27 = vector.load %arg7[%c0_16, %c0_17, %c0_18] : memref<1x1x128xf32, #tpu.memory_space<vmem>>, vector<1x1x128xf32>
    tpu.vector_store %arg7[%c0_16, %c0_17, %c0_18], %26 {strides = array<i32>} : memref<1x1x128xf32, #tpu.memory_space<vmem>>, vector<1x1x128xf32>,
    %28 = arith.mulf %20, %20 : vector<256x128xf32>
    %cst_19 = arith.constant dense<0.000000e+00> : vector<128xf32>
    %29 = vector.multi_reduction <add>, %28, %cst_19 [0] : vector<256x128xf32> to vector<128xf32>
    %30 = vector.shape_cast %29 : vector<128xf32> to vector<1x128xf32>
    %31 = vector.shape_cast %30 : vector<1x128xf32> to vector<1x1x128xf32>
    %c0_20 = arith.constant 0 : index
    %c0_21 = arith.constant 0 : index
    %c0_22 = arith.constant 0 : index
    %32 = vector.load %arg8[%c0_20, %c0_21, %c0_22] : memref<1x1x128xf32, #tpu.memory_space<vmem>>, vector<1x1x128xf32>
    tpu.vector_store %arg8[%c0_20, %c0_21, %c0_22], %31 {strides = array<i32>} : memref<1x1x128xf32, #tpu.memory_space<vmem>>, vector<1x1x128xf32>,
    return
  }
  func.func @transform_0(%arg0: i32, %arg1: i32) -> (i32, i32, i32, i32) {
    %c0_i32 = arith.constant 0 : i32
    %c0_i32_0 = arith.constant 0 : i32
    %c0_i32_1 = arith.constant 0 : i32
    %c0_i32_2 = arith.constant 0 : i32
    return %arg0, %c0_i32, %c0_i32_0, %c0_i32_1 : i32, i32, i32, i32
  }
  func.func @transform_1(%arg0: i32, %arg1: i32) -> (i32, i32, i32) {
    %c0_i32 = arith.constant 0 : i32
    %c0_i32_0 = arith.constant 0 : i32
    %c0_i32_1 = arith.constant 0 : i32
    return %c0_i32, %c0_i32_0, %arg1 : i32, i32, i32
  }
  func.func @transform_2(%arg0: i32, %arg1: i32) -> (i32, i32) {
    %c0_i32 = arith.constant 0 : i32
    %c0_i32_0 = arith.constant 0 : i32
    %c0_i32_1 = arith.constant 0 : i32
    return %c0_i32, %c0_i32_0 : i32, i32
  }
  func.func @transform_3(%arg0: i32, %arg1: i32) -> (i32, i32) {
    %c0_i32 = arith.constant 0 : i32
    %c0_i32_0 = arith.constant 0 : i32
    %c0_i32_1 = arith.constant 0 : i32
    return %c0_i32, %c0_i32_0 : i32, i32
  }
  func.func @transform_4(%arg0: i32, %arg1: i32) -> (i32, i32, i32) {
    %c0_i32 = arith.constant 0 : i32
    %c0_i32_0 = arith.constant 0 : i32
    return %arg0, %c0_i32, %arg1 : i32, i32, i32
  }
  func.func @transform_5(%arg0: i32, %arg1: i32) -> (i32, i32, i32) {
    %c0_i32 = arith.constant 0 : i32
    %c0_i32_0 = arith.constant 0 : i32
    return %arg0, %c0_i32, %arg1 : i32, i32, i32
  }
  func.func @transform_6(%arg0: i32, %arg1: i32) -> (i32, i32, i32) {
    %c0_i32 = arith.constant 0 : i32
    %c0_i32_0 = arith.constant 0 : i32
    return %arg0, %c0_i32, %arg1 : i32, i32, i32
  }
}

module attributes {stable_mosaic.version = 11 : i64} {
  func.func @_bn_lrelu_kernel(%arg0: i32, %arg1: i32, %arg2: memref<1x256x128xbf16, #tpu.memory_space<vmem>>, %arg3: memref<1x128xf32, #tpu.memory_space<vmem>>, %arg4: memref<1x128xf32, #tpu.memory_space<vmem>>, %arg5: memref<1x256x128xbf16, #tpu.memory_space<vmem>>) attributes {dimension_semantics = [#tpu.dimension_semantics<parallel>, #tpu.dimension_semantics<parallel>], iteration_bounds = array<i64: 2, 1>, scalar_prefetch = 0 : i64, scratch_operands = 0 : i64, tpu.core_type = #tpu.core_type<tc>, window_params = [{transform_indices = @transform_0, window_bounds = array<i64: 1, 256, 128>}, {transform_indices = @transform_1, window_bounds = array<i64: 1, 128>}, {transform_indices = @transform_2, window_bounds = array<i64: 1, 128>}, {transform_indices = @transform_3, window_bounds = array<i64: 1, 256, 128>}]} {
    %c0 = arith.constant 0 : index
    %c0_0 = arith.constant 0 : index
    %c0_1 = arith.constant 0 : index
    %0 = vector.load %arg2[%c0, %c0_0, %c0_1] : memref<1x256x128xbf16, #tpu.memory_space<vmem>>, vector<1x256x128xbf16>
    %1 = arith.extf %0 : vector<1x256x128xbf16> to vector<1x256x128xf32>
    %c0_2 = arith.constant 0 : index
    %c0_3 = arith.constant 0 : index
    %2 = vector.load %arg3[%c0_2, %c0_3] : memref<1x128xf32, #tpu.memory_space<vmem>>, vector<1x128xf32>
    %3 = vector.shape_cast %2 : vector<1x128xf32> to vector<1x1x128xf32>
    %4 = vector.broadcast %3 : vector<1x1x128xf32> to vector<1x256x128xf32>
    %5 = arith.mulf %1, %4 : vector<1x256x128xf32>
    %c0_4 = arith.constant 0 : index
    %c0_5 = arith.constant 0 : index
    %6 = vector.load %arg4[%c0_4, %c0_5] : memref<1x128xf32, #tpu.memory_space<vmem>>, vector<1x128xf32>
    %7 = vector.shape_cast %6 : vector<1x128xf32> to vector<1x1x128xf32>
    %8 = vector.broadcast %7 : vector<1x1x128xf32> to vector<1x256x128xf32>
    %9 = arith.addf %5, %8 : vector<1x256x128xf32>
    %cst = arith.constant 0.000000e+00 : f32
    %10 = vector.broadcast %cst : f32 to vector<1x256x128xf32>
    %11 = arith.cmpf ogt, %9, %10 : vector<1x256x128xf32>
    %cst_6 = arith.constant 1.000000e-01 : f32
    %12 = vector.broadcast %cst_6 : f32 to vector<1x256x128xf32>
    %13 = arith.mulf %12, %9 : vector<1x256x128xf32>
    %14 = arith.select %11, %9, %13 : vector<1x256x128xi1>, vector<1x256x128xf32>
    %15 = arith.truncf %14 : vector<1x256x128xf32> to vector<1x256x128xbf16>
    %c0_7 = arith.constant 0 : index
    %c0_8 = arith.constant 0 : index
    %c0_9 = arith.constant 0 : index
    %16 = vector.load %arg5[%c0_7, %c0_8, %c0_9] : memref<1x256x128xbf16, #tpu.memory_space<vmem>>, vector<1x256x128xbf16>
    tpu.vector_store %arg5[%c0_7, %c0_8, %c0_9], %15 {strides = array<i32>} : memref<1x256x128xbf16, #tpu.memory_space<vmem>>, vector<1x256x128xbf16>,
    return
  }
  func.func @transform_0(%arg0: i32, %arg1: i32) -> (i32, i32, i32) {
    %c0_i32 = arith.constant 0 : i32
    %c0_i32_0 = arith.constant 0 : i32
    return %arg0, %c0_i32, %arg1 : i32, i32, i32
  }
  func.func @transform_1(%arg0: i32, %arg1: i32) -> (i32, i32) {
    %c0_i32 = arith.constant 0 : i32
    %c0_i32_0 = arith.constant 0 : i32
    return %c0_i32, %arg1 : i32, i32
  }
  func.func @transform_2(%arg0: i32, %arg1: i32) -> (i32, i32) {
    %c0_i32 = arith.constant 0 : i32
    %c0_i32_0 = arith.constant 0 : i32
    return %c0_i32, %arg1 : i32, i32
  }
  func.func @transform_3(%arg0: i32, %arg1: i32) -> (i32, i32, i32) {
    %c0_i32 = arith.constant 0 : i32
    %c0_i32_0 = arith.constant 0 : i32
    return %arg0, %c0_i32, %arg1 : i32, i32, i32
  }
}

</mosaic_0001>

<llo_original>
// kernel: cblx5_forward.6
$region0: #{cblx5_forward.6}
  #allocation0 [shape = 'u32[]', space=smem, size = 0x4, offset = 0x4, fixed_abs, tag = 'smem constant byte address 0x4 - core index']
  #allocation1 [shape = 'u32[144,128]{1,0:T(1,128)}', space=vmem, size = 0x12000, scoped, tag = 'internal scratch']
  %s0 = inlined_call_operand.hbm [shape: bf16[2,16,16,128], index: 0, kind: input, shape index: {}]
  %s1 = inlined_call_operand.hbm [shape: bf16[1,128,128], index: 1, kind: input, shape index: {}]
  %s2 = inlined_call_operand.hbm [shape: f32[1,128], index: 2, kind: input, shape index: {}]
  %s3 = inlined_call_operand.hbm [shape: f32[1,128], index: 3, kind: input, shape index: {}]
  %s4 = inlined_call_operand.hbm [shape: bf16[2,256,128], index: 4, kind: output, shape index: {0}]
  %s5 = inlined_call_operand.hbm [shape: f32[2,1,128], index: 5, kind: output, shape index: {1}]
  %s6 = inlined_call_operand.hbm [shape: f32[2,1,128], index: 6, kind: output, shape index: {2}]
  %7 = xla_tuple %s4, %s5, %s6
  %s8 = sld [smem:[#allocation0]]
  $region81: #{cblx5_forward.6} parent=0
    _
  %s10 = ssub.s32 1, %s8
  %s11 = scalar_select 0, %s10, %s8
  $region1: #{cblx5_forward.6} parent=0
    #allocation2 [shape = 'u8[131072]{0}', space=vmem, size = 0x20000, scoped, tag = 'input window, operand 0']
    #allocation3 [shape = 's32[2]{0}', space=sflag, size = 0x8, scoped, tag = 'scoped memory for cblx5_forward.6']
    #allocation4 [shape = 's32[2]{0}', space=sflag, size = 0x8, scoped, tag = 'scoped memory for cblx5_forward.6']
    #allocation5 [shape = 'u8[32768]{0}', space=vmem, size = 0x8000, scoped, tag = 'input window, operand 1, single buffered']
    #allocation6 [shape = 's32[1]{0}', space=sflag, size = 0x4, scoped, tag = 'scoped memory for cblx5_forward.6']
    #allocation7 [shape = 'u8[512]{0}', space=vmem, size = 0x400, scoped, tag = 'input window, operand 2, single buffered']
    #allocation8 [shape = 'u8[512]{0}', space=vmem, size = 0x400, scoped, tag = 'input window, operand 3, single buffered']
    #allocation9 [shape = 's32[1]{0}', space=sflag, size = 0x4, scoped, tag = 'scoped memory for cblx5_forward.6']
    #allocation10 [shape = 'u8[131072]{0}', space=vmem, size = 0x20000, scoped, tag = 'output window, operand 0']
    #allocation11 [shape = 'u8[1024]{0}', space=vmem, size = 0x400, scoped, tag = 'output window, operand 1']
    #allocation12 [shape = 's32[2]{0}', space=sflag, size = 0x8, scoped, tag = 'scoped memory for cblx5_forward.6']
    #allocation13 [shape = 'u8[1024]{0}', space=vmem, size = 0x400, scoped, tag = 'output window, operand 2']
    %12 = vsyncpa [#allocation3], 0
    %s13 = scalar_lea.sflag [#allocation3], 1
    %14 = vsyncpa %s13, 0
    %15 = vsyncpa [#allocation6], 0
    %16 = vsyncpa [#allocation9], 0
    %17 = vsyncpa [#allocation4], 0
    %s18 = scalar_lea.sflag [#allocation4], 1
    %19 = vsyncpa %s18, 0
    %20 = vsyncpa [#allocation12], 0
    %s21 = scalar_lea.sflag [#allocation12], 1
    %22 = vsyncpa %s21, 0
    loop: start=0, step=1, limit=4
    $region2: #{cblx5_forward.6} parent=1 // loop_pre_header
      _
    $region3: #{cblx5_forward.6} parent=1 // loop_header
      %s24 = sphi 0, %s28
      %p25 = scmp.ge.s32.totalorder %s24, 4
      %s31 = sphi 0, %s43
      %s32 = sphi 0, %s39
      %s33 = sphi 0, %s31
      %s34 = sphi 0, %s32
      %s35 = sphi 0, %s33
      %s36 = sphi 0, %s34
      %s46 = sphi 0, %s48
      %s49 = sphi 0, %s46
      %s50 = sphi 0, %s49
      %s66 = sphi 0, %s50
      %s72 = sphi 0, %s74
      %s75 = sphi 0, %s72
      %s76 = sphi 0, %s75
      %s92 = sphi 0, %s76
      %s96 = sphi 0, %s96
      %s98 = sphi 0, %s96
      %s99 = sphi 0, %s98
      %s113 = sphi 0, %s99
      %s117 = sphi 0, %s117
      %s119 = sphi 0, %s117
      %s120 = sphi 0, %s119
      %s134 = sphi 0, %s120
      %s142 = sphi 0, %s144
      %s145 = sphi 0, %s142
      %s146 = sphi 0, %s145
      %s162 = sphi 0, %s146
      %s170 = sphi 0, %s172
      %s173 = sphi 0, %s170
      %s174 = sphi 0, %s173
      %s190 = sphi 0, %s174
      %s198 = sphi 0, %s200
      %s201 = sphi 0, %s198
      %s202 = sphi 0, %s201
      %s218 = sphi 0, %s202
    $region4: #{cblx5_forward.6} parent=1 // loop_header_branch
      %27 = sbr.rel (%p25) target = $region8
    $region5: #{cblx5_forward.6} parent=1 // loop_body
      %s29 = ssub.s32 %s24, 1
      %s30 = ssub.s32 %s24, 2
      %s37 = sadd.s32 1, %s32
      %p38 = scmp.ge.s32.totalorder %s37, 1
      %s39 = scalar_select %p38, 0, %s37
      %s40 = sadd.s32 1, %s31
      %s41 = scalar_select %p38, %s40, %s31
      %p42 = scmp.ge.s32.totalorder %s41, 2
      %s43 = scalar_select %p42, 0, %s41
      %s44 = ssub.s32 %s31, %s43
      %p45 = scmp.eq.s32.totalorder %s44, 0
      %s47 = sadd.s32 %s46, 1
      %s48 = scalar_select %p45, %s46, %s47
      %p51 = pneg %p45
      %p52 = scmp.eq.s32.totalorder %s24, 1
      %p53 = por %p51, %p52
      %p54 = scmp.ne.s32.totalorder %s46, %s49
      %p55 = scmp.eq.s32.totalorder %s24, 0
      %p56 = por %p54, %p55
      %p57 = scmp.ne.s32.totalorder %s46, %s49
      %p58 = scmp.eq.s32.totalorder %s29, 1
      %p59 = por %p57, %p58
      %p60 = scmp.ne.s32.totalorder %s49, %s50
      %p61 = scmp.eq.s32.totalorder %s29, 0
      %p62 = por %p60, %p61
      %p63 = scmp.ne.s32.totalorder %s49, %s50
      %p64 = scmp.eq.s32.totalorder %s30, 1
      %p65 = por %p63, %p64
      %p67 = scmp.ne.s32.totalorder %s50, %s66
      %p68 = scmp.eq.s32.totalorder %s30, 0
      %p69 = por %p67, %p68
      %s70 = ssub.s32 %s32, %s39
      %p71 = scmp.eq.s32.totalorder %s70, 0
      %s73 = sadd.s32 %s72, 1
      %s74 = scalar_select %p71, %s72, %s73
      %p77 = pneg %p71
      %p78 = scmp.eq.s32.totalorder %s24, 1
      %p79 = por %p77, %p78
      %p80 = scmp.ne.s32.totalorder %s72, %s75
      %p81 = scmp.eq.s32.totalorder %s24, 0
      %p82 = por %p80, %p81
      %p83 = scmp.ne.s32.totalorder %s72, %s75
      %p84 = scmp.eq.s32.totalorder %s29, 1
      %p85 = por %p83, %p84
      %p86 = scmp.ne.s32.totalorder %s75, %s76
      %p87 = scmp.eq.s32.totalorder %s29, 0
      %p88 = por %p86, %p87
      %p89 = scmp.ne.s32.totalorder %s75, %s76
      %p90 = scmp.eq.s32.totalorder %s30, 1
      %p91 = por %p89, %p90
      %p93 = scmp.ne.s32.totalorder %s76, %s92
      %p94 = scmp.eq.s32.totalorder %s30, 0
      %p95 = por %p93, %p94
      %s97 = sadd.s32 %s96, 1
      %p100 = scmp.eq.s32.totalorder %s24, 1
      %p101 = scmp.ne.s32.totalorder %s96, %s98
      %p102 = scmp.eq.s32.totalorder %s24, 0
      %p103 = por %p101, %p102
      %p104 = scmp.ne.s32.totalorder %s96, %s98
      %p105 = scmp.eq.s32.totalorder %s29, 1
      %p106 = por %p104, %p105
      %p107 = scmp.ne.s32.totalorder %s98, %s99
      %p108 = scmp.eq.s32.totalorder %s29, 0
      %p109 = por %p107, %p108
      %p110 = scmp.ne.s32.totalorder %s98, %s99
      %p111 = scmp.eq.s32.totalorder %s30, 1
      %p112 = por %p110, %p111
      %p114 = scmp.ne.s32.totalorder %s99, %s113
      %p115 = scmp.eq.s32.totalorder %s30, 0
      %p116 = por %p114, %p115
      %s118 = sadd.s32 %s117, 1
      %p121 = scmp.eq.s32.totalorder %s24, 1
      %p122 = scmp.ne.s32.totalorder %s117, %s119
      %p123 = scmp.eq.s32.totalorder %s24, 0
      %p124 = por %p122, %p123
      %p125 = scmp.ne.s32.totalorder %s117, %s119
      %p126 = scmp.eq.s32.totalorder %s29, 1
      %p127 = por %p125, %p126
      %p128 = scmp.ne.s32.totalorder %s119, %s120
      %p129 = scmp.eq.s32.totalorder %s29, 0
      %p130 = por %p128, %p129
      %p131 = scmp.ne.s32.totalorder %s119, %s120
      %p132 = scmp.eq.s32.totalorder %s30, 1
      %p133 = por %p131, %p132
      %p135 = scmp.ne.s32.totalorder %s120, %s134
      %p136 = scmp.eq.s32.totalorder %s30, 0
      %p137 = por %p135, %p136
      %s138 = ssub.s32 %s31, %s43
      %s139 = ssub.s32 %s32, %s39
      %s140 = sor.u32 %s138, %s139
      %p141 = scmp.eq.s32.totalorder %s140, 0
      %s143 = sadd.s32 %s142, 1
      %s144 = scalar_select %p141, %s142, %s143
      %p147 = pneg %p141
      %p148 = scmp.eq.s32.totalorder %s24, 1
      %p149 = por %p147, %p148
      %p150 = scmp.ne.s32.totalorder %s142, %s145
      %p151 = scmp.eq.s32.totalorder %s24, 0
      %p152 = por %p150, %p151
      %p153 = scmp.ne.s32.totalorder %s142, %s145
      %p154 = scmp.eq.s32.totalorder %s29, 1
      %p155 = por %p153, %p154
      %p156 = scmp.ne.s32.totalorder %s145, %s146
      %p157 = scmp.eq.s32.totalorder %s29, 0
      %p158 = por %p156, %p157
      %p159 = scmp.ne.s32.totalorder %s145, %s146
      %p160 = scmp.eq.s32.totalorder %s30, 1
      %p161 = por %p159, %p160
      %p163 = scmp.ne.s32.totalorder %s146, %s162
      %p164 = scmp.eq.s32.totalorder %s30, 0
      %p165 = por %p163, %p164
      %s166 = ssub.s32 %s31, %s43
      %s167 = ssub.s32 %s32, %s39
      %s168 = sor.u32 %s166, %s167
      %p169 = scmp.eq.s32.totalorder %s168, 0
      %s171 = sadd.s32 %s170, 1
      %s172 = scalar_select %p169, %s170, %s171
      %p175 = pneg %p169
      %p176 = scmp.eq.s32.totalorder %s24, 1
      %p177 = por %p175, %p176
      %p178 = scmp.ne.s32.totalorder %s170, %s173
      %p179 = scmp.eq.s32.totalorder %s24, 0
      %p180 = por %p178, %p179
      %p181 = scmp.ne.s32.totalorder %s170, %s173
      %p182 = scmp.eq.s32.totalorder %s29, 1
      %p183 = por %p181, %p182
      %p184 = scmp.ne.s32.totalorder %s173, %s174
      %p185 = scmp.eq.s32.totalorder %s29, 0
      %p186 = por %p184, %p185
      %p187 = scmp.ne.s32.totalorder %s173, %s174
      %p188 = scmp.eq.s32.totalorder %s30, 1
      %p189 = por %p187, %p188
      %p191 = scmp.ne.s32.totalorder %s174, %s190
      %p192 = scmp.eq.s32.totalorder %s30, 0
      %p193 = por %p191, %p192
      %s194 = ssub.s32 %s31, %s43
      %s195 = ssub.s32 %s32, %s39
      %s196 = sor.u32 %s194, %s195
      %p197 = scmp.eq.s32.totalorder %s196, 0
      %s199 = sadd.s32 %s198, 1
      %s200 = scalar_select %p197, %s198, %s199
      %p203 = pneg %p197
      %p204 = scmp.eq.s32.totalorder %s24, 1
      %p205 = por %p203, %p204
      %p206 = scmp.ne.s32.totalorder %s198, %s201
      %p207 = scmp.eq.s32.totalorder %s24, 0
      %p208 = por %p206, %p207
      %p209 = scmp.ne.s32.totalorder %s198, %s201
      %p210 = scmp.eq.s32.totalorder %s29, 1
      %p211 = por %p209, %p210
      %p212 = scmp.ne.s32.totalorder %s201, %s202
      %p213 = scmp.eq.s32.totalorder %s29, 0
      %p214 = por %p212, %p213
      %p215 = scmp.ne.s32.totalorder %s201, %s202
      %p216 = scmp.eq.s32.totalorder %s30, 1
      %p217 = por %p215, %p216
      %p219 = scmp.ne.s32.totalorder %s202, %s218
      %p220 = scmp.eq.s32.totalorder %s30, 0
      %p221 = por %p219, %p220
      %p222 = scmp.le.s32.totalorder 1, %s24
      %p223 = scmp.lt.s32.totalorder %s24, 3
      %p224 = pnand %p222, %p223
      %p225 = pneg %p224
      // Predicated region
      $region9: #{cblx5_forward.6} parent=5 // pred_check
        _
      $region10: #{cblx5_forward.6} parent=5 // pred_check_branch
        %227 = sbr.rel (%p224) target = $region12
      $region11: #{cblx5_forward.6} parent=5 // pred_region
        %s228 = ssub.s32 %s24, 1
        // Predicated region
        $region13: #{cblx5_forward.6} parent=11 // pred_check
          %p229 = pneg %p88
        $region14: #{cblx5_forward.6} parent=11 // pred_check_branch
          %231 = sbr.rel (%p229) target = $region16
        $region15: #{cblx5_forward.6} parent=11 // pred_region
          %s233 = ssub.s32 1024, 1024
          %234 = vsyncadd [#allocation6], %s233
          %s235 = smul.addr %s34, 64
          %s236 = scalar_lea.hbm %s1, %s235
          %s237 = sshll.u32 [#allocation5], 4
          %s238 = int_to_ptr.vmem [resolvable:$true] %s237
          %243 = dma.hbm_to_vmem [thread:$0]  %s236, 1024, %s238, [#allocation6], 64, 64, 4
        $region16: #{cblx5_forward.6} parent=11 // pred_fallthru
          _
        // Predicated region
        $region17: #{cblx5_forward.6} parent=11 // pred_check
          %p244 = pneg %p109
        $region18: #{cblx5_forward.6} parent=11 // pred_check_branch
          %246 = sbr.rel (%p244) target = $region20
        $region19: #{cblx5_forward.6} parent=11 // pred_region
          %s248 = ssub.s32 16, 16
          %249 = vsyncadd [#allocation6], %s248
          %s251 = sshll.u32 [#allocation7], 4
          %s252 = int_to_ptr.vmem [resolvable:$true] %s251
          %254 = dma.hbm_to_vmem [thread:$0]  %s2, 16, %s252, [#allocation6]
        $region20: #{cblx5_forward.6} parent=11 // pred_fallthru
          _
        // Predicated region
        $region21: #{cblx5_forward.6} parent=11 // pred_check
          %p255 = pneg %p130
        $region22: #{cblx5_forward.6} parent=11 // pred_check_branch
          %257 = sbr.rel (%p255) target = $region24
        $region23: #{cblx5_forward.6} parent=11 // pred_region
          %s259 = ssub.s32 16, 16
          %260 = vsyncadd [#allocation9], %s259
          %s262 = sshll.u32 [#allocation8], 4
          %s263 = int_to_ptr.vmem [resolvable:$true] %s262
          %265 = dma.hbm_to_vmem [thread:$0]  %s3, 16, %s263, [#allocation9]
        $region24: #{cblx5_forward.6} parent=11 // pred_fallthru
          _
      $region12: #{cblx5_forward.6} parent=5 // pred_fallthru
        _
      %p266 = scmp.lt.s32.totalorder %s24, 2
      // Predicated region
      $region25: #{cblx5_forward.6} parent=5 // pred_check
        %p267 = pneg %p266
      $region26: #{cblx5_forward.6} parent=5 // pred_check_branch
        %269 = sbr.rel (%p267) target = $region28
      $region27: #{cblx5_forward.6} parent=5 // pred_region
        // Predicated region
        $region29: #{cblx5_forward.6} parent=27 // pred_check
          %p270 = pneg %p56
        $region30: #{cblx5_forward.6} parent=27 // pred_check_branch
          %272 = sbr.rel (%p270) target = $region32
        $region31: #{cblx5_forward.6} parent=27 // pred_region
          %s273 = sand.u32 %s46, 1
          %s274 = scalar_lea.sflag [#allocation3], %s273
          %s275 = sand.u32 %s46, 1
          %s276 = smul.addr %s275, 128
          %s277 = scalar_lea.vmem [#allocation2], %s276
          %s279 = ssub.s32 2048, 2048
          %280 = vsyncadd %s274, %s279
          %s281 = smul.addr %s31, 32
          %s282 = smul.addr %s281, 64
          %s283 = scalar_lea.hbm %s0, %s282
          %s284 = sshll.u32 %s277, 4
          %s285 = int_to_ptr.vmem [resolvable:$true] %s284
          %290 = dma.hbm_to_vmem [thread:$0]  %s283, 2048, %s285, %s274, 64, 64, 4
        $region32: #{cblx5_forward.6} parent=27 // pred_fallthru
          _
      $region28: #{cblx5_forward.6} parent=5 // pred_fallthru
        _
      %p291 = scmp.le.s32.totalorder 1, %s24
      %p292 = scmp.lt.s32.totalorder %s24, 3
      %p293 = pnand %p291, %p292
      %p294 = pneg %p293
      // Predicated region
      $region33: #{cblx5_forward.6} parent=5 // pred_check
        _
      $region34: #{cblx5_forward.6} parent=5 // pred_check_branch
        %296 = sbr.rel (%p293) target = $region36
      $region35: #{cblx5_forward.6} parent=5 // pred_region
        %s297 = ssub.s32 %s24, 1
        %s298 = sand.u32 %s49, 1
        %s299 = scalar_lea.sflag [#allocation3], %s298
        %s300 = sand.u32 %s49, 1
        %s301 = smul.addr %s300, 128
        %s302 = scalar_lea.vmem [#allocation2], %s301
        // Predicated region
        $region37: #{cblx5_forward.6} parent=35 // pred_check
          %p303 = pneg %p62
        $region38: #{cblx5_forward.6} parent=35 // pred_check_branch
          %305 = sbr.rel (%p303) target = $region40
        $region39: #{cblx5_forward.6} parent=35 // pred_region
          %306 = dma.done %s299, 2048
        $region40: #{cblx5_forward.6} parent=35 // pred_fallthru
          _
        // Predicated region
        $region41: #{cblx5_forward.6} parent=35 // pred_check
          %p307 = pneg %p88
        $region42: #{cblx5_forward.6} parent=35 // pred_check_branch
          %309 = sbr.rel (%p307) target = $region44
        $region43: #{cblx5_forward.6} parent=35 // pred_region
          %310 = dma.done [#allocation6], 1024
        $region44: #{cblx5_forward.6} parent=35 // pred_fallthru
          _
        // Predicated region
        $region45: #{cblx5_forward.6} parent=35 // pred_check
          %p311 = pneg %p109
        $region46: #{cblx5_forward.6} parent=35 // pred_check_branch
          %313 = sbr.rel (%p311) target = $region48
        $region47: #{cblx5_forward.6} parent=35 // pred_region
          %314 = dma.done [#allocation6], 16
        $region48: #{cblx5_forward.6} parent=35 // pred_fallthru
          _
        // Predicated region
        $region49: #{cblx5_forward.6} parent=35 // pred_check
          %p315 = pneg %p130
        $region50: #{cblx5_forward.6} parent=35 // pred_check_branch
          %317 = sbr.rel (%p315) target = $region52
        $region51: #{cblx5_forward.6} parent=35 // pred_region
          %318 = dma.done [#allocation9], 16
        $region52: #{cblx5_forward.6} parent=35 // pred_fallthru
          _
        %s319 = sand.u32 %s49, 1
        %s320 = scalar_lea.sflag [#allocation3], %s319
        %s321 = sand.u32 %s49, 1
        %s322 = smul.addr %s321, 128
        %s323 = scalar_lea.vmem [#allocation2], %s322
        %p324 = pneg %p62
        %p325 = pneg %p59
        %p326 = pneg %p88
        %p327 = pneg %p85
        %p328 = pneg %p109
        %p329 = pneg %p106
        %p330 = pneg %p130
        %p331 = pneg %p127
        %p332 = pneg %p158
        %p333 = pneg %p155
        %s334 = sand.u32 %s145, 1
        %s335 = scalar_lea.sflag [#allocation4], %s334
        %s336 = sand.u32 %s145, 1
        %s337 = smul.addr %s336, 128
        %s338 = scalar_lea.vmem [#allocation10], %s337
        %p339 = pneg %p186
        %p340 = pneg %p183
        %s341 = sand.u32 %s29, 1
        %s342 = scalar_lea.sflag [#allocation12], %s341
        %s343 = sand.u32 %s173, 1
        %s344 = scalar_lea.vmem [#allocation11], %s343
        %p345 = pneg %p214
        %p346 = pneg %p211
        %s347 = sand.u32 %s29, 1
        %s348 = scalar_lea.sflag [#allocation12], %s347
        %s349 = sand.u32 %s201, 1
        %s350 = scalar_lea.vmem [#allocation13], %s349
        %v352 = vld [vmem:[%s302] sm:$0xf]
        %v353 = vld [vmem:[%s302 + $0x4] sm:$0xf]
        %v354 = vld [vmem:[%s302 + $0x8] sm:$0xf]
        %v355 = vld [vmem:[%s302 + $0xc] sm:$0xf]
        %v356 = vld [vmem:[%s302 + $0x10] sm:$0xf]
        %v357 = vld [vmem:[%s302 + $0x14] sm:$0xf]
        %v358 = vld [vmem:[%s302 + $0x18] sm:$0xf]
        %v359 = vld [vmem:[%s302 + $0x1c] sm:$0xf]
        %v360 = vld [vmem:[%s302 + $0x20] sm:$0xf]
        %v361 = vld [vmem:[%s302 + $0x24] sm:$0xf]
        %v362 = vld [vmem:[%s302 + $0x28] sm:$0xf]
        %v363 = vld [vmem:[%s302 + $0x2c] sm:$0xf]
        %v364 = vld [vmem:[%s302 + $0x30] sm:$0xf]
        %v365 = vld [vmem:[%s302 + $0x34] sm:$0xf]
        %v366 = vld [vmem:[%s302 + $0x38] sm:$0xf]
        %v367 = vld [vmem:[%s302 + $0x3c] sm:$0xf]
        %v368 = vld [vmem:[%s302 + $0x40] sm:$0xf]
        %v369 = vld [vmem:[%s302 + $0x44] sm:$0xf]
        %v370 = vld [vmem:[%s302 + $0x48] sm:$0xf]
        %v371 = vld [vmem:[%s302 + $0x4c] sm:$0xf]
        %v372 = vld [vmem:[%s302 + $0x50] sm:$0xf]
        %v373 = vld [vmem:[%s302 + $0x54] sm:$0xf]
        %v374 = vld [vmem:[%s302 + $0x58] sm:$0xf]
        %v375 = vld [vmem:[%s302 + $0x5c] sm:$0xf]
        %v376 = vld [vmem:[%s302 + $0x60] sm:$0xf]
        %v377 = vld [vmem:[%s302 + $0x64] sm:$0xf]
        %v378 = vld [vmem:[%s302 + $0x68] sm:$0xf]
        %v379 = vld [vmem:[%s302 + $0x6c] sm:$0xf]
        %v380 = vld [vmem:[%s302 + $0x70] sm:$0xf]
        %v381 = vld [vmem:[%s302 + $0x74] sm:$0xf]
        %v382 = vld [vmem:[%s302 + $0x78] sm:$0xf]
        %v383 = vld [vmem:[%s302 + $0x7c] sm:$0xf]
        %v384 = vld [vmem:[#allocation5] sm:$0xf]
        %v385 = vld [vmem:[#allocation5 + $0x4] sm:$0xf]
        %v386 = vld [vmem:[#allocation5 + $0x8] sm:$0xf]
        %v387 = vld [vmem:[#allocation5 + $0xc] sm:$0xf]
        %v388 = vld [vmem:[#allocation5 + $0x10] sm:$0xf]
        %v389 = vld [vmem:[#allocation5 + $0x14] sm:$0xf]
        %v390 = vld [vmem:[#allocation5 + $0x18] sm:$0xf]
        %v391 = vld [vmem:[#allocation5 + $0x1c] sm:$0xf]
        %v392 = vld [vmem:[#allocation5 + $0x20] sm:$0xf]
        %v393 = vld [vmem:[#allocation5 + $0x24] sm:$0xf]
        %v394 = vld [vmem:[#allocation5 + $0x28] sm:$0xf]
        %v395 = vld [vmem:[#allocation5 + $0x2c] sm:$0xf]
        %v396 = vld [vmem:[#allocation5 + $0x30] sm:$0xf]
        %v397 = vld [vmem:[#allocation5 + $0x34] sm:$0xf]
        %v398 = vld [vmem:[#allocation5 + $0x38] sm:$0xf]
        %v399 = vld [vmem:[#allocation5 + $0x3c] sm:$0xf]
        %v432 = vunpack.c.l.b16 %v352
        %v433 = vunpack.c.l.b16 %v353
        %v434 = vunpack.c.l.b16 %v354
        %v435 = vunpack.c.l.b16 %v355
        %v436 = vunpack.c.l.b16 %v356
        %v437 = vunpack.c.l.b16 %v357
        %v438 = vunpack.c.l.b16 %v358
        %v439 = vunpack.c.l.b16 %v359
        %v440 = vunpack.c.l.b16 %v360
        %v441 = vunpack.c.l.b16 %v361
        %v442 = vunpack.c.l.b16 %v362
        %v443 = vunpack.c.l.b16 %v363
        %v444 = vunpack.c.l.b16 %v364
        %v445 = vunpack.c.l.b16 %v365
        %v446 = vunpack.c.l.b16 %v366
        %v447 = vunpack.c.l.b16 %v367
        %v448 = vunpack.c.l.b16 %v368
        %v449 = vunpack.c.l.b16 %v369
        %v450 = vunpack.c.l.b16 %v370
        %v451 = vunpack.c.l.b16 %v371
        %v452 = vunpack.c.l.b16 %v372
        %v453 = vunpack.c.l.b16 %v373
        %v454 = vunpack.c.l.b16 %v374
        %v455 = vunpack.c.l.b16 %v375
        %v456 = vunpack.c.l.b16 %v376
        %v457 = vunpack.c.l.b16 %v377
        %v458 = vunpack.c.l.b16 %v378
        %v459 = vunpack.c.l.b16 %v379
        %v460 = vunpack.c.l.b16 %v380
        %v461 = vunpack.c.l.b16 %v381
        %v462 = vunpack.c.l.b16 %v382
        %v463 = vunpack.c.l.b16 %v383
        %v464 = vpack.c.b16 %v433, %v432
        %v465 = vpack.c.b16 %v435, %v434
        %v466 = vpack.c.b16 %v437, %v436
        %v467 = vpack.c.b16 %v439, %v438
        %v468 = vpack.c.b16 %v441, %v440
        %v469 = vpack.c.b16 %v443, %v442
        %v470 = vpack.c.b16 %v445, %v444
        %v471 = vpack.c.b16 %v447, %v446
        %v472 = vpack.c.b16 %v449, %v448
        %v473 = vpack.c.b16 %v451, %v450
        %v474 = vpack.c.b16 %v453, %v452
        %v475 = vpack.c.b16 %v455, %v454
        %v476 = vpack.c.b16 %v457, %v456
        %v477 = vpack.c.b16 %v459, %v458
        %v478 = vpack.c.b16 %v461, %v460
        %v479 = vpack.c.b16 %v463, %v462
        %v512 = vunpack.c.l.b16 %v384
        %v513 = vunpack.c.l.b16 %v385
        %v514 = vunpack.c.l.b16 %v386
        %v515 = vunpack.c.l.b16 %v387
        %v516 = vunpack.c.l.b16 %v388
        %v517 = vunpack.c.l.b16 %v389
        %v518 = vunpack.c.l.b16 %v390
        %v519 = vunpack.c.l.b16 %v391
        %v520 = vunpack.c.l.b16 %v392
        %v521 = vunpack.c.l.b16 %v393
        %v522 = vunpack.c.l.b16 %v394
        %v523 = vunpack.c.l.b16 %v395
        %v524 = vunpack.c.l.b16 %v396
        %v525 = vunpack.c.l.b16 %v397
        %v526 = vunpack.c.l.b16 %v398
        %v527 = vunpack.c.l.b16 %v399
        %v528 = vpack.c.b16 %v513, %v512
        %v529 = vpack.c.b16 %v515, %v514
        %v530 = vpack.c.b16 %v517, %v516
        %v531 = vpack.c.b16 %v519, %v518
        %v532 = vpack.c.b16 %v521, %v520
        %v533 = vpack.c.b16 %v523, %v522
        %v534 = vpack.c.b16 %v525, %v524
        %v535 = vpack.c.b16 %v527, %v526
        %544 = vmatprep.subr.bf16.mxu0 0
        %545 = vmatpush1.bf16.msra.mxu0 %v528
        %546 = vmatprep.subr.bf16.mxu0 0
        %547 = vmatpush1.bf16.msra.mxu0 %v529
        %548 = vmatprep.subr.bf16.mxu0 0
        %549 = vmatpush1.bf16.msra.mxu0 %v530
        %550 = vmatprep.subr.bf16.mxu0 0
        %551 = vmatpush1.bf16.msra.mxu0 %v531
        %552 = vmatprep.subr.bf16.mxu0 0
        %553 = vmatpush1.bf16.msra.mxu0 %v532
        %554 = vmatprep.subr.bf16.mxu0 0
        %555 = vmatpush1.bf16.msra.mxu0 %v533
        %556 = vmatprep.subr.bf16.mxu0 0
        %557 = vmatpush1.bf16.msra.mxu0 %v534
        %558 = vmatprep.subr.bf16.mxu0 0
        %559 = vmatpush1.bf16.msra.mxu0 %v535
        %560 = vmatprep.subr.bf16.mxu0 0
        %561 = vmatpush1.bf16.msra.mxu0 0
        %562 = vmatprep.subr.bf16.mxu0 0
        %563 = vmatpush1.bf16.msra.mxu0 0
        %564 = vmatprep.subr.bf16.mxu0 0
        %565 = vmatpush1.bf16.msra.mxu0 0
        %566 = vmatprep.subr.bf16.mxu0 0
        %567 = vmatpush1.bf16.msra.mxu0 0
        %568 = vmatprep.subr.bf16.mxu0 0
        %569 = vmatpush1.bf16.msra.mxu0 0
        %570 = vmatprep.subr.bf16.mxu0 0
        %571 = vmatpush1.bf16.msra.mxu0 0
        %572 = vmatprep.subr.bf16.mxu0 0
        %573 = vmatpush1.bf16.msra.mxu0 0
        %574 = vmatprep.subr.bf16.mxu0 0
        %575 = vmatpush1.bf16.msra.mxu0 0
        %576 = vmatprep.mubr.bf16.mxu0 0
        %577 = vmatmul.mubr.bf16.gmra.mrb[0].mxu0 %v464
        %v578 = vpop.f32.mrb[0].mxu0
        %v579 = vadd.f32 0.0, %v578
        %v580 = vpop.f32.mrb[0].mxu0
        %v581 = vpop.f32.mrb[0].mxu0
        %v582 = vadd.f32 0.0, %v581
        %v583 = vpop.f32.mrb[0].mxu0
        %584 = vmatprep.mubr.bf16.mxu0 0
        %585 = vmatmul.mubr.bf16.gmra.mrb[0].mxu0 %v465
        %v586 = vpop.f32.mrb[0].mxu0
        %v587 = vadd.f32 0.0, %v586
        %v588 = vpop.f32.mrb[0].mxu0
        %v589 = vpop.f32.mrb[0].mxu0
        %v590 = vadd.f32 0.0, %v589
        %v591 = vpop.f32.mrb[0].mxu0
        %592 = vmatprep.mubr.bf16.mxu0 0
        %593 = vmatmul.mubr.bf16.gmra.mrb[0].mxu0 %v466
        %v594 = vpop.f32.mrb[0].mxu0
        %v595 = vadd.f32 0.0, %v594
        %v596 = vpop.f32.mrb[0].mxu0
        %v597 = vpop.f32.mrb[0].mxu0
        %v598 = vadd.f32 0.0, %v597
        %v599 = vpop.f32.mrb[0].mxu0
        %600 = vmatprep.mubr.bf16.mxu0 0
        %601 = vmatmul.mubr.bf16.gmra.mrb[0].mxu0 %v467
        %v602 = vpop.f32.mrb[0].mxu0
        %v603 = vadd.f32 0.0, %v602
        %v604 = vpop.f32.mrb[0].mxu0
        %v605 = vpop.f32.mrb[0].mxu0
        %v606 = vadd.f32 0.0, %v605
        %v607 = vpop.f32.mrb[0].mxu0
        %608 = vmatprep.mubr.bf16.mxu0 0
        %609 = vmatmul.mubr.bf16.gmra.mrb[0].mxu0 %v468
        %v610 = vpop.f32.mrb[0].mxu0
        %v611 = vadd.f32 0.0, %v610
        %v612 = vpop.f32.mrb[0].mxu0
        %v613 = vpop.f32.mrb[0].mxu0
        %v614 = vadd.f32 0.0, %v613
        %v615 = vpop.f32.mrb[0].mxu0
        %616 = vmatprep.mubr.bf16.mxu0 0
        %617 = vmatmul.mubr.bf16.gmra.mrb[0].mxu0 %v469
        %v618 = vpop.f32.mrb[0].mxu0
        %v619 = vadd.f32 0.0, %v618
        %v620 = vpop.f32.mrb[0].mxu0
        %v621 = vpop.f32.mrb[0].mxu0
        %v622 = vadd.f32 0.0, %v621
        %v623 = vpop.f32.mrb[0].mxu0
        %624 = vmatprep.mubr.bf16.mxu0 0
        %625 = vmatmul.mubr.bf16.gmra.mrb[0].mxu0 %v470
        %v626 = vpop.f32.mrb[0].mxu0
        %v627 = vadd.f32 0.0, %v626
        %v628 = vpop.f32.mrb[0].mxu0
        %v629 = vpop.f32.mrb[0].mxu0
        %v630 = vadd.f32 0.0, %v629
        %v631 = vpop.f32.mrb[0].mxu0
        %632 = vmatprep.mubr.bf16.mxu0 0
        %633 = vmatmul.mubr.bf16.gmra.mrb[0].mxu0 %v471
        %v634 = vpop.f32.mrb[0].mxu0
        %v635 = vadd.f32 0.0, %v634
        %v636 = vpop.f32.mrb[0].mxu0
        %v637 = vpop.f32.mrb[0].mxu0
        %v638 = vadd.f32 0.0, %v637
        %v639 = vpop.f32.mrb[0].mxu0
        %640 = vmatprep.mubr.bf16.mxu0 0
        %641 = vmatmul.mubr.bf16.gmra.mrb[0].mxu0 %v472
        %v642 = vpop.f32.mrb[0].mxu0
        %v643 = vadd.f32 0.0, %v642
        %v644 = vpop.f32.mrb[0].mxu0
        %v645 = vpop.f32.mrb[0].mxu0
        %v646 = vadd.f32 0.0, %v645
        %v647 = vpop.f32.mrb[0].mxu0
        %648 = vmatprep.mubr.bf16.mxu0 0
        %649 = vmatmul.mubr.bf16.gmra.mrb[0].mxu0 %v473
        %v650 = vpop.f32.mrb[0].mxu0
        %v651 = vadd.f32 0.0, %v650
        %v652 = vpop.f32.mrb[0].mxu0
        %v653 = vpop.f32.mrb[0].mxu0
        %v654 = vadd.f32 0.0, %v653
        %v655 = vpop.f32.mrb[0].mxu0
        %656 = vmatprep.mubr.bf16.mxu0 0
        %657 = vmatmul.mubr.bf16.gmra.mrb[0].mxu0 %v474
        %v658 = vpop.f32.mrb[0].mxu0
        %v659 = vadd.f32 0.0, %v658
        %v660 = vpop.f32.mrb[0].mxu0
        %v661 = vpop.f32.mrb[0].mxu0
        %v662 = vadd.f32 0.0, %v661
        %v663 = vpop.f32.mrb[0].mxu0
        %664 = vmatprep.mubr.bf16.mxu0 0
        %665 = vmatmul.mubr.bf16.gmra.mrb[0].mxu0 %v475
        %v666 = vpop.f32.mrb[0].mxu0
        %v667 = vadd.f32 0.0, %v666
        %v668 = vpop.f32.mrb[0].mxu0
        %v669 = vpop.f32.mrb[0].mxu0
        %v670 = vadd.f32 0.0, %v669
        %v671 = vpop.f32.mrb[0].mxu0
        %672 = vmatprep.mubr.bf16.mxu0 0
        %673 = vmatmul.mubr.bf16.gmra.mrb[0].mxu0 %v476
        %v674 = vpop.f32.mrb[0].mxu0
        %v675 = vadd.f32 0.0, %v674
        %v676 = vpop.f32.mrb[0].mxu0
        %v677 = vpop.f32.mrb[0].mxu0
        %v678 = vadd.f32 0.0, %v677
        %v679 = vpop.f32.mrb[0].mxu0
        %680 = vmatprep.mubr.bf16.mxu0 0
        %681 = vmatmul.mubr.bf16.gmra.mrb[0].mxu0 %v477
        %v682 = vpop.f32.mrb[0].mxu0
        %v683 = vadd.f32 0.0, %v682
        %v684 = vpop.f32.mrb[0].mxu0
        %v685 = vpop.f32.mrb[0].mxu0
        %v686 = vadd.f32 0.0, %v685
        %v687 = vpop.f32.mrb[0].mxu0
        %688 = vmatprep.mubr.bf16.mxu0 0
        %689 = vmatmul.mubr.bf16.gmra.mrb[0].mxu0 %v478
        %v690 = vpop.f32.mrb[0].mxu0
        %v691 = vadd.f32 0.0, %v690
        %v692 = vpop.f32.mrb[0].mxu0
        %v693 = vpop.f32.mrb[0].mxu0
        %v694 = vadd.f32 0.0, %v693
        %v695 = vpop.f32.mrb[0].mxu0
        %696 = vmatprep.mubr.bf16.mxu0 0
        %697 = vmatmul.mubr.bf16.gmra.mrb[0].mxu0 %v479
        %v698 = vpop.f32.mrb[0].mxu0
        %v699 = vadd.f32 0.0, %v698
        %v700 = vpop.f32.mrb[0].mxu0
        %v701 = vpop.f32.mrb[0].mxu0
        %v702 = vadd.f32 0.0, %v701
        %v703 = vpop.f32.mrb[0].mxu0
        %704 = vdwg.mxu0
        %v705 = vpack.c.bf16 %v582, %v579
        %v706 = vpack.c.bf16 %v590, %v587
        %v707 = vpack.c.bf16 %v598, %v595
        %v708 = vpack.c.bf16 %v606, %v603
        %v709 = vpack.c.bf16 %v614, %v611
        %v710 = vpack.c.bf16 %v622, %v619
        %v711 = vpack.c.bf16 %v630, %v627
        %v712 = vpack.c.bf16 %v638, %v635
        %v713 = vpack.c.bf16 %v646, %v643
        %v714 = vpack.c.bf16 %v654, %v651
        %v715 = vpack.c.bf16 %v662, %v659
        %v716 = vpack.c.bf16 %v670, %v667
        %v717 = vpack.c.bf16 %v678, %v675
        %v718 = vpack.c.bf16 %v686, %v683
        %v719 = vpack.c.bf16 %v694, %v691
        %v720 = vpack.c.bf16 %v702, %v699
        %v737 = vunpack.c.l.b16 %v705
        %v738 = vunpack.c.h.b16 %v705
        %v739 = vunpack.c.l.b16 %v706
        %v740 = vunpack.c.h.b16 %v706
        %v741 = vunpack.c.l.b16 %v707
        %v742 = vunpack.c.h.b16 %v707
        %v743 = vunpack.c.l.b16 %v708
        %v744 = vunpack.c.h.b16 %v708
        %v745 = vunpack.c.l.b16 %v709
        %v746 = vunpack.c.h.b16 %v709
        %v747 = vunpack.c.l.b16 %v710
        %v748 = vunpack.c.h.b16 %v710
        %v749 = vunpack.c.l.b16 %v711
        %v750 = vunpack.c.h.b16 %v711
        %v751 = vunpack.c.l.b16 %v712
        %v752 = vunpack.c.h.b16 %v712
        %v753 = vunpack.c.l.b16 %v713
        %v754 = vunpack.c.h.b16 %v713
        %v755 = vunpack.c.l.b16 %v714
        %v756 = vunpack.c.h.b16 %v714
        %v757 = vunpack.c.l.b16 %v715
        %v758 = vunpack.c.h.b16 %v715
        %v759 = vunpack.c.l.b16 %v716
        %v760 = vunpack.c.h.b16 %v716
        %v761 = vunpack.c.l.b16 %v717
        %v762 = vunpack.c.h.b16 %v717
        %v763 = vunpack.c.l.b16 %v718
        %v764 = vunpack.c.h.b16 %v718
        %v765 = vunpack.c.l.b16 %v719
        %v766 = vunpack.c.h.b16 %v719
        %v767 = vunpack.c.l.b16 %v720
        %v768 = vunpack.c.h.b16 %v720
        %v769 = vpack.c.b16 %v737, %v737
        %v770 = vpack.c.b16 %v738, %v738
        %v771 = vpack.c.b16 %v739, %v739
        %v772 = vpack.c.b16 %v740, %v740
        %v773 = vpack.c.b16 %v741, %v741
        %v774 = vpack.c.b16 %v742, %v742
        %v775 = vpack.c.b16 %v743, %v743
        %v776 = vpack.c.b16 %v744, %v744
        %v777 = vpack.c.b16 %v745, %v745
        %v778 = vpack.c.b16 %v746, %v746
        %v779 = vpack.c.b16 %v747, %v747
        %v780 = vpack.c.b16 %v748, %v748
        %v781 = vpack.c.b16 %v749, %v749
        %v782 = vpack.c.b16 %v750, %v750
        %v783 = vpack.c.b16 %v751, %v751
        %v784 = vpack.c.b16 %v752, %v752
        %v785 = vpack.c.b16 %v753, %v753
        %v786 = vpack.c.b16 %v754, %v754
        %v787 = vpack.c.b16 %v755, %v755
        %v788 = vpack.c.b16 %v756, %v756
        %v789 = vpack.c.b16 %v757, %v757
        %v790 = vpack.c.b16 %v758, %v758
        %v791 = vpack.c.b16 %v759, %v759
        %v792 = vpack.c.b16 %v760, %v760
        %v793 = vpack.c.b16 %v761, %v761
        %v794 = vpack.c.b16 %v762, %v762
        %v795 = vpack.c.b16 %v763, %v763
        %v796 = vpack.c.b16 %v764, %v764
        %v797 = vpack.c.b16 %v765, %v765
        %v798 = vpack.c.b16 %v766, %v766
        %v799 = vpack.c.b16 %v767, %v767
        %v800 = vpack.c.b16 %v768, %v768
        %833 = vst [vmem:[%s338] sm:$0xf] %v769
        %834 = vst [vmem:[%s338 + $0x4] sm:$0xf] %v770
        %835 = vst [vmem:[%s338 + $0x8] sm:$0xf] %v771
        %836 = vst [vmem:[%s338 + $0xc] sm:$0xf] %v772
        %837 = vst [vmem:[%s338 + $0x10] sm:$0xf] %v773
        %838 = vst [vmem:[%s338 + $0x14] sm:$0xf] %v774
        %839 = vst [vmem:[%s338 + $0x18] sm:$0xf] %v775
        %840 = vst [vmem:[%s338 + $0x1c] sm:$0xf] %v776
        %841 = vst [vmem:[%s338 + $0x20] sm:$0xf] %v777
        %842 = vst [vmem:[%s338 + $0x24] sm:$0xf] %v778
        %843 = vst [vmem:[%s338 + $0x28] sm:$0xf] %v779
        %844 = vst [vmem:[%s338 + $0x2c] sm:$0xf] %v780
        %845 = vst [vmem:[%s338 + $0x30] sm:$0xf] %v781
        %846 = vst [vmem:[%s338 + $0x34] sm:$0xf] %v782
        %847 = vst [vmem:[%s338 + $0x38] sm:$0xf] %v783
        %848 = vst [vmem:[%s338 + $0x3c] sm:$0xf] %v784
        %849 = vst [vmem:[%s338 + $0x40] sm:$0xf] %v785
        %850 = vst [vmem:[%s338 + $0x44] sm:$0xf] %v786
        %851 = vst [vmem:[%s338 + $0x48] sm:$0xf] %v787
        %852 = vst [vmem:[%s338 + $0x4c] sm:$0xf] %v788
        %853 = vst [vmem:[%s338 + $0x50] sm:$0xf] %v789
        %854 = vst [vmem:[%s338 + $0x54] sm:$0xf] %v790
        %855 = vst [vmem:[%s338 + $0x58] sm:$0xf] %v791
        %856 = vst [vmem:[%s338 + $0x5c] sm:$0xf] %v792
        %857 = vst [vmem:[%s338 + $0x60] sm:$0xf] %v793
        %858 = vst [vmem:[%s338 + $0x64] sm:$0xf] %v794
        %859 = vst [vmem:[%s338 + $0x68] sm:$0xf] %v795
        %860 = vst [vmem:[%s338 + $0x6c] sm:$0xf] %v796
        %861 = vst [vmem:[%s338 + $0x70] sm:$0xf] %v797
        %862 = vst [vmem:[%s338 + $0x74] sm:$0xf] %v798
        %863 = vst [vmem:[%s338 + $0x78] sm:$0xf] %v799
        %864 = vst [vmem:[%s338 + $0x7c] sm:$0xf] %v800
        %v865 = vadd.f32 %v579, %v582
        %v866 = vadd.f32 %v865, %v587
        %v867 = vadd.f32 %v866, %v590
        %v868 = vadd.f32 %v867, %v595
        %v869 = vadd.f32 %v868, %v598
        %v870 = vadd.f32 %v869, %v603
        %v871 = vadd.f32 %v870, %v606
        %v872 = vadd.f32 %v871, %v611
        %v873 = vadd.f32 %v872, %v614
        %v874 = vadd.f32 %v873, %v619
        %v875 = vadd.f32 %v874, %v622
        %v876 = vadd.f32 %v875, %v627
        %v877 = vadd.f32 %v876, %v630
        %v878 = vadd.f32 %v877, %v635
        %v879 = vadd.f32 %v878, %v638
        %v880 = vadd.f32 %v879, %v643
        %v881 = vadd.f32 %v880, %v646
        %v882 = vadd.f32 %v881, %v651
        %v883 = vadd.f32 %v882, %v654
        %v884 = vadd.f32 %v883, %v659
        %v885 = vadd.f32 %v884, %v662
        %v886 = vadd.f32 %v885, %v667
        %v887 = vadd.f32 %v886, %v670
        %v888 = vadd.f32 %v887, %v675
        %v889 = vadd.f32 %v888, %v678
        %v890 = vadd.f32 %v889, %v683
        %v891 = vadd.f32 %v890, %v686
        %v892 = vadd.f32 %v891, %v691
        %v893 = vadd.f32 %v892, %v694
        %v894 = vadd.f32 %v893, %v699
        %v895 = vadd.f32 %v894, %v702
        %v896 = vrot.slane %v895, 4
        %v897 = vadd.f32 %v895, %v896
        %v898 = vrot.slane %v897, 2
        %v899 = vadd.f32 %v897, %v898
        %v900 = vrot.slane %v899, 1
        %v901 = vadd.f32 %v899, %v900
        %902 = vst [vmem:[%s344] sm:$0x1] %v901
        %v903 = vmul.f32 %v579, %v579
        %v904 = vmul.f32 %v582, %v582
        %v905 = vmul.f32 %v587, %v587
        %v906 = vmul.f32 %v590, %v590
        %v907 = vmul.f32 %v595, %v595
        %v908 = vmul.f32 %v598, %v598
        %v909 = vmul.f32 %v603, %v603
        %v910 = vmul.f32 %v606, %v606
        %v911 = vmul.f32 %v611, %v611
        %v912 = vmul.f32 %v614, %v614
        %v913 = vmul.f32 %v619, %v619
        %v914 = vmul.f32 %v622, %v622
        %v915 = vmul.f32 %v627, %v627
        %v916 = vmul.f32 %v630, %v630
        %v917 = vmul.f32 %v635, %v635
        %v918 = vmul.f32 %v638, %v638
        %v919 = vmul.f32 %v643, %v643
        %v920 = vmul.f32 %v646, %v646
        %v921 = vmul.f32 %v651, %v651
        %v922 = vmul.f32 %v654, %v654
        %v923 = vmul.f32 %v659, %v659
        %v924 = vmul.f32 %v662, %v662
        %v925 = vmul.f32 %v667, %v667
        %v926 = vmul.f32 %v670, %v670
        %v927 = vmul.f32 %v675, %v675
        %v928 = vmul.f32 %v678, %v678
        %v929 = vmul.f32 %v683, %v683
        %v930 = vmul.f32 %v686, %v686
        %v931 = vmul.f32 %v691, %v691
        %v932 = vmul.f32 %v694, %v694
        %v933 = vmul.f32 %v699, %v699
        %v934 = vmul.f32 %v702, %v702
        %v935 = vadd.f32 %v903, %v904
        %v936 = vadd.f32 %v935, %v905
        %v937 = vadd.f32 %v936, %v906
        %v938 = vadd.f32 %v937, %v907
        %v939 = vadd.f32 %v938, %v908
        %v940 = vadd.f32 %v939, %v909
        %v941 = vadd.f32 %v940, %v910
        %v942 = vadd.f32 %v941, %v911
        %v943 = vadd.f32 %v942, %v912
        %v944 = vadd.f32 %v943, %v913
        %v945 = vadd.f32 %v944, %v914
        %v946 = vadd.f32 %v945, %v915
        %v947 = vadd.f32 %v946, %v916
        %v948 = vadd.f32 %v947, %v917
        %v949 = vadd.f32 %v948, %v918
        %v950 = vadd.f32 %v949, %v919
        %v951 = vadd.f32 %v950, %v920
        %v952 = vadd.f32 %v951, %v921
        %v953 = vadd.f32 %v952, %v922
        %v954 = vadd.f32 %v953, %v923
        %v955 = vadd.f32 %v954, %v924
        %v956 = vadd.f32 %v955, %v925
        %v957 = vadd.f32 %v956, %v926
        %v958 = vadd.f32 %v957, %v927
        %v959 = vadd.f32 %v958, %v928
        %v960 = vadd.f32 %v959, %v929
        %v961 = vadd.f32 %v960, %v930
        %v962 = vadd.f32 %v961, %v931
        %v963 = vadd.f32 %v962, %v932
        %v964 = vadd.f32 %v963, %v933
        %v965 = vadd.f32 %v964, %v934
        %v966 = vrot.slane %v965, 4
        %v967 = vadd.f32 %v965, %v966
        %v968 = vrot.slane %v967, 2
        %v969 = vadd.f32 %v967, %v968
        %v970 = vrot.slane %v969, 1
        %v971 = vadd.f32 %v969, %v970
        %972 = vst [vmem:[%s350] sm:$0x1] %v971
        %s973 = sand.u32 %s145, 1
        %s974 = scalar_lea.sflag [#allocation4], %s973
        %s975 = sand.u32 %s145, 1
        %s976 = smul.addr %s975, 128
        %s977 = scalar_lea.vmem [#allocation10], %s976
        %s978 = sand.u32 %s29, 1
        %s979 = scalar_lea.sflag [#allocation12], %s978
        %s980 = sand.u32 %s173, 1
        %s981 = scalar_lea.vmem [#allocation11], %s980
        %s982 = sand.u32 %s29, 1
        %s983 = scalar_lea.sflag [#allocation12], %s982
        %s984 = sand.u32 %s201, 1
        %s985 = scalar_lea.vmem [#allocation13], %s984
        // Predicated region
        $region53: #{cblx5_forward.6} parent=35 // pred_check
          %p986 = pneg %p155
        $region54: #{cblx5_forward.6} parent=35 // pred_check_branch
          %988 = sbr.rel (%p986) target = $region56
        $region55: #{cblx5_forward.6} parent=35 // pred_region
          %s990 = ssub.s32 2048, 2048
          %991 = vsyncadd %s974, %s990
          %s992 = smul.addr %s33, 32
          %s993 = sadd.s32 %s34, %s992
          %s994 = smul.addr %s993, 64
          %s995 = scalar_lea.hbm %s4, %s994
          %s996 = sshll.u32 %s977, 4
          %s997 = int_to_ptr.vmem [resolvable:$true] %s996
          %1002 = dma.vmem_to_hbm [thread:$0]  %s997, 2048, %s995, %s974, 64, 64, 4
        $region56: #{cblx5_forward.6} parent=35 // pred_fallthru
          _
        // Predicated region
        $region57: #{cblx5_forward.6} parent=35 // pred_check
          %p1003 = pneg %p183
        $region58: #{cblx5_forward.6} parent=35 // pred_check_branch
          %1005 = sbr.rel (%p1003) target = $region60
        $region59: #{cblx5_forward.6} parent=35 // pred_region
          %s1007 = ssub.s32 16, 16
          %1008 = vsyncadd %s979, %s1007
          %s1009 = sadd.s32 %s34, %s33
          %s1010 = smul.addr %s1009, 16
          %s1011 = scalar_lea.hbm %s5, %s1010
          %s1013 = sshll.u32 %s981, 4
          %s1014 = int_to_ptr.vmem [resolvable:$true] %s1013
          %1016 = dma.vmem_to_hbm [thread:$0]  %s1014, 16, %s1011, %s979
        $region60: #{cblx5_forward.6} parent=35 // pred_fallthru
          _
        // Predicated region
        $region61: #{cblx5_forward.6} parent=35 // pred_check
          %p1017 = pneg %p211
        $region62: #{cblx5_forward.6} parent=35 // pred_check_branch
          %1019 = sbr.rel (%p1017) target = $region64
        $region63: #{cblx5_forward.6} parent=35 // pred_region
          %s1021 = ssub.s32 16, 16
          %1022 = vsyncadd %s983, %s1021
          %s1023 = sadd.s32 %s34, %s33
          %s1024 = smul.addr %s1023, 16
          %s1025 = scalar_lea.hbm %s6, %s1024
          %s1027 = sshll.u32 %s985, 4
          %s1028 = int_to_ptr.vmem [resolvable:$true] %s1027
          %1030 = dma.vmem_to_hbm [thread:$0]  %s1028, 16, %s1025, %s983
        $region64: #{cblx5_forward.6} parent=35 // pred_fallthru
          _
      $region36: #{cblx5_forward.6} parent=5 // pred_fallthru
        _
      %p1031 = scmp.le.s32.totalorder 2, %s24
      // Predicated region
      $region65: #{cblx5_forward.6} parent=5 // pred_check
        %p1032 = pneg %p1031
      $region66: #{cblx5_forward.6} parent=5 // pred_check_branch
        %1034 = sbr.rel (%p1032) target = $region68
      $region67: #{cblx5_forward.6} parent=5 // pred_region
        %s1035 = ssub.s32 %s24, 2
        // Predicated region
        $region69: #{cblx5_forward.6} parent=67 // pred_check
          %p1036 = pneg %p161
        $region70: #{cblx5_forward.6} parent=67 // pred_check_branch
          %1038 = sbr.rel (%p1036) target = $region72
        $region71: #{cblx5_forward.6} parent=67 // pred_region
          %s1039 = sand.u32 %s146, 1
          %s1040 = scalar_lea.sflag [#allocation4], %s1039
          %s1041 = sand.u32 %s146, 1
          %s1042 = smul.addr %s1041, 128
          %s1043 = scalar_lea.vmem [#allocation10], %s1042
          %1044 = dma.done %s1040, 2048
        $region72: #{cblx5_forward.6} parent=67 // pred_fallthru
          _
        // Predicated region
        $region73: #{cblx5_forward.6} parent=67 // pred_check
          %p1045 = pneg %p189
        $region74: #{cblx5_forward.6} parent=67 // pred_check_branch
          %1047 = sbr.rel (%p1045) target = $region76
        $region75: #{cblx5_forward.6} parent=67 // pred_region
          %s1048 = sand.u32 %s30, 1
          %s1049 = scalar_lea.sflag [#allocation12], %s1048
          %s1050 = sand.u32 %s174, 1
          %s1051 = scalar_lea.vmem [#allocation11], %s1050
          %1052 = dma.done %s1049, 16
        $region76: #{cblx5_forward.6} parent=67 // pred_fallthru
          _
        // Predicated region
        $region77: #{cblx5_forward.6} parent=67 // pred_check
          %p1053 = pneg %p217
        $region78: #{cblx5_forward.6} parent=67 // pred_check_branch
          %1055 = sbr.rel (%p1053) target = $region80
        $region79: #{cblx5_forward.6} parent=67 // pred_region
          %s1056 = sand.u32 %s30, 1
          %s1057 = scalar_lea.sflag [#allocation12], %s1056
          %s1058 = sand.u32 %s202, 1
          %s1059 = scalar_lea.vmem [#allocation13], %s1058
          %1060 = dma.done %s1057, 16
        $region80: #{cblx5_forward.6} parent=67 // pred_fallthru
          _
      $region68: #{cblx5_forward.6} parent=5 // pred_fallthru
        _
    $region6: #{cblx5_forward.6} parent=1 // loop_footer
      %s28 = sadd.s32 1, %s24
    $region7: #{cblx5_forward.6} parent=1 // loop_footer_branch
      %23 = sbr.rel target = $region3
    $region8: #{cblx5_forward.6} parent=1 // loop_exit
      _
    %1061 = vsyncpa [#allocation3], 1
    %s1062 = scalar_lea.sflag [#allocation3], 1
    %1063 = vsyncpa %s1062, 1
    %1064 = vsyncpa [#allocation6], 1
    %1065 = vsyncpa [#allocation9], 1
    %1066 = vsyncpa [#allocation4], 1
    %s1067 = scalar_lea.sflag [#allocation4], 1
    %1068 = vsyncpa %s1067, 1
    %1069 = vsyncpa [#allocation12], 1
    %s1070 = scalar_lea.sflag [#allocation12], 1
    %1071 = vsyncpa %s1070, 1

// kernel: cblx5_forward.11
$region0: #{cblx5_forward.11}
  #allocation0 [shape = 'u32[]', space=smem, size = 0x4, offset = 0x4, fixed_abs, tag = 'smem constant byte address 0x4 - core index']
  #allocation1 [shape = 'u32[144,128]{1,0:T(1,128)}', space=vmem, size = 0x12000, scoped, tag = 'internal scratch']
  %s0 = inlined_call_operand.hbm [shape: bf16[2,256,128], index: 0, kind: input, shape index: {}]
  %s1 = inlined_call_operand.hbm [shape: f32[1,128], index: 1, kind: input, shape index: {}]
  %s2 = inlined_call_operand.hbm [shape: f32[1,128], index: 2, kind: input, shape index: {}]
  %s3 = inlined_call_operand.hbm [shape: bf16[2,256,128], index: 3, kind: output, shape index: {}]
  %s4 = sld [smem:[#allocation0]]
  $region57: #{cblx5_forward.11} parent=0
    _
  %s6 = ssub.s32 1, %s4
  %s7 = scalar_select 0, %s6, %s4
  $region1: #{cblx5_forward.11} parent=0
    #allocation2 [shape = 'u8[131072]{0}', space=vmem, size = 0x20000, scoped, tag = 'input window, operand 0']
    #allocation3 [shape = 's32[2]{0}', space=sflag, size = 0x8, scoped, tag = 'scoped memory for cblx5_forward.11']
    #allocation4 [shape = 's32[2]{0}', space=sflag, size = 0x8, scoped, tag = 'scoped memory for cblx5_forward.11']
    #allocation5 [shape = 'u8[512]{0}', space=vmem, size = 0x400, scoped, tag = 'input window, operand 1, single buffered']
    #allocation6 [shape = 's32[1]{0}', space=sflag, size = 0x4, scoped, tag = 'scoped memory for cblx5_forward.11']
    #allocation7 [shape = 'u8[512]{0}', space=vmem, size = 0x400, scoped, tag = 'input window, operand 2, single buffered']
    #allocation8 [shape = 'u8[131072]{0}', space=vmem, size = 0x20000, scoped, tag = 'output window, operand 0']
    %8 = vsyncpa [#allocation3], 0
    %s9 = scalar_lea.sflag [#allocation3], 1
    %10 = vsyncpa %s9, 0
    %11 = vsyncpa [#allocation6], 0
    %12 = vsyncpa [#allocation4], 0
    %s13 = scalar_lea.sflag [#allocation4], 1
    %14 = vsyncpa %s13, 0
    loop: start=0, step=1, limit=4
    $region2: #{cblx5_forward.11} parent=1 // loop_pre_header
      _
    $region3: #{cblx5_forward.11} parent=1 // loop_header
      %s16 = sphi 0, %s20
      %p17 = scmp.ge.s32.totalorder %s16, 4
      %s23 = sphi 0, %s35
      %s24 = sphi 0, %s31
      %s25 = sphi 0, %s23
      %s26 = sphi 0, %s24
      %s27 = sphi 0, %s25
      %s28 = sphi 0, %s26
      %s40 = sphi 0, %s42
      %s43 = sphi 0, %s40
      %s44 = sphi 0, %s43
      %s60 = sphi 0, %s44
      %s66 = sphi 0, %s68
      %s69 = sphi 0, %s66
      %s70 = sphi 0, %s69
      %s86 = sphi 0, %s70
      %s92 = sphi 0, %s94
      %s95 = sphi 0, %s92
      %s96 = sphi 0, %s95
      %s112 = sphi 0, %s96
      %s120 = sphi 0, %s122
      %s123 = sphi 0, %s120
      %s124 = sphi 0, %s123
      %s140 = sphi 0, %s124
    $region4: #{cblx5_forward.11} parent=1 // loop_header_branch
      %19 = sbr.rel (%p17) target = $region8
    $region5: #{cblx5_forward.11} parent=1 // loop_body
      %s21 = ssub.s32 %s16, 1
      %s22 = ssub.s32 %s16, 2
      %s29 = sadd.s32 1, %s24
      %p30 = scmp.ge.s32.totalorder %s29, 1
      %s31 = scalar_select %p30, 0, %s29
      %s32 = sadd.s32 1, %s23
      %s33 = scalar_select %p30, %s32, %s23
      %p34 = scmp.ge.s32.totalorder %s33, 2
      %s35 = scalar_select %p34, 0, %s33
      %s36 = ssub.s32 %s23, %s35
      %s37 = ssub.s32 %s24, %s31
      %s38 = sor.u32 %s36, %s37
      %p39 = scmp.eq.s32.totalorder %s38, 0
      %s41 = sadd.s32 %s40, 1
      %s42 = scalar_select %p39, %s40, %s41
      %p45 = pneg %p39
      %p46 = scmp.eq.s32.totalorder %s16, 1
      %p47 = por %p45, %p46
      %p48 = scmp.ne.s32.totalorder %s40, %s43
      %p49 = scmp.eq.s32.totalorder %s16, 0
      %p50 = por %p48, %p49
      %p51 = scmp.ne.s32.totalorder %s40, %s43
      %p52 = scmp.eq.s32.totalorder %s21, 1
      %p53 = por %p51, %p52
      %p54 = scmp.ne.s32.totalorder %s43, %s44
      %p55 = scmp.eq.s32.totalorder %s21, 0
      %p56 = por %p54, %p55
      %p57 = scmp.ne.s32.totalorder %s43, %s44
      %p58 = scmp.eq.s32.totalorder %s22, 1
      %p59 = por %p57, %p58
      %p61 = scmp.ne.s32.totalorder %s44, %s60
      %p62 = scmp.eq.s32.totalorder %s22, 0
      %p63 = por %p61, %p62
      %s64 = ssub.s32 %s24, %s31
      %p65 = scmp.eq.s32.totalorder %s64, 0
      %s67 = sadd.s32 %s66, 1
      %s68 = scalar_select %p65, %s66, %s67
      %p71 = pneg %p65
      %p72 = scmp.eq.s32.totalorder %s16, 1
      %p73 = por %p71, %p72
      %p74 = scmp.ne.s32.totalorder %s66, %s69
      %p75 = scmp.eq.s32.totalorder %s16, 0
      %p76 = por %p74, %p75
      %p77 = scmp.ne.s32.totalorder %s66, %s69
      %p78 = scmp.eq.s32.totalorder %s21, 1
      %p79 = por %p77, %p78
      %p80 = scmp.ne.s32.totalorder %s69, %s70
      %p81 = scmp.eq.s32.totalorder %s21, 0
      %p82 = por %p80, %p81
      %p83 = scmp.ne.s32.totalorder %s69, %s70
      %p84 = scmp.eq.s32.totalorder %s22, 1
      %p85 = por %p83, %p84
      %p87 = scmp.ne.s32.totalorder %s70, %s86
      %p88 = scmp.eq.s32.totalorder %s22, 0
      %p89 = por %p87, %p88
      %s90 = ssub.s32 %s24, %s31
      %p91 = scmp.eq.s32.totalorder %s90, 0
      %s93 = sadd.s32 %s92, 1
      %s94 = scalar_select %p91, %s92, %s93
      %p97 = pneg %p91
      %p98 = scmp.eq.s32.totalorder %s16, 1
      %p99 = por %p97, %p98
      %p100 = scmp.ne.s32.totalorder %s92, %s95
      %p101 = scmp.eq.s32.totalorder %s16, 0
      %p102 = por %p100, %p101
      %p103 = scmp.ne.s32.totalorder %s92, %s95
      %p104 = scmp.eq.s32.totalorder %s21, 1
      %p105 = por %p103, %p104
      %p106 = scmp.ne.s32.totalorder %s95, %s96
      %p107 = scmp.eq.s32.totalorder %s21, 0
      %p108 = por %p106, %p107
      %p109 = scmp.ne.s32.totalorder %s95, %s96
      %p110 = scmp.eq.s32.totalorder %s22, 1
      %p111 = por %p109, %p110
      %p113 = scmp.ne.s32.totalorder %s96, %s112
      %p114 = scmp.eq.s32.totalorder %s22, 0
      %p115 = por %p113, %p114
      %s116 = ssub.s32 %s23, %s35
      %s117 = ssub.s32 %s24, %s31
      %s118 = sor.u32 %s116, %s117
      %p119 = scmp.eq.s32.totalorder %s118, 0
      %s121 = sadd.s32 %s120, 1
      %s122 = scalar_select %p119, %s120, %s121
      %p125 = pneg %p119
      %p126 = scmp.eq.s32.totalorder %s16, 1
      %p127 = por %p125, %p126
      %p128 = scmp.ne.s32.totalorder %s120, %s123
      %p129 = scmp.eq.s32.totalorder %s16, 0
      %p130 = por %p128, %p129
      %p131 = scmp.ne.s32.totalorder %s120, %s123
      %p132 = scmp.eq.s32.totalorder %s21, 1
      %p133 = por %p131, %p132
      %p134 = scmp.ne.s32.totalorder %s123, %s124
      %p135 = scmp.eq.s32.totalorder %s21, 0
      %p136 = por %p134, %p135
      %p137 = scmp.ne.s32.totalorder %s123, %s124
      %p138 = scmp.eq.s32.totalorder %s22, 1
      %p139 = por %p137, %p138
      %p141 = scmp.ne.s32.totalorder %s124, %s140
      %p142 = scmp.eq.s32.totalorder %s22, 0
      %p143 = por %p141, %p142
      %p144 = scmp.le.s32.totalorder 1, %s16
      %p145 = scmp.lt.s32.totalorder %s16, 3
      %p146 = pnand %p144, %p145
      %p147 = pneg %p146
      // Predicated region
      $region9: #{cblx5_forward.11} parent=5 // pred_check
        _
      $region10: #{cblx5_forward.11} parent=5 // pred_check_branch
        %149 = sbr.rel (%p146) target = $region12
      $region11: #{cblx5_forward.11} parent=5 // pred_region
        %s150 = ssub.s32 %s16, 1
        // Predicated region
        $region13: #{cblx5_forward.11} parent=11 // pred_check
          %p151 = pneg %p82
        $region14: #{cblx5_forward.11} parent=11 // pred_check_branch
          %153 = sbr.rel (%p151) target = $region16
        $region15: #{cblx5_forward.11} parent=11 // pred_region
          %s155 = ssub.s32 16, 16
          %156 = vsyncadd [#allocation6], %s155
          %s157 = smul.addr %s26, 16
          %s158 = scalar_lea.hbm %s1, %s157
          %s160 = sshll.u32 [#allocation5], 4
          %s161 = int_to_ptr.vmem [resolvable:$true] %s160
          %163 = dma.hbm_to_vmem [thread:$0]  %s158, 16, %s161, [#allocation6]
        $region16: #{cblx5_forward.11} parent=11 // pred_fallthru
          _
        // Predicated region
        $region17: #{cblx5_forward.11} parent=11 // pred_check
          %p164 = pneg %p108
        $region18: #{cblx5_forward.11} parent=11 // pred_check_branch
          %166 = sbr.rel (%p164) target = $region20
        $region19: #{cblx5_forward.11} parent=11 // pred_region
          %s168 = ssub.s32 16, 16
          %169 = vsyncadd [#allocation6], %s168
          %s170 = smul.addr %s26, 16
          %s171 = scalar_lea.hbm %s2, %s170
          %s173 = sshll.u32 [#allocation7], 4
          %s174 = int_to_ptr.vmem [resolvable:$true] %s173
          %176 = dma.hbm_to_vmem [thread:$0]  %s171, 16, %s174, [#allocation6]
        $region20: #{cblx5_forward.11} parent=11 // pred_fallthru
          _
      $region12: #{cblx5_forward.11} parent=5 // pred_fallthru
        _
      %p177 = scmp.lt.s32.totalorder %s16, 2
      // Predicated region
      $region21: #{cblx5_forward.11} parent=5 // pred_check
        %p178 = pneg %p177
      $region22: #{cblx5_forward.11} parent=5 // pred_check_branch
        %180 = sbr.rel (%p178) target = $region24
      $region23: #{cblx5_forward.11} parent=5 // pred_region
        // Predicated region
        $region25: #{cblx5_forward.11} parent=23 // pred_check
          %p181 = pneg %p50
        $region26: #{cblx5_forward.11} parent=23 // pred_check_branch
          %183 = sbr.rel (%p181) target = $region28
        $region27: #{cblx5_forward.11} parent=23 // pred_region
          %s184 = sand.u32 %s40, 1
          %s185 = scalar_lea.sflag [#allocation3], %s184
          %s186 = sand.u32 %s40, 1
          %s187 = smul.addr %s186, 128
          %s188 = scalar_lea.vmem [#allocation2], %s187
          %s190 = ssub.s32 2048, 2048
          %191 = vsyncadd %s185, %s190
          %s192 = smul.addr %s23, 32
          %s193 = sadd.s32 %s24, %s192
          %s194 = smul.addr %s193, 64
          %s195 = scalar_lea.hbm %s0, %s194
          %s196 = sshll.u32 %s188, 4
          %s197 = int_to_ptr.vmem [resolvable:$true] %s196
          %202 = dma.hbm_to_vmem [thread:$0]  %s195, 2048, %s197, %s185, 64, 64, 4
        $region28: #{cblx5_forward.11} parent=23 // pred_fallthru
          _
      $region24: #{cblx5_forward.11} parent=5 // pred_fallthru
        _
      %p203 = scmp.le.s32.totalorder 1, %s16
      %p204 = scmp.lt.s32.totalorder %s16, 3
      %p205 = pnand %p203, %p204
      %p206 = pneg %p205
      // Predicated region
      $region29: #{cblx5_forward.11} parent=5 // pred_check
        _
      $region30: #{cblx5_forward.11} parent=5 // pred_check_branch
        %208 = sbr.rel (%p205) target = $region32
      $region31: #{cblx5_forward.11} parent=5 // pred_region
        %s209 = ssub.s32 %s16, 1
        %s210 = sand.u32 %s43, 1
        %s211 = scalar_lea.sflag [#allocation3], %s210
        %s212 = sand.u32 %s43, 1
        %s213 = smul.addr %s212, 128
        %s214 = scalar_lea.vmem [#allocation2], %s213
        // Predicated region
        $region33: #{cblx5_forward.11} parent=31 // pred_check
          %p215 = pneg %p56
        $region34: #{cblx5_forward.11} parent=31 // pred_check_branch
          %217 = sbr.rel (%p215) target = $region36
        $region35: #{cblx5_forward.11} parent=31 // pred_region
          %218 = dma.done %s211, 2048
        $region36: #{cblx5_forward.11} parent=31 // pred_fallthru
          _
        // Predicated region
        $region37: #{cblx5_forward.11} parent=31 // pred_check
          %p219 = pneg %p82
        $region38: #{cblx5_forward.11} parent=31 // pred_check_branch
          %221 = sbr.rel (%p219) target = $region40
        $region39: #{cblx5_forward.11} parent=31 // pred_region
          %222 = dma.done [#allocation6], 16
        $region40: #{cblx5_forward.11} parent=31 // pred_fallthru
          _
        // Predicated region
        $region41: #{cblx5_forward.11} parent=31 // pred_check
          %p223 = pneg %p108
        $region42: #{cblx5_forward.11} parent=31 // pred_check_branch
          %225 = sbr.rel (%p223) target = $region44
        $region43: #{cblx5_forward.11} parent=31 // pred_region
          %226 = dma.done [#allocation6], 16
        $region44: #{cblx5_forward.11} parent=31 // pred_fallthru
          _
        %s227 = sand.u32 %s43, 1
        %s228 = scalar_lea.sflag [#allocation3], %s227
        %s229 = sand.u32 %s43, 1
        %s230 = smul.addr %s229, 128
        %s231 = scalar_lea.vmem [#allocation2], %s230
        %p232 = pneg %p56
        %p233 = pneg %p53
        %p234 = pneg %p82
        %p235 = pneg %p79
        %p236 = pneg %p108
        %p237 = pneg %p105
        %p238 = pneg %p136
        %p239 = pneg %p133
        %s240 = sand.u32 %s123, 1
        %s241 = scalar_lea.sflag [#allocation4], %s240
        %s242 = sand.u32 %s123, 1
        %s243 = smul.addr %s242, 128
        %s244 = scalar_lea.vmem [#allocation8], %s243
        %v245 = vld [vmem:[%s214] sm:$0xf]
        %v246 = vld [vmem:[%s214 + $0x4] sm:$0xf]
        %v247 = vld [vmem:[%s214 + $0x8] sm:$0xf]
        %v248 = vld [vmem:[%s214 + $0xc] sm:$0xf]
        %v249 = vld [vmem:[%s214 + $0x10] sm:$0xf]
        %v250 = vld [vmem:[%s214 + $0x14] sm:$0xf]
        %v251 = vld [vmem:[%s214 + $0x18] sm:$0xf]
        %v252 = vld [vmem:[%s214 + $0x1c] sm:$0xf]
        %v253 = vld [vmem:[%s214 + $0x20] sm:$0xf]
        %v254 = vld [vmem:[%s214 + $0x24] sm:$0xf]
        %v255 = vld [vmem:[%s214 + $0x28] sm:$0xf]
        %v256 = vld [vmem:[%s214 + $0x2c] sm:$0xf]
        %v257 = vld [vmem:[%s214 + $0x30] sm:$0xf]
        %v258 = vld [vmem:[%s214 + $0x34] sm:$0xf]
        %v259 = vld [vmem:[%s214 + $0x38] sm:$0xf]
        %v260 = vld [vmem:[%s214 + $0x3c] sm:$0xf]
        %v261 = vld [vmem:[%s214 + $0x40] sm:$0xf]
        %v262 = vld [vmem:[%s214 + $0x44] sm:$0xf]
        %v263 = vld [vmem:[%s214 + $0x48] sm:$0xf]
        %v264 = vld [vmem:[%s214 + $0x4c] sm:$0xf]
        %v265 = vld [vmem:[%s214 + $0x50] sm:$0xf]
        %v266 = vld [vmem:[%s214 + $0x54] sm:$0xf]
        %v267 = vld [vmem:[%s214 + $0x58] sm:$0xf]
        %v268 = vld [vmem:[%s214 + $0x5c] sm:$0xf]
        %v269 = vld [vmem:[%s214 + $0x60] sm:$0xf]
        %v270 = vld [vmem:[%s214 + $0x64] sm:$0xf]
        %v271 = vld [vmem:[%s214 + $0x68] sm:$0xf]
        %v272 = vld [vmem:[%s214 + $0x6c] sm:$0xf]
        %v273 = vld [vmem:[%s214 + $0x70] sm:$0xf]
        %v274 = vld [vmem:[%s214 + $0x74] sm:$0xf]
        %v275 = vld [vmem:[%s214 + $0x78] sm:$0xf]
        %v276 = vld [vmem:[%s214 + $0x7c] sm:$0xf]
        %v277 = vunpack.c.l.bf16 %v245
        %v278 = vunpack.c.l.bf16 %v246
        %v279 = vunpack.c.l.bf16 %v247
        %v280 = vunpack.c.l.bf16 %v248
        %v281 = vunpack.c.l.bf16 %v249
        %v282 = vunpack.c.l.bf16 %v250
        %v283 = vunpack.c.l.bf16 %v251
        %v284 = vunpack.c.l.bf16 %v252
        %v285 = vunpack.c.l.bf16 %v253
        %v286 = vunpack.c.l.bf16 %v254
        %v287 = vunpack.c.l.bf16 %v255
        %v288 = vunpack.c.l.bf16 %v256
        %v289 = vunpack.c.l.bf16 %v257
        %v290 = vunpack.c.l.bf16 %v258
        %v291 = vunpack.c.l.bf16 %v259
        %v292 = vunpack.c.l.bf16 %v260
        %v293 = vunpack.c.l.bf16 %v261
        %v294 = vunpack.c.l.bf16 %v262
        %v295 = vunpack.c.l.bf16 %v263
        %v296 = vunpack.c.l.bf16 %v264
        %v297 = vunpack.c.l.bf16 %v265
        %v298 = vunpack.c.l.bf16 %v266
        %v299 = vunpack.c.l.bf16 %v267
        %v300 = vunpack.c.l.bf16 %v268
        %v301 = vunpack.c.l.bf16 %v269
        %v302 = vunpack.c.l.bf16 %v270
        %v303 = vunpack.c.l.bf16 %v271
        %v304 = vunpack.c.l.bf16 %v272
        %v305 = vunpack.c.l.bf16 %v273
        %v306 = vunpack.c.l.bf16 %v274
        %v307 = vunpack.c.l.bf16 %v275
        %v308 = vunpack.c.l.bf16 %v276
        %v309 = vld [vmem:[#allocation5] sm:$0x1]
        %v311 = vlaneseq
        %v312 = vshrl.u32 %v311, 7
        %v313 = vsub.s32 0, %v312
        %v314 = vrot.slane %v309, %v313
        %v316 = vmul.f32 %v277, %v314
        %v317 = vmul.f32 %v278, %v314
        %v318 = vmul.f32 %v279, %v314
        %v319 = vmul.f32 %v280, %v314
        %v320 = vmul.f32 %v281, %v314
        %v321 = vmul.f32 %v282, %v314
        %v322 = vmul.f32 %v283, %v314
        %v323 = vmul.f32 %v284, %v314
        %v324 = vmul.f32 %v285, %v314
        %v325 = vmul.f32 %v286, %v314
        %v326 = vmul.f32 %v287, %v314
        %v327 = vmul.f32 %v288, %v314
        %v328 = vmul.f32 %v289, %v314
        %v329 = vmul.f32 %v290, %v314
        %v330 = vmul.f32 %v291, %v314
        %v331 = vmul.f32 %v292, %v314
        %v332 = vmul.f32 %v293, %v314
        %v333 = vmul.f32 %v294, %v314
        %v334 = vmul.f32 %v295, %v314
        %v335 = vmul.f32 %v296, %v314
        %v336 = vmul.f32 %v297, %v314
        %v337 = vmul.f32 %v298, %v314
        %v338 = vmul.f32 %v299, %v314
        %v339 = vmul.f32 %v300, %v314
        %v340 = vmul.f32 %v301, %v314
        %v341 = vmul.f32 %v302, %v314
        %v342 = vmul.f32 %v303, %v314
        %v343 = vmul.f32 %v304, %v314
        %v344 = vmul.f32 %v305, %v314
        %v345 = vmul.f32 %v306, %v314
        %v346 = vmul.f32 %v307, %v314
        %v347 = vmul.f32 %v308, %v314
        %v348 = vld [vmem:[#allocation7] sm:$0x1]
        %v350 = vlaneseq
        %v351 = vshrl.u32 %v350, 7
        %v352 = vsub.s32 0, %v351
        %v353 = vrot.slane %v348, %v352
        %v355 = vadd.f32 %v316, %v353
        %v356 = vadd.f32 %v317, %v353
        %v357 = vadd.f32 %v318, %v353
        %v358 = vadd.f32 %v319, %v353
        %v359 = vadd.f32 %v320, %v353
        %v360 = vadd.f32 %v321, %v353
        %v361 = vadd.f32 %v322, %v353
        %v362 = vadd.f32 %v323, %v353
        %v363 = vadd.f32 %v324, %v353
        %v364 = vadd.f32 %v325, %v353
        %v365 = vadd.f32 %v326, %v353
        %v366 = vadd.f32 %v327, %v353
        %v367 = vadd.f32 %v328, %v353
        %v368 = vadd.f32 %v329, %v353
        %v369 = vadd.f32 %v330, %v353
        %v370 = vadd.f32 %v331, %v353
        %v371 = vadd.f32 %v332, %v353
        %v372 = vadd.f32 %v333, %v353
        %v373 = vadd.f32 %v334, %v353
        %v374 = vadd.f32 %v335, %v353
        %v375 = vadd.f32 %v336, %v353
        %v376 = vadd.f32 %v337, %v353
        %v377 = vadd.f32 %v338, %v353
        %v378 = vadd.f32 %v339, %v353
        %v379 = vadd.f32 %v340, %v353
        %v380 = vadd.f32 %v341, %v353
        %v381 = vadd.f32 %v342, %v353
        %v382 = vadd.f32 %v343, %v353
        %v383 = vadd.f32 %v344, %v353
        %v384 = vadd.f32 %v345, %v353
        %v385 = vadd.f32 %v346, %v353
        %v386 = vadd.f32 %v347, %v353
        %vm387 = vcmp.gt.f32.partialorder %v355, 0.0
        %vm388 = vcmp.gt.f32.partialorder %v356, 0.0
        %vm389 = vcmp.gt.f32.partialorder %v357, 0.0
        %vm390 = vcmp.gt.f32.partialorder %v358, 0.0
        %vm391 = vcmp.gt.f32.partialorder %v359, 0.0
        %vm392 = vcmp.gt.f32.partialorder %v360, 0.0
        %vm393 = vcmp.gt.f32.partialorder %v361, 0.0
        %vm394 = vcmp.gt.f32.partialorder %v362, 0.0
        %vm395 = vcmp.gt.f32.partialorder %v363, 0.0
        %vm396 = vcmp.gt.f32.partialorder %v364, 0.0
        %vm397 = vcmp.gt.f32.partialorder %v365, 0.0
        %vm398 = vcmp.gt.f32.partialorder %v366, 0.0
        %vm399 = vcmp.gt.f32.partialorder %v367, 0.0
        %vm400 = vcmp.gt.f32.partialorder %v368, 0.0
        %vm401 = vcmp.gt.f32.partialorder %v369, 0.0
        %vm402 = vcmp.gt.f32.partialorder %v370, 0.0
        %vm403 = vcmp.gt.f32.partialorder %v371, 0.0
        %vm404 = vcmp.gt.f32.partialorder %v372, 0.0
        %vm405 = vcmp.gt.f32.partialorder %v373, 0.0
        %vm406 = vcmp.gt.f32.partialorder %v374, 0.0
        %vm407 = vcmp.gt.f32.partialorder %v375, 0.0
        %vm408 = vcmp.gt.f32.partialorder %v376, 0.0
        %vm409 = vcmp.gt.f32.partialorder %v377, 0.0
        %vm410 = vcmp.gt.f32.partialorder %v378, 0.0
        %vm411 = vcmp.gt.f32.partialorder %v379, 0.0
        %vm412 = vcmp.gt.f32.partialorder %v380, 0.0
        %vm413 = vcmp.gt.f32.partialorder %v381, 0.0
        %vm414 = vcmp.gt.f32.partialorder %v382, 0.0
        %vm415 = vcmp.gt.f32.partialorder %v383, 0.0
        %vm416 = vcmp.gt.f32.partialorder %v384, 0.0
        %vm417 = vcmp.gt.f32.partialorder %v385, 0.0
        %vm418 = vcmp.gt.f32.partialorder %v386, 0.0
        %v419 = vmul.f32 %v355, 0.1
        %v420 = vmul.f32 %v356, 0.1
        %v421 = vmul.f32 %v357, 0.1
        %v422 = vmul.f32 %v358, 0.1
        %v423 = vmul.f32 %v359, 0.1
        %v424 = vmul.f32 %v360, 0.1
        %v425 = vmul.f32 %v361, 0.1
        %v426 = vmul.f32 %v362, 0.1
        %v427 = vmul.f32 %v363, 0.1
        %v428 = vmul.f32 %v364, 0.1
        %v429 = vmul.f32 %v365, 0.1
        %v430 = vmul.f32 %v366, 0.1
        %v431 = vmul.f32 %v367, 0.1
        %v432 = vmul.f32 %v368, 0.1
        %v433 = vmul.f32 %v369, 0.1
        %v434 = vmul.f32 %v370, 0.1
        %v435 = vmul.f32 %v371, 0.1
        %v436 = vmul.f32 %v372, 0.1
        %v437 = vmul.f32 %v373, 0.1
        %v438 = vmul.f32 %v374, 0.1
        %v439 = vmul.f32 %v375, 0.1
        %v440 = vmul.f32 %v376, 0.1
        %v441 = vmul.f32 %v377, 0.1
        %v442 = vmul.f32 %v378, 0.1
        %v443 = vmul.f32 %v379, 0.1
        %v444 = vmul.f32 %v380, 0.1
        %v445 = vmul.f32 %v381, 0.1
        %v446 = vmul.f32 %v382, 0.1
        %v447 = vmul.f32 %v383, 0.1
        %v448 = vmul.f32 %v384, 0.1
        %v449 = vmul.f32 %v385, 0.1
        %v450 = vmul.f32 %v386, 0.1
        %v451 = vsel %vm387, %v355, %v419
        %v452 = vsel %vm388, %v356, %v420
        %v453 = vsel %vm389, %v357, %v421
        %v454 = vsel %vm390, %v358, %v422
        %v455 = vsel %vm391, %v359, %v423
        %v456 = vsel %vm392, %v360, %v424
        %v457 = vsel %vm393, %v361, %v425
        %v458 = vsel %vm394, %v362, %v426
        %v459 = vsel %vm395, %v363, %v427
        %v460 = vsel %vm396, %v364, %v428
        %v461 = vsel %vm397, %v365, %v429
        %v462 = vsel %vm398, %v366, %v430
        %v463 = vsel %vm399, %v367, %v431
        %v464 = vsel %vm400, %v368, %v432
        %v465 = vsel %vm401, %v369, %v433
        %v466 = vsel %vm402, %v370, %v434
        %v467 = vsel %vm403, %v371, %v435
        %v468 = vsel %vm404, %v372, %v436
        %v469 = vsel %vm405, %v373, %v437
        %v470 = vsel %vm406, %v374, %v438
        %v471 = vsel %vm407, %v375, %v439
        %v472 = vsel %vm408, %v376, %v440
        %v473 = vsel %vm409, %v377, %v441
        %v474 = vsel %vm410, %v378, %v442
        %v475 = vsel %vm411, %v379, %v443
        %v476 = vsel %vm412, %v380, %v444
        %v477 = vsel %vm413, %v381, %v445
        %v478 = vsel %vm414, %v382, %v446
        %v479 = vsel %vm415, %v383, %v447
        %v480 = vsel %vm416, %v384, %v448
        %v481 = vsel %vm417, %v385, %v449
        %v482 = vsel %vm418, %v386, %v450
        %v483 = vpack.c.bf16 %v452, %v451
        %v484 = vpack.c.bf16 %v454, %v453
        %v485 = vpack.c.bf16 %v456, %v455
        %v486 = vpack.c.bf16 %v458, %v457
        %v487 = vpack.c.bf16 %v460, %v459
        %v488 = vpack.c.bf16 %v462, %v461
        %v489 = vpack.c.bf16 %v464, %v463
        %v490 = vpack.c.bf16 %v466, %v465
        %v491 = vpack.c.bf16 %v468, %v467
        %v492 = vpack.c.bf16 %v470, %v469
        %v493 = vpack.c.bf16 %v472, %v471
        %v494 = vpack.c.bf16 %v474, %v473
        %v495 = vpack.c.bf16 %v476, %v475
        %v496 = vpack.c.bf16 %v478, %v477
        %v497 = vpack.c.bf16 %v480, %v479
        %v498 = vpack.c.bf16 %v482, %v481
        %v515 = vunpack.c.l.b16 %v483
        %v516 = vunpack.c.h.b16 %v483
        %v517 = vunpack.c.l.b16 %v484
        %v518 = vunpack.c.h.b16 %v484
        %v519 = vunpack.c.l.b16 %v485
        %v520 = vunpack.c.h.b16 %v485
        %v521 = vunpack.c.l.b16 %v486
        %v522 = vunpack.c.h.b16 %v486
        %v523 = vunpack.c.l.b16 %v487
        %v524 = vunpack.c.h.b16 %v487
        %v525 = vunpack.c.l.b16 %v488
        %v526 = vunpack.c.h.b16 %v488
        %v527 = vunpack.c.l.b16 %v489
        %v528 = vunpack.c.h.b16 %v489
        %v529 = vunpack.c.l.b16 %v490
        %v530 = vunpack.c.h.b16 %v490
        %v531 = vunpack.c.l.b16 %v491
        %v532 = vunpack.c.h.b16 %v491
        %v533 = vunpack.c.l.b16 %v492
        %v534 = vunpack.c.h.b16 %v492
        %v535 = vunpack.c.l.b16 %v493
        %v536 = vunpack.c.h.b16 %v493
        %v537 = vunpack.c.l.b16 %v494
        %v538 = vunpack.c.h.b16 %v494
        %v539 = vunpack.c.l.b16 %v495
        %v540 = vunpack.c.h.b16 %v495
        %v541 = vunpack.c.l.b16 %v496
        %v542 = vunpack.c.h.b16 %v496
        %v543 = vunpack.c.l.b16 %v497
        %v544 = vunpack.c.h.b16 %v497
        %v545 = vunpack.c.l.b16 %v498
        %v546 = vunpack.c.h.b16 %v498
        %v547 = vpack.c.b16 %v515, %v515
        %v548 = vpack.c.b16 %v516, %v516
        %v549 = vpack.c.b16 %v517, %v517
        %v550 = vpack.c.b16 %v518, %v518
        %v551 = vpack.c.b16 %v519, %v519
        %v552 = vpack.c.b16 %v520, %v520
        %v553 = vpack.c.b16 %v521, %v521
        %v554 = vpack.c.b16 %v522, %v522
        %v555 = vpack.c.b16 %v523, %v523
        %v556 = vpack.c.b16 %v524, %v524
        %v557 = vpack.c.b16 %v525, %v525
        %v558 = vpack.c.b16 %v526, %v526
        %v559 = vpack.c.b16 %v527, %v527
        %v560 = vpack.c.b16 %v528, %v528
        %v561 = vpack.c.b16 %v529, %v529
        %v562 = vpack.c.b16 %v530, %v530
        %v563 = vpack.c.b16 %v531, %v531
        %v564 = vpack.c.b16 %v532, %v532
        %v565 = vpack.c.b16 %v533, %v533
        %v566 = vpack.c.b16 %v534, %v534
        %v567 = vpack.c.b16 %v535, %v535
        %v568 = vpack.c.b16 %v536, %v536
        %v569 = vpack.c.b16 %v537, %v537
        %v570 = vpack.c.b16 %v538, %v538
        %v571 = vpack.c.b16 %v539, %v539
        %v572 = vpack.c.b16 %v540, %v540
        %v573 = vpack.c.b16 %v541, %v541
        %v574 = vpack.c.b16 %v542, %v542
        %v575 = vpack.c.b16 %v543, %v543
        %v576 = vpack.c.b16 %v544, %v544
        %v577 = vpack.c.b16 %v545, %v545
        %v578 = vpack.c.b16 %v546, %v546
        %611 = vst [vmem:[%s244] sm:$0xf] %v547
        %612 = vst [vmem:[%s244 + $0x4] sm:$0xf] %v548
        %613 = vst [vmem:[%s244 + $0x8] sm:$0xf] %v549
        %614 = vst [vmem:[%s244 + $0xc] sm:$0xf] %v550
        %615 = vst [vmem:[%s244 + $0x10] sm:$0xf] %v551
        %616 = vst [vmem:[%s244 + $0x14] sm:$0xf] %v552
        %617 = vst [vmem:[%s244 + $0x18] sm:$0xf] %v553
        %618 = vst [vmem:[%s244 + $0x1c] sm:$0xf] %v554
        %619 = vst [vmem:[%s244 + $0x20] sm:$0xf] %v555
        %620 = vst [vmem:[%s244 + $0x24] sm:$0xf] %v556
        %621 = vst [vmem:[%s244 + $0x28] sm:$0xf] %v557
        %622 = vst [vmem:[%s244 + $0x2c] sm:$0xf] %v558
        %623 = vst [vmem:[%s244 + $0x30] sm:$0xf] %v559
        %624 = vst [vmem:[%s244 + $0x34] sm:$0xf] %v560
        %625 = vst [vmem:[%s244 + $0x38] sm:$0xf] %v561
        %626 = vst [vmem:[%s244 + $0x3c] sm:$0xf] %v562
        %627 = vst [vmem:[%s244 + $0x40] sm:$0xf] %v563
        %628 = vst [vmem:[%s244 + $0x44] sm:$0xf] %v564
        %629 = vst [vmem:[%s244 + $0x48] sm:$0xf] %v565
        %630 = vst [vmem:[%s244 + $0x4c] sm:$0xf] %v566
        %631 = vst [vmem:[%s244 + $0x50] sm:$0xf] %v567
        %632 = vst [vmem:[%s244 + $0x54] sm:$0xf] %v568
        %633 = vst [vmem:[%s244 + $0x58] sm:$0xf] %v569
        %634 = vst [vmem:[%s244 + $0x5c] sm:$0xf] %v570
        %635 = vst [vmem:[%s244 + $0x60] sm:$0xf] %v571
        %636 = vst [vmem:[%s244 + $0x64] sm:$0xf] %v572
        %637 = vst [vmem:[%s244 + $0x68] sm:$0xf] %v573
        %638 = vst [vmem:[%s244 + $0x6c] sm:$0xf] %v574
        %639 = vst [vmem:[%s244 + $0x70] sm:$0xf] %v575
        %640 = vst [vmem:[%s244 + $0x74] sm:$0xf] %v576
        %641 = vst [vmem:[%s244 + $0x78] sm:$0xf] %v577
        %642 = vst [vmem:[%s244 + $0x7c] sm:$0xf] %v578
        %s643 = sand.u32 %s123, 1
        %s644 = scalar_lea.sflag [#allocation4], %s643
        %s645 = sand.u32 %s123, 1
        %s646 = smul.addr %s645, 128
        %s647 = scalar_lea.vmem [#allocation8], %s646
        // Predicated region
        $region45: #{cblx5_forward.11} parent=31 // pred_check
          %p648 = pneg %p133
        $region46: #{cblx5_forward.11} parent=31 // pred_check_branch
          %650 = sbr.rel (%p648) target = $region48
        $region47: #{cblx5_forward.11} parent=31 // pred_region
          %s652 = ssub.s32 2048, 2048
          %653 = vsyncadd %s644, %s652
          %s654 = smul.addr %s25, 32
          %s655 = sadd.s32 %s26, %s654
          %s656 = smul.addr %s655, 64
          %s657 = scalar_lea.hbm %s3, %s656
          %s658 = sshll.u32 %s647, 4
          %s659 = int_to_ptr.vmem [resolvable:$true] %s658
          %664 = dma.vmem_to_hbm [thread:$0]  %s659, 2048, %s657, %s644, 64, 64, 4
        $region48: #{cblx5_forward.11} parent=31 // pred_fallthru
          _
      $region32: #{cblx5_forward.11} parent=5 // pred_fallthru
        _
      %p665 = scmp.le.s32.totalorder 2, %s16
      // Predicated region
      $region49: #{cblx5_forward.11} parent=5 // pred_check
        %p666 = pneg %p665
      $region50: #{cblx5_forward.11} parent=5 // pred_check_branch
        %668 = sbr.rel (%p666) target = $region52
      $region51: #{cblx5_forward.11} parent=5 // pred_region
        %s669 = ssub.s32 %s16, 2
        // Predicated region
        $region53: #{cblx5_forward.11} parent=51 // pred_check
          %p670 = pneg %p139
        $region54: #{cblx5_forward.11} parent=51 // pred_check_branch
          %672 = sbr.rel (%p670) target = $region56
        $region55: #{cblx5_forward.11} parent=51 // pred_region
          %s673 = sand.u32 %s124, 1
          %s674 = scalar_lea.sflag [#allocation4], %s673
          %s675 = sand.u32 %s124, 1
          %s676 = smul.addr %s675, 128
          %s677 = scalar_lea.vmem [#allocation8], %s676
          %678 = dma.done %s674, 2048
        $region56: #{cblx5_forward.11} parent=51 // pred_fallthru
          _
      $region52: #{cblx5_forward.11} parent=5 // pred_fallthru
        _
    $region6: #{cblx5_forward.11} parent=1 // loop_footer
      %s20 = sadd.s32 1, %s16
    $region7: #{cblx5_forward.11} parent=1 // loop_footer_branch
      %15 = sbr.rel target = $region3
    $region8: #{cblx5_forward.11} parent=1 // loop_exit
      _
    %679 = vsyncpa [#allocation3], 1
    %s680 = scalar_lea.sflag [#allocation3], 1
    %681 = vsyncpa %s680, 1
    %682 = vsyncpa [#allocation6], 1
    %683 = vsyncpa [#allocation4], 1
    %s684 = scalar_lea.sflag [#allocation4], 1
    %685 = vsyncpa %s684, 1

// kernel: cblx5_forward.8
$region0: #{cblx5_forward.8}
  #allocation0 [shape = 'u32[]', space=smem, size = 0x4, offset = 0x4, fixed_abs, tag = 'smem constant byte address 0x4 - core index']
  #allocation1 [shape = 'u32[144,128]{1,0:T(1,128)}', space=vmem, size = 0x12000, scoped, tag = 'internal scratch']
  %s0 = inlined_call_operand.hbm [shape: bf16[2,16,16,128], index: 0, kind: input, shape index: {}]
  %s1 = inlined_call_operand.hbm [shape: bf16[1,128,128], index: 1, kind: input, shape index: {}]
  %s2 = inlined_call_operand.hbm [shape: f32[1,128], index: 2, kind: input, shape index: {}]
  %s3 = inlined_call_operand.hbm [shape: f32[1,128], index: 3, kind: input, shape index: {}]
  %s4 = inlined_call_operand.hbm [shape: bf16[2,256,128], index: 4, kind: output, shape index: {0}]
  %s5 = inlined_call_operand.hbm [shape: f32[2,1,128], index: 5, kind: output, shape index: {1}]
  %s6 = inlined_call_operand.hbm [shape: f32[2,1,128], index: 6, kind: output, shape index: {2}]
  %7 = xla_tuple %s4, %s5, %s6
  %s8 = sld [smem:[#allocation0]]
  $region81: #{cblx5_forward.8} parent=0
    _
  %s10 = ssub.s32 1, %s8
  %s11 = scalar_select 0, %s10, %s8
  $region1: #{cblx5_forward.8} parent=0
    #allocation2 [shape = 'u8[131072]{0}', space=vmem, size = 0x20000, scoped, tag = 'input window, operand 0']
    #allocation3 [shape = 's32[2]{0}', space=sflag, size = 0x8, scoped, tag = 'scoped memory for cblx5_forward.8']
    #allocation4 [shape = 's32[2]{0}', space=sflag, size = 0x8, scoped, tag = 'scoped memory for cblx5_forward.8']
    #allocation5 [shape = 'u8[32768]{0}', space=vmem, size = 0x8000, scoped, tag = 'input window, operand 1, single buffered']
    #allocation6 [shape = 's32[1]{0}', space=sflag, size = 0x4, scoped, tag = 'scoped memory for cblx5_forward.8']
    #allocation7 [shape = 'u8[512]{0}', space=vmem, size = 0x400, scoped, tag = 'input window, operand 2, single buffered']
    #allocation8 [shape = 'u8[512]{0}', space=vmem, size = 0x400, scoped, tag = 'input window, operand 3, single buffered']
    #allocation9 [shape = 's32[1]{0}', space=sflag, size = 0x4, scoped, tag = 'scoped memory for cblx5_forward.8']
    #allocation10 [shape = 'u8[131072]{0}', space=vmem, size = 0x20000, scoped, tag = 'output window, operand 0']
    #allocation11 [shape = 'u8[1024]{0}', space=vmem, size = 0x400, scoped, tag = 'output window, operand 1']
    #allocation12 [shape = 's32[2]{0}', space=sflag, size = 0x8, scoped, tag = 'scoped memory for cblx5_forward.8']
    #allocation13 [shape = 'u8[1024]{0}', space=vmem, size = 0x400, scoped, tag = 'output window, operand 2']
    %12 = vsyncpa [#allocation3], 0
    %s13 = scalar_lea.sflag [#allocation3], 1
    %14 = vsyncpa %s13, 0
    %15 = vsyncpa [#allocation6], 0
    %16 = vsyncpa [#allocation9], 0
    %17 = vsyncpa [#allocation4], 0
    %s18 = scalar_lea.sflag [#allocation4], 1
    %19 = vsyncpa %s18, 0
    %20 = vsyncpa [#allocation12], 0
    %s21 = scalar_lea.sflag [#allocation12], 1
    %22 = vsyncpa %s21, 0
    loop: start=0, step=1, limit=4
    $region2: #{cblx5_forward.8} parent=1 // loop_pre_header
      _
    $region3: #{cblx5_forward.8} parent=1 // loop_header
      %s24 = sphi 0, %s28
      %p25 = scmp.ge.s32.totalorder %s24, 4
      %s31 = sphi 0, %s43
      %s32 = sphi 0, %s39
      %s33 = sphi 0, %s31
      %s34 = sphi 0, %s32
      %s35 = sphi 0, %s33
      %s36 = sphi 0, %s34
      %s46 = sphi 0, %s48
      %s49 = sphi 0, %s46
      %s50 = sphi 0, %s49
      %s66 = sphi 0, %s50
      %s72 = sphi 0, %s74
      %s75 = sphi 0, %s72
      %s76 = sphi 0, %s75
      %s92 = sphi 0, %s76
      %s96 = sphi 0, %s96
      %s98 = sphi 0, %s96
      %s99 = sphi 0, %s98
      %s113 = sphi 0, %s99
      %s117 = sphi 0, %s117
      %s119 = sphi 0, %s117
      %s120 = sphi 0, %s119
      %s134 = sphi 0, %s120
      %s142 = sphi 0, %s144
      %s145 = sphi 0, %s142
      %s146 = sphi 0, %s145
      %s162 = sphi 0, %s146
      %s170 = sphi 0, %s172
      %s173 = sphi 0, %s170
      %s174 = sphi 0, %s173
      %s190 = sphi 0, %s174
      %s198 = sphi 0, %s200
      %s201 = sphi 0, %s198
      %s202 = sphi 0, %s201
      %s218 = sphi 0, %s202
    $region4: #{cblx5_forward.8} parent=1 // loop_header_branch
      %27 = sbr.rel (%p25) target = $region8
    $region5: #{cblx5_forward.8} parent=1 // loop_body
      %s29 = ssub.s32 %s24, 1
      %s30 = ssub.s32 %s24, 2
      %s37 = sadd.s32 1, %s32
      %p38 = scmp.ge.s32.totalorder %s37, 1
      %s39 = scalar_select %p38, 0, %s37
      %s40 = sadd.s32 1, %s31
      %s41 = scalar_select %p38, %s40, %s31
      %p42 = scmp.ge.s32.totalorder %s41, 2
      %s43 = scalar_select %p42, 0, %s41
      %s44 = ssub.s32 %s31, %s43
      %p45 = scmp.eq.s32.totalorder %s44, 0
      %s47 = sadd.s32 %s46, 1
      %s48 = scalar_select %p45, %s46, %s47
      %p51 = pneg %p45
      %p52 = scmp.eq.s32.totalorder %s24, 1
      %p53 = por %p51, %p52
      %p54 = scmp.ne.s32.totalorder %s46, %s49
      %p55 = scmp.eq.s32.totalorder %s24, 0
      %p56 = por %p54, %p55
      %p57 = scmp.ne.s32.totalorder %s46, %s49
      %p58 = scmp.eq.s32.totalorder %s29, 1
      %p59 = por %p57, %p58
      %p60 = scmp.ne.s32.totalorder %s49, %s50
      %p61 = scmp.eq.s32.totalorder %s29, 0
      %p62 = por %p60, %p61
      %p63 = scmp.ne.s32.totalorder %s49, %s50
      %p64 = scmp.eq.s32.totalorder %s30, 1
      %p65 = por %p63, %p64
      %p67 = scmp.ne.s32.totalorder %s50, %s66
      %p68 = scmp.eq.s32.totalorder %s30, 0
      %p69 = por %p67, %p68
      %s70 = ssub.s32 %s32, %s39
      %p71 = scmp.eq.s32.totalorder %s70, 0
      %s73 = sadd.s32 %s72, 1
      %s74 = scalar_select %p71, %s72, %s73
      %p77 = pneg %p71
      %p78 = scmp.eq.s32.totalorder %s24, 1
      %p79 = por %p77, %p78
      %p80 = scmp.ne.s32.totalorder %s72, %s75
      %p81 = scmp.eq.s32.totalorder %s24, 0
      %p82 = por %p80, %p81
      %p83 = scmp.ne.s32.totalorder %s72, %s75
      %p84 = scmp.eq.s32.totalorder %s29, 1
      %p85 = por %p83, %p84
      %p86 = scmp.ne.s32.totalorder %s75, %s76
      %p87 = scmp.eq.s32.totalorder %s29, 0
      %p88 = por %p86, %p87
      %p89 = scmp.ne.s32.totalorder %s75, %s76
      %p90 = scmp.eq.s32.totalorder %s30, 1
      %p91 = por %p89, %p90
      %p93 = scmp.ne.s32.totalorder %s76, %s92
      %p94 = scmp.eq.s32.totalorder %s30, 0
      %p95 = por %p93, %p94
      %s97 = sadd.s32 %s96, 1
      %p100 = scmp.eq.s32.totalorder %s24, 1
      %p101 = scmp.ne.s32.totalorder %s96, %s98
      %p102 = scmp.eq.s32.totalorder %s24, 0
      %p103 = por %p101, %p102
      %p104 = scmp.ne.s32.totalorder %s96, %s98
      %p105 = scmp.eq.s32.totalorder %s29, 1
      %p106 = por %p104, %p105
      %p107 = scmp.ne.s32.totalorder %s98, %s99
      %p108 = scmp.eq.s32.totalorder %s29, 0
      %p109 = por %p107, %p108
      %p110 = scmp.ne.s32.totalorder %s98, %s99
      %p111 = scmp.eq.s32.totalorder %s30, 1
      %p112 = por %p110, %p111
      %p114 = scmp.ne.s32.totalorder %s99, %s113
      %p115 = scmp.eq.s32.totalorder %s30, 0
      %p116 = por %p114, %p115
      %s118 = sadd.s32 %s117, 1
      %p121 = scmp.eq.s32.totalorder %s24, 1
      %p122 = scmp.ne.s32.totalorder %s117, %s119
      %p123 = scmp.eq.s32.totalorder %s24, 0
      %p124 = por %p122, %p123
      %p125 = scmp.ne.s32.totalorder %s117, %s119
      %p126 = scmp.eq.s32.totalorder %s29, 1
      %p127 = por %p125, %p126
      %p128 = scmp.ne.s32.totalorder %s119, %s120
      %p129 = scmp.eq.s32.totalorder %s29, 0
      %p130 = por %p128, %p129
      %p131 = scmp.ne.s32.totalorder %s119, %s120
      %p132 = scmp.eq.s32.totalorder %s30, 1
      %p133 = por %p131, %p132
      %p135 = scmp.ne.s32.totalorder %s120, %s134
      %p136 = scmp.eq.s32.totalorder %s30, 0
      %p137 = por %p135, %p136
      %s138 = ssub.s32 %s31, %s43
      %s139 = ssub.s32 %s32, %s39
      %s140 = sor.u32 %s138, %s139
      %p141 = scmp.eq.s32.totalorder %s140, 0
      %s143 = sadd.s32 %s142, 1
      %s144 = scalar_select %p141, %s142, %s143
      %p147 = pneg %p141
      %p148 = scmp.eq.s32.totalorder %s24, 1
      %p149 = por %p147, %p148
      %p150 = scmp.ne.s32.totalorder %s142, %s145
      %p151 = scmp.eq.s32.totalorder %s24, 0
      %p152 = por %p150, %p151
      %p153 = scmp.ne.s32.totalorder %s142, %s145
      %p154 = scmp.eq.s32.totalorder %s29, 1
      %p155 = por %p153, %p154
      %p156 = scmp.ne.s32.totalorder %s145, %s146
      %p157 = scmp.eq.s32.totalorder %s29, 0
      %p158 = por %p156, %p157
      %p159 = scmp.ne.s32.totalorder %s145, %s146
      %p160 = scmp.eq.s32.totalorder %s30, 1
      %p161 = por %p159, %p160
      %p163 = scmp.ne.s32.totalorder %s146, %s162
      %p164 = scmp.eq.s32.totalorder %s30, 0
      %p165 = por %p163, %p164
      %s166 = ssub.s32 %s31, %s43
      %s167 = ssub.s32 %s32, %s39
      %s168 = sor.u32 %s166, %s167
      %p169 = scmp.eq.s32.totalorder %s168, 0
      %s171 = sadd.s32 %s170, 1
      %s172 = scalar_select %p169, %s170, %s171
      %p175 = pneg %p169
      %p176 = scmp.eq.s32.totalorder %s24, 1
      %p177 = por %p175, %p176
      %p178 = scmp.ne.s32.totalorder %s170, %s173
      %p179 = scmp.eq.s32.totalorder %s24, 0
      %p180 = por %p178, %p179
      %p181 = scmp.ne.s32.totalorder %s170, %s173
      %p182 = scmp.eq.s32.totalorder %s29, 1
      %p183 = por %p181, %p182
      %p184 = scmp.ne.s32.totalorder %s173, %s174
      %p185 = scmp.eq.s32.totalorder %s29, 0
      %p186 = por %p184, %p185
      %p187 = scmp.ne.s32.totalorder %s173, %s174
      %p188 = scmp.eq.s32.totalorder %s30, 1
      %p189 = por %p187, %p188
      %p191 = scmp.ne.s32.totalorder %s174, %s190
      %p192 = scmp.eq.s32.totalorder %s30, 0
      %p193 = por %p191, %p192
      %s194 = ssub.s32 %s31, %s43
      %s195 = ssub.s32 %s32, %s39
      %s196 = sor.u32 %s194, %s195
      %p197 = scmp.eq.s32.totalorder %s196, 0
      %s199 = sadd.s32 %s198, 1
      %s200 = scalar_select %p197, %s198, %s199
      %p203 = pneg %p197
      %p204 = scmp.eq.s32.totalorder %s24, 1
      %p205 = por %p203, %p204
      %p206 = scmp.ne.s32.totalorder %s198, %s201
      %p207 = scmp.eq.s32.totalorder %s24, 0
      %p208 = por %p206, %p207
      %p209 = scmp.ne.s32.totalorder %s198, %s201
      %p210 = scmp.eq.s32.totalorder %s29, 1
      %p211 = por %p209, %p210
      %p212 = scmp.ne.s32.totalorder %s201, %s202
      %p213 = scmp.eq.s32.totalorder %s29, 0
      %p214 = por %p212, %p213
      %p215 = scmp.ne.s32.totalorder %s201, %s202
      %p216 = scmp.eq.s32.totalorder %s30, 1
      %p217 = por %p215, %p216
      %p219 = scmp.ne.s32.totalorder %s202, %s218
      %p220 = scmp.eq.s32.totalorder %s30, 0
      %p221 = por %p219, %p220
      %p222 = scmp.le.s32.totalorder 1, %s24
      %p223 = scmp.lt.s32.totalorder %s24, 3
      %p224 = pnand %p222, %p223
      %p225 = pneg %p224
      // Predicated region
      $region9: #{cblx5_forward.8} parent=5 // pred_check
        _
      $region10: #{cblx5_forward.8} parent=5 // pred_check_branch
        %227 = sbr.rel (%p224) target = $region12
      $region11: #{cblx5_forward.8} parent=5 // pred_region
        %s228 = ssub.s32 %s24, 1
        // Predicated region
        $region13: #{cblx5_forward.8} parent=11 // pred_check
          %p229 = pneg %p88
        $region14: #{cblx5_forward.8} parent=11 // pred_check_branch
          %231 = sbr.rel (%p229) target = $region16
        $region15: #{cblx5_forward.8} parent=11 // pred_region
          %s233 = ssub.s32 1024, 1024
          %234 = vsyncadd [#allocation6], %s233
          %s235 = smul.addr %s34, 64
          %s236 = scalar_lea.hbm %s1, %s235
          %s237 = sshll.u32 [#allocation5], 4
          %s238 = int_to_ptr.vmem [resolvable:$true] %s237
          %243 = dma.hbm_to_vmem [thread:$0]  %s236, 1024, %s238, [#allocation6], 64, 64, 4
        $region16: #{cblx5_forward.8} parent=11 // pred_fallthru
          _
        // Predicated region
        $region17: #{cblx5_forward.8} parent=11 // pred_check
          %p244 = pneg %p109
        $region18: #{cblx5_forward.8} parent=11 // pred_check_branch
          %246 = sbr.rel (%p244) target = $region20
        $region19: #{cblx5_forward.8} parent=11 // pred_region
          %s248 = ssub.s32 16, 16
          %249 = vsyncadd [#allocation6], %s248
          %s251 = sshll.u32 [#allocation7], 4
          %s252 = int_to_ptr.vmem [resolvable:$true] %s251
          %254 = dma.hbm_to_vmem [thread:$0]  %s2, 16, %s252, [#allocation6]
        $region20: #{cblx5_forward.8} parent=11 // pred_fallthru
          _
        // Predicated region
        $region21: #{cblx5_forward.8} parent=11 // pred_check
          %p255 = pneg %p130
        $region22: #{cblx5_forward.8} parent=11 // pred_check_branch
          %257 = sbr.rel (%p255) target = $region24
        $region23: #{cblx5_forward.8} parent=11 // pred_region
          %s259 = ssub.s32 16, 16
          %260 = vsyncadd [#allocation9], %s259
          %s262 = sshll.u32 [#allocation8], 4
          %s263 = int_to_ptr.vmem [resolvable:$true] %s262
          %265 = dma.hbm_to_vmem [thread:$0]  %s3, 16, %s263, [#allocation9]
        $region24: #{cblx5_forward.8} parent=11 // pred_fallthru
          _
      $region12: #{cblx5_forward.8} parent=5 // pred_fallthru
        _
      %p266 = scmp.lt.s32.totalorder %s24, 2
      // Predicated region
      $region25: #{cblx5_forward.8} parent=5 // pred_check
        %p267 = pneg %p266
      $region26: #{cblx5_forward.8} parent=5 // pred_check_branch
        %269 = sbr.rel (%p267) target = $region28
      $region27: #{cblx5_forward.8} parent=5 // pred_region
        // Predicated region
        $region29: #{cblx5_forward.8} parent=27 // pred_check
          %p270 = pneg %p56
        $region30: #{cblx5_forward.8} parent=27 // pred_check_branch
          %272 = sbr.rel (%p270) target = $region32
        $region31: #{cblx5_forward.8} parent=27 // pred_region
          %s273 = sand.u32 %s46, 1
          %s274 = scalar_lea.sflag [#allocation3], %s273
          %s275 = sand.u32 %s46, 1
          %s276 = smul.addr %s275, 128
          %s277 = scalar_lea.vmem [#allocation2], %s276
          %s279 = ssub.s32 2048, 2048
          %280 = vsyncadd %s274, %s279
          %s281 = smul.addr %s31, 32
          %s282 = smul.addr %s281, 64
          %s283 = scalar_lea.hbm %s0, %s282
          %s284 = sshll.u32 %s277, 4
          %s285 = int_to_ptr.vmem [resolvable:$true] %s284
          %290 = dma.hbm_to_vmem [thread:$0]  %s283, 2048, %s285, %s274, 64, 64, 4
        $region32: #{cblx5_forward.8} parent=27 // pred_fallthru
          _
      $region28: #{cblx5_forward.8} parent=5 // pred_fallthru
        _
      %p291 = scmp.le.s32.totalorder 1, %s24
      %p292 = scmp.lt.s32.totalorder %s24, 3
      %p293 = pnand %p291, %p292
      %p294 = pneg %p293
      // Predicated region
      $region33: #{cblx5_forward.8} parent=5 // pred_check
        _
      $region34: #{cblx5_forward.8} parent=5 // pred_check_branch
        %296 = sbr.rel (%p293) target = $region36
      $region35: #{cblx5_forward.8} parent=5 // pred_region
        %s297 = ssub.s32 %s24, 1
        %s298 = sand.u32 %s49, 1
        %s299 = scalar_lea.sflag [#allocation3], %s298
        %s300 = sand.u32 %s49, 1
        %s301 = smul.addr %s300, 128
        %s302 = scalar_lea.vmem [#allocation2], %s301
        // Predicated region
        $region37: #{cblx5_forward.8} parent=35 // pred_check
          %p303 = pneg %p62
        $region38: #{cblx5_forward.8} parent=35 // pred_check_branch
          %305 = sbr.rel (%p303) target = $region40
        $region39: #{cblx5_forward.8} parent=35 // pred_region
          %306 = dma.done %s299, 2048
        $region40: #{cblx5_forward.8} parent=35 // pred_fallthru
          _
        // Predicated region
        $region41: #{cblx5_forward.8} parent=35 // pred_check
          %p307 = pneg %p88
        $region42: #{cblx5_forward.8} parent=35 // pred_check_branch
          %309 = sbr.rel (%p307) target = $region44
        $region43: #{cblx5_forward.8} parent=35 // pred_region
          %310 = dma.done [#allocation6], 1024
        $region44: #{cblx5_forward.8} parent=35 // pred_fallthru
          _
        // Predicated region
        $region45: #{cblx5_forward.8} parent=35 // pred_check
          %p311 = pneg %p109
        $region46: #{cblx5_forward.8} parent=35 // pred_check_branch
          %313 = sbr.rel (%p311) target = $region48
        $region47: #{cblx5_forward.8} parent=35 // pred_region
          %314 = dma.done [#allocation6], 16
        $region48: #{cblx5_forward.8} parent=35 // pred_fallthru
          _
        // Predicated region
        $region49: #{cblx5_forward.8} parent=35 // pred_check
          %p315 = pneg %p130
        $region50: #{cblx5_forward.8} parent=35 // pred_check_branch
          %317 = sbr.rel (%p315) target = $region52
        $region51: #{cblx5_forward.8} parent=35 // pred_region
          %318 = dma.done [#allocation9], 16
        $region52: #{cblx5_forward.8} parent=35 // pred_fallthru
          _
        %s319 = sand.u32 %s49, 1
        %s320 = scalar_lea.sflag [#allocation3], %s319
        %s321 = sand.u32 %s49, 1
        %s322 = smul.addr %s321, 128
        %s323 = scalar_lea.vmem [#allocation2], %s322
        %p324 = pneg %p62
        %p325 = pneg %p59
        %p326 = pneg %p88
        %p327 = pneg %p85
        %p328 = pneg %p109
        %p329 = pneg %p106
        %p330 = pneg %p130
        %p331 = pneg %p127
        %p332 = pneg %p158
        %p333 = pneg %p155
        %s334 = sand.u32 %s145, 1
        %s335 = scalar_lea.sflag [#allocation4], %s334
        %s336 = sand.u32 %s145, 1
        %s337 = smul.addr %s336, 128
        %s338 = scalar_lea.vmem [#allocation10], %s337
        %p339 = pneg %p186
        %p340 = pneg %p183
        %s341 = sand.u32 %s29, 1
        %s342 = scalar_lea.sflag [#allocation12], %s341
        %s343 = sand.u32 %s173, 1
        %s344 = scalar_lea.vmem [#allocation11], %s343
        %p345 = pneg %p214
        %p346 = pneg %p211
        %s347 = sand.u32 %s29, 1
        %s348 = scalar_lea.sflag [#allocation12], %s347
        %s349 = sand.u32 %s201, 1
        %s350 = scalar_lea.vmem [#allocation13], %s349
        %v352 = vld [vmem:[%s302] sm:$0xf]
        %v353 = vld [vmem:[%s302 + $0x4] sm:$0xf]
        %v354 = vld [vmem:[%s302 + $0x8] sm:$0xf]
        %v355 = vld [vmem:[%s302 + $0xc] sm:$0xf]
        %v356 = vld [vmem:[%s302 + $0x10] sm:$0xf]
        %v357 = vld [vmem:[%s302 + $0x14] sm:$0xf]
        %v358 = vld [vmem:[%s302 + $0x18] sm:$0xf]
        %v359 = vld [vmem:[%s302 + $0x1c] sm:$0xf]
        %v360 = vld [vmem:[%s302 + $0x20] sm:$0xf]
        %v361 = vld [vmem:[%s302 + $0x24] sm:$0xf]
        %v362 = vld [vmem:[%s302 + $0x28] sm:$0xf]
        %v363 = vld [vmem:[%s302 + $0x2c] sm:$0xf]
        %v364 = vld [vmem:[%s302 + $0x30] sm:$0xf]
        %v365 = vld [vmem:[%s302 + $0x34] sm:$0xf]
        %v366 = vld [vmem:[%s302 + $0x38] sm:$0xf]
        %v367 = vld [vmem:[%s302 + $0x3c] sm:$0xf]
        %v368 = vld [vmem:[%s302 + $0x40] sm:$0xf]
        %v369 = vld [vmem:[%s302 + $0x44] sm:$0xf]
        %v370 = vld [vmem:[%s302 + $0x48] sm:$0xf]
        %v371 = vld [vmem:[%s302 + $0x4c] sm:$0xf]
        %v372 = vld [vmem:[%s302 + $0x50] sm:$0xf]
        %v373 = vld [vmem:[%s302 + $0x54] sm:$0xf]
        %v374 = vld [vmem:[%s302 + $0x58] sm:$0xf]
        %v375 = vld [vmem:[%s302 + $0x5c] sm:$0xf]
        %v376 = vld [vmem:[%s302 + $0x60] sm:$0xf]
        %v377 = vld [vmem:[%s302 + $0x64] sm:$0xf]
        %v378 = vld [vmem:[%s302 + $0x68] sm:$0xf]
        %v379 = vld [vmem:[%s302 + $0x6c] sm:$0xf]
        %v380 = vld [vmem:[%s302 + $0x70] sm:$0xf]
        %v381 = vld [vmem:[%s302 + $0x74] sm:$0xf]
        %v382 = vld [vmem:[%s302 + $0x78] sm:$0xf]
        %v383 = vld [vmem:[%s302 + $0x7c] sm:$0xf]
        %v384 = vld [vmem:[#allocation7] sm:$0x1]
        %v385 = vld [vmem:[#allocation8] sm:$0x1]
        %v386 = vunpack.c.l.bf16 %v352
        %v387 = vunpack.c.l.bf16 %v353
        %v388 = vunpack.c.l.bf16 %v354
        %v389 = vunpack.c.l.bf16 %v355
        %v390 = vunpack.c.l.bf16 %v356
        %v391 = vunpack.c.l.bf16 %v357
        %v392 = vunpack.c.l.bf16 %v358
        %v393 = vunpack.c.l.bf16 %v359
        %v394 = vunpack.c.l.bf16 %v360
        %v395 = vunpack.c.l.bf16 %v361
        %v396 = vunpack.c.l.bf16 %v362
        %v397 = vunpack.c.l.bf16 %v363
        %v398 = vunpack.c.l.bf16 %v364
        %v399 = vunpack.c.l.bf16 %v365
        %v400 = vunpack.c.l.bf16 %v366
        %v401 = vunpack.c.l.bf16 %v367
        %v402 = vunpack.c.l.bf16 %v368
        %v403 = vunpack.c.l.bf16 %v369
        %v404 = vunpack.c.l.bf16 %v370
        %v405 = vunpack.c.l.bf16 %v371
        %v406 = vunpack.c.l.bf16 %v372
        %v407 = vunpack.c.l.bf16 %v373
        %v408 = vunpack.c.l.bf16 %v374
        %v409 = vunpack.c.l.bf16 %v375
        %v410 = vunpack.c.l.bf16 %v376
        %v411 = vunpack.c.l.bf16 %v377
        %v412 = vunpack.c.l.bf16 %v378
        %v413 = vunpack.c.l.bf16 %v379
        %v414 = vunpack.c.l.bf16 %v380
        %v415 = vunpack.c.l.bf16 %v381
        %v416 = vunpack.c.l.bf16 %v382
        %v417 = vunpack.c.l.bf16 %v383
        %v419 = vlaneseq
        %v420 = vshrl.u32 %v419, 7
        %v421 = vsub.s32 0, %v420
        %v422 = vrot.slane %v384, %v421
        %v424 = vmul.f32 %v386, %v422
        %v425 = vmul.f32 %v387, %v422
        %v426 = vmul.f32 %v388, %v422
        %v427 = vmul.f32 %v389, %v422
        %v428 = vmul.f32 %v390, %v422
        %v429 = vmul.f32 %v391, %v422
        %v430 = vmul.f32 %v392, %v422
        %v431 = vmul.f32 %v393, %v422
        %v432 = vmul.f32 %v394, %v422
        %v433 = vmul.f32 %v395, %v422
        %v434 = vmul.f32 %v396, %v422
        %v435 = vmul.f32 %v397, %v422
        %v436 = vmul.f32 %v398, %v422
        %v437 = vmul.f32 %v399, %v422
        %v438 = vmul.f32 %v400, %v422
        %v439 = vmul.f32 %v401, %v422
        %v440 = vmul.f32 %v402, %v422
        %v441 = vmul.f32 %v403, %v422
        %v442 = vmul.f32 %v404, %v422
        %v443 = vmul.f32 %v405, %v422
        %v444 = vmul.f32 %v406, %v422
        %v445 = vmul.f32 %v407, %v422
        %v446 = vmul.f32 %v408, %v422
        %v447 = vmul.f32 %v409, %v422
        %v448 = vmul.f32 %v410, %v422
        %v449 = vmul.f32 %v411, %v422
        %v450 = vmul.f32 %v412, %v422
        %v451 = vmul.f32 %v413, %v422
        %v452 = vmul.f32 %v414, %v422
        %v453 = vmul.f32 %v415, %v422
        %v454 = vmul.f32 %v416, %v422
        %v455 = vmul.f32 %v417, %v422
        %v457 = vlaneseq
        %v458 = vshrl.u32 %v457, 7
        %v459 = vsub.s32 0, %v458
        %v460 = vrot.slane %v385, %v459
        %v462 = vadd.f32 %v424, %v460
        %v463 = vadd.f32 %v425, %v460
        %v464 = vadd.f32 %v426, %v460
        %v465 = vadd.f32 %v427, %v460
        %v466 = vadd.f32 %v428, %v460
        %v467 = vadd.f32 %v429, %v460
        %v468 = vadd.f32 %v430, %v460
        %v469 = vadd.f32 %v431, %v460
        %v470 = vadd.f32 %v432, %v460
        %v471 = vadd.f32 %v433, %v460
        %v472 = vadd.f32 %v434, %v460
        %v473 = vadd.f32 %v435, %v460
        %v474 = vadd.f32 %v436, %v460
        %v475 = vadd.f32 %v437, %v460
        %v476 = vadd.f32 %v438, %v460
        %v477 = vadd.f32 %v439, %v460
        %v478 = vadd.f32 %v440, %v460
        %v479 = vadd.f32 %v441, %v460
        %v480 = vadd.f32 %v442, %v460
        %v481 = vadd.f32 %v443, %v460
        %v482 = vadd.f32 %v444, %v460
        %v483 = vadd.f32 %v445, %v460
        %v484 = vadd.f32 %v446, %v460
        %v485 = vadd.f32 %v447, %v460
        %v486 = vadd.f32 %v448, %v460
        %v487 = vadd.f32 %v449, %v460
        %v488 = vadd.f32 %v450, %v460
        %v489 = vadd.f32 %v451, %v460
        %v490 = vadd.f32 %v452, %v460
        %v491 = vadd.f32 %v453, %v460
        %v492 = vadd.f32 %v454, %v460
        %v493 = vadd.f32 %v455, %v460
        %vm494 = vcmp.gt.f32.partialorder %v462, 0.0
        %vm495 = vcmp.gt.f32.partialorder %v463, 0.0
        %vm496 = vcmp.gt.f32.partialorder %v464, 0.0
        %vm497 = vcmp.gt.f32.partialorder %v465, 0.0
        %vm498 = vcmp.gt.f32.partialorder %v466, 0.0
        %vm499 = vcmp.gt.f32.partialorder %v467, 0.0
        %vm500 = vcmp.gt.f32.partialorder %v468, 0.0
        %vm501 = vcmp.gt.f32.partialorder %v469, 0.0
        %vm502 = vcmp.gt.f32.partialorder %v470, 0.0
        %vm503 = vcmp.gt.f32.partialorder %v471, 0.0
        %vm504 = vcmp.gt.f32.partialorder %v472, 0.0
        %vm505 = vcmp.gt.f32.partialorder %v473, 0.0
        %vm506 = vcmp.gt.f32.partialorder %v474, 0.0
        %vm507 = vcmp.gt.f32.partialorder %v475, 0.0
        %vm508 = vcmp.gt.f32.partialorder %v476, 0.0
        %vm509 = vcmp.gt.f32.partialorder %v477, 0.0
        %vm510 = vcmp.gt.f32.partialorder %v478, 0.0
        %vm511 = vcmp.gt.f32.partialorder %v479, 0.0
        %vm512 = vcmp.gt.f32.partialorder %v480, 0.0
        %vm513 = vcmp.gt.f32.partialorder %v481, 0.0
        %vm514 = vcmp.gt.f32.partialorder %v482, 0.0
        %vm515 = vcmp.gt.f32.partialorder %v483, 0.0
        %vm516 = vcmp.gt.f32.partialorder %v484, 0.0
        %vm517 = vcmp.gt.f32.partialorder %v485, 0.0
        %vm518 = vcmp.gt.f32.partialorder %v486, 0.0
        %vm519 = vcmp.gt.f32.partialorder %v487, 0.0
        %vm520 = vcmp.gt.f32.partialorder %v488, 0.0
        %vm521 = vcmp.gt.f32.partialorder %v489, 0.0
        %vm522 = vcmp.gt.f32.partialorder %v490, 0.0
        %vm523 = vcmp.gt.f32.partialorder %v491, 0.0
        %vm524 = vcmp.gt.f32.partialorder %v492, 0.0
        %vm525 = vcmp.gt.f32.partialorder %v493, 0.0
        %v526 = vmul.f32 %v462, 0.1
        %v527 = vmul.f32 %v463, 0.1
        %v528 = vmul.f32 %v464, 0.1
        %v529 = vmul.f32 %v465, 0.1
        %v530 = vmul.f32 %v466, 0.1
        %v531 = vmul.f32 %v467, 0.1
        %v532 = vmul.f32 %v468, 0.1
        %v533 = vmul.f32 %v469, 0.1
        %v534 = vmul.f32 %v470, 0.1
        %v535 = vmul.f32 %v471, 0.1
        %v536 = vmul.f32 %v472, 0.1
        %v537 = vmul.f32 %v473, 0.1
        %v538 = vmul.f32 %v474, 0.1
        %v539 = vmul.f32 %v475, 0.1
        %v540 = vmul.f32 %v476, 0.1
        %v541 = vmul.f32 %v477, 0.1
        %v542 = vmul.f32 %v478, 0.1
        %v543 = vmul.f32 %v479, 0.1
        %v544 = vmul.f32 %v480, 0.1
        %v545 = vmul.f32 %v481, 0.1
        %v546 = vmul.f32 %v482, 0.1
        %v547 = vmul.f32 %v483, 0.1
        %v548 = vmul.f32 %v484, 0.1
        %v549 = vmul.f32 %v485, 0.1
        %v550 = vmul.f32 %v486, 0.1
        %v551 = vmul.f32 %v487, 0.1
        %v552 = vmul.f32 %v488, 0.1
        %v553 = vmul.f32 %v489, 0.1
        %v554 = vmul.f32 %v490, 0.1
        %v555 = vmul.f32 %v491, 0.1
        %v556 = vmul.f32 %v492, 0.1
        %v557 = vmul.f32 %v493, 0.1
        %v558 = vsel %vm494, %v462, %v526
        %v559 = vsel %vm495, %v463, %v527
        %v560 = vsel %vm496, %v464, %v528
        %v561 = vsel %vm497, %v465, %v529
        %v562 = vsel %vm498, %v466, %v530
        %v563 = vsel %vm499, %v467, %v531
        %v564 = vsel %vm500, %v468, %v532
        %v565 = vsel %vm501, %v469, %v533
        %v566 = vsel %vm502, %v470, %v534
        %v567 = vsel %vm503, %v471, %v535
        %v568 = vsel %vm504, %v472, %v536
        %v569 = vsel %vm505, %v473, %v537
        %v570 = vsel %vm506, %v474, %v538
        %v571 = vsel %vm507, %v475, %v539
        %v572 = vsel %vm508, %v476, %v540
        %v573 = vsel %vm509, %v477, %v541
        %v574 = vsel %vm510, %v478, %v542
        %v575 = vsel %vm511, %v479, %v543
        %v576 = vsel %vm512, %v480, %v544
        %v577 = vsel %vm513, %v481, %v545
        %v578 = vsel %vm514, %v482, %v546
        %v579 = vsel %vm515, %v483, %v547
        %v580 = vsel %vm516, %v484, %v548
        %v581 = vsel %vm517, %v485, %v549
        %v582 = vsel %vm518, %v486, %v550
        %v583 = vsel %vm519, %v487, %v551
        %v584 = vsel %vm520, %v488, %v552
        %v585 = vsel %vm521, %v489, %v553
        %v586 = vsel %vm522, %v490, %v554
        %v587 = vsel %vm523, %v491, %v555
        %v588 = vsel %vm524, %v492, %v556
        %v589 = vsel %vm525, %v493, %v557
        %v590 = vpack.c.bf16 %v559, %v558
        %v591 = vpack.c.bf16 %v561, %v560
        %v592 = vpack.c.bf16 %v563, %v562
        %v593 = vpack.c.bf16 %v565, %v564
        %v594 = vpack.c.bf16 %v567, %v566
        %v595 = vpack.c.bf16 %v569, %v568
        %v596 = vpack.c.bf16 %v571, %v570
        %v597 = vpack.c.bf16 %v573, %v572
        %v598 = vpack.c.bf16 %v575, %v574
        %v599 = vpack.c.bf16 %v577, %v576
        %v600 = vpack.c.bf16 %v579, %v578
        %v601 = vpack.c.bf16 %v581, %v580
        %v602 = vpack.c.bf16 %v583, %v582
        %v603 = vpack.c.bf16 %v585, %v584
        %v604 = vpack.c.bf16 %v587, %v586
        %v605 = vpack.c.bf16 %v589, %v588
        %v606 = vld [vmem:[#allocation5] sm:$0xf]
        %v607 = vld [vmem:[#allocation5 + $0x4] sm:$0xf]
        %v608 = vld [vmem:[#allocation5 + $0x8] sm:$0xf]
        %v609 = vld [vmem:[#allocation5 + $0xc] sm:$0xf]
        %v610 = vld [vmem:[#allocation5 + $0x10] sm:$0xf]
        %v611 = vld [vmem:[#allocation5 + $0x14] sm:$0xf]
        %v612 = vld [vmem:[#allocation5 + $0x18] sm:$0xf]
        %v613 = vld [vmem:[#allocation5 + $0x1c] sm:$0xf]
        %v614 = vld [vmem:[#allocation5 + $0x20] sm:$0xf]
        %v615 = vld [vmem:[#allocation5 + $0x24] sm:$0xf]
        %v616 = vld [vmem:[#allocation5 + $0x28] sm:$0xf]
        %v617 = vld [vmem:[#allocation5 + $0x2c] sm:$0xf]
        %v618 = vld [vmem:[#allocation5 + $0x30] sm:$0xf]
        %v619 = vld [vmem:[#allocation5 + $0x34] sm:$0xf]
        %v620 = vld [vmem:[#allocation5 + $0x38] sm:$0xf]
        %v621 = vld [vmem:[#allocation5 + $0x3c] sm:$0xf]
        %v638 = vunpack.c.l.b16 %v606
        %v639 = vunpack.c.l.b16 %v607
        %v640 = vunpack.c.l.b16 %v608
        %v641 = vunpack.c.l.b16 %v609
        %v642 = vunpack.c.l.b16 %v610
        %v643 = vunpack.c.l.b16 %v611
        %v644 = vunpack.c.l.b16 %v612
        %v645 = vunpack.c.l.b16 %v613
        %v646 = vunpack.c.l.b16 %v614
        %v647 = vunpack.c.l.b16 %v615
        %v648 = vunpack.c.l.b16 %v616
        %v649 = vunpack.c.l.b16 %v617
        %v650 = vunpack.c.l.b16 %v618
        %v651 = vunpack.c.l.b16 %v619
        %v652 = vunpack.c.l.b16 %v620
        %v653 = vunpack.c.l.b16 %v621
        %v654 = vpack.c.b16 %v639, %v638
        %v655 = vpack.c.b16 %v641, %v640
        %v656 = vpack.c.b16 %v643, %v642
        %v657 = vpack.c.b16 %v645, %v644
        %v658 = vpack.c.b16 %v647, %v646
        %v659 = vpack.c.b16 %v649, %v648
        %v660 = vpack.c.b16 %v651, %v650
        %v661 = vpack.c.b16 %v653, %v652
        %670 = vmatprep.subr.bf16.mxu0 0
        %671 = vmatpush1.bf16.msra.mxu0 %v654
        %672 = vmatprep.subr.bf16.mxu0 0
        %673 = vmatpush1.bf16.msra.mxu0 %v655
        %674 = vmatprep.subr.bf16.mxu0 0
        %675 = vmatpush1.bf16.msra.mxu0 %v656
        %676 = vmatprep.subr.bf16.mxu0 0
        %677 = vmatpush1.bf16.msra.mxu0 %v657
        %678 = vmatprep.subr.bf16.mxu0 0
        %679 = vmatpush1.bf16.msra.mxu0 %v658
        %680 = vmatprep.subr.bf16.mxu0 0
        %681 = vmatpush1.bf16.msra.mxu0 %v659
        %682 = vmatprep.subr.bf16.mxu0 0
        %683 = vmatpush1.bf16.msra.mxu0 %v660
        %684 = vmatprep.subr.bf16.mxu0 0
        %685 = vmatpush1.bf16.msra.mxu0 %v661
        %686 = vmatprep.subr.bf16.mxu0 0
        %687 = vmatpush1.bf16.msra.mxu0 0
        %688 = vmatprep.subr.bf16.mxu0 0
        %689 = vmatpush1.bf16.msra.mxu0 0
        %690 = vmatprep.subr.bf16.mxu0 0
        %691 = vmatpush1.bf16.msra.mxu0 0
        %692 = vmatprep.subr.bf16.mxu0 0
        %693 = vmatpush1.bf16.msra.mxu0 0
        %694 = vmatprep.subr.bf16.mxu0 0
        %695 = vmatpush1.bf16.msra.mxu0 0
        %696 = vmatprep.subr.bf16.mxu0 0
        %697 = vmatpush1.bf16.msra.mxu0 0
        %698 = vmatprep.subr.bf16.mxu0 0
        %699 = vmatpush1.bf16.msra.mxu0 0
        %700 = vmatprep.subr.bf16.mxu0 0
        %701 = vmatpush1.bf16.msra.mxu0 0
        %702 = vmatprep.mubr.bf16.mxu0 0
        %703 = vmatmul.mubr.bf16.gmra.mrb[0].mxu0 %v590
        %v704 = vpop.f32.mrb[0].mxu0
        %v705 = vadd.f32 0.0, %v704
        %v706 = vpop.f32.mrb[0].mxu0
        %v707 = vpop.f32.mrb[0].mxu0
        %v708 = vadd.f32 0.0, %v707
        %v709 = vpop.f32.mrb[0].mxu0
        %710 = vmatprep.mubr.bf16.mxu0 0
        %711 = vmatmul.mubr.bf16.gmra.mrb[0].mxu0 %v591
        %v712 = vpop.f32.mrb[0].mxu0
        %v713 = vadd.f32 0.0, %v712
        %v714 = vpop.f32.mrb[0].mxu0
        %v715 = vpop.f32.mrb[0].mxu0
        %v716 = vadd.f32 0.0, %v715
        %v717 = vpop.f32.mrb[0].mxu0
        %718 = vmatprep.mubr.bf16.mxu0 0
        %719 = vmatmul.mubr.bf16.gmra.mrb[0].mxu0 %v592
        %v720 = vpop.f32.mrb[0].mxu0
        %v721 = vadd.f32 0.0, %v720
        %v722 = vpop.f32.mrb[0].mxu0
        %v723 = vpop.f32.mrb[0].mxu0
        %v724 = vadd.f32 0.0, %v723
        %v725 = vpop.f32.mrb[0].mxu0
        %726 = vmatprep.mubr.bf16.mxu0 0
        %727 = vmatmul.mubr.bf16.gmra.mrb[0].mxu0 %v593
        %v728 = vpop.f32.mrb[0].mxu0
        %v729 = vadd.f32 0.0, %v728
        %v730 = vpop.f32.mrb[0].mxu0
        %v731 = vpop.f32.mrb[0].mxu0
        %v732 = vadd.f32 0.0, %v731
        %v733 = vpop.f32.mrb[0].mxu0
        %734 = vmatprep.mubr.bf16.mxu0 0
        %735 = vmatmul.mubr.bf16.gmra.mrb[0].mxu0 %v594
        %v736 = vpop.f32.mrb[0].mxu0
        %v737 = vadd.f32 0.0, %v736
        %v738 = vpop.f32.mrb[0].mxu0
        %v739 = vpop.f32.mrb[0].mxu0
        %v740 = vadd.f32 0.0, %v739
        %v741 = vpop.f32.mrb[0].mxu0
        %742 = vmatprep.mubr.bf16.mxu0 0
        %743 = vmatmul.mubr.bf16.gmra.mrb[0].mxu0 %v595
        %v744 = vpop.f32.mrb[0].mxu0
        %v745 = vadd.f32 0.0, %v744
        %v746 = vpop.f32.mrb[0].mxu0
        %v747 = vpop.f32.mrb[0].mxu0
        %v748 = vadd.f32 0.0, %v747
        %v749 = vpop.f32.mrb[0].mxu0
        %750 = vmatprep.mubr.bf16.mxu0 0
        %751 = vmatmul.mubr.bf16.gmra.mrb[0].mxu0 %v596
        %v752 = vpop.f32.mrb[0].mxu0
        %v753 = vadd.f32 0.0, %v752
        %v754 = vpop.f32.mrb[0].mxu0
        %v755 = vpop.f32.mrb[0].mxu0
        %v756 = vadd.f32 0.0, %v755
        %v757 = vpop.f32.mrb[0].mxu0
        %758 = vmatprep.mubr.bf16.mxu0 0
        %759 = vmatmul.mubr.bf16.gmra.mrb[0].mxu0 %v597
        %v760 = vpop.f32.mrb[0].mxu0
        %v761 = vadd.f32 0.0, %v760
        %v762 = vpop.f32.mrb[0].mxu0
        %v763 = vpop.f32.mrb[0].mxu0
        %v764 = vadd.f32 0.0, %v763
        %v765 = vpop.f32.mrb[0].mxu0
        %766 = vmatprep.mubr.bf16.mxu0 0
        %767 = vmatmul.mubr.bf16.gmra.mrb[0].mxu0 %v598
        %v768 = vpop.f32.mrb[0].mxu0
        %v769 = vadd.f32 0.0, %v768
        %v770 = vpop.f32.mrb[0].mxu0
        %v771 = vpop.f32.mrb[0].mxu0
        %v772 = vadd.f32 0.0, %v771
        %v773 = vpop.f32.mrb[0].mxu0
        %774 = vmatprep.mubr.bf16.mxu0 0
        %775 = vmatmul.mubr.bf16.gmra.mrb[0].mxu0 %v599
        %v776 = vpop.f32.mrb[0].mxu0
        %v777 = vadd.f32 0.0, %v776
        %v778 = vpop.f32.mrb[0].mxu0
        %v779 = vpop.f32.mrb[0].mxu0
        %v780 = vadd.f32 0.0, %v779
        %v781 = vpop.f32.mrb[0].mxu0
        %782 = vmatprep.mubr.bf16.mxu0 0
        %783 = vmatmul.mubr.bf16.gmra.mrb[0].mxu0 %v600
        %v784 = vpop.f32.mrb[0].mxu0
        %v785 = vadd.f32 0.0, %v784
        %v786 = vpop.f32.mrb[0].mxu0
        %v787 = vpop.f32.mrb[0].mxu0
        %v788 = vadd.f32 0.0, %v787
        %v789 = vpop.f32.mrb[0].mxu0
        %790 = vmatprep.mubr.bf16.mxu0 0
        %791 = vmatmul.mubr.bf16.gmra.mrb[0].mxu0 %v601
        %v792 = vpop.f32.mrb[0].mxu0
        %v793 = vadd.f32 0.0, %v792
        %v794 = vpop.f32.mrb[0].mxu0
        %v795 = vpop.f32.mrb[0].mxu0
        %v796 = vadd.f32 0.0, %v795
        %v797 = vpop.f32.mrb[0].mxu0
        %798 = vmatprep.mubr.bf16.mxu0 0
        %799 = vmatmul.mubr.bf16.gmra.mrb[0].mxu0 %v602
        %v800 = vpop.f32.mrb[0].mxu0
        %v801 = vadd.f32 0.0, %v800
        %v802 = vpop.f32.mrb[0].mxu0
        %v803 = vpop.f32.mrb[0].mxu0
        %v804 = vadd.f32 0.0, %v803
        %v805 = vpop.f32.mrb[0].mxu0
        %806 = vmatprep.mubr.bf16.mxu0 0
        %807 = vmatmul.mubr.bf16.gmra.mrb[0].mxu0 %v603
        %v808 = vpop.f32.mrb[0].mxu0
        %v809 = vadd.f32 0.0, %v808
        %v810 = vpop.f32.mrb[0].mxu0
        %v811 = vpop.f32.mrb[0].mxu0
        %v812 = vadd.f32 0.0, %v811
        %v813 = vpop.f32.mrb[0].mxu0
        %814 = vmatprep.mubr.bf16.mxu0 0
        %815 = vmatmul.mubr.bf16.gmra.mrb[0].mxu0 %v604
        %v816 = vpop.f32.mrb[0].mxu0
        %v817 = vadd.f32 0.0, %v816
        %v818 = vpop.f32.mrb[0].mxu0
        %v819 = vpop.f32.mrb[0].mxu0
        %v820 = vadd.f32 0.0, %v819
        %v821 = vpop.f32.mrb[0].mxu0
        %822 = vmatprep.mubr.bf16.mxu0 0
        %823 = vmatmul.mubr.bf16.gmra.mrb[0].mxu0 %v605
        %v824 = vpop.f32.mrb[0].mxu0
        %v825 = vadd.f32 0.0, %v824
        %v826 = vpop.f32.mrb[0].mxu0
        %v827 = vpop.f32.mrb[0].mxu0
        %v828 = vadd.f32 0.0, %v827
        %v829 = vpop.f32.mrb[0].mxu0
        %830 = vdwg.mxu0
        %v831 = vpack.c.bf16 %v708, %v705
        %v832 = vpack.c.bf16 %v716, %v713
        %v833 = vpack.c.bf16 %v724, %v721
        %v834 = vpack.c.bf16 %v732, %v729
        %v835 = vpack.c.bf16 %v740, %v737
        %v836 = vpack.c.bf16 %v748, %v745
        %v837 = vpack.c.bf16 %v756, %v753
        %v838 = vpack.c.bf16 %v764, %v761
        %v839 = vpack.c.bf16 %v772, %v769
        %v840 = vpack.c.bf16 %v780, %v777
        %v841 = vpack.c.bf16 %v788, %v785
        %v842 = vpack.c.bf16 %v796, %v793
        %v843 = vpack.c.bf16 %v804, %v801
        %v844 = vpack.c.bf16 %v812, %v809
        %v845 = vpack.c.bf16 %v820, %v817
        %v846 = vpack.c.bf16 %v828, %v825
        %v863 = vunpack.c.l.b16 %v831
        %v864 = vunpack.c.h.b16 %v831
        %v865 = vunpack.c.l.b16 %v832
        %v866 = vunpack.c.h.b16 %v832
        %v867 = vunpack.c.l.b16 %v833
        %v868 = vunpack.c.h.b16 %v833
        %v869 = vunpack.c.l.b16 %v834
        %v870 = vunpack.c.h.b16 %v834
        %v871 = vunpack.c.l.b16 %v835
        %v872 = vunpack.c.h.b16 %v835
        %v873 = vunpack.c.l.b16 %v836
        %v874 = vunpack.c.h.b16 %v836
        %v875 = vunpack.c.l.b16 %v837
        %v876 = vunpack.c.h.b16 %v837
        %v877 = vunpack.c.l.b16 %v838
        %v878 = vunpack.c.h.b16 %v838
        %v879 = vunpack.c.l.b16 %v839
        %v880 = vunpack.c.h.b16 %v839
        %v881 = vunpack.c.l.b16 %v840
        %v882 = vunpack.c.h.b16 %v840
        %v883 = vunpack.c.l.b16 %v841
        %v884 = vunpack.c.h.b16 %v841
        %v885 = vunpack.c.l.b16 %v842
        %v886 = vunpack.c.h.b16 %v842
        %v887 = vunpack.c.l.b16 %v843
        %v888 = vunpack.c.h.b16 %v843
        %v889 = vunpack.c.l.b16 %v844
        %v890 = vunpack.c.h.b16 %v844
        %v891 = vunpack.c.l.b16 %v845
        %v892 = vunpack.c.h.b16 %v845
        %v893 = vunpack.c.l.b16 %v846
        %v894 = vunpack.c.h.b16 %v846
        %v895 = vpack.c.b16 %v863, %v863
        %v896 = vpack.c.b16 %v864, %v864
        %v897 = vpack.c.b16 %v865, %v865
        %v898 = vpack.c.b16 %v866, %v866
        %v899 = vpack.c.b16 %v867, %v867
        %v900 = vpack.c.b16 %v868, %v868
        %v901 = vpack.c.b16 %v869, %v869
        %v902 = vpack.c.b16 %v870, %v870
        %v903 = vpack.c.b16 %v871, %v871
        %v904 = vpack.c.b16 %v872, %v872
        %v905 = vpack.c.b16 %v873, %v873
        %v906 = vpack.c.b16 %v874, %v874
        %v907 = vpack.c.b16 %v875, %v875
        %v908 = vpack.c.b16 %v876, %v876
        %v909 = vpack.c.b16 %v877, %v877
        %v910 = vpack.c.b16 %v878, %v878
        %v911 = vpack.c.b16 %v879, %v879
        %v912 = vpack.c.b16 %v880, %v880
        %v913 = vpack.c.b16 %v881, %v881
        %v914 = vpack.c.b16 %v882, %v882
        %v915 = vpack.c.b16 %v883, %v883
        %v916 = vpack.c.b16 %v884, %v884
        %v917 = vpack.c.b16 %v885, %v885
        %v918 = vpack.c.b16 %v886, %v886
        %v919 = vpack.c.b16 %v887, %v887
        %v920 = vpack.c.b16 %v888, %v888
        %v921 = vpack.c.b16 %v889, %v889
        %v922 = vpack.c.b16 %v890, %v890
        %v923 = vpack.c.b16 %v891, %v891
        %v924 = vpack.c.b16 %v892, %v892
        %v925 = vpack.c.b16 %v893, %v893
        %v926 = vpack.c.b16 %v894, %v894
        %959 = vst [vmem:[%s338] sm:$0xf] %v895
        %960 = vst [vmem:[%s338 + $0x4] sm:$0xf] %v896
        %961 = vst [vmem:[%s338 + $0x8] sm:$0xf] %v897
        %962 = vst [vmem:[%s338 + $0xc] sm:$0xf] %v898
        %963 = vst [vmem:[%s338 + $0x10] sm:$0xf] %v899
        %964 = vst [vmem:[%s338 + $0x14] sm:$0xf] %v900
        %965 = vst [vmem:[%s338 + $0x18] sm:$0xf] %v901
        %966 = vst [vmem:[%s338 + $0x1c] sm:$0xf] %v902
        %967 = vst [vmem:[%s338 + $0x20] sm:$0xf] %v903
        %968 = vst [vmem:[%s338 + $0x24] sm:$0xf] %v904
        %969 = vst [vmem:[%s338 + $0x28] sm:$0xf] %v905
        %970 = vst [vmem:[%s338 + $0x2c] sm:$0xf] %v906
        %971 = vst [vmem:[%s338 + $0x30] sm:$0xf] %v907
        %972 = vst [vmem:[%s338 + $0x34] sm:$0xf] %v908
        %973 = vst [vmem:[%s338 + $0x38] sm:$0xf] %v909
        %974 = vst [vmem:[%s338 + $0x3c] sm:$0xf] %v910
        %975 = vst [vmem:[%s338 + $0x40] sm:$0xf] %v911
        %976 = vst [vmem:[%s338 + $0x44] sm:$0xf] %v912
        %977 = vst [vmem:[%s338 + $0x48] sm:$0xf] %v913
        %978 = vst [vmem:[%s338 + $0x4c] sm:$0xf] %v914
        %979 = vst [vmem:[%s338 + $0x50] sm:$0xf] %v915
        %980 = vst [vmem:[%s338 + $0x54] sm:$0xf] %v916
        %981 = vst [vmem:[%s338 + $0x58] sm:$0xf] %v917
        %982 = vst [vmem:[%s338 + $0x5c] sm:$0xf] %v918
        %983 = vst [vmem:[%s338 + $0x60] sm:$0xf] %v919
        %984 = vst [vmem:[%s338 + $0x64] sm:$0xf] %v920
        %985 = vst [vmem:[%s338 + $0x68] sm:$0xf] %v921
        %986 = vst [vmem:[%s338 + $0x6c] sm:$0xf] %v922
        %987 = vst [vmem:[%s338 + $0x70] sm:$0xf] %v923
        %988 = vst [vmem:[%s338 + $0x74] sm:$0xf] %v924
        %989 = vst [vmem:[%s338 + $0x78] sm:$0xf] %v925
        %990 = vst [vmem:[%s338 + $0x7c] sm:$0xf] %v926
        %v991 = vadd.f32 %v705, %v708
        %v992 = vadd.f32 %v991, %v713
        %v993 = vadd.f32 %v992, %v716
        %v994 = vadd.f32 %v993, %v721
        %v995 = vadd.f32 %v994, %v724
        %v996 = vadd.f32 %v995, %v729
        %v997 = vadd.f32 %v996, %v732
        %v998 = vadd.f32 %v997, %v737
        %v999 = vadd.f32 %v998, %v740
        %v1000 = vadd.f32 %v999, %v745
        %v1001 = vadd.f32 %v1000, %v748
        %v1002 = vadd.f32 %v1001, %v753
        %v1003 = vadd.f32 %v1002, %v756
        %v1004 = vadd.f32 %v1003, %v761
        %v1005 = vadd.f32 %v1004, %v764
        %v1006 = vadd.f32 %v1005, %v769
        %v1007 = vadd.f32 %v1006, %v772
        %v1008 = vadd.f32 %v1007, %v777
        %v1009 = vadd.f32 %v1008, %v780
        %v1010 = vadd.f32 %v1009, %v785
        %v1011 = vadd.f32 %v1010, %v788
        %v1012 = vadd.f32 %v1011, %v793
        %v1013 = vadd.f32 %v1012, %v796
        %v1014 = vadd.f32 %v1013, %v801
        %v1015 = vadd.f32 %v1014, %v804
        %v1016 = vadd.f32 %v1015, %v809
        %v1017 = vadd.f32 %v1016, %v812
        %v1018 = vadd.f32 %v1017, %v817
        %v1019 = vadd.f32 %v1018, %v820
        %v1020 = vadd.f32 %v1019, %v825
        %v1021 = vadd.f32 %v1020, %v828
        %v1022 = vrot.slane %v1021, 4
        %v1023 = vadd.f32 %v1021, %v1022
        %v1024 = vrot.slane %v1023, 2
        %v1025 = vadd.f32 %v1023, %v1024
        %v1026 = vrot.slane %v1025, 1
        %v1027 = vadd.f32 %v1025, %v1026
        %1028 = vst [vmem:[%s344] sm:$0x1] %v1027
        %v1029 = vmul.f32 %v705, %v705
        %v1030 = vmul.f32 %v708, %v708
        %v1031 = vmul.f32 %v713, %v713
        %v1032 = vmul.f32 %v716, %v716
        %v1033 = vmul.f32 %v721, %v721
        %v1034 = vmul.f32 %v724, %v724
        %v1035 = vmul.f32 %v729, %v729
        %v1036 = vmul.f32 %v732, %v732
        %v1037 = vmul.f32 %v737, %v737
        %v1038 = vmul.f32 %v740, %v740
        %v1039 = vmul.f32 %v745, %v745
        %v1040 = vmul.f32 %v748, %v748
        %v1041 = vmul.f32 %v753, %v753
        %v1042 = vmul.f32 %v756, %v756
        %v1043 = vmul.f32 %v761, %v761
        %v1044 = vmul.f32 %v764, %v764
        %v1045 = vmul.f32 %v769, %v769
        %v1046 = vmul.f32 %v772, %v772
        %v1047 = vmul.f32 %v777, %v777
        %v1048 = vmul.f32 %v780, %v780
        %v1049 = vmul.f32 %v785, %v785
        %v1050 = vmul.f32 %v788, %v788
        %v1051 = vmul.f32 %v793, %v793
        %v1052 = vmul.f32 %v796, %v796
        %v1053 = vmul.f32 %v801, %v801
        %v1054 = vmul.f32 %v804, %v804
        %v1055 = vmul.f32 %v809, %v809
        %v1056 = vmul.f32 %v812, %v812
        %v1057 = vmul.f32 %v817, %v817
        %v1058 = vmul.f32 %v820, %v820
        %v1059 = vmul.f32 %v825, %v825
        %v1060 = vmul.f32 %v828, %v828
        %v1061 = vadd.f32 %v1029, %v1030
        %v1062 = vadd.f32 %v1061, %v1031
        %v1063 = vadd.f32 %v1062, %v1032
        %v1064 = vadd.f32 %v1063, %v1033
        %v1065 = vadd.f32 %v1064, %v1034
        %v1066 = vadd.f32 %v1065, %v1035
        %v1067 = vadd.f32 %v1066, %v1036
        %v1068 = vadd.f32 %v1067, %v1037
        %v1069 = vadd.f32 %v1068, %v1038
        %v1070 = vadd.f32 %v1069, %v1039
        %v1071 = vadd.f32 %v1070, %v1040
        %v1072 = vadd.f32 %v1071, %v1041
        %v1073 = vadd.f32 %v1072, %v1042
        %v1074 = vadd.f32 %v1073, %v1043
        %v1075 = vadd.f32 %v1074, %v1044
        %v1076 = vadd.f32 %v1075, %v1045
        %v1077 = vadd.f32 %v1076, %v1046
        %v1078 = vadd.f32 %v1077, %v1047
        %v1079 = vadd.f32 %v1078, %v1048
        %v1080 = vadd.f32 %v1079, %v1049
        %v1081 = vadd.f32 %v1080, %v1050
        %v1082 = vadd.f32 %v1081, %v1051
        %v1083 = vadd.f32 %v1082, %v1052
        %v1084 = vadd.f32 %v1083, %v1053
        %v1085 = vadd.f32 %v1084, %v1054
        %v1086 = vadd.f32 %v1085, %v1055
        %v1087 = vadd.f32 %v1086, %v1056
        %v1088 = vadd.f32 %v1087, %v1057
        %v1089 = vadd.f32 %v1088, %v1058
        %v1090 = vadd.f32 %v1089, %v1059
        %v1091 = vadd.f32 %v1090, %v1060
        %v1092 = vrot.slane %v1091, 4
        %v1093 = vadd.f32 %v1091, %v1092
        %v1094 = vrot.slane %v1093, 2
        %v1095 = vadd.f32 %v1093, %v1094
        %v1096 = vrot.slane %v1095, 1
        %v1097 = vadd.f32 %v1095, %v1096
        %1098 = vst [vmem:[%s350] sm:$0x1] %v1097
        %s1099 = sand.u32 %s145, 1
        %s1100 = scalar_lea.sflag [#allocation4], %s1099
        %s1101 = sand.u32 %s145, 1
        %s1102 = smul.addr %s1101, 128
        %s1103 = scalar_lea.vmem [#allocation10], %s1102
        %s1104 = sand.u32 %s29, 1
        %s1105 = scalar_lea.sflag [#allocation12], %s1104
        %s1106 = sand.u32 %s173, 1
        %s1107 = scalar_lea.vmem [#allocation11], %s1106
        %s1108 = sand.u32 %s29, 1
        %s1109 = scalar_lea.sflag [#allocation12], %s1108
        %s1110 = sand.u32 %s201, 1
        %s1111 = scalar_lea.vmem [#allocation13], %s1110
        // Predicated region
        $region53: #{cblx5_forward.8} parent=35 // pred_check
          %p1112 = pneg %p155
        $region54: #{cblx5_forward.8} parent=35 // pred_check_branch
          %1114 = sbr.rel (%p1112) target = $region56
        $region55: #{cblx5_forward.8} parent=35 // pred_region
          %s1116 = ssub.s32 2048, 2048
          %1117 = vsyncadd %s1100, %s1116
          %s1118 = smul.addr %s33, 32
          %s1119 = sadd.s32 %s34, %s1118
          %s1120 = smul.addr %s1119, 64
          %s1121 = scalar_lea.hbm %s4, %s1120
          %s1122 = sshll.u32 %s1103, 4
          %s1123 = int_to_ptr.vmem [resolvable:$true] %s1122
          %1128 = dma.vmem_to_hbm [thread:$0]  %s1123, 2048, %s1121, %s1100, 64, 64, 4
        $region56: #{cblx5_forward.8} parent=35 // pred_fallthru
          _
        // Predicated region
        $region57: #{cblx5_forward.8} parent=35 // pred_check
          %p1129 = pneg %p183
        $region58: #{cblx5_forward.8} parent=35 // pred_check_branch
          %1131 = sbr.rel (%p1129) target = $region60
        $region59: #{cblx5_forward.8} parent=35 // pred_region
          %s1133 = ssub.s32 16, 16
          %1134 = vsyncadd %s1105, %s1133
          %s1135 = sadd.s32 %s34, %s33
          %s1136 = smul.addr %s1135, 16
          %s1137 = scalar_lea.hbm %s5, %s1136
          %s1139 = sshll.u32 %s1107, 4
          %s1140 = int_to_ptr.vmem [resolvable:$true] %s1139
          %1142 = dma.vmem_to_hbm [thread:$0]  %s1140, 16, %s1137, %s1105
        $region60: #{cblx5_forward.8} parent=35 // pred_fallthru
          _
        // Predicated region
        $region61: #{cblx5_forward.8} parent=35 // pred_check
          %p1143 = pneg %p211
        $region62: #{cblx5_forward.8} parent=35 // pred_check_branch
          %1145 = sbr.rel (%p1143) target = $region64
        $region63: #{cblx5_forward.8} parent=35 // pred_region
          %s1147 = ssub.s32 16, 16
          %1148 = vsyncadd %s1109, %s1147
          %s1149 = sadd.s32 %s34, %s33
          %s1150 = smul.addr %s1149, 16
          %s1151 = scalar_lea.hbm %s6, %s1150
          %s1153 = sshll.u32 %s1111, 4
          %s1154 = int_to_ptr.vmem [resolvable:$true] %s1153
          %1156 = dma.vmem_to_hbm [thread:$0]  %s1154, 16, %s1151, %s1109
        $region64: #{cblx5_forward.8} parent=35 // pred_fallthru
          _
      $region36: #{cblx5_forward.8} parent=5 // pred_fallthru
        _
      %p1157 = scmp.le.s32.totalorder 2, %s24
      // Predicated region
      $region65: #{cblx5_forward.8} parent=5 // pred_check
        %p1158 = pneg %p1157
      $region66: #{cblx5_forward.8} parent=5 // pred_check_branch
        %1160 = sbr.rel (%p1158) target = $region68
      $region67: #{cblx5_forward.8} parent=5 // pred_region
        %s1161 = ssub.s32 %s24, 2
        // Predicated region
        $region69: #{cblx5_forward.8} parent=67 // pred_check
          %p1162 = pneg %p161
        $region70: #{cblx5_forward.8} parent=67 // pred_check_branch
          %1164 = sbr.rel (%p1162) target = $region72
        $region71: #{cblx5_forward.8} parent=67 // pred_region
          %s1165 = sand.u32 %s146, 1
          %s1166 = scalar_lea.sflag [#allocation4], %s1165
          %s1167 = sand.u32 %s146, 1
          %s1168 = smul.addr %s1167, 128
          %s1169 = scalar_lea.vmem [#allocation10], %s1168
          %1170 = dma.done %s1166, 2048
        $region72: #{cblx5_forward.8} parent=67 // pred_fallthru
          _
        // Predicated region
        $region73: #{cblx5_forward.8} parent=67 // pred_check
          %p1171 = pneg %p189
        $region74: #{cblx5_forward.8} parent=67 // pred_check_branch
          %1173 = sbr.rel (%p1171) target = $region76
        $region75: #{cblx5_forward.8} parent=67 // pred_region
          %s1174 = sand.u32 %s30, 1
          %s1175 = scalar_lea.sflag [#allocation12], %s1174
          %s1176 = sand.u32 %s174, 1
          %s1177 = scalar_lea.vmem [#allocation11], %s1176
          %1178 = dma.done %s1175, 16
        $region76: #{cblx5_forward.8} parent=67 // pred_fallthru
          _
        // Predicated region
        $region77: #{cblx5_forward.8} parent=67 // pred_check
          %p1179 = pneg %p217
        $region78: #{cblx5_forward.8} parent=67 // pred_check_branch
          %1181 = sbr.rel (%p1179) target = $region80
        $region79: #{cblx5_forward.8} parent=67 // pred_region
          %s1182 = sand.u32 %s30, 1
          %s1183 = scalar_lea.sflag [#allocation12], %s1182
          %s1184 = sand.u32 %s202, 1
          %s1185 = scalar_lea.vmem [#allocation13], %s1184
          %1186 = dma.done %s1183, 16
        $region80: #{cblx5_forward.8} parent=67 // pred_fallthru
          _
      $region68: #{cblx5_forward.8} parent=5 // pred_fallthru
        _
    $region6: #{cblx5_forward.8} parent=1 // loop_footer
      %s28 = sadd.s32 1, %s24
    $region7: #{cblx5_forward.8} parent=1 // loop_footer_branch
      %23 = sbr.rel target = $region3
    $region8: #{cblx5_forward.8} parent=1 // loop_exit
      _
    %1187 = vsyncpa [#allocation3], 1
    %s1188 = scalar_lea.sflag [#allocation3], 1
    %1189 = vsyncpa %s1188, 1
    %1190 = vsyncpa [#allocation6], 1
    %1191 = vsyncpa [#allocation9], 1
    %1192 = vsyncpa [#allocation4], 1
    %s1193 = scalar_lea.sflag [#allocation4], 1
    %1194 = vsyncpa %s1193, 1
    %1195 = vsyncpa [#allocation12], 1
    %s1196 = scalar_lea.sflag [#allocation12], 1
    %1197 = vsyncpa %s1196, 1

// kernel: cblx5_forward.7
$region0: #{cblx5_forward.7}
  #allocation0 [shape = 'u32[]', space=smem, size = 0x4, offset = 0x4, fixed_abs, tag = 'smem constant byte address 0x4 - core index']
  #allocation1 [shape = 'u32[144,128]{1,0:T(1,128)}', space=vmem, size = 0x12000, scoped, tag = 'internal scratch']
  %s0 = inlined_call_operand.hbm [shape: bf16[2,18,18,128], index: 0, kind: input, shape index: {}]
  %s1 = inlined_call_operand.hbm [shape: bf16[9,128,128], index: 1, kind: input, shape index: {}]
  %s2 = inlined_call_operand.hbm [shape: f32[1,128], index: 2, kind: input, shape index: {}]
  %s3 = inlined_call_operand.hbm [shape: f32[1,128], index: 3, kind: input, shape index: {}]
  %s4 = inlined_call_operand.hbm [shape: bf16[2,256,128], index: 4, kind: output, shape index: {0}]
  %s5 = inlined_call_operand.hbm [shape: f32[2,1,128], index: 5, kind: output, shape index: {1}]
  %s6 = inlined_call_operand.hbm [shape: f32[2,1,128], index: 6, kind: output, shape index: {2}]
  %7 = xla_tuple %s4, %s5, %s6
  %s8 = sld [smem:[#allocation0]]
  $region81: #{cblx5_forward.7} parent=0
    _
  %s10 = ssub.s32 1, %s8
  %s11 = scalar_select 0, %s10, %s8
  $region1: #{cblx5_forward.7} parent=0
    #allocation2 [shape = 'u8[221184]{0}', space=vmem, size = 0x36000, scoped, tag = 'input window, operand 0']
    #allocation3 [shape = 's32[2]{0}', space=sflag, size = 0x8, scoped, tag = 'scoped memory for cblx5_forward.7']
    #allocation4 [shape = 's32[2]{0}', space=sflag, size = 0x8, scoped, tag = 'scoped memory for cblx5_forward.7']
    #allocation5 [shape = 'u8[294912]{0}', space=vmem, size = 0x48000, scoped, tag = 'input window, operand 1, single buffered']
    #allocation6 [shape = 's32[1]{0}', space=sflag, size = 0x4, scoped, tag = 'scoped memory for cblx5_forward.7']
    #allocation7 [shape = 'u8[512]{0}', space=vmem, size = 0x400, scoped, tag = 'input window, operand 2, single buffered']
    #allocation8 [shape = 'u8[512]{0}', space=vmem, size = 0x400, scoped, tag = 'input window, operand 3, single buffered']
    #allocation9 [shape = 's32[1]{0}', space=sflag, size = 0x4, scoped, tag = 'scoped memory for cblx5_forward.7']
    #allocation10 [shape = 'u8[131072]{0}', space=vmem, size = 0x20000, scoped, tag = 'output window, operand 0']
    #allocation11 [shape = 'u8[1024]{0}', space=vmem, size = 0x400, scoped, tag = 'output window, operand 1']
    #allocation12 [shape = 's32[2]{0}', space=sflag, size = 0x8, scoped, tag = 'scoped memory for cblx5_forward.7']
    #allocation13 [shape = 'u8[1024]{0}', space=vmem, size = 0x400, scoped, tag = 'output window, operand 2']
    %12 = vsyncpa [#allocation3], 0
    %s13 = scalar_lea.sflag [#allocation3], 1
    %14 = vsyncpa %s13, 0
    %15 = vsyncpa [#allocation6], 0
    %16 = vsyncpa [#allocation9], 0
    %17 = vsyncpa [#allocation4], 0
    %s18 = scalar_lea.sflag [#allocation4], 1
    %19 = vsyncpa %s18, 0
    %20 = vsyncpa [#allocation12], 0
    %s21 = scalar_lea.sflag [#allocation12], 1
    %22 = vsyncpa %s21, 0
    loop: start=0, step=1, limit=4
    $region2: #{cblx5_forward.7} parent=1 // loop_pre_header
      _
    $region3: #{cblx5_forward.7} parent=1 // loop_header
      %s24 = sphi 0, %s28
      %p25 = scmp.ge.s32.totalorder %s24, 4
      %s31 = sphi 0, %s43
      %s32 = sphi 0, %s39
      %s33 = sphi 0, %s31
      %s34 = sphi 0, %s32
      %s35 = sphi 0, %s33
      %s36 = sphi 0, %s34
      %s46 = sphi 0, %s48
      %s49 = sphi 0, %s46
      %s50 = sphi 0, %s49
      %s66 = sphi 0, %s50
      %s72 = sphi 0, %s74
      %s75 = sphi 0, %s72
      %s76 = sphi 0, %s75
      %s92 = sphi 0, %s76
      %s96 = sphi 0, %s96
      %s98 = sphi 0, %s96
      %s99 = sphi 0, %s98
      %s113 = sphi 0, %s99
      %s117 = sphi 0, %s117
      %s119 = sphi 0, %s117
      %s120 = sphi 0, %s119
      %s134 = sphi 0, %s120
      %s142 = sphi 0, %s144
      %s145 = sphi 0, %s142
      %s146 = sphi 0, %s145
      %s162 = sphi 0, %s146
      %s170 = sphi 0, %s172
      %s173 = sphi 0, %s170
      %s174 = sphi 0, %s173
      %s190 = sphi 0, %s174
      %s198 = sphi 0, %s200
      %s201 = sphi 0, %s198
      %s202 = sphi 0, %s201
      %s218 = sphi 0, %s202
    $region4: #{cblx5_forward.7} parent=1 // loop_header_branch
      %27 = sbr.rel (%p25) target = $region8
    $region5: #{cblx5_forward.7} parent=1 // loop_body
      %s29 = ssub.s32 %s24, 1
      %s30 = ssub.s32 %s24, 2
      %s37 = sadd.s32 1, %s32
      %p38 = scmp.ge.s32.totalorder %s37, 1
      %s39 = scalar_select %p38, 0, %s37
      %s40 = sadd.s32 1, %s31
      %s41 = scalar_select %p38, %s40, %s31
      %p42 = scmp.ge.s32.totalorder %s41, 2
      %s43 = scalar_select %p42, 0, %s41
      %s44 = ssub.s32 %s31, %s43
      %p45 = scmp.eq.s32.totalorder %s44, 0
      %s47 = sadd.s32 %s46, 1
      %s48 = scalar_select %p45, %s46, %s47
      %p51 = pneg %p45
      %p52 = scmp.eq.s32.totalorder %s24, 1
      %p53 = por %p51, %p52
      %p54 = scmp.ne.s32.totalorder %s46, %s49
      %p55 = scmp.eq.s32.totalorder %s24, 0
      %p56 = por %p54, %p55
      %p57 = scmp.ne.s32.totalorder %s46, %s49
      %p58 = scmp.eq.s32.totalorder %s29, 1
      %p59 = por %p57, %p58
      %p60 = scmp.ne.s32.totalorder %s49, %s50
      %p61 = scmp.eq.s32.totalorder %s29, 0
      %p62 = por %p60, %p61
      %p63 = scmp.ne.s32.totalorder %s49, %s50
      %p64 = scmp.eq.s32.totalorder %s30, 1
      %p65 = por %p63, %p64
      %p67 = scmp.ne.s32.totalorder %s50, %s66
      %p68 = scmp.eq.s32.totalorder %s30, 0
      %p69 = por %p67, %p68
      %s70 = ssub.s32 %s32, %s39
      %p71 = scmp.eq.s32.totalorder %s70, 0
      %s73 = sadd.s32 %s72, 1
      %s74 = scalar_select %p71, %s72, %s73
      %p77 = pneg %p71
      %p78 = scmp.eq.s32.totalorder %s24, 1
      %p79 = por %p77, %p78
      %p80 = scmp.ne.s32.totalorder %s72, %s75
      %p81 = scmp.eq.s32.totalorder %s24, 0
      %p82 = por %p80, %p81
      %p83 = scmp.ne.s32.totalorder %s72, %s75
      %p84 = scmp.eq.s32.totalorder %s29, 1
      %p85 = por %p83, %p84
      %p86 = scmp.ne.s32.totalorder %s75, %s76
      %p87 = scmp.eq.s32.totalorder %s29, 0
      %p88 = por %p86, %p87
      %p89 = scmp.ne.s32.totalorder %s75, %s76
      %p90 = scmp.eq.s32.totalorder %s30, 1
      %p91 = por %p89, %p90
      %p93 = scmp.ne.s32.totalorder %s76, %s92
      %p94 = scmp.eq.s32.totalorder %s30, 0
      %p95 = por %p93, %p94
      %s97 = sadd.s32 %s96, 1
      %p100 = scmp.eq.s32.totalorder %s24, 1
      %p101 = scmp.ne.s32.totalorder %s96, %s98
      %p102 = scmp.eq.s32.totalorder %s24, 0
      %p103 = por %p101, %p102
      %p104 = scmp.ne.s32.totalorder %s96, %s98
      %p105 = scmp.eq.s32.totalorder %s29, 1
      %p106 = por %p104, %p105
      %p107 = scmp.ne.s32.totalorder %s98, %s99
      %p108 = scmp.eq.s32.totalorder %s29, 0
      %p109 = por %p107, %p108
      %p110 = scmp.ne.s32.totalorder %s98, %s99
      %p111 = scmp.eq.s32.totalorder %s30, 1
      %p112 = por %p110, %p111
      %p114 = scmp.ne.s32.totalorder %s99, %s113
      %p115 = scmp.eq.s32.totalorder %s30, 0
      %p116 = por %p114, %p115
      %s118 = sadd.s32 %s117, 1
      %p121 = scmp.eq.s32.totalorder %s24, 1
      %p122 = scmp.ne.s32.totalorder %s117, %s119
      %p123 = scmp.eq.s32.totalorder %s24, 0
      %p124 = por %p122, %p123
      %p125 = scmp.ne.s32.totalorder %s117, %s119
      %p126 = scmp.eq.s32.totalorder %s29, 1
      %p127 = por %p125, %p126
      %p128 = scmp.ne.s32.totalorder %s119, %s120
      %p129 = scmp.eq.s32.totalorder %s29, 0
      %p130 = por %p128, %p129
      %p131 = scmp.ne.s32.totalorder %s119, %s120
      %p132 = scmp.eq.s32.totalorder %s30, 1
      %p133 = por %p131, %p132
      %p135 = scmp.ne.s32.totalorder %s120, %s134
      %p136 = scmp.eq.s32.totalorder %s30, 0
      %p137 = por %p135, %p136
      %s138 = ssub.s32 %s31, %s43
      %s139 = ssub.s32 %s32, %s39
      %s140 = sor.u32 %s138, %s139
      %p141 = scmp.eq.s32.totalorder %s140, 0
      %s143 = sadd.s32 %s142, 1
      %s144 = scalar_select %p141, %s142, %s143
      %p147 = pneg %p141
      %p148 = scmp.eq.s32.totalorder %s24, 1
      %p149 = por %p147, %p148
      %p150 = scmp.ne.s32.totalorder %s142, %s145
      %p151 = scmp.eq.s32.totalorder %s24, 0
      %p152 = por %p150, %p151
      %p153 = scmp.ne.s32.totalorder %s142, %s145
      %p154 = scmp.eq.s32.totalorder %s29, 1
      %p155 = por %p153, %p154
      %p156 = scmp.ne.s32.totalorder %s145, %s146
      %p157 = scmp.eq.s32.totalorder %s29, 0
      %p158 = por %p156, %p157
      %p159 = scmp.ne.s32.totalorder %s145, %s146
      %p160 = scmp.eq.s32.totalorder %s30, 1
      %p161 = por %p159, %p160
      %p163 = scmp.ne.s32.totalorder %s146, %s162
      %p164 = scmp.eq.s32.totalorder %s30, 0
      %p165 = por %p163, %p164
      %s166 = ssub.s32 %s31, %s43
      %s167 = ssub.s32 %s32, %s39
      %s168 = sor.u32 %s166, %s167
      %p169 = scmp.eq.s32.totalorder %s168, 0
      %s171 = sadd.s32 %s170, 1
      %s172 = scalar_select %p169, %s170, %s171
      %p175 = pneg %p169
      %p176 = scmp.eq.s32.totalorder %s24, 1
      %p177 = por %p175, %p176
      %p178 = scmp.ne.s32.totalorder %s170, %s173
      %p179 = scmp.eq.s32.totalorder %s24, 0
      %p180 = por %p178, %p179
      %p181 = scmp.ne.s32.totalorder %s170, %s173
      %p182 = scmp.eq.s32.totalorder %s29, 1
      %p183 = por %p181, %p182
      %p184 = scmp.ne.s32.totalorder %s173, %s174
      %p185 = scmp.eq.s32.totalorder %s29, 0
      %p186 = por %p184, %p185
      %p187 = scmp.ne.s32.totalorder %s173, %s174
      %p188 = scmp.eq.s32.totalorder %s30, 1
      %p189 = por %p187, %p188
      %p191 = scmp.ne.s32.totalorder %s174, %s190
      %p192 = scmp.eq.s32.totalorder %s30, 0
      %p193 = por %p191, %p192
      %s194 = ssub.s32 %s31, %s43
      %s195 = ssub.s32 %s32, %s39
      %s196 = sor.u32 %s194, %s195
      %p197 = scmp.eq.s32.totalorder %s196, 0
      %s199 = sadd.s32 %s198, 1
      %s200 = scalar_select %p197, %s198, %s199
      %p203 = pneg %p197
      %p204 = scmp.eq.s32.totalorder %s24, 1
      %p205 = por %p203, %p204
      %p206 = scmp.ne.s32.totalorder %s198, %s201
      %p207 = scmp.eq.s32.totalorder %s24, 0
      %p208 = por %p206, %p207
      %p209 = scmp.ne.s32.totalorder %s198, %s201
      %p210 = scmp.eq.s32.totalorder %s29, 1
      %p211 = por %p209, %p210
      %p212 = scmp.ne.s32.totalorder %s201, %s202
      %p213 = scmp.eq.s32.totalorder %s29, 0
      %p214 = por %p212, %p213
      %p215 = scmp.ne.s32.totalorder %s201, %s202
      %p216 = scmp.eq.s32.totalorder %s30, 1
      %p217 = por %p215, %p216
      %p219 = scmp.ne.s32.totalorder %s202, %s218
      %p220 = scmp.eq.s32.totalorder %s30, 0
      %p221 = por %p219, %p220
      %p222 = scmp.le.s32.totalorder 1, %s24
      %p223 = scmp.lt.s32.totalorder %s24, 3
      %p224 = pnand %p222, %p223
      %p225 = pneg %p224
      // Predicated region
      $region9: #{cblx5_forward.7} parent=5 // pred_check
        _
      $region10: #{cblx5_forward.7} parent=5 // pred_check_branch
        %227 = sbr.rel (%p224) target = $region12
      $region11: #{cblx5_forward.7} parent=5 // pred_region
        %s228 = ssub.s32 %s24, 1
        // Predicated region
        $region13: #{cblx5_forward.7} parent=11 // pred_check
          %p229 = pneg %p88
        $region14: #{cblx5_forward.7} parent=11 // pred_check_branch
          %231 = sbr.rel (%p229) target = $region16
        $region15: #{cblx5_forward.7} parent=11 // pred_region
          %s233 = ssub.s32 9216, 9216
          %234 = vsyncadd [#allocation6], %s233
          %s235 = smul.addr %s34, 64
          %s236 = scalar_lea.hbm %s1, %s235
          %s237 = sshll.u32 [#allocation5], 4
          %s238 = int_to_ptr.vmem [resolvable:$true] %s237
          %243 = dma.hbm_to_vmem [thread:$0]  %s236, 9216, %s238, [#allocation6], 64, 64, 4
        $region16: #{cblx5_forward.7} parent=11 // pred_fallthru
          _
        // Predicated region
        $region17: #{cblx5_forward.7} parent=11 // pred_check
          %p244 = pneg %p109
        $region18: #{cblx5_forward.7} parent=11 // pred_check_branch
          %246 = sbr.rel (%p244) target = $region20
        $region19: #{cblx5_forward.7} parent=11 // pred_region
          %s248 = ssub.s32 16, 16
          %249 = vsyncadd [#allocation6], %s248
          %s251 = sshll.u32 [#allocation7], 4
          %s252 = int_to_ptr.vmem [resolvable:$true] %s251
          %254 = dma.hbm_to_vmem [thread:$0]  %s2, 16, %s252, [#allocation6]
        $region20: #{cblx5_forward.7} parent=11 // pred_fallthru
          _
        // Predicated region
        $region21: #{cblx5_forward.7} parent=11 // pred_check
          %p255 = pneg %p130
        $region22: #{cblx5_forward.7} parent=11 // pred_check_branch
          %257 = sbr.rel (%p255) target = $region24
        $region23: #{cblx5_forward.7} parent=11 // pred_region
          %s259 = ssub.s32 16, 16
          %260 = vsyncadd [#allocation9], %s259
          %s262 = sshll.u32 [#allocation8], 4
          %s263 = int_to_ptr.vmem [resolvable:$true] %s262
          %265 = dma.hbm_to_vmem [thread:$0]  %s3, 16, %s263, [#allocation9]
        $region24: #{cblx5_forward.7} parent=11 // pred_fallthru
          _
      $region12: #{cblx5_forward.7} parent=5 // pred_fallthru
        _
      %p266 = scmp.lt.s32.totalorder %s24, 2
      // Predicated region
      $region25: #{cblx5_forward.7} parent=5 // pred_check
        %p267 = pneg %p266
      $region26: #{cblx5_forward.7} parent=5 // pred_check_branch
        %269 = sbr.rel (%p267) target = $region28
      $region27: #{cblx5_forward.7} parent=5 // pred_region
        // Predicated region
        $region29: #{cblx5_forward.7} parent=27 // pred_check
          %p270 = pneg %p56
        $region30: #{cblx5_forward.7} parent=27 // pred_check_branch
          %272 = sbr.rel (%p270) target = $region32
        $region31: #{cblx5_forward.7} parent=27 // pred_region
          %s273 = sand.u32 %s46, 1
          %s274 = scalar_lea.sflag [#allocation3], %s273
          %s275 = sand.u32 %s46, 1
          %s276 = smul.addr %s275, 216
          %s277 = scalar_lea.vmem [#allocation2], %s276
          %s279 = ssub.s32 3456, 3456
          %280 = vsyncadd %s274, %s279
          %s281 = smul.addr %s31, 54
          %s282 = smul.addr %s281, 64
          %s283 = scalar_lea.hbm %s0, %s282
          %s284 = sshll.u32 %s277, 4
          %s285 = int_to_ptr.vmem [resolvable:$true] %s284
          %290 = dma.hbm_to_vmem [thread:$0]  %s283, 3456, %s285, %s274, 64, 64, 4
        $region32: #{cblx5_forward.7} parent=27 // pred_fallthru
          _
      $region28: #{cblx5_forward.7} parent=5 // pred_fallthru
        _
      %p291 = scmp.le.s32.totalorder 1, %s24
      %p292 = scmp.lt.s32.totalorder %s24, 3
      %p293 = pnand %p291, %p292
      %p294 = pneg %p293
      // Predicated region
      $region33: #{cblx5_forward.7} parent=5 // pred_check
        _
      $region34: #{cblx5_forward.7} parent=5 // pred_check_branch
        %296 = sbr.rel (%p293) target = $region36
      $region35: #{cblx5_forward.7} parent=5 // pred_region
        %s297 = ssub.s32 %s24, 1
        %s298 = sand.u32 %s49, 1
        %s299 = scalar_lea.sflag [#allocation3], %s298
        %s300 = sand.u32 %s49, 1
        %s301 = smul.addr %s300, 216
        %s302 = scalar_lea.vmem [#allocation2], %s301
        // Predicated region
        $region37: #{cblx5_forward.7} parent=35 // pred_check
          %p303 = pneg %p62
        $region38: #{cblx5_forward.7} parent=35 // pred_check_branch
          %305 = sbr.rel (%p303) target = $region40
        $region39: #{cblx5_forward.7} parent=35 // pred_region
          %306 = dma.done %s299, 3456
        $region40: #{cblx5_forward.7} parent=35 // pred_fallthru
          _
        // Predicated region
        $region41: #{cblx5_forward.7} parent=35 // pred_check
          %p307 = pneg %p88
        $region42: #{cblx5_forward.7} parent=35 // pred_check_branch
          %309 = sbr.rel (%p307) target = $region44
        $region43: #{cblx5_forward.7} parent=35 // pred_region
          %310 = dma.done [#allocation6], 9216
        $region44: #{cblx5_forward.7} parent=35 // pred_fallthru
          _
        // Predicated region
        $region45: #{cblx5_forward.7} parent=35 // pred_check
          %p311 = pneg %p109
        $region46: #{cblx5_forward.7} parent=35 // pred_check_branch
          %313 = sbr.rel (%p311) target = $region48
        $region47: #{cblx5_forward.7} parent=35 // pred_region
          %314 = dma.done [#allocation6], 16
        $region48: #{cblx5_forward.7} parent=35 // pred_fallthru
          _
        // Predicated region
        $region49: #{cblx5_forward.7} parent=35 // pred_check
          %p315 = pneg %p130
        $region50: #{cblx5_forward.7} parent=35 // pred_check_branch
          %317 = sbr.rel (%p315) target = $region52
        $region51: #{cblx5_forward.7} parent=35 // pred_region
          %318 = dma.done [#allocation9], 16
        $region52: #{cblx5_forward.7} parent=35 // pred_fallthru
          _
        %s319 = sand.u32 %s49, 1
        %s320 = scalar_lea.sflag [#allocation3], %s319
        %s321 = sand.u32 %s49, 1
        %s322 = smul.addr %s321, 216
        %s323 = scalar_lea.vmem [#allocation2], %s322
        %p324 = pneg %p62
        %p325 = pneg %p59
        %p326 = pneg %p88
        %p327 = pneg %p85
        %p328 = pneg %p109
        %p329 = pneg %p106
        %p330 = pneg %p130
        %p331 = pneg %p127
        %p332 = pneg %p158
        %p333 = pneg %p155
        %s334 = sand.u32 %s145, 1
        %s335 = scalar_lea.sflag [#allocation4], %s334
        %s336 = sand.u32 %s145, 1
        %s337 = smul.addr %s336, 128
        %s338 = scalar_lea.vmem [#allocation10], %s337
        %p339 = pneg %p186
        %p340 = pneg %p183
        %s341 = sand.u32 %s29, 1
        %s342 = scalar_lea.sflag [#allocation12], %s341
        %s343 = sand.u32 %s173, 1
        %s344 = scalar_lea.vmem [#allocation11], %s343
        %p345 = pneg %p214
        %p346 = pneg %p211
        %s347 = sand.u32 %s29, 1
        %s348 = scalar_lea.sflag [#allocation12], %s347
        %s349 = sand.u32 %s201, 1
        %s350 = scalar_lea.vmem [#allocation13], %s349
        %v352 = vld [vmem:[%s302] sm:$0xf]
        %v353 = vld [vmem:[%s302 + $0x4] sm:$0xf]
        %v354 = vld [vmem:[%s302 + $0x8] sm:$0x1]
        %v355 = vld [vmem:[%s302 + $0xc] sm:$0xf]
        %v356 = vld [vmem:[%s302 + $0x10] sm:$0xf]
        %v357 = vld [vmem:[%s302 + $0x14] sm:$0x1]
        %v358 = vld [vmem:[%s302 + $0x18] sm:$0xf]
        %v359 = vld [vmem:[%s302 + $0x1c] sm:$0xf]
        %v360 = vld [vmem:[%s302 + $0x20] sm:$0x1]
        %v361 = vld [vmem:[%s302 + $0x24] sm:$0xf]
        %v362 = vld [vmem:[%s302 + $0x28] sm:$0xf]
        %v363 = vld [vmem:[%s302 + $0x2c] sm:$0x1]
        %v364 = vld [vmem:[%s302 + $0x30] sm:$0xf]
        %v365 = vld [vmem:[%s302 + $0x34] sm:$0xf]
        %v366 = vld [vmem:[%s302 + $0x38] sm:$0x1]
        %v367 = vld [vmem:[%s302 + $0x3c] sm:$0xf]
        %v368 = vld [vmem:[%s302 + $0x40] sm:$0xf]
        %v369 = vld [vmem:[%s302 + $0x44] sm:$0x1]
        %v370 = vld [vmem:[%s302 + $0x48] sm:$0xf]
        %v371 = vld [vmem:[%s302 + $0x4c] sm:$0xf]
        %v372 = vld [vmem:[%s302 + $0x50] sm:$0x1]
        %v373 = vld [vmem:[%s302 + $0x54] sm:$0xf]
        %v374 = vld [vmem:[%s302 + $0x58] sm:$0xf]
        %v375 = vld [vmem:[%s302 + $0x5c] sm:$0x1]
        %v376 = vld [vmem:[%s302 + $0x60] sm:$0xf]
        %v377 = vld [vmem:[%s302 + $0x64] sm:$0xf]
        %v378 = vld [vmem:[%s302 + $0x68] sm:$0x1]
        %v379 = vld [vmem:[%s302 + $0x6c] sm:$0xf]
        %v380 = vld [vmem:[%s302 + $0x70] sm:$0xf]
        %v381 = vld [vmem:[%s302 + $0x74] sm:$0x1]
        %v382 = vld [vmem:[%s302 + $0x78] sm:$0xf]
        %v383 = vld [vmem:[%s302 + $0x7c] sm:$0xf]
        %v384 = vld [vmem:[%s302 + $0x80] sm:$0x1]
        %v385 = vld [vmem:[%s302 + $0x84] sm:$0xf]
        %v386 = vld [vmem:[%s302 + $0x88] sm:$0xf]
        %v387 = vld [vmem:[%s302 + $0x8c] sm:$0x1]
        %v388 = vld [vmem:[%s302 + $0x90] sm:$0xf]
        %v389 = vld [vmem:[%s302 + $0x94] sm:$0xf]
        %v390 = vld [vmem:[%s302 + $0x98] sm:$0x1]
        %v391 = vld [vmem:[%s302 + $0x9c] sm:$0xf]
        %v392 = vld [vmem:[%s302 + $0xa0] sm:$0xf]
        %v393 = vld [vmem:[%s302 + $0xa4] sm:$0x1]
        %v394 = vld [vmem:[%s302 + $0xa8] sm:$0xf]
        %v395 = vld [vmem:[%s302 + $0xac] sm:$0xf]
        %v396 = vld [vmem:[%s302 + $0xb0] sm:$0x1]
        %v397 = vld [vmem:[%s302 + $0xb4] sm:$0xf]
        %v398 = vld [vmem:[%s302 + $0xb8] sm:$0xf]
        %v399 = vld [vmem:[%s302 + $0xbc] sm:$0x1]
        %v400 = vld [vmem:[%s302 + $0xc0] sm:$0xf]
        %v401 = vld [vmem:[%s302 + $0xc4] sm:$0xf]
        %v402 = vld [vmem:[%s302 + $0xc8] sm:$0x1]
        %v403 = vld [vmem:[%s302 + $0xcc] sm:$0xf]
        %v404 = vld [vmem:[%s302 + $0xd0] sm:$0xf]
        %v405 = vld [vmem:[%s302 + $0xd4] sm:$0x1]
        %v406 = vld [vmem:[#allocation7] sm:$0x1]
        %v407 = vld [vmem:[#allocation8] sm:$0x1]
        %v408 = vunpack.c.l.bf16 %v352
        %v409 = vunpack.c.l.bf16 %v353
        %v410 = vunpack.c.l.bf16 %v354
        %v411 = vunpack.c.l.bf16 %v355
        %v412 = vunpack.c.l.bf16 %v356
        %v413 = vunpack.c.l.bf16 %v357
        %v414 = vunpack.c.l.bf16 %v358
        %v415 = vunpack.c.l.bf16 %v359
        %v416 = vunpack.c.l.bf16 %v360
        %v417 = vunpack.c.l.bf16 %v361
        %v418 = vunpack.c.l.bf16 %v362
        %v419 = vunpack.c.l.bf16 %v363
        %v420 = vunpack.c.l.bf16 %v364
        %v421 = vunpack.c.l.bf16 %v365
        %v422 = vunpack.c.l.bf16 %v366
        %v423 = vunpack.c.l.bf16 %v367
        %v424 = vunpack.c.l.bf16 %v368
        %v425 = vunpack.c.l.bf16 %v369
        %v426 = vunpack.c.l.bf16 %v370
        %v427 = vunpack.c.l.bf16 %v371
        %v428 = vunpack.c.l.bf16 %v372
        %v429 = vunpack.c.l.bf16 %v373
        %v430 = vunpack.c.l.bf16 %v374
        %v431 = vunpack.c.l.bf16 %v375
        %v432 = vunpack.c.l.bf16 %v376
        %v433 = vunpack.c.l.bf16 %v377
        %v434 = vunpack.c.l.bf16 %v378
        %v435 = vunpack.c.l.bf16 %v379
        %v436 = vunpack.c.l.bf16 %v380
        %v437 = vunpack.c.l.bf16 %v381
        %v438 = vunpack.c.l.bf16 %v382
        %v439 = vunpack.c.l.bf16 %v383
        %v440 = vunpack.c.l.bf16 %v384
        %v441 = vunpack.c.l.bf16 %v385
        %v442 = vunpack.c.l.bf16 %v386
        %v443 = vunpack.c.l.bf16 %v387
        %v444 = vunpack.c.l.bf16 %v388
        %v445 = vunpack.c.l.bf16 %v389
        %v446 = vunpack.c.l.bf16 %v390
        %v447 = vunpack.c.l.bf16 %v391
        %v448 = vunpack.c.l.bf16 %v392
        %v449 = vunpack.c.l.bf16 %v393
        %v450 = vunpack.c.l.bf16 %v394
        %v451 = vunpack.c.l.bf16 %v395
        %v452 = vunpack.c.l.bf16 %v396
        %v453 = vunpack.c.l.bf16 %v397
        %v454 = vunpack.c.l.bf16 %v398
        %v455 = vunpack.c.l.bf16 %v399
        %v456 = vunpack.c.l.bf16 %v400
        %v457 = vunpack.c.l.bf16 %v401
        %v458 = vunpack.c.l.bf16 %v402
        %v459 = vunpack.c.l.bf16 %v403
        %v460 = vunpack.c.l.bf16 %v404
        %v461 = vunpack.c.l.bf16 %v405
        %v463 = vlaneseq
        %v464 = vshrl.u32 %v463, 7
        %v465 = vsub.s32 0, %v464
        %v466 = vrot.slane %v406, %v465
        %v468 = vmul.f32 %v408, %v466
        %v469 = vmul.f32 %v409, %v466
        %v470 = vmul.f32 %v410, %v466
        %v471 = vmul.f32 %v411, %v466
        %v472 = vmul.f32 %v412, %v466
        %v473 = vmul.f32 %v413, %v466
        %v474 = vmul.f32 %v414, %v466
        %v475 = vmul.f32 %v415, %v466
        %v476 = vmul.f32 %v416, %v466
        %v477 = vmul.f32 %v417, %v466
        %v478 = vmul.f32 %v418, %v466
        %v479 = vmul.f32 %v419, %v466
        %v480 = vmul.f32 %v420, %v466
        %v481 = vmul.f32 %v421, %v466
        %v482 = vmul.f32 %v422, %v466
        %v483 = vmul.f32 %v423, %v466
        %v484 = vmul.f32 %v424, %v466
        %v485 = vmul.f32 %v425, %v466
        %v486 = vmul.f32 %v426, %v466
        %v487 = vmul.f32 %v427, %v466
        %v488 = vmul.f32 %v428, %v466
        %v489 = vmul.f32 %v429, %v466
        %v490 = vmul.f32 %v430, %v466
        %v491 = vmul.f32 %v431, %v466
        %v492 = vmul.f32 %v432, %v466
        %v493 = vmul.f32 %v433, %v466
        %v494 = vmul.f32 %v434, %v466
        %v495 = vmul.f32 %v435, %v466
        %v496 = vmul.f32 %v436, %v466
        %v497 = vmul.f32 %v437, %v466
        %v498 = vmul.f32 %v438, %v466
        %v499 = vmul.f32 %v439, %v466
        %v500 = vmul.f32 %v440, %v466
        %v501 = vmul.f32 %v441, %v466
        %v502 = vmul.f32 %v442, %v466
        %v503 = vmul.f32 %v443, %v466
        %v504 = vmul.f32 %v444, %v466
        %v505 = vmul.f32 %v445, %v466
        %v506 = vmul.f32 %v446, %v466
        %v507 = vmul.f32 %v447, %v466
        %v508 = vmul.f32 %v448, %v466
        %v509 = vmul.f32 %v449, %v466
        %v510 = vmul.f32 %v450, %v466
        %v511 = vmul.f32 %v451, %v466
        %v512 = vmul.f32 %v452, %v466
        %v513 = vmul.f32 %v453, %v466
        %v514 = vmul.f32 %v454, %v466
        %v515 = vmul.f32 %v455, %v466
        %v516 = vmul.f32 %v456, %v466
        %v517 = vmul.f32 %v457, %v466
        %v518 = vmul.f32 %v458, %v466
        %v519 = vmul.f32 %v459, %v466
        %v520 = vmul.f32 %v460, %v466
        %v521 = vmul.f32 %v461, %v466
        %v523 = vlaneseq
        %v524 = vshrl.u32 %v523, 7
        %v525 = vsub.s32 0, %v524
        %v526 = vrot.slane %v407, %v525
        %v528 = vadd.f32 %v468, %v526
        %v529 = vadd.f32 %v469, %v526
        %v530 = vadd.f32 %v470, %v526
        %v531 = vadd.f32 %v471, %v526
        %v532 = vadd.f32 %v472, %v526
        %v533 = vadd.f32 %v473, %v526
        %v534 = vadd.f32 %v474, %v526
        %v535 = vadd.f32 %v475, %v526
        %v536 = vadd.f32 %v476, %v526
        %v537 = vadd.f32 %v477, %v526
        %v538 = vadd.f32 %v478, %v526
        %v539 = vadd.f32 %v479, %v526
        %v540 = vadd.f32 %v480, %v526
        %v541 = vadd.f32 %v481, %v526
        %v542 = vadd.f32 %v482, %v526
        %v543 = vadd.f32 %v483, %v526
        %v544 = vadd.f32 %v484, %v526
        %v545 = vadd.f32 %v485, %v526
        %v546 = vadd.f32 %v486, %v526
        %v547 = vadd.f32 %v487, %v526
        %v548 = vadd.f32 %v488, %v526
        %v549 = vadd.f32 %v489, %v526
        %v550 = vadd.f32 %v490, %v526
        %v551 = vadd.f32 %v491, %v526
        %v552 = vadd.f32 %v492, %v526
        %v553 = vadd.f32 %v493, %v526
        %v554 = vadd.f32 %v494, %v526
        %v555 = vadd.f32 %v495, %v526
        %v556 = vadd.f32 %v496, %v526
        %v557 = vadd.f32 %v497, %v526
        %v558 = vadd.f32 %v498, %v526
        %v559 = vadd.f32 %v499, %v526
        %v560 = vadd.f32 %v500, %v526
        %v561 = vadd.f32 %v501, %v526
        %v562 = vadd.f32 %v502, %v526
        %v563 = vadd.f32 %v503, %v526
        %v564 = vadd.f32 %v504, %v526
        %v565 = vadd.f32 %v505, %v526
        %v566 = vadd.f32 %v506, %v526
        %v567 = vadd.f32 %v507, %v526
        %v568 = vadd.f32 %v508, %v526
        %v569 = vadd.f32 %v509, %v526
        %v570 = vadd.f32 %v510, %v526
        %v571 = vadd.f32 %v511, %v526
        %v572 = vadd.f32 %v512, %v526
        %v573 = vadd.f32 %v513, %v526
        %v574 = vadd.f32 %v514, %v526
        %v575 = vadd.f32 %v515, %v526
        %v576 = vadd.f32 %v516, %v526
        %v577 = vadd.f32 %v517, %v526
        %v578 = vadd.f32 %v518, %v526
        %v579 = vadd.f32 %v519, %v526
        %v580 = vadd.f32 %v520, %v526
        %v581 = vadd.f32 %v521, %v526
        %vm582 = vcmp.gt.f32.partialorder %v528, 0.0
        %vm583 = vcmp.gt.f32.partialorder %v529, 0.0
        %vm584 = vcmp.gt.f32.partialorder %v530, 0.0
        %vm585 = vcmp.gt.f32.partialorder %v531, 0.0
        %vm586 = vcmp.gt.f32.partialorder %v532, 0.0
        %vm587 = vcmp.gt.f32.partialorder %v533, 0.0
        %vm588 = vcmp.gt.f32.partialorder %v534, 0.0
        %vm589 = vcmp.gt.f32.partialorder %v535, 0.0
        %vm590 = vcmp.gt.f32.partialorder %v536, 0.0
        %vm591 = vcmp.gt.f32.partialorder %v537, 0.0
        %vm592 = vcmp.gt.f32.partialorder %v538, 0.0
        %vm593 = vcmp.gt.f32.partialorder %v539, 0.0
        %vm594 = vcmp.gt.f32.partialorder %v540, 0.0
        %vm595 = vcmp.gt.f32.partialorder %v541, 0.0
        %vm596 = vcmp.gt.f32.partialorder %v542, 0.0
        %vm597 = vcmp.gt.f32.partialorder %v543, 0.0
        %vm598 = vcmp.gt.f32.partialorder %v544, 0.0
        %vm599 = vcmp.gt.f32.partialorder %v545, 0.0
        %vm600 = vcmp.gt.f32.partialorder %v546, 0.0
        %vm601 = vcmp.gt.f32.partialorder %v547, 0.0
        %vm602 = vcmp.gt.f32.partialorder %v548, 0.0
        %vm603 = vcmp.gt.f32.partialorder %v549, 0.0
        %vm604 = vcmp.gt.f32.partialorder %v550, 0.0
        %vm605 = vcmp.gt.f32.partialorder %v551, 0.0
        %vm606 = vcmp.gt.f32.partialorder %v552, 0.0
        %vm607 = vcmp.gt.f32.partialorder %v553, 0.0
        %vm608 = vcmp.gt.f32.partialorder %v554, 0.0
        %vm609 = vcmp.gt.f32.partialorder %v555, 0.0
        %vm610 = vcmp.gt.f32.partialorder %v556, 0.0
        %vm611 = vcmp.gt.f32.partialorder %v557, 0.0
        %vm612 = vcmp.gt.f32.partialorder %v558, 0.0
        %vm613 = vcmp.gt.f32.partialorder %v559, 0.0
        %vm614 = vcmp.gt.f32.partialorder %v560, 0.0
        %vm615 = vcmp.gt.f32.partialorder %v561, 0.0
        %vm616 = vcmp.gt.f32.partialorder %v562, 0.0
        %vm617 = vcmp.gt.f32.partialorder %v563, 0.0
        %vm618 = vcmp.gt.f32.partialorder %v564, 0.0
        %vm619 = vcmp.gt.f32.partialorder %v565, 0.0
        %vm620 = vcmp.gt.f32.partialorder %v566, 0.0
        %vm621 = vcmp.gt.f32.partialorder %v567, 0.0
        %vm622 = vcmp.gt.f32.partialorder %v568, 0.0
        %vm623 = vcmp.gt.f32.partialorder %v569, 0.0
        %vm624 = vcmp.gt.f32.partialorder %v570, 0.0
        %vm625 = vcmp.gt.f32.partialorder %v571, 0.0
        %vm626 = vcmp.gt.f32.partialorder %v572, 0.0
        %vm627 = vcmp.gt.f32.partialorder %v573, 0.0
        %vm628 = vcmp.gt.f32.partialorder %v574, 0.0
        %vm629 = vcmp.gt.f32.partialorder %v575, 0.0
        %vm630 = vcmp.gt.f32.partialorder %v576, 0.0
        %vm631 = vcmp.gt.f32.partialorder %v577, 0.0
        %vm632 = vcmp.gt.f32.partialorder %v578, 0.0
        %vm633 = vcmp.gt.f32.partialorder %v579, 0.0
        %vm634 = vcmp.gt.f32.partialorder %v580, 0.0
        %vm635 = vcmp.gt.f32.partialorder %v581, 0.0
        %v636 = vmul.f32 %v528, 0.1
        %v637 = vmul.f32 %v529, 0.1
        %v638 = vmul.f32 %v530, 0.1
        %v639 = vmul.f32 %v531, 0.1
        %v640 = vmul.f32 %v532, 0.1
        %v641 = vmul.f32 %v533, 0.1
        %v642 = vmul.f32 %v534, 0.1
        %v643 = vmul.f32 %v535, 0.1
        %v644 = vmul.f32 %v536, 0.1
        %v645 = vmul.f32 %v537, 0.1
        %v646 = vmul.f32 %v538, 0.1
        %v647 = vmul.f32 %v539, 0.1
        %v648 = vmul.f32 %v540, 0.1
        %v649 = vmul.f32 %v541, 0.1
        %v650 = vmul.f32 %v542, 0.1
        %v651 = vmul.f32 %v543, 0.1
        %v652 = vmul.f32 %v544, 0.1
        %v653 = vmul.f32 %v545, 0.1
        %v654 = vmul.f32 %v546, 0.1
        %v655 = vmul.f32 %v547, 0.1
        %v656 = vmul.f32 %v548, 0.1
        %v657 = vmul.f32 %v549, 0.1
        %v658 = vmul.f32 %v550, 0.1
        %v659 = vmul.f32 %v551, 0.1
        %v660 = vmul.f32 %v552, 0.1
        %v661 = vmul.f32 %v553, 0.1
        %v662 = vmul.f32 %v554, 0.1
        %v663 = vmul.f32 %v555, 0.1
        %v664 = vmul.f32 %v556, 0.1
        %v665 = vmul.f32 %v557, 0.1
        %v666 = vmul.f32 %v558, 0.1
        %v667 = vmul.f32 %v559, 0.1
        %v668 = vmul.f32 %v560, 0.1
        %v669 = vmul.f32 %v561, 0.1
        %v670 = vmul.f32 %v562, 0.1
        %v671 = vmul.f32 %v563, 0.1
        %v672 = vmul.f32 %v564, 0.1
        %v673 = vmul.f32 %v565, 0.1
        %v674 = vmul.f32 %v566, 0.1
        %v675 = vmul.f32 %v567, 0.1
        %v676 = vmul.f32 %v568, 0.1
        %v677 = vmul.f32 %v569, 0.1
        %v678 = vmul.f32 %v570, 0.1
        %v679 = vmul.f32 %v571, 0.1
        %v680 = vmul.f32 %v572, 0.1
        %v681 = vmul.f32 %v573, 0.1
        %v682 = vmul.f32 %v574, 0.1
        %v683 = vmul.f32 %v575, 0.1
        %v684 = vmul.f32 %v576, 0.1
        %v685 = vmul.f32 %v577, 0.1
        %v686 = vmul.f32 %v578, 0.1
        %v687 = vmul.f32 %v579, 0.1
        %v688 = vmul.f32 %v580, 0.1
        %v689 = vmul.f32 %v581, 0.1
        %v690 = vsel %vm582, %v528, %v636
        %v691 = vsel %vm583, %v529, %v637
        %v692 = vsel %vm584, %v530, %v638
        %v693 = vsel %vm585, %v531, %v639
        %v694 = vsel %vm586, %v532, %v640
        %v695 = vsel %vm587, %v533, %v641
        %v696 = vsel %vm588, %v534, %v642
        %v697 = vsel %vm589, %v535, %v643
        %v698 = vsel %vm590, %v536, %v644
        %v699 = vsel %vm591, %v537, %v645
        %v700 = vsel %vm592, %v538, %v646
        %v701 = vsel %vm593, %v539, %v647
        %v702 = vsel %vm594, %v540, %v648
        %v703 = vsel %vm595, %v541, %v649
        %v704 = vsel %vm596, %v542, %v650
        %v705 = vsel %vm597, %v543, %v651
        %v706 = vsel %vm598, %v544, %v652
        %v707 = vsel %vm599, %v545, %v653
        %v708 = vsel %vm600, %v546, %v654
        %v709 = vsel %vm601, %v547, %v655
        %v710 = vsel %vm602, %v548, %v656
        %v711 = vsel %vm603, %v549, %v657
        %v712 = vsel %vm604, %v550, %v658
        %v713 = vsel %vm605, %v551, %v659
        %v714 = vsel %vm606, %v552, %v660
        %v715 = vsel %vm607, %v553, %v661
        %v716 = vsel %vm608, %v554, %v662
        %v717 = vsel %vm609, %v555, %v663
        %v718 = vsel %vm610, %v556, %v664
        %v719 = vsel %vm611, %v557, %v665
        %v720 = vsel %vm612, %v558, %v666
        %v721 = vsel %vm613, %v559, %v667
        %v722 = vsel %vm614, %v560, %v668
        %v723 = vsel %vm615, %v561, %v669
        %v724 = vsel %vm616, %v562, %v670
        %v725 = vsel %vm617, %v563, %v671
        %v726 = vsel %vm618, %v564, %v672
        %v727 = vsel %vm619, %v565, %v673
        %v728 = vsel %vm620, %v566, %v674
        %v729 = vsel %vm621, %v567, %v675
        %v730 = vsel %vm622, %v568, %v676
        %v731 = vsel %vm623, %v569, %v677
        %v732 = vsel %vm624, %v570, %v678
        %v733 = vsel %vm625, %v571, %v679
        %v734 = vsel %vm626, %v572, %v680
        %v735 = vsel %vm627, %v573, %v681
        %v736 = vsel %vm628, %v574, %v682
        %v737 = vsel %vm629, %v575, %v683
        %v738 = vsel %vm630, %v576, %v684
        %v739 = vsel %vm631, %v577, %v685
        %v740 = vsel %vm632, %v578, %v686
        %v741 = vsel %vm633, %v579, %v687
        %v742 = vsel %vm634, %v580, %v688
        %v743 = vsel %vm635, %v581, %v689
        %v744 = vlaneseq
        %v745 = vshrl.u32 %v744, 7
        %v746 = vadd.s32 %v745, 8
        %v747 = vadd.s32 %v745, 16
        %vm748 = vcmp.ge.s32.totalorder %v745, 1
        %vm749 = vcmp.ge.s32.totalorder %v746, 1
        %vm750 = vcmp.ge.s32.totalorder %v747, 1
        %vm751 = vmand 0, %vm748
        %vm752 = vmand 0, %vm749
        %vm753 = vmand 0, %vm750
        %vm754 = vmand 1, %vm748
        %vm755 = vmand 1, %vm749
        %vm756 = vmand 1, %vm750
        %vm757 = vcmp.lt.s32.totalorder %v745, 17
        %vm758 = vcmp.lt.s32.totalorder %v746, 17
        %vm759 = vcmp.lt.s32.totalorder %v747, 17
        %vm760 = vmand %vm751, %vm757
        %vm761 = vmand %vm752, %vm758
        %vm762 = vmand %vm753, %vm759
        %vm763 = vmand %vm754, %vm757
        %vm764 = vmand %vm755, %vm758
        %vm765 = vmand %vm756, %vm759
        %v766 = vsel %vm760, 1, 0
        %v767 = vsel %vm761, 1, 0
        %v768 = vsel %vm762, 1, 0
        %v769 = vsel %vm763, 1, 0
        %v770 = vsel %vm764, 1, 0
        %v771 = vsel %vm765, 1, 0
        %vm772 = vcmp.eq.s32.totalorder %v766, 1
        %vm773 = vcmp.eq.s32.totalorder %v767, 1
        %vm774 = vcmp.eq.s32.totalorder %v768, 1
        %vm775 = vcmp.eq.s32.totalorder %v769, 1
        %vm776 = vcmp.eq.s32.totalorder %v770, 1
        %vm777 = vcmp.eq.s32.totalorder %v771, 1
        %v778 = vsel %vm772, %v690, 0.0
        %v779 = vsel %vm773, %v691, 0.0
        %v780 = vsel %vm774, %v692, 0.0
        %v781 = vsel %vm775, %v693, 0.0
        %v782 = vsel %vm776, %v694, 0.0
        %v783 = vsel %vm777, %v695, 0.0
        %v784 = vsel %vm775, %v696, 0.0
        %v785 = vsel %vm776, %v697, 0.0
        %v786 = vsel %vm777, %v698, 0.0
        %v787 = vsel %vm775, %v699, 0.0
        %v788 = vsel %vm776, %v700, 0.0
        %v789 = vsel %vm777, %v701, 0.0
        %v790 = vsel %vm775, %v702, 0.0
        %v791 = vsel %vm776, %v703, 0.0
        %v792 = vsel %vm777, %v704, 0.0
        %v793 = vsel %vm775, %v705, 0.0
        %v794 = vsel %vm776, %v706, 0.0
        %v795 = vsel %vm777, %v707, 0.0
        %v796 = vsel %vm775, %v708, 0.0
        %v797 = vsel %vm776, %v709, 0.0
        %v798 = vsel %vm777, %v710, 0.0
        %v799 = vsel %vm775, %v711, 0.0
        %v800 = vsel %vm776, %v712, 0.0
        %v801 = vsel %vm777, %v713, 0.0
        %v802 = vsel %vm775, %v714, 0.0
        %v803 = vsel %vm776, %v715, 0.0
        %v804 = vsel %vm777, %v716, 0.0
        %v805 = vsel %vm775, %v717, 0.0
        %v806 = vsel %vm776, %v718, 0.0
        %v807 = vsel %vm777, %v719, 0.0
        %v808 = vsel %vm775, %v720, 0.0
        %v809 = vsel %vm776, %v721, 0.0
        %v810 = vsel %vm777, %v722, 0.0
        %v811 = vsel %vm775, %v723, 0.0
        %v812 = vsel %vm776, %v724, 0.0
        %v813 = vsel %vm777, %v725, 0.0
        %v814 = vsel %vm775, %v726, 0.0
        %v815 = vsel %vm776, %v727, 0.0
        %v816 = vsel %vm777, %v728, 0.0
        %v817 = vsel %vm775, %v729, 0.0
        %v818 = vsel %vm776, %v730, 0.0
        %v819 = vsel %vm777, %v731, 0.0
        %v820 = vsel %vm775, %v732, 0.0
        %v821 = vsel %vm776, %v733, 0.0
        %v822 = vsel %vm777, %v734, 0.0
        %v823 = vsel %vm775, %v735, 0.0
        %v824 = vsel %vm776, %v736, 0.0
        %v825 = vsel %vm777, %v737, 0.0
        %v826 = vsel %vm775, %v738, 0.0
        %v827 = vsel %vm776, %v739, 0.0
        %v828 = vsel %vm777, %v740, 0.0
        %v829 = vsel %vm772, %v741, 0.0
        %v830 = vsel %vm773, %v742, 0.0
        %v831 = vsel %vm774, %v743, 0.0
        %v832 = vpack.c.bf16 %v779, %v778
        %v833 = vpack.c.bf16 %v780, %v780
        %v834 = vpack.c.bf16 %v782, %v781
        %v835 = vpack.c.bf16 %v783, %v783
        %v836 = vpack.c.bf16 %v785, %v784
        %v837 = vpack.c.bf16 %v786, %v786
        %v838 = vpack.c.bf16 %v788, %v787
        %v839 = vpack.c.bf16 %v789, %v789
        %v840 = vpack.c.bf16 %v791, %v790
        %v841 = vpack.c.bf16 %v792, %v792
        %v842 = vpack.c.bf16 %v794, %v793
        %v843 = vpack.c.bf16 %v795, %v795
        %v844 = vpack.c.bf16 %v797, %v796
        %v845 = vpack.c.bf16 %v798, %v798
        %v846 = vpack.c.bf16 %v800, %v799
        %v847 = vpack.c.bf16 %v801, %v801
        %v848 = vpack.c.bf16 %v803, %v802
        %v849 = vpack.c.bf16 %v804, %v804
        %v850 = vpack.c.bf16 %v806, %v805
        %v851 = vpack.c.bf16 %v807, %v807
        %v852 = vpack.c.bf16 %v809, %v808
        %v853 = vpack.c.bf16 %v810, %v810
        %v854 = vpack.c.bf16 %v812, %v811
        %v855 = vpack.c.bf16 %v813, %v813
        %v856 = vpack.c.bf16 %v815, %v814
        %v857 = vpack.c.bf16 %v816, %v816
        %v858 = vpack.c.bf16 %v818, %v817
        %v859 = vpack.c.bf16 %v819, %v819
        %v860 = vpack.c.bf16 %v821, %v820
        %v861 = vpack.c.bf16 %v822, %v822
        %v862 = vpack.c.bf16 %v824, %v823
        %v863 = vpack.c.bf16 %v825, %v825
        %v864 = vpack.c.bf16 %v827, %v826
        %v865 = vpack.c.bf16 %v828, %v828
        %v866 = vpack.c.bf16 %v830, %v829
        %v867 = vpack.c.bf16 %v831, %v831
        %v868 = vld [vmem:[#allocation5] sm:$0xf]
        %v869 = vld [vmem:[#allocation5 + $0x4] sm:$0xf]
        %v870 = vld [vmem:[#allocation5 + $0x8] sm:$0xf]
        %v871 = vld [vmem:[#allocation5 + $0xc] sm:$0xf]
        %v872 = vld [vmem:[#allocation5 + $0x10] sm:$0xf]
        %v873 = vld [vmem:[#allocation5 + $0x14] sm:$0xf]
        %v874 = vld [vmem:[#allocation5 + $0x18] sm:$0xf]
        %v875 = vld [vmem:[#allocation5 + $0x1c] sm:$0xf]
        %v876 = vld [vmem:[#allocation5 + $0x20] sm:$0xf]
        %v877 = vld [vmem:[#allocation5 + $0x24] sm:$0xf]
        %v878 = vld [vmem:[#allocation5 + $0x28] sm:$0xf]
        %v879 = vld [vmem:[#allocation5 + $0x2c] sm:$0xf]
        %v880 = vld [vmem:[#allocation5 + $0x30] sm:$0xf]
        %v881 = vld [vmem:[#allocation5 + $0x34] sm:$0xf]
        %v882 = vld [vmem:[#allocation5 + $0x38] sm:$0xf]
        %v883 = vld [vmem:[#allocation5 + $0x3c] sm:$0xf]
        %vm884 = vsmask.f32 7424
        %v886 = vshrl.u32 %v832, 16
        %v888 = vshll.u32 %v832, 16
        %v890 = vrot.slane %v888, 1
        %v891 = vor.u32 %v886, %v890
        %v893 = vshll.u32 %v833, 16
        %v895 = vrot.slane %v893, 1
        %v896 = vsel %vm884, %v891, %v895
        %v898 = vshrl.u32 %v834, 16
        %v900 = vshll.u32 %v834, 16
        %v902 = vrot.slane %v900, 1
        %v903 = vor.u32 %v898, %v902
        %v905 = vshll.u32 %v835, 16
        %v907 = vrot.slane %v905, 1
        %v908 = vsel %vm884, %v903, %v907
        %v910 = vshrl.u32 %v836, 16
        %v912 = vshll.u32 %v836, 16
        %v914 = vrot.slane %v912, 1
        %v915 = vor.u32 %v910, %v914
        %v917 = vshll.u32 %v837, 16
        %v919 = vrot.slane %v917, 1
        %v920 = vsel %vm884, %v915, %v919
        %v922 = vshrl.u32 %v838, 16
        %v924 = vshll.u32 %v838, 16
        %v926 = vrot.slane %v924, 1
        %v927 = vor.u32 %v922, %v926
        %v929 = vshll.u32 %v839, 16
        %v931 = vrot.slane %v929, 1
        %v932 = vsel %vm884, %v927, %v931
        %v934 = vshrl.u32 %v840, 16
        %v936 = vshll.u32 %v840, 16
        %v938 = vrot.slane %v936, 1
        %v939 = vor.u32 %v934, %v938
        %v941 = vshll.u32 %v841, 16
        %v943 = vrot.slane %v941, 1
        %v944 = vsel %vm884, %v939, %v943
        %v946 = vshrl.u32 %v842, 16
        %v948 = vshll.u32 %v842, 16
        %v950 = vrot.slane %v948, 1
        %v951 = vor.u32 %v946, %v950
        %v953 = vshll.u32 %v843, 16
        %v955 = vrot.slane %v953, 1
        %v956 = vsel %vm884, %v951, %v955
        %v958 = vshrl.u32 %v844, 16
        %v960 = vshll.u32 %v844, 16
        %v962 = vrot.slane %v960, 1
        %v963 = vor.u32 %v958, %v962
        %v965 = vshll.u32 %v845, 16
        %v967 = vrot.slane %v965, 1
        %v968 = vsel %vm884, %v963, %v967
        %v970 = vshrl.u32 %v846, 16
        %v972 = vshll.u32 %v846, 16
        %v974 = vrot.slane %v972, 1
        %v975 = vor.u32 %v970, %v974
        %v977 = vshll.u32 %v847, 16
        %v979 = vrot.slane %v977, 1
        %v980 = vsel %vm884, %v975, %v979
        %v982 = vshrl.u32 %v848, 16
        %v984 = vshll.u32 %v848, 16
        %v986 = vrot.slane %v984, 1
        %v987 = vor.u32 %v982, %v986
        %v989 = vshll.u32 %v849, 16
        %v991 = vrot.slane %v989, 1
        %v992 = vsel %vm884, %v987, %v991
        %v994 = vshrl.u32 %v850, 16
        %v996 = vshll.u32 %v850, 16
        %v998 = vrot.slane %v996, 1
        %v999 = vor.u32 %v994, %v998
        %v1001 = vshll.u32 %v851, 16
        %v1003 = vrot.slane %v1001, 1
        %v1004 = vsel %vm884, %v999, %v1003
        %v1006 = vshrl.u32 %v852, 16
        %v1008 = vshll.u32 %v852, 16
        %v1010 = vrot.slane %v1008, 1
        %v1011 = vor.u32 %v1006, %v1010
        %v1013 = vshll.u32 %v853, 16
        %v1015 = vrot.slane %v1013, 1
        %v1016 = vsel %vm884, %v1011, %v1015
        %v1018 = vshrl.u32 %v854, 16
        %v1020 = vshll.u32 %v854, 16
        %v1022 = vrot.slane %v1020, 1
        %v1023 = vor.u32 %v1018, %v1022
        %v1025 = vshll.u32 %v855, 16
        %v1027 = vrot.slane %v1025, 1
        %v1028 = vsel %vm884, %v1023, %v1027
        %v1030 = vshrl.u32 %v856, 16
        %v1032 = vshll.u32 %v856, 16
        %v1034 = vrot.slane %v1032, 1
        %v1035 = vor.u32 %v1030, %v1034
        %v1037 = vshll.u32 %v857, 16
        %v1039 = vrot.slane %v1037, 1
        %v1040 = vsel %vm884, %v1035, %v1039
        %v1042 = vshrl.u32 %v858, 16
        %v1044 = vshll.u32 %v858, 16
        %v1046 = vrot.slane %v1044, 1
        %v1047 = vor.u32 %v1042, %v1046
        %v1049 = vshll.u32 %v859, 16
        %v1051 = vrot.slane %v1049, 1
        %v1052 = vsel %vm884, %v1047, %v1051
        %v1054 = vshrl.u32 %v860, 16
        %v1056 = vshll.u32 %v860, 16
        %v1058 = vrot.slane %v1056, 1
        %v1059 = vor.u32 %v1054, %v1058
        %v1061 = vshll.u32 %v861, 16
        %v1063 = vrot.slane %v1061, 1
        %v1064 = vsel %vm884, %v1059, %v1063
        %v1066 = vshrl.u32 %v862, 16
        %v1068 = vshll.u32 %v862, 16
        %v1070 = vrot.slane %v1068, 1
        %v1071 = vor.u32 %v1066, %v1070
        %v1073 = vshll.u32 %v863, 16
        %v1075 = vrot.slane %v1073, 1
        %v1076 = vsel %vm884, %v1071, %v1075
        %s1093 = scalar_lea.vmem [#allocation5], 64
        %v1094 = vld [vmem:[%s1093] sm:$0xf]
        %v1095 = vld [vmem:[%s1093 + $0x4] sm:$0xf]
        %v1096 = vld [vmem:[%s1093 + $0x8] sm:$0xf]
        %v1097 = vld [vmem:[%s1093 + $0xc] sm:$0xf]
        %v1098 = vld [vmem:[%s1093 + $0x10] sm:$0xf]
        %v1099 = vld [vmem:[%s1093 + $0x14] sm:$0xf]
        %v1100 = vld [vmem:[%s1093 + $0x18] sm:$0xf]
        %v1101 = vld [vmem:[%s1093 + $0x1c] sm:$0xf]
        %v1102 = vld [vmem:[%s1093 + $0x20] sm:$0xf]
        %v1103 = vld [vmem:[%s1093 + $0x24] sm:$0xf]
        %v1104 = vld [vmem:[%s1093 + $0x28] sm:$0xf]
        %v1105 = vld [vmem:[%s1093 + $0x2c] sm:$0xf]
        %v1106 = vld [vmem:[%s1093 + $0x30] sm:$0xf]
        %v1107 = vld [vmem:[%s1093 + $0x34] sm:$0xf]
        %v1108 = vld [vmem:[%s1093 + $0x38] sm:$0xf]
        %v1109 = vld [vmem:[%s1093 + $0x3c] sm:$0xf]
        %v1126 = vunpack.c.l.b16 %v1094
        %v1127 = vunpack.c.l.b16 %v1095
        %v1128 = vunpack.c.l.b16 %v1096
        %v1129 = vunpack.c.l.b16 %v1097
        %v1130 = vunpack.c.l.b16 %v1098
        %v1131 = vunpack.c.l.b16 %v1099
        %v1132 = vunpack.c.l.b16 %v1100
        %v1133 = vunpack.c.l.b16 %v1101
        %v1134 = vunpack.c.l.b16 %v1102
        %v1135 = vunpack.c.l.b16 %v1103
        %v1136 = vunpack.c.l.b16 %v1104
        %v1137 = vunpack.c.l.b16 %v1105
        %v1138 = vunpack.c.l.b16 %v1106
        %v1139 = vunpack.c.l.b16 %v1107
        %v1140 = vunpack.c.l.b16 %v1108
        %v1141 = vunpack.c.l.b16 %v1109
        %v1142 = vpack.c.b16 %v1127, %v1126
        %v1143 = vpack.c.b16 %v1129, %v1128
        %v1144 = vpack.c.b16 %v1131, %v1130
        %v1145 = vpack.c.b16 %v1133, %v1132
        %v1146 = vpack.c.b16 %v1135, %v1134
        %v1147 = vpack.c.b16 %v1137, %v1136
        %v1148 = vpack.c.b16 %v1139, %v1138
        %v1149 = vpack.c.b16 %v1141, %v1140
        %1158 = vmatprep.subr.bf16.mxu0 0
        %1159 = vmatpush1.bf16.msra.mxu0 %v1142
        %1160 = vmatprep.subr.bf16.mxu0 0
        %1161 = vmatpush1.bf16.msra.mxu0 %v1143
        %1162 = vmatprep.subr.bf16.mxu0 0
        %1163 = vmatpush1.bf16.msra.mxu0 %v1144
        %1164 = vmatprep.subr.bf16.mxu0 0
        %1165 = vmatpush1.bf16.msra.mxu0 %v1145
        %1166 = vmatprep.subr.bf16.mxu0 0
        %1167 = vmatpush1.bf16.msra.mxu0 %v1146
        %1168 = vmatprep.subr.bf16.mxu0 0
        %1169 = vmatpush1.bf16.msra.mxu0 %v1147
        %1170 = vmatprep.subr.bf16.mxu0 0
        %1171 = vmatpush1.bf16.msra.mxu0 %v1148
        %1172 = vmatprep.subr.bf16.mxu0 0
        %1173 = vmatpush1.bf16.msra.mxu0 %v1149
        %1174 = vmatprep.subr.bf16.mxu0 0
        %1175 = vmatpush1.bf16.msra.mxu0 0
        %1176 = vmatprep.subr.bf16.mxu0 0
        %1177 = vmatpush1.bf16.msra.mxu0 0
        %1178 = vmatprep.subr.bf16.mxu0 0
        %1179 = vmatpush1.bf16.msra.mxu0 0
        %1180 = vmatprep.subr.bf16.mxu0 0
        %1181 = vmatpush1.bf16.msra.mxu0 0
        %1182 = vmatprep.subr.bf16.mxu0 0
        %1183 = vmatpush1.bf16.msra.mxu0 0
        %1184 = vmatprep.subr.bf16.mxu0 0
        %1185 = vmatpush1.bf16.msra.mxu0 0
        %1186 = vmatprep.subr.bf16.mxu0 0
        %1187 = vmatpush1.bf16.msra.mxu0 0
        %1188 = vmatprep.subr.bf16.mxu0 0
        %1189 = vmatpush1.bf16.msra.mxu0 0
        %1190 = vmatprep.mubr.bf16.mxu0 0
        %1191 = vmatmul.mubr.bf16.gmra.mrb[0].mxu0 %v896
        %v1192 = vpop.f32.mrb[0].mxu0
        %v1193 = vadd.f32 0.0, %v1192
        %v1194 = vpop.f32.mrb[0].mxu0
        %v1195 = vpop.f32.mrb[0].mxu0
        %v1196 = vadd.f32 0.0, %v1195
        %v1197 = vpop.f32.mrb[0].mxu0
        %1198 = vmatprep.mubr.bf16.mxu0 0
        %1199 = vmatmul.mubr.bf16.gmra.mrb[0].mxu0 %v908
        %v1200 = vpop.f32.mrb[0].mxu0
        %v1201 = vadd.f32 0.0, %v1200
        %v1202 = vpop.f32.mrb[0].mxu0
        %v1203 = vpop.f32.mrb[0].mxu0
        %v1204 = vadd.f32 0.0, %v1203
        %v1205 = vpop.f32.mrb[0].mxu0
        %1206 = vmatprep.mubr.bf16.mxu0 0
        %1207 = vmatmul.mubr.bf16.gmra.mrb[0].mxu0 %v920
        %v1208 = vpop.f32.mrb[0].mxu0
        %v1209 = vadd.f32 0.0, %v1208
        %v1210 = vpop.f32.mrb[0].mxu0
        %v1211 = vpop.f32.mrb[0].mxu0
        %v1212 = vadd.f32 0.0, %v1211
        %v1213 = vpop.f32.mrb[0].mxu0
        %1214 = vmatprep.mubr.bf16.mxu0 0
        %1215 = vmatmul.mubr.bf16.gmra.mrb[0].mxu0 %v932
        %v1216 = vpop.f32.mrb[0].mxu0
        %v1217 = vadd.f32 0.0, %v1216
        %v1218 = vpop.f32.mrb[0].mxu0
        %v1219 = vpop.f32.mrb[0].mxu0
        %v1220 = vadd.f32 0.0, %v1219
        %v1221 = vpop.f32.mrb[0].mxu0
        %1222 = vmatprep.mubr.bf16.mxu0 0
        %1223 = vmatmul.mubr.bf16.gmra.mrb[0].mxu0 %v944
        %v1224 = vpop.f32.mrb[0].mxu0
        %v1225 = vadd.f32 0.0, %v1224
        %v1226 = vpop.f32.mrb[0].mxu0
        %v1227 = vpop.f32.mrb[0].mxu0
        %v1228 = vadd.f32 0.0, %v1227
        %v1229 = vpop.f32.mrb[0].mxu0
        %1230 = vmatprep.mubr.bf16.mxu0 0
        %1231 = vmatmul.mubr.bf16.gmra.mrb[0].mxu0 %v956
        %v1232 = vpop.f32.mrb[0].mxu0
        %v1233 = vadd.f32 0.0, %v1232
        %v1234 = vpop.f32.mrb[0].mxu0
        %v1235 = vpop.f32.mrb[0].mxu0
        %v1236 = vadd.f32 0.0, %v1235
        %v1237 = vpop.f32.mrb[0].mxu0
        %1238 = vmatprep.mubr.bf16.mxu0 0
        %1239 = vmatmul.mubr.bf16.gmra.mrb[0].mxu0 %v968
        %v1240 = vpop.f32.mrb[0].mxu0
        %v1241 = vadd.f32 0.0, %v1240
        %v1242 = vpop.f32.mrb[0].mxu0
        %v1243 = vpop.f32.mrb[0].mxu0
        %v1244 = vadd.f32 0.0, %v1243
        %v1245 = vpop.f32.mrb[0].mxu0
        %1246 = vmatprep.mubr.bf16.mxu0 0
        %1247 = vmatmul.mubr.bf16.gmra.mrb[0].mxu0 %v980
        %v1248 = vpop.f32.mrb[0].mxu0
        %v1249 = vadd.f32 0.0, %v1248
        %v1250 = vpop.f32.mrb[0].mxu0
        %v1251 = vpop.f32.mrb[0].mxu0
        %v1252 = vadd.f32 0.0, %v1251
        %v1253 = vpop.f32.mrb[0].mxu0
        %1254 = vmatprep.mubr.bf16.mxu0 0
        %1255 = vmatmul.mubr.bf16.gmra.mrb[0].mxu0 %v992
        %v1256 = vpop.f32.mrb[0].mxu0
        %v1257 = vadd.f32 0.0, %v1256
        %v1258 = vpop.f32.mrb[0].mxu0
        %v1259 = vpop.f32.mrb[0].mxu0
        %v1260 = vadd.f32 0.0, %v1259
        %v1261 = vpop.f32.mrb[0].mxu0
        %1262 = vmatprep.mubr.bf16.mxu0 0
        %1263 = vmatmul.mubr.bf16.gmra.mrb[0].mxu0 %v1004
        %v1264 = vpop.f32.mrb[0].mxu0
        %v1265 = vadd.f32 0.0, %v1264
        %v1266 = vpop.f32.mrb[0].mxu0
        %v1267 = vpop.f32.mrb[0].mxu0
        %v1268 = vadd.f32 0.0, %v1267
        %v1269 = vpop.f32.mrb[0].mxu0
        %1270 = vmatprep.mubr.bf16.mxu0 0
        %1271 = vmatmul.mubr.bf16.gmra.mrb[0].mxu0 %v1016
        %v1272 = vpop.f32.mrb[0].mxu0
        %v1273 = vadd.f32 0.0, %v1272
        %v1274 = vpop.f32.mrb[0].mxu0
        %v1275 = vpop.f32.mrb[0].mxu0
        %v1276 = vadd.f32 0.0, %v1275
        %v1277 = vpop.f32.mrb[0].mxu0
        %1278 = vmatprep.mubr.bf16.mxu0 0
        %1279 = vmatmul.mubr.bf16.gmra.mrb[0].mxu0 %v1028
        %v1280 = vpop.f32.mrb[0].mxu0
        %v1281 = vadd.f32 0.0, %v1280
        %v1282 = vpop.f32.mrb[0].mxu0
        %v1283 = vpop.f32.mrb[0].mxu0
        %v1284 = vadd.f32 0.0, %v1283
        %v1285 = vpop.f32.mrb[0].mxu0
        %1286 = vmatprep.mubr.bf16.mxu0 0
        %1287 = vmatmul.mubr.bf16.gmra.mrb[0].mxu0 %v1040
        %v1288 = vpop.f32.mrb[0].mxu0
        %v1289 = vadd.f32 0.0, %v1288
        %v1290 = vpop.f32.mrb[0].mxu0
        %v1291 = vpop.f32.mrb[0].mxu0
        %v1292 = vadd.f32 0.0, %v1291
        %v1293 = vpop.f32.mrb[0].mxu0
        %1294 = vmatprep.mubr.bf16.mxu0 0
        %1295 = vmatmul.mubr.bf16.gmra.mrb[0].mxu0 %v1052
        %v1296 = vpop.f32.mrb[0].mxu0
        %v1297 = vadd.f32 0.0, %v1296
        %v1298 = vpop.f32.mrb[0].mxu0
        %v1299 = vpop.f32.mrb[0].mxu0
        %v1300 = vadd.f32 0.0, %v1299
        %v1301 = vpop.f32.mrb[0].mxu0
        %1302 = vmatprep.mubr.bf16.mxu0 0
        %1303 = vmatmul.mubr.bf16.gmra.mrb[0].mxu0 %v1064
        %v1304 = vpop.f32.mrb[0].mxu0
        %v1305 = vadd.f32 0.0, %v1304
        %v1306 = vpop.f32.mrb[0].mxu0
        %v1307 = vpop.f32.mrb[0].mxu0
        %v1308 = vadd.f32 0.0, %v1307
        %v1309 = vpop.f32.mrb[0].mxu0
        %1310 = vmatprep.mubr.bf16.mxu0 0
        %1311 = vmatmul.mubr.bf16.gmra.mrb[0].mxu0 %v1076
        %v1312 = vpop.f32.mrb[0].mxu0
        %v1313 = vadd.f32 0.0, %v1312
        %v1314 = vpop.f32.mrb[0].mxu0
        %v1315 = vpop.f32.mrb[0].mxu0
        %v1316 = vadd.f32 0.0, %v1315
        %v1317 = vpop.f32.mrb[0].mxu0
        %1318 = vdwg.mxu0
        %v1335 = vunpack.c.l.b16 %v868
        %v1336 = vunpack.c.l.b16 %v869
        %v1337 = vunpack.c.l.b16 %v870
        %v1338 = vunpack.c.l.b16 %v871
        %v1339 = vunpack.c.l.b16 %v872
        %v1340 = vunpack.c.l.b16 %v873
        %v1341 = vunpack.c.l.b16 %v874
        %v1342 = vunpack.c.l.b16 %v875
        %v1343 = vunpack.c.l.b16 %v876
        %v1344 = vunpack.c.l.b16 %v877
        %v1345 = vunpack.c.l.b16 %v878
        %v1346 = vunpack.c.l.b16 %v879
        %v1347 = vunpack.c.l.b16 %v880
        %v1348 = vunpack.c.l.b16 %v881
        %v1349 = vunpack.c.l.b16 %v882
        %v1350 = vunpack.c.l.b16 %v883
        %v1351 = vpack.c.b16 %v1336, %v1335
        %v1352 = vpack.c.b16 %v1338, %v1337
        %v1353 = vpack.c.b16 %v1340, %v1339
        %v1354 = vpack.c.b16 %v1342, %v1341
        %v1355 = vpack.c.b16 %v1344, %v1343
        %v1356 = vpack.c.b16 %v1346, %v1345
        %v1357 = vpack.c.b16 %v1348, %v1347
        %v1358 = vpack.c.b16 %v1350, %v1349
        %1367 = vmatprep.subr.bf16.mxu0 0
        %1368 = vmatpush1.bf16.msra.mxu0 %v1351
        %1369 = vmatprep.subr.bf16.mxu0 0
        %1370 = vmatpush1.bf16.msra.mxu0 %v1352
        %1371 = vmatprep.subr.bf16.mxu0 0
        %1372 = vmatpush1.bf16.msra.mxu0 %v1353
        %1373 = vmatprep.subr.bf16.mxu0 0
        %1374 = vmatpush1.bf16.msra.mxu0 %v1354
        %1375 = vmatprep.subr.bf16.mxu0 0
        %1376 = vmatpush1.bf16.msra.mxu0 %v1355
        %1377 = vmatprep.subr.bf16.mxu0 0
        %1378 = vmatpush1.bf16.msra.mxu0 %v1356
        %1379 = vmatprep.subr.bf16.mxu0 0
        %1380 = vmatpush1.bf16.msra.mxu0 %v1357
        %1381 = vmatprep.subr.bf16.mxu0 0
        %1382 = vmatpush1.bf16.msra.mxu0 %v1358
        %1383 = vmatprep.subr.bf16.mxu0 0
        %1384 = vmatpush1.bf16.msra.mxu0 0
        %1385 = vmatprep.subr.bf16.mxu0 0
        %1386 = vmatpush1.bf16.msra.mxu0 0
        %1387 = vmatprep.subr.bf16.mxu0 0
        %1388 = vmatpush1.bf16.msra.mxu0 0
        %1389 = vmatprep.subr.bf16.mxu0 0
        %1390 = vmatpush1.bf16.msra.mxu0 0
        %1391 = vmatprep.subr.bf16.mxu0 0
        %1392 = vmatpush1.bf16.msra.mxu0 0
        %1393 = vmatprep.subr.bf16.mxu0 0
        %1394 = vmatpush1.bf16.msra.mxu0 0
        %1395 = vmatprep.subr.bf16.mxu0 0
        %1396 = vmatpush1.bf16.msra.mxu0 0
        %1397 = vmatprep.subr.bf16.mxu0 0
        %1398 = vmatpush1.bf16.msra.mxu0 0
        %1399 = vmatprep.mubr.bf16.mxu0 0
        %1400 = vmatmul.mubr.bf16.gmra.mrb[0].mxu0 %v832
        %v1401 = vpop.f32.mrb[0].mxu0
        %v1402 = vadd.f32 %v1193, %v1401
        %v1403 = vpop.f32.mrb[0].mxu0
        %v1404 = vpop.f32.mrb[0].mxu0
        %v1405 = vadd.f32 %v1196, %v1404
        %v1406 = vpop.f32.mrb[0].mxu0
        %1407 = vmatprep.mubr.bf16.mxu0 0
        %1408 = vmatmul.mubr.bf16.gmra.mrb[0].mxu0 %v834
        %v1409 = vpop.f32.mrb[0].mxu0
        %v1410 = vadd.f32 %v1201, %v1409
        %v1411 = vpop.f32.mrb[0].mxu0
        %v1412 = vpop.f32.mrb[0].mxu0
        %v1413 = vadd.f32 %v1204, %v1412
        %v1414 = vpop.f32.mrb[0].mxu0
        %1415 = vmatprep.mubr.bf16.mxu0 0
        %1416 = vmatmul.mubr.bf16.gmra.mrb[0].mxu0 %v836
        %v1417 = vpop.f32.mrb[0].mxu0
        %v1418 = vadd.f32 %v1209, %v1417
        %v1419 = vpop.f32.mrb[0].mxu0
        %v1420 = vpop.f32.mrb[0].mxu0
        %v1421 = vadd.f32 %v1212, %v1420
        %v1422 = vpop.f32.mrb[0].mxu0
        %1423 = vmatprep.mubr.bf16.mxu0 0
        %1424 = vmatmul.mubr.bf16.gmra.mrb[0].mxu0 %v838
        %v1425 = vpop.f32.mrb[0].mxu0
        %v1426 = vadd.f32 %v1217, %v1425
        %v1427 = vpop.f32.mrb[0].mxu0
        %v1428 = vpop.f32.mrb[0].mxu0
        %v1429 = vadd.f32 %v1220, %v1428
        %v1430 = vpop.f32.mrb[0].mxu0
        %1431 = vmatprep.mubr.bf16.mxu0 0
        %1432 = vmatmul.mubr.bf16.gmra.mrb[0].mxu0 %v840
        %v1433 = vpop.f32.mrb[0].mxu0
        %v1434 = vadd.f32 %v1225, %v1433
        %v1435 = vpop.f32.mrb[0].mxu0
        %v1436 = vpop.f32.mrb[0].mxu0
        %v1437 = vadd.f32 %v1228, %v1436
        %v1438 = vpop.f32.mrb[0].mxu0
        %1439 = vmatprep.mubr.bf16.mxu0 0
        %1440 = vmatmul.mubr.bf16.gmra.mrb[0].mxu0 %v842
        %v1441 = vpop.f32.mrb[0].mxu0
        %v1442 = vadd.f32 %v1233, %v1441
        %v1443 = vpop.f32.mrb[0].mxu0
        %v1444 = vpop.f32.mrb[0].mxu0
        %v1445 = vadd.f32 %v1236, %v1444
        %v1446 = vpop.f32.mrb[0].mxu0
        %1447 = vmatprep.mubr.bf16.mxu0 0
        %1448 = vmatmul.mubr.bf16.gmra.mrb[0].mxu0 %v844
        %v1449 = vpop.f32.mrb[0].mxu0
        %v1450 = vadd.f32 %v1241, %v1449
        %v1451 = vpop.f32.mrb[0].mxu0
        %v1452 = vpop.f32.mrb[0].mxu0
        %v1453 = vadd.f32 %v1244, %v1452
        %v1454 = vpop.f32.mrb[0].mxu0
        %1455 = vmatprep.mubr.bf16.mxu0 0
        %1456 = vmatmul.mubr.bf16.gmra.mrb[0].mxu0 %v846
        %v1457 = vpop.f32.mrb[0].mxu0
        %v1458 = vadd.f32 %v1249, %v1457
        %v1459 = vpop.f32.mrb[0].mxu0
        %v1460 = vpop.f32.mrb[0].mxu0
        %v1461 = vadd.f32 %v1252, %v1460
        %v1462 = vpop.f32.mrb[0].mxu0
        %1463 = vmatprep.mubr.bf16.mxu0 0
        %1464 = vmatmul.mubr.bf16.gmra.mrb[0].mxu0 %v848
        %v1465 = vpop.f32.mrb[0].mxu0
        %v1466 = vadd.f32 %v1257, %v1465
        %v1467 = vpop.f32.mrb[0].mxu0
        %v1468 = vpop.f32.mrb[0].mxu0
        %v1469 = vadd.f32 %v1260, %v1468
        %v1470 = vpop.f32.mrb[0].mxu0
        %1471 = vmatprep.mubr.bf16.mxu0 0
        %1472 = vmatmul.mubr.bf16.gmra.mrb[0].mxu0 %v850
        %v1473 = vpop.f32.mrb[0].mxu0
        %v1474 = vadd.f32 %v1265, %v1473
        %v1475 = vpop.f32.mrb[0].mxu0
        %v1476 = vpop.f32.mrb[0].mxu0
        %v1477 = vadd.f32 %v1268, %v1476
        %v1478 = vpop.f32.mrb[0].mxu0
        %1479 = vmatprep.mubr.bf16.mxu0 0
        %1480 = vmatmul.mubr.bf16.gmra.mrb[0].mxu0 %v852
        %v1481 = vpop.f32.mrb[0].mxu0
        %v1482 = vadd.f32 %v1273, %v1481
        %v1483 = vpop.f32.mrb[0].mxu0
        %v1484 = vpop.f32.mrb[0].mxu0
        %v1485 = vadd.f32 %v1276, %v1484
        %v1486 = vpop.f32.mrb[0].mxu0
        %1487 = vmatprep.mubr.bf16.mxu0 0
        %1488 = vmatmul.mubr.bf16.gmra.mrb[0].mxu0 %v854
        %v1489 = vpop.f32.mrb[0].mxu0
        %v1490 = vadd.f32 %v1281, %v1489
        %v1491 = vpop.f32.mrb[0].mxu0
        %v1492 = vpop.f32.mrb[0].mxu0
        %v1493 = vadd.f32 %v1284, %v1492
        %v1494 = vpop.f32.mrb[0].mxu0
        %1495 = vmatprep.mubr.bf16.mxu0 0
        %1496 = vmatmul.mubr.bf16.gmra.mrb[0].mxu0 %v856
        %v1497 = vpop.f32.mrb[0].mxu0
        %v1498 = vadd.f32 %v1289, %v1497
        %v1499 = vpop.f32.mrb[0].mxu0
        %v1500 = vpop.f32.mrb[0].mxu0
        %v1501 = vadd.f32 %v1292, %v1500
        %v1502 = vpop.f32.mrb[0].mxu0
        %1503 = vmatprep.mubr.bf16.mxu0 0
        %1504 = vmatmul.mubr.bf16.gmra.mrb[0].mxu0 %v858
        %v1505 = vpop.f32.mrb[0].mxu0
        %v1506 = vadd.f32 %v1297, %v1505
        %v1507 = vpop.f32.mrb[0].mxu0
        %v1508 = vpop.f32.mrb[0].mxu0
        %v1509 = vadd.f32 %v1300, %v1508
        %v1510 = vpop.f32.mrb[0].mxu0
        %1511 = vmatprep.mubr.bf16.mxu0 0
        %1512 = vmatmul.mubr.bf16.gmra.mrb[0].mxu0 %v860
        %v1513 = vpop.f32.mrb[0].mxu0
        %v1514 = vadd.f32 %v1305, %v1513
        %v1515 = vpop.f32.mrb[0].mxu0
        %v1516 = vpop.f32.mrb[0].mxu0
        %v1517 = vadd.f32 %v1308, %v1516
        %v1518 = vpop.f32.mrb[0].mxu0
        %1519 = vmatprep.mubr.bf16.mxu0 0
        %1520 = vmatmul.mubr.bf16.gmra.mrb[0].mxu0 %v862
        %v1521 = vpop.f32.mrb[0].mxu0
        %v1522 = vadd.f32 %v1313, %v1521
        %v1523 = vpop.f32.mrb[0].mxu0
        %v1524 = vpop.f32.mrb[0].mxu0
        %v1525 = vadd.f32 %v1316, %v1524
        %v1526 = vpop.f32.mrb[0].mxu0
        %1527 = vdwg.mxu0
        %vm1560 = vcmask 1046528
        %v1561 = vrot.slane %v832, 1
        %v1562 = vrot.slane %v833, 1
        %v1563 = vsel %vm1560, %v1561, %v1562
        %v1564 = vrot.slane %v834, 1
        %v1565 = vrot.slane %v835, 1
        %v1566 = vsel %vm1560, %v1564, %v1565
        %v1567 = vrot.slane %v836, 1
        %v1568 = vrot.slane %v837, 1
        %v1569 = vsel %vm1560, %v1567, %v1568
        %v1570 = vrot.slane %v838, 1
        %v1571 = vrot.slane %v839, 1
        %v1572 = vsel %vm1560, %v1570, %v1571
        %v1573 = vrot.slane %v840, 1
        %v1574 = vrot.slane %v841, 1
        %v1575 = vsel %vm1560, %v1573, %v1574
        %v1576 = vrot.slane %v842, 1
        %v1577 = vrot.slane %v843, 1
        %v1578 = vsel %vm1560, %v1576, %v1577
        %v1579 = vrot.slane %v844, 1
        %v1580 = vrot.slane %v845, 1
        %v1581 = vsel %vm1560, %v1579, %v1580
        %v1582 = vrot.slane %v846, 1
        %v1583 = vrot.slane %v847, 1
        %v1584 = vsel %vm1560, %v1582, %v1583
        %v1585 = vrot.slane %v848, 1
        %v1586 = vrot.slane %v849, 1
        %v1587 = vsel %vm1560, %v1585, %v1586
        %v1588 = vrot.slane %v850, 1
        %v1589 = vrot.slane %v851, 1
        %v1590 = vsel %vm1560, %v1588, %v1589
        %v1591 = vrot.slane %v852, 1
        %v1592 = vrot.slane %v853, 1
        %v1593 = vsel %vm1560, %v1591, %v1592
        %v1594 = vrot.slane %v854, 1
        %v1595 = vrot.slane %v855, 1
        %v1596 = vsel %vm1560, %v1594, %v1595
        %v1597 = vrot.slane %v856, 1
        %v1598 = vrot.slane %v857, 1
        %v1599 = vsel %vm1560, %v1597, %v1598
        %v1600 = vrot.slane %v858, 1
        %v1601 = vrot.slane %v859, 1
        %v1602 = vsel %vm1560, %v1600, %v1601
        %v1603 = vrot.slane %v860, 1
        %v1604 = vrot.slane %v861, 1
        %v1605 = vsel %vm1560, %v1603, %v1604
        %v1606 = vrot.slane %v862, 1
        %v1607 = vrot.slane %v863, 1
        %v1608 = vsel %vm1560, %v1606, %v1607
        %s1625 = scalar_lea.vmem [#allocation5], 128
        %v1626 = vld [vmem:[%s1625] sm:$0xf]
        %v1627 = vld [vmem:[%s1625 + $0x4] sm:$0xf]
        %v1628 = vld [vmem:[%s1625 + $0x8] sm:$0xf]
        %v1629 = vld [vmem:[%s1625 + $0xc] sm:$0xf]
        %v1630 = vld [vmem:[%s1625 + $0x10] sm:$0xf]
        %v1631 = vld [vmem:[%s1625 + $0x14] sm:$0xf]
        %v1632 = vld [vmem:[%s1625 + $0x18] sm:$0xf]
        %v1633 = vld [vmem:[%s1625 + $0x1c] sm:$0xf]
        %v1634 = vld [vmem:[%s1625 + $0x20] sm:$0xf]
        %v1635 = vld [vmem:[%s1625 + $0x24] sm:$0xf]
        %v1636 = vld [vmem:[%s1625 + $0x28] sm:$0xf]
        %v1637 = vld [vmem:[%s1625 + $0x2c] sm:$0xf]
        %v1638 = vld [vmem:[%s1625 + $0x30] sm:$0xf]
        %v1639 = vld [vmem:[%s1625 + $0x34] sm:$0xf]
        %v1640 = vld [vmem:[%s1625 + $0x38] sm:$0xf]
        %v1641 = vld [vmem:[%s1625 + $0x3c] sm:$0xf]
        %v1658 = vunpack.c.l.b16 %v1626
        %v1659 = vunpack.c.l.b16 %v1627
        %v1660 = vunpack.c.l.b16 %v1628
        %v1661 = vunpack.c.l.b16 %v1629
        %v1662 = vunpack.c.l.b16 %v1630
        %v1663 = vunpack.c.l.b16 %v1631
        %v1664 = vunpack.c.l.b16 %v1632
        %v1665 = vunpack.c.l.b16 %v1633
        %v1666 = vunpack.c.l.b16 %v1634
        %v1667 = vunpack.c.l.b16 %v1635
        %v1668 = vunpack.c.l.b16 %v1636
        %v1669 = vunpack.c.l.b16 %v1637
        %v1670 = vunpack.c.l.b16 %v1638
        %v1671 = vunpack.c.l.b16 %v1639
        %v1672 = vunpack.c.l.b16 %v1640
        %v1673 = vunpack.c.l.b16 %v1641
        %v1674 = vpack.c.b16 %v1659, %v1658
        %v1675 = vpack.c.b16 %v1661, %v1660
        %v1676 = vpack.c.b16 %v1663, %v1662
        %v1677 = vpack.c.b16 %v1665, %v1664
        %v1678 = vpack.c.b16 %v1667, %v1666
        %v1679 = vpack.c.b16 %v1669, %v1668
        %v1680 = vpack.c.b16 %v1671, %v1670
        %v1681 = vpack.c.b16 %v1673, %v1672
        %1690 = vmatprep.subr.bf16.mxu0 0
        %1691 = vmatpush1.bf16.msra.mxu0 %v1674
        %1692 = vmatprep.subr.bf16.mxu0 0
        %1693 = vmatpush1.bf16.msra.mxu0 %v1675
        %1694 = vmatprep.subr.bf16.mxu0 0
        %1695 = vmatpush1.bf16.msra.mxu0 %v1676
        %1696 = vmatprep.subr.bf16.mxu0 0
        %1697 = vmatpush1.bf16.msra.mxu0 %v1677
        %1698 = vmatprep.subr.bf16.mxu0 0
        %1699 = vmatpush1.bf16.msra.mxu0 %v1678
        %1700 = vmatprep.subr.bf16.mxu0 0
        %1701 = vmatpush1.bf16.msra.mxu0 %v1679
        %1702 = vmatprep.subr.bf16.mxu0 0
        %1703 = vmatpush1.bf16.msra.mxu0 %v1680
        %1704 = vmatprep.subr.bf16.mxu0 0
        %1705 = vmatpush1.bf16.msra.mxu0 %v1681
        %1706 = vmatprep.subr.bf16.mxu0 0
        %1707 = vmatpush1.bf16.msra.mxu0 0
        %1708 = vmatprep.subr.bf16.mxu0 0
        %1709 = vmatpush1.bf16.msra.mxu0 0
        %1710 = vmatprep.subr.bf16.mxu0 0
        %1711 = vmatpush1.bf16.msra.mxu0 0
        %1712 = vmatprep.subr.bf16.mxu0 0
        %1713 = vmatpush1.bf16.msra.mxu0 0
        %1714 = vmatprep.subr.bf16.mxu0 0
        %1715 = vmatpush1.bf16.msra.mxu0 0
        %1716 = vmatprep.subr.bf16.mxu0 0
        %1717 = vmatpush1.bf16.msra.mxu0 0
        %1718 = vmatprep.subr.bf16.mxu0 0
        %1719 = vmatpush1.bf16.msra.mxu0 0
        %1720 = vmatprep.subr.bf16.mxu0 0
        %1721 = vmatpush1.bf16.msra.mxu0 0
        %1722 = vmatprep.mubr.bf16.mxu0 0
        %1723 = vmatmul.mubr.bf16.gmra.mrb[0].mxu0 %v1563
        %v1724 = vpop.f32.mrb[0].mxu0
        %v1725 = vadd.f32 0.0, %v1724
        %v1726 = vpop.f32.mrb[0].mxu0
        %v1727 = vpop.f32.mrb[0].mxu0
        %v1728 = vadd.f32 0.0, %v1727
        %v1729 = vpop.f32.mrb[0].mxu0
        %1730 = vmatprep.mubr.bf16.mxu0 0
        %1731 = vmatmul.mubr.bf16.gmra.mrb[0].mxu0 %v1566
        %v1732 = vpop.f32.mrb[0].mxu0
        %v1733 = vadd.f32 0.0, %v1732
        %v1734 = vpop.f32.mrb[0].mxu0
        %v1735 = vpop.f32.mrb[0].mxu0
        %v1736 = vadd.f32 0.0, %v1735
        %v1737 = vpop.f32.mrb[0].mxu0
        %1738 = vmatprep.mubr.bf16.mxu0 0
        %1739 = vmatmul.mubr.bf16.gmra.mrb[0].mxu0 %v1569
        %v1740 = vpop.f32.mrb[0].mxu0
        %v1741 = vadd.f32 0.0, %v1740
        %v1742 = vpop.f32.mrb[0].mxu0
        %v1743 = vpop.f32.mrb[0].mxu0
        %v1744 = vadd.f32 0.0, %v1743
        %v1745 = vpop.f32.mrb[0].mxu0
        %1746 = vmatprep.mubr.bf16.mxu0 0
        %1747 = vmatmul.mubr.bf16.gmra.mrb[0].mxu0 %v1572
        %v1748 = vpop.f32.mrb[0].mxu0
        %v1749 = vadd.f32 0.0, %v1748
        %v1750 = vpop.f32.mrb[0].mxu0
        %v1751 = vpop.f32.mrb[0].mxu0
        %v1752 = vadd.f32 0.0, %v1751
        %v1753 = vpop.f32.mrb[0].mxu0
        %1754 = vmatprep.mubr.bf16.mxu0 0
        %1755 = vmatmul.mubr.bf16.gmra.mrb[0].mxu0 %v1575
        %v1756 = vpop.f32.mrb[0].mxu0
        %v1757 = vadd.f32 0.0, %v1756
        %v1758 = vpop.f32.mrb[0].mxu0
        %v1759 = vpop.f32.mrb[0].mxu0
        %v1760 = vadd.f32 0.0, %v1759
        %v1761 = vpop.f32.mrb[0].mxu0
        %1762 = vmatprep.mubr.bf16.mxu0 0
        %1763 = vmatmul.mubr.bf16.gmra.mrb[0].mxu0 %v1578
        %v1764 = vpop.f32.mrb[0].mxu0
        %v1765 = vadd.f32 0.0, %v1764
        %v1766 = vpop.f32.mrb[0].mxu0
        %v1767 = vpop.f32.mrb[0].mxu0
        %v1768 = vadd.f32 0.0, %v1767
        %v1769 = vpop.f32.mrb[0].mxu0
        %1770 = vmatprep.mubr.bf16.mxu0 0
        %1771 = vmatmul.mubr.bf16.gmra.mrb[0].mxu0 %v1581
        %v1772 = vpop.f32.mrb[0].mxu0
        %v1773 = vadd.f32 0.0, %v1772
        %v1774 = vpop.f32.mrb[0].mxu0
        %v1775 = vpop.f32.mrb[0].mxu0
        %v1776 = vadd.f32 0.0, %v1775
        %v1777 = vpop.f32.mrb[0].mxu0
        %1778 = vmatprep.mubr.bf16.mxu0 0
        %1779 = vmatmul.mubr.bf16.gmra.mrb[0].mxu0 %v1584
        %v1780 = vpop.f32.mrb[0].mxu0
        %v1781 = vadd.f32 0.0, %v1780
        %v1782 = vpop.f32.mrb[0].mxu0
        %v1783 = vpop.f32.mrb[0].mxu0
        %v1784 = vadd.f32 0.0, %v1783
        %v1785 = vpop.f32.mrb[0].mxu0
        %1786 = vmatprep.mubr.bf16.mxu0 0
        %1787 = vmatmul.mubr.bf16.gmra.mrb[0].mxu0 %v1587
        %v1788 = vpop.f32.mrb[0].mxu0
        %v1789 = vadd.f32 0.0, %v1788
        %v1790 = vpop.f32.mrb[0].mxu0
        %v1791 = vpop.f32.mrb[0].mxu0
        %v1792 = vadd.f32 0.0, %v1791
        %v1793 = vpop.f32.mrb[0].mxu0
        %1794 = vmatprep.mubr.bf16.mxu0 0
        %1795 = vmatmul.mubr.bf16.gmra.mrb[0].mxu0 %v1590
        %v1796 = vpop.f32.mrb[0].mxu0
        %v1797 = vadd.f32 0.0, %v1796
        %v1798 = vpop.f32.mrb[0].mxu0
        %v1799 = vpop.f32.mrb[0].mxu0
        %v1800 = vadd.f32 0.0, %v1799
        %v1801 = vpop.f32.mrb[0].mxu0
        %1802 = vmatprep.mubr.bf16.mxu0 0
        %1803 = vmatmul.mubr.bf16.gmra.mrb[0].mxu0 %v1593
        %v1804 = vpop.f32.mrb[0].mxu0
        %v1805 = vadd.f32 0.0, %v1804
        %v1806 = vpop.f32.mrb[0].mxu0
        %v1807 = vpop.f32.mrb[0].mxu0
        %v1808 = vadd.f32 0.0, %v1807
        %v1809 = vpop.f32.mrb[0].mxu0
        %1810 = vmatprep.mubr.bf16.mxu0 0
        %1811 = vmatmul.mubr.bf16.gmra.mrb[0].mxu0 %v1596
        %v1812 = vpop.f32.mrb[0].mxu0
        %v1813 = vadd.f32 0.0, %v1812
        %v1814 = vpop.f32.mrb[0].mxu0
        %v1815 = vpop.f32.mrb[0].mxu0
        %v1816 = vadd.f32 0.0, %v1815
        %v1817 = vpop.f32.mrb[0].mxu0
        %1818 = vmatprep.mubr.bf16.mxu0 0
        %1819 = vmatmul.mubr.bf16.gmra.mrb[0].mxu0 %v1599
        %v1820 = vpop.f32.mrb[0].mxu0
        %v1821 = vadd.f32 0.0, %v1820
        %v1822 = vpop.f32.mrb[0].mxu0
        %v1823 = vpop.f32.mrb[0].mxu0
        %v1824 = vadd.f32 0.0, %v1823
        %v1825 = vpop.f32.mrb[0].mxu0
        %1826 = vmatprep.mubr.bf16.mxu0 0
        %1827 = vmatmul.mubr.bf16.gmra.mrb[0].mxu0 %v1602
        %v1828 = vpop.f32.mrb[0].mxu0
        %v1829 = vadd.f32 0.0, %v1828
        %v1830 = vpop.f32.mrb[0].mxu0
        %v1831 = vpop.f32.mrb[0].mxu0
        %v1832 = vadd.f32 0.0, %v1831
        %v1833 = vpop.f32.mrb[0].mxu0
        %1834 = vmatprep.mubr.bf16.mxu0 0
        %1835 = vmatmul.mubr.bf16.gmra.mrb[0].mxu0 %v1605
        %v1836 = vpop.f32.mrb[0].mxu0
        %v1837 = vadd.f32 0.0, %v1836
        %v1838 = vpop.f32.mrb[0].mxu0
        %v1839 = vpop.f32.mrb[0].mxu0
        %v1840 = vadd.f32 0.0, %v1839
        %v1841 = vpop.f32.mrb[0].mxu0
        %1842 = vmatprep.mubr.bf16.mxu0 0
        %1843 = vmatmul.mubr.bf16.gmra.mrb[0].mxu0 %v1608
        %v1844 = vpop.f32.mrb[0].mxu0
        %v1845 = vadd.f32 0.0, %v1844
        %v1846 = vpop.f32.mrb[0].mxu0
        %v1847 = vpop.f32.mrb[0].mxu0
        %v1848 = vadd.f32 0.0, %v1847
        %v1849 = vpop.f32.mrb[0].mxu0
        %1850 = vdwg.mxu0
        %v1851 = vadd.f32 %v1402, %v1725
        %v1852 = vadd.f32 %v1405, %v1728
        %v1853 = vadd.f32 %v1410, %v1733
        %v1854 = vadd.f32 %v1413, %v1736
        %v1855 = vadd.f32 %v1418, %v1741
        %v1856 = vadd.f32 %v1421, %v1744
        %v1857 = vadd.f32 %v1426, %v1749
        %v1858 = vadd.f32 %v1429, %v1752
        %v1859 = vadd.f32 %v1434, %v1757
        %v1860 = vadd.f32 %v1437, %v1760
        %v1861 = vadd.f32 %v1442, %v1765
        %v1862 = vadd.f32 %v1445, %v1768
        %v1863 = vadd.f32 %v1450, %v1773
        %v1864 = vadd.f32 %v1453, %v1776
        %v1865 = vadd.f32 %v1458, %v1781
        %v1866 = vadd.f32 %v1461, %v1784
        %v1867 = vadd.f32 %v1466, %v1789
        %v1868 = vadd.f32 %v1469, %v1792
        %v1869 = vadd.f32 %v1474, %v1797
        %v1870 = vadd.f32 %v1477, %v1800
        %v1871 = vadd.f32 %v1482, %v1805
        %v1872 = vadd.f32 %v1485, %v1808
        %v1873 = vadd.f32 %v1490, %v1813
        %v1874 = vadd.f32 %v1493, %v1816
        %v1875 = vadd.f32 %v1498, %v1821
        %v1876 = vadd.f32 %v1501, %v1824
        %v1877 = vadd.f32 %v1506, %v1829
        %v1878 = vadd.f32 %v1509, %v1832
        %v1879 = vadd.f32 %v1514, %v1837
        %v1880 = vadd.f32 %v1517, %v1840
        %v1881 = vadd.f32 %v1522, %v1845
        %v1882 = vadd.f32 %v1525, %v1848
        %s1883 = scalar_lea.vmem [#allocation5], 192
        %v1884 = vld [vmem:[%s1883] sm:$0xf]
        %v1885 = vld [vmem:[%s1883 + $0x4] sm:$0xf]
        %v1886 = vld [vmem:[%s1883 + $0x8] sm:$0xf]
        %v1887 = vld [vmem:[%s1883 + $0xc] sm:$0xf]
        %v1888 = vld [vmem:[%s1883 + $0x10] sm:$0xf]
        %v1889 = vld [vmem:[%s1883 + $0x14] sm:$0xf]
        %v1890 = vld [vmem:[%s1883 + $0x18] sm:$0xf]
        %v1891 = vld [vmem:[%s1883 + $0x1c] sm:$0xf]
        %v1892 = vld [vmem:[%s1883 + $0x20] sm:$0xf]
        %v1893 = vld [vmem:[%s1883 + $0x24] sm:$0xf]
        %v1894 = vld [vmem:[%s1883 + $0x28] sm:$0xf]
        %v1895 = vld [vmem:[%s1883 + $0x2c] sm:$0xf]
        %v1896 = vld [vmem:[%s1883 + $0x30] sm:$0xf]
        %v1897 = vld [vmem:[%s1883 + $0x34] sm:$0xf]
        %v1898 = vld [vmem:[%s1883 + $0x38] sm:$0xf]
        %v1899 = vld [vmem:[%s1883 + $0x3c] sm:$0xf]
        %v1916 = vunpack.c.l.b16 %v1884
        %v1917 = vunpack.c.l.b16 %v1885
        %v1918 = vunpack.c.l.b16 %v1886
        %v1919 = vunpack.c.l.b16 %v1887
        %v1920 = vunpack.c.l.b16 %v1888
        %v1921 = vunpack.c.l.b16 %v1889
        %v1922 = vunpack.c.l.b16 %v1890
        %v1923 = vunpack.c.l.b16 %v1891
        %v1924 = vunpack.c.l.b16 %v1892
        %v1925 = vunpack.c.l.b16 %v1893
        %v1926 = vunpack.c.l.b16 %v1894
        %v1927 = vunpack.c.l.b16 %v1895
        %v1928 = vunpack.c.l.b16 %v1896
        %v1929 = vunpack.c.l.b16 %v1897
        %v1930 = vunpack.c.l.b16 %v1898
        %v1931 = vunpack.c.l.b16 %v1899
        %v1932 = vpack.c.b16 %v1917, %v1916
        %v1933 = vpack.c.b16 %v1919, %v1918
        %v1934 = vpack.c.b16 %v1921, %v1920
        %v1935 = vpack.c.b16 %v1923, %v1922
        %v1936 = vpack.c.b16 %v1925, %v1924
        %v1937 = vpack.c.b16 %v1927, %v1926
        %v1938 = vpack.c.b16 %v1929, %v1928
        %v1939 = vpack.c.b16 %v1931, %v1930
        %1948 = vmatprep.subr.bf16.mxu0 0
        %1949 = vmatpush1.bf16.msra.mxu0 %v1932
        %1950 = vmatprep.subr.bf16.mxu0 0
        %1951 = vmatpush1.bf16.msra.mxu0 %v1933
        %1952 = vmatprep.subr.bf16.mxu0 0
        %1953 = vmatpush1.bf16.msra.mxu0 %v1934
        %1954 = vmatprep.subr.bf16.mxu0 0
        %1955 = vmatpush1.bf16.msra.mxu0 %v1935
        %1956 = vmatprep.subr.bf16.mxu0 0
        %1957 = vmatpush1.bf16.msra.mxu0 %v1936
        %1958 = vmatprep.subr.bf16.mxu0 0
        %1959 = vmatpush1.bf16.msra.mxu0 %v1937
        %1960 = vmatprep.subr.bf16.mxu0 0
        %1961 = vmatpush1.bf16.msra.mxu0 %v1938
        %1962 = vmatprep.subr.bf16.mxu0 0
        %1963 = vmatpush1.bf16.msra.mxu0 %v1939
        %1964 = vmatprep.subr.bf16.mxu0 0
        %1965 = vmatpush1.bf16.msra.mxu0 0
        %1966 = vmatprep.subr.bf16.mxu0 0
        %1967 = vmatpush1.bf16.msra.mxu0 0
        %1968 = vmatprep.subr.bf16.mxu0 0
        %1969 = vmatpush1.bf16.msra.mxu0 0
        %1970 = vmatprep.subr.bf16.mxu0 0
        %1971 = vmatpush1.bf16.msra.mxu0 0
        %1972 = vmatprep.subr.bf16.mxu0 0
        %1973 = vmatpush1.bf16.msra.mxu0 0
        %1974 = vmatprep.subr.bf16.mxu0 0
        %1975 = vmatpush1.bf16.msra.mxu0 0
        %1976 = vmatprep.subr.bf16.mxu0 0
        %1977 = vmatpush1.bf16.msra.mxu0 0
        %1978 = vmatprep.subr.bf16.mxu0 0
        %1979 = vmatpush1.bf16.msra.mxu0 0
        %1980 = vmatprep.mubr.bf16.mxu0 0
        %1981 = vmatmul.mubr.bf16.gmra.mrb[0].mxu0 %v834
        %v1982 = vpop.f32.mrb[0].mxu0
        %v1983 = vadd.f32 0.0, %v1982
        %v1984 = vpop.f32.mrb[0].mxu0
        %v1985 = vpop.f32.mrb[0].mxu0
        %v1986 = vadd.f32 0.0, %v1985
        %v1987 = vpop.f32.mrb[0].mxu0
        %1988 = vmatprep.mubr.bf16.mxu0 0
        %1989 = vmatmul.mubr.bf16.gmra.mrb[0].mxu0 %v836
        %v1990 = vpop.f32.mrb[0].mxu0
        %v1991 = vadd.f32 0.0, %v1990
        %v1992 = vpop.f32.mrb[0].mxu0
        %v1993 = vpop.f32.mrb[0].mxu0
        %v1994 = vadd.f32 0.0, %v1993
        %v1995 = vpop.f32.mrb[0].mxu0
        %1996 = vmatprep.mubr.bf16.mxu0 0
        %1997 = vmatmul.mubr.bf16.gmra.mrb[0].mxu0 %v838
        %v1998 = vpop.f32.mrb[0].mxu0
        %v1999 = vadd.f32 0.0, %v1998
        %v2000 = vpop.f32.mrb[0].mxu0
        %v2001 = vpop.f32.mrb[0].mxu0
        %v2002 = vadd.f32 0.0, %v2001
        %v2003 = vpop.f32.mrb[0].mxu0
        %2004 = vmatprep.mubr.bf16.mxu0 0
        %2005 = vmatmul.mubr.bf16.gmra.mrb[0].mxu0 %v840
        %v2006 = vpop.f32.mrb[0].mxu0
        %v2007 = vadd.f32 0.0, %v2006
        %v2008 = vpop.f32.mrb[0].mxu0
        %v2009 = vpop.f32.mrb[0].mxu0
        %v2010 = vadd.f32 0.0, %v2009
        %v2011 = vpop.f32.mrb[0].mxu0
        %2012 = vmatprep.mubr.bf16.mxu0 0
        %2013 = vmatmul.mubr.bf16.gmra.mrb[0].mxu0 %v842
        %v2014 = vpop.f32.mrb[0].mxu0
        %v2015 = vadd.f32 0.0, %v2014
        %v2016 = vpop.f32.mrb[0].mxu0
        %v2017 = vpop.f32.mrb[0].mxu0
        %v2018 = vadd.f32 0.0, %v2017
        %v2019 = vpop.f32.mrb[0].mxu0
        %2020 = vmatprep.mubr.bf16.mxu0 0
        %2021 = vmatmul.mubr.bf16.gmra.mrb[0].mxu0 %v844
        %v2022 = vpop.f32.mrb[0].mxu0
        %v2023 = vadd.f32 0.0, %v2022
        %v2024 = vpop.f32.mrb[0].mxu0
        %v2025 = vpop.f32.mrb[0].mxu0
        %v2026 = vadd.f32 0.0, %v2025
        %v2027 = vpop.f32.mrb[0].mxu0
        %2028 = vmatprep.mubr.bf16.mxu0 0
        %2029 = vmatmul.mubr.bf16.gmra.mrb[0].mxu0 %v846
        %v2030 = vpop.f32.mrb[0].mxu0
        %v2031 = vadd.f32 0.0, %v2030
        %v2032 = vpop.f32.mrb[0].mxu0
        %v2033 = vpop.f32.mrb[0].mxu0
        %v2034 = vadd.f32 0.0, %v2033
        %v2035 = vpop.f32.mrb[0].mxu0
        %2036 = vmatprep.mubr.bf16.mxu0 0
        %2037 = vmatmul.mubr.bf16.gmra.mrb[0].mxu0 %v848
        %v2038 = vpop.f32.mrb[0].mxu0
        %v2039 = vadd.f32 0.0, %v2038
        %v2040 = vpop.f32.mrb[0].mxu0
        %v2041 = vpop.f32.mrb[0].mxu0
        %v2042 = vadd.f32 0.0, %v2041
        %v2043 = vpop.f32.mrb[0].mxu0
        %2044 = vmatprep.mubr.bf16.mxu0 0
        %2045 = vmatmul.mubr.bf16.gmra.mrb[0].mxu0 %v850
        %v2046 = vpop.f32.mrb[0].mxu0
        %v2047 = vadd.f32 0.0, %v2046
        %v2048 = vpop.f32.mrb[0].mxu0
        %v2049 = vpop.f32.mrb[0].mxu0
        %v2050 = vadd.f32 0.0, %v2049
        %v2051 = vpop.f32.mrb[0].mxu0
        %2052 = vmatprep.mubr.bf16.mxu0 0
        %2053 = vmatmul.mubr.bf16.gmra.mrb[0].mxu0 %v852
        %v2054 = vpop.f32.mrb[0].mxu0
        %v2055 = vadd.f32 0.0, %v2054
        %v2056 = vpop.f32.mrb[0].mxu0
        %v2057 = vpop.f32.mrb[0].mxu0
        %v2058 = vadd.f32 0.0, %v2057
        %v2059 = vpop.f32.mrb[0].mxu0
        %2060 = vmatprep.mubr.bf16.mxu0 0
        %2061 = vmatmul.mubr.bf16.gmra.mrb[0].mxu0 %v854
        %v2062 = vpop.f32.mrb[0].mxu0
        %v2063 = vadd.f32 0.0, %v2062
        %v2064 = vpop.f32.mrb[0].mxu0
        %v2065 = vpop.f32.mrb[0].mxu0
        %v2066 = vadd.f32 0.0, %v2065
        %v2067 = vpop.f32.mrb[0].mxu0
        %2068 = vmatprep.mubr.bf16.mxu0 0
        %2069 = vmatmul.mubr.bf16.gmra.mrb[0].mxu0 %v856
        %v2070 = vpop.f32.mrb[0].mxu0
        %v2071 = vadd.f32 0.0, %v2070
        %v2072 = vpop.f32.mrb[0].mxu0
        %v2073 = vpop.f32.mrb[0].mxu0
        %v2074 = vadd.f32 0.0, %v2073
        %v2075 = vpop.f32.mrb[0].mxu0
        %2076 = vmatprep.mubr.bf16.mxu0 0
        %2077 = vmatmul.mubr.bf16.gmra.mrb[0].mxu0 %v858
        %v2078 = vpop.f32.mrb[0].mxu0
        %v2079 = vadd.f32 0.0, %v2078
        %v2080 = vpop.f32.mrb[0].mxu0
        %v2081 = vpop.f32.mrb[0].mxu0
        %v2082 = vadd.f32 0.0, %v2081
        %v2083 = vpop.f32.mrb[0].mxu0
        %2084 = vmatprep.mubr.bf16.mxu0 0
        %2085 = vmatmul.mubr.bf16.gmra.mrb[0].mxu0 %v860
        %v2086 = vpop.f32.mrb[0].mxu0
        %v2087 = vadd.f32 0.0, %v2086
        %v2088 = vpop.f32.mrb[0].mxu0
        %v2089 = vpop.f32.mrb[0].mxu0
        %v2090 = vadd.f32 0.0, %v2089
        %v2091 = vpop.f32.mrb[0].mxu0
        %2092 = vmatprep.mubr.bf16.mxu0 0
        %2093 = vmatmul.mubr.bf16.gmra.mrb[0].mxu0 %v862
        %v2094 = vpop.f32.mrb[0].mxu0
        %v2095 = vadd.f32 0.0, %v2094
        %v2096 = vpop.f32.mrb[0].mxu0
        %v2097 = vpop.f32.mrb[0].mxu0
        %v2098 = vadd.f32 0.0, %v2097
        %v2099 = vpop.f32.mrb[0].mxu0
        %2100 = vmatprep.mubr.bf16.mxu0 0
        %2101 = vmatmul.mubr.bf16.gmra.mrb[0].mxu0 %v864
        %v2102 = vpop.f32.mrb[0].mxu0
        %v2103 = vadd.f32 0.0, %v2102
        %v2104 = vpop.f32.mrb[0].mxu0
        %v2105 = vpop.f32.mrb[0].mxu0
        %v2106 = vadd.f32 0.0, %v2105
        %v2107 = vpop.f32.mrb[0].mxu0
        %2108 = vdwg.mxu0
        %v2109 = vadd.f32 %v1851, %v1983
        %v2110 = vadd.f32 %v1852, %v1986
        %v2111 = vadd.f32 %v1853, %v1991
        %v2112 = vadd.f32 %v1854, %v1994
        %v2113 = vadd.f32 %v1855, %v1999
        %v2114 = vadd.f32 %v1856, %v2002
        %v2115 = vadd.f32 %v1857, %v2007
        %v2116 = vadd.f32 %v1858, %v2010
        %v2117 = vadd.f32 %v1859, %v2015
        %v2118 = vadd.f32 %v1860, %v2018
        %v2119 = vadd.f32 %v1861, %v2023
        %v2120 = vadd.f32 %v1862, %v2026
        %v2121 = vadd.f32 %v1863, %v2031
        %v2122 = vadd.f32 %v1864, %v2034
        %v2123 = vadd.f32 %v1865, %v2039
        %v2124 = vadd.f32 %v1866, %v2042
        %v2125 = vadd.f32 %v1867, %v2047
        %v2126 = vadd.f32 %v1868, %v2050
        %v2127 = vadd.f32 %v1869, %v2055
        %v2128 = vadd.f32 %v1870, %v2058
        %v2129 = vadd.f32 %v1871, %v2063
        %v2130 = vadd.f32 %v1872, %v2066
        %v2131 = vadd.f32 %v1873, %v2071
        %v2132 = vadd.f32 %v1874, %v2074
        %v2133 = vadd.f32 %v1875, %v2079
        %v2134 = vadd.f32 %v1876, %v2082
        %v2135 = vadd.f32 %v1877, %v2087
        %v2136 = vadd.f32 %v1878, %v2090
        %v2137 = vadd.f32 %v1879, %v2095
        %v2138 = vadd.f32 %v1880, %v2098
        %v2139 = vadd.f32 %v1881, %v2103
        %v2140 = vadd.f32 %v1882, %v2106
        %v2142 = vshrl.u32 %v864, 16
        %v2144 = vshll.u32 %v864, 16
        %v2146 = vrot.slane %v2144, 1
        %v2147 = vor.u32 %v2142, %v2146
        %v2149 = vshll.u32 %v865, 16
        %v2151 = vrot.slane %v2149, 1
        %v2152 = vsel %vm884, %v2147, %v2151
        %s2154 = scalar_lea.vmem [#allocation5], 256
        %v2155 = vld [vmem:[%s2154] sm:$0xf]
        %v2156 = vld [vmem:[%s2154 + $0x4] sm:$0xf]
        %v2157 = vld [vmem:[%s2154 + $0x8] sm:$0xf]
        %v2158 = vld [vmem:[%s2154 + $0xc] sm:$0xf]
        %v2159 = vld [vmem:[%s2154 + $0x10] sm:$0xf]
        %v2160 = vld [vmem:[%s2154 + $0x14] sm:$0xf]
        %v2161 = vld [vmem:[%s2154 + $0x18] sm:$0xf]
        %v2162 = vld [vmem:[%s2154 + $0x1c] sm:$0xf]
        %v2163 = vld [vmem:[%s2154 + $0x20] sm:$0xf]
        %v2164 = vld [vmem:[%s2154 + $0x24] sm:$0xf]
        %v2165 = vld [vmem:[%s2154 + $0x28] sm:$0xf]
        %v2166 = vld [vmem:[%s2154 + $0x2c] sm:$0xf]
        %v2167 = vld [vmem:[%s2154 + $0x30] sm:$0xf]
        %v2168 = vld [vmem:[%s2154 + $0x34] sm:$0xf]
        %v2169 = vld [vmem:[%s2154 + $0x38] sm:$0xf]
        %v2170 = vld [vmem:[%s2154 + $0x3c] sm:$0xf]
        %v2187 = vunpack.c.l.b16 %v2155
        %v2188 = vunpack.c.l.b16 %v2156
        %v2189 = vunpack.c.l.b16 %v2157
        %v2190 = vunpack.c.l.b16 %v2158
        %v2191 = vunpack.c.l.b16 %v2159
        %v2192 = vunpack.c.l.b16 %v2160
        %v2193 = vunpack.c.l.b16 %v2161
        %v2194 = vunpack.c.l.b16 %v2162
        %v2195 = vunpack.c.l.b16 %v2163
        %v2196 = vunpack.c.l.b16 %v2164
        %v2197 = vunpack.c.l.b16 %v2165
        %v2198 = vunpack.c.l.b16 %v2166
        %v2199 = vunpack.c.l.b16 %v2167
        %v2200 = vunpack.c.l.b16 %v2168
        %v2201 = vunpack.c.l.b16 %v2169
        %v2202 = vunpack.c.l.b16 %v2170
        %v2203 = vpack.c.b16 %v2188, %v2187
        %v2204 = vpack.c.b16 %v2190, %v2189
        %v2205 = vpack.c.b16 %v2192, %v2191
        %v2206 = vpack.c.b16 %v2194, %v2193
        %v2207 = vpack.c.b16 %v2196, %v2195
        %v2208 = vpack.c.b16 %v2198, %v2197
        %v2209 = vpack.c.b16 %v2200, %v2199
        %v2210 = vpack.c.b16 %v2202, %v2201
        %2219 = vmatprep.subr.bf16.mxu0 0
        %2220 = vmatpush1.bf16.msra.mxu0 %v2203
        %2221 = vmatprep.subr.bf16.mxu0 0
        %2222 = vmatpush1.bf16.msra.mxu0 %v2204
        %2223 = vmatprep.subr.bf16.mxu0 0
        %2224 = vmatpush1.bf16.msra.mxu0 %v2205
        %2225 = vmatprep.subr.bf16.mxu0 0
        %2226 = vmatpush1.bf16.msra.mxu0 %v2206
        %2227 = vmatprep.subr.bf16.mxu0 0
        %2228 = vmatpush1.bf16.msra.mxu0 %v2207
        %2229 = vmatprep.subr.bf16.mxu0 0
        %2230 = vmatpush1.bf16.msra.mxu0 %v2208
        %2231 = vmatprep.subr.bf16.mxu0 0
        %2232 = vmatpush1.bf16.msra.mxu0 %v2209
        %2233 = vmatprep.subr.bf16.mxu0 0
        %2234 = vmatpush1.bf16.msra.mxu0 %v2210
        %2235 = vmatprep.subr.bf16.mxu0 0
        %2236 = vmatpush1.bf16.msra.mxu0 0
        %2237 = vmatprep.subr.bf16.mxu0 0
        %2238 = vmatpush1.bf16.msra.mxu0 0
        %2239 = vmatprep.subr.bf16.mxu0 0
        %2240 = vmatpush1.bf16.msra.mxu0 0
        %2241 = vmatprep.subr.bf16.mxu0 0
        %2242 = vmatpush1.bf16.msra.mxu0 0
        %2243 = vmatprep.subr.bf16.mxu0 0
        %2244 = vmatpush1.bf16.msra.mxu0 0
        %2245 = vmatprep.subr.bf16.mxu0 0
        %2246 = vmatpush1.bf16.msra.mxu0 0
        %2247 = vmatprep.subr.bf16.mxu0 0
        %2248 = vmatpush1.bf16.msra.mxu0 0
        %2249 = vmatprep.subr.bf16.mxu0 0
        %2250 = vmatpush1.bf16.msra.mxu0 0
        %2251 = vmatprep.mubr.bf16.mxu0 0
        %2252 = vmatmul.mubr.bf16.gmra.mrb[0].mxu0 %v908
        %v2253 = vpop.f32.mrb[0].mxu0
        %v2254 = vadd.f32 0.0, %v2253
        %v2255 = vpop.f32.mrb[0].mxu0
        %v2256 = vpop.f32.mrb[0].mxu0
        %v2257 = vadd.f32 0.0, %v2256
        %v2258 = vpop.f32.mrb[0].mxu0
        %2259 = vmatprep.mubr.bf16.mxu0 0
        %2260 = vmatmul.mubr.bf16.gmra.mrb[0].mxu0 %v920
        %v2261 = vpop.f32.mrb[0].mxu0
        %v2262 = vadd.f32 0.0, %v2261
        %v2263 = vpop.f32.mrb[0].mxu0
        %v2264 = vpop.f32.mrb[0].mxu0
        %v2265 = vadd.f32 0.0, %v2264
        %v2266 = vpop.f32.mrb[0].mxu0
        %2267 = vmatprep.mubr.bf16.mxu0 0
        %2268 = vmatmul.mubr.bf16.gmra.mrb[0].mxu0 %v932
        %v2269 = vpop.f32.mrb[0].mxu0
        %v2270 = vadd.f32 0.0, %v2269
        %v2271 = vpop.f32.mrb[0].mxu0
        %v2272 = vpop.f32.mrb[0].mxu0
        %v2273 = vadd.f32 0.0, %v2272
        %v2274 = vpop.f32.mrb[0].mxu0
        %2275 = vmatprep.mubr.bf16.mxu0 0
        %2276 = vmatmul.mubr.bf16.gmra.mrb[0].mxu0 %v944
        %v2277 = vpop.f32.mrb[0].mxu0
        %v2278 = vadd.f32 0.0, %v2277
        %v2279 = vpop.f32.mrb[0].mxu0
        %v2280 = vpop.f32.mrb[0].mxu0
        %v2281 = vadd.f32 0.0, %v2280
        %v2282 = vpop.f32.mrb[0].mxu0
        %2283 = vmatprep.mubr.bf16.mxu0 0
        %2284 = vmatmul.mubr.bf16.gmra.mrb[0].mxu0 %v956
        %v2285 = vpop.f32.mrb[0].mxu0
        %v2286 = vadd.f32 0.0, %v2285
        %v2287 = vpop.f32.mrb[0].mxu0
        %v2288 = vpop.f32.mrb[0].mxu0
        %v2289 = vadd.f32 0.0, %v2288
        %v2290 = vpop.f32.mrb[0].mxu0
        %2291 = vmatprep.mubr.bf16.mxu0 0
        %2292 = vmatmul.mubr.bf16.gmra.mrb[0].mxu0 %v968
        %v2293 = vpop.f32.mrb[0].mxu0
        %v2294 = vadd.f32 0.0, %v2293
        %v2295 = vpop.f32.mrb[0].mxu0
        %v2296 = vpop.f32.mrb[0].mxu0
        %v2297 = vadd.f32 0.0, %v2296
        %v2298 = vpop.f32.mrb[0].mxu0
        %2299 = vmatprep.mubr.bf16.mxu0 0
        %2300 = vmatmul.mubr.bf16.gmra.mrb[0].mxu0 %v980
        %v2301 = vpop.f32.mrb[0].mxu0
        %v2302 = vadd.f32 0.0, %v2301
        %v2303 = vpop.f32.mrb[0].mxu0
        %v2304 = vpop.f32.mrb[0].mxu0
        %v2305 = vadd.f32 0.0, %v2304
        %v2306 = vpop.f32.mrb[0].mxu0
        %2307 = vmatprep.mubr.bf16.mxu0 0
        %2308 = vmatmul.mubr.bf16.gmra.mrb[0].mxu0 %v992
        %v2309 = vpop.f32.mrb[0].mxu0
        %v2310 = vadd.f32 0.0, %v2309
        %v2311 = vpop.f32.mrb[0].mxu0
        %v2312 = vpop.f32.mrb[0].mxu0
        %v2313 = vadd.f32 0.0, %v2312
        %v2314 = vpop.f32.mrb[0].mxu0
        %2315 = vmatprep.mubr.bf16.mxu0 0
        %2316 = vmatmul.mubr.bf16.gmra.mrb[0].mxu0 %v1004
        %v2317 = vpop.f32.mrb[0].mxu0
        %v2318 = vadd.f32 0.0, %v2317
        %v2319 = vpop.f32.mrb[0].mxu0
        %v2320 = vpop.f32.mrb[0].mxu0
        %v2321 = vadd.f32 0.0, %v2320
        %v2322 = vpop.f32.mrb[0].mxu0
        %2323 = vmatprep.mubr.bf16.mxu0 0
        %2324 = vmatmul.mubr.bf16.gmra.mrb[0].mxu0 %v1016
        %v2325 = vpop.f32.mrb[0].mxu0
        %v2326 = vadd.f32 0.0, %v2325
        %v2327 = vpop.f32.mrb[0].mxu0
        %v2328 = vpop.f32.mrb[0].mxu0
        %v2329 = vadd.f32 0.0, %v2328
        %v2330 = vpop.f32.mrb[0].mxu0
        %2331 = vmatprep.mubr.bf16.mxu0 0
        %2332 = vmatmul.mubr.bf16.gmra.mrb[0].mxu0 %v1028
        %v2333 = vpop.f32.mrb[0].mxu0
        %v2334 = vadd.f32 0.0, %v2333
        %v2335 = vpop.f32.mrb[0].mxu0
        %v2336 = vpop.f32.mrb[0].mxu0
        %v2337 = vadd.f32 0.0, %v2336
        %v2338 = vpop.f32.mrb[0].mxu0
        %2339 = vmatprep.mubr.bf16.mxu0 0
        %2340 = vmatmul.mubr.bf16.gmra.mrb[0].mxu0 %v1040
        %v2341 = vpop.f32.mrb[0].mxu0
        %v2342 = vadd.f32 0.0, %v2341
        %v2343 = vpop.f32.mrb[0].mxu0
        %v2344 = vpop.f32.mrb[0].mxu0
        %v2345 = vadd.f32 0.0, %v2344
        %v2346 = vpop.f32.mrb[0].mxu0
        %2347 = vmatprep.mubr.bf16.mxu0 0
        %2348 = vmatmul.mubr.bf16.gmra.mrb[0].mxu0 %v1052
        %v2349 = vpop.f32.mrb[0].mxu0
        %v2350 = vadd.f32 0.0, %v2349
        %v2351 = vpop.f32.mrb[0].mxu0
        %v2352 = vpop.f32.mrb[0].mxu0
        %v2353 = vadd.f32 0.0, %v2352
        %v2354 = vpop.f32.mrb[0].mxu0
        %2355 = vmatprep.mubr.bf16.mxu0 0
        %2356 = vmatmul.mubr.bf16.gmra.mrb[0].mxu0 %v1064
        %v2357 = vpop.f32.mrb[0].mxu0
        %v2358 = vadd.f32 0.0, %v2357
        %v2359 = vpop.f32.mrb[0].mxu0
        %v2360 = vpop.f32.mrb[0].mxu0
        %v2361 = vadd.f32 0.0, %v2360
        %v2362 = vpop.f32.mrb[0].mxu0
        %2363 = vmatprep.mubr.bf16.mxu0 0
        %2364 = vmatmul.mubr.bf16.gmra.mrb[0].mxu0 %v1076
        %v2365 = vpop.f32.mrb[0].mxu0
        %v2366 = vadd.f32 0.0, %v2365
        %v2367 = vpop.f32.mrb[0].mxu0
        %v2368 = vpop.f32.mrb[0].mxu0
        %v2369 = vadd.f32 0.0, %v2368
        %v2370 = vpop.f32.mrb[0].mxu0
        %2371 = vmatprep.mubr.bf16.mxu0 0
        %2372 = vmatmul.mubr.bf16.gmra.mrb[0].mxu0 %v2152
        %v2373 = vpop.f32.mrb[0].mxu0
        %v2374 = vadd.f32 0.0, %v2373
        %v2375 = vpop.f32.mrb[0].mxu0
        %v2376 = vpop.f32.mrb[0].mxu0
        %v2377 = vadd.f32 0.0, %v2376
        %v2378 = vpop.f32.mrb[0].mxu0
        %2379 = vdwg.mxu0
        %v2380 = vadd.f32 %v2109, %v2254
        %v2381 = vadd.f32 %v2110, %v2257
        %v2382 = vadd.f32 %v2111, %v2262
        %v2383 = vadd.f32 %v2112, %v2265
        %v2384 = vadd.f32 %v2113, %v2270
        %v2385 = vadd.f32 %v2114, %v2273
        %v2386 = vadd.f32 %v2115, %v2278
        %v2387 = vadd.f32 %v2116, %v2281
        %v2388 = vadd.f32 %v2117, %v2286
        %v2389 = vadd.f32 %v2118, %v2289
        %v2390 = vadd.f32 %v2119, %v2294
        %v2391 = vadd.f32 %v2120, %v2297
        %v2392 = vadd.f32 %v2121, %v2302
        %v2393 = vadd.f32 %v2122, %v2305
        %v2394 = vadd.f32 %v2123, %v2310
        %v2395 = vadd.f32 %v2124, %v2313
        %v2396 = vadd.f32 %v2125, %v2318
        %v2397 = vadd.f32 %v2126, %v2321
        %v2398 = vadd.f32 %v2127, %v2326
        %v2399 = vadd.f32 %v2128, %v2329
        %v2400 = vadd.f32 %v2129, %v2334
        %v2401 = vadd.f32 %v2130, %v2337
        %v2402 = vadd.f32 %v2131, %v2342
        %v2403 = vadd.f32 %v2132, %v2345
        %v2404 = vadd.f32 %v2133, %v2350
        %v2405 = vadd.f32 %v2134, %v2353
        %v2406 = vadd.f32 %v2135, %v2358
        %v2407 = vadd.f32 %v2136, %v2361
        %v2408 = vadd.f32 %v2137, %v2366
        %v2409 = vadd.f32 %v2138, %v2369
        %v2410 = vadd.f32 %v2139, %v2374
        %v2411 = vadd.f32 %v2140, %v2377
        %v2414 = vrot.slane %v864, 1
        %v2415 = vrot.slane %v865, 1
        %v2416 = vsel %vm1560, %v2414, %v2415
        %s2418 = scalar_lea.vmem [#allocation5], 320
        %v2419 = vld [vmem:[%s2418] sm:$0xf]
        %v2420 = vld [vmem:[%s2418 + $0x4] sm:$0xf]
        %v2421 = vld [vmem:[%s2418 + $0x8] sm:$0xf]
        %v2422 = vld [vmem:[%s2418 + $0xc] sm:$0xf]
        %v2423 = vld [vmem:[%s2418 + $0x10] sm:$0xf]
        %v2424 = vld [vmem:[%s2418 + $0x14] sm:$0xf]
        %v2425 = vld [vmem:[%s2418 + $0x18] sm:$0xf]
        %v2426 = vld [vmem:[%s2418 + $0x1c] sm:$0xf]
        %v2427 = vld [vmem:[%s2418 + $0x20] sm:$0xf]
        %v2428 = vld [vmem:[%s2418 + $0x24] sm:$0xf]
        %v2429 = vld [vmem:[%s2418 + $0x28] sm:$0xf]
        %v2430 = vld [vmem:[%s2418 + $0x2c] sm:$0xf]
        %v2431 = vld [vmem:[%s2418 + $0x30] sm:$0xf]
        %v2432 = vld [vmem:[%s2418 + $0x34] sm:$0xf]
        %v2433 = vld [vmem:[%s2418 + $0x38] sm:$0xf]
        %v2434 = vld [vmem:[%s2418 + $0x3c] sm:$0xf]
        %v2451 = vunpack.c.l.b16 %v2419
        %v2452 = vunpack.c.l.b16 %v2420
        %v2453 = vunpack.c.l.b16 %v2421
        %v2454 = vunpack.c.l.b16 %v2422
        %v2455 = vunpack.c.l.b16 %v2423
        %v2456 = vunpack.c.l.b16 %v2424
        %v2457 = vunpack.c.l.b16 %v2425
        %v2458 = vunpack.c.l.b16 %v2426
        %v2459 = vunpack.c.l.b16 %v2427
        %v2460 = vunpack.c.l.b16 %v2428
        %v2461 = vunpack.c.l.b16 %v2429
        %v2462 = vunpack.c.l.b16 %v2430
        %v2463 = vunpack.c.l.b16 %v2431
        %v2464 = vunpack.c.l.b16 %v2432
        %v2465 = vunpack.c.l.b16 %v2433
        %v2466 = vunpack.c.l.b16 %v2434
        %v2467 = vpack.c.b16 %v2452, %v2451
        %v2468 = vpack.c.b16 %v2454, %v2453
        %v2469 = vpack.c.b16 %v2456, %v2455
        %v2470 = vpack.c.b16 %v2458, %v2457
        %v2471 = vpack.c.b16 %v2460, %v2459
        %v2472 = vpack.c.b16 %v2462, %v2461
        %v2473 = vpack.c.b16 %v2464, %v2463
        %v2474 = vpack.c.b16 %v2466, %v2465
        %2483 = vmatprep.subr.bf16.mxu0 0
        %2484 = vmatpush1.bf16.msra.mxu0 %v2467
        %2485 = vmatprep.subr.bf16.mxu0 0
        %2486 = vmatpush1.bf16.msra.mxu0 %v2468
        %2487 = vmatprep.subr.bf16.mxu0 0
        %2488 = vmatpush1.bf16.msra.mxu0 %v2469
        %2489 = vmatprep.subr.bf16.mxu0 0
        %2490 = vmatpush1.bf16.msra.mxu0 %v2470
        %2491 = vmatprep.subr.bf16.mxu0 0
        %2492 = vmatpush1.bf16.msra.mxu0 %v2471
        %2493 = vmatprep.subr.bf16.mxu0 0
        %2494 = vmatpush1.bf16.msra.mxu0 %v2472
        %2495 = vmatprep.subr.bf16.mxu0 0
        %2496 = vmatpush1.bf16.msra.mxu0 %v2473
        %2497 = vmatprep.subr.bf16.mxu0 0
        %2498 = vmatpush1.bf16.msra.mxu0 %v2474
        %2499 = vmatprep.subr.bf16.mxu0 0
        %2500 = vmatpush1.bf16.msra.mxu0 0
        %2501 = vmatprep.subr.bf16.mxu0 0
        %2502 = vmatpush1.bf16.msra.mxu0 0
        %2503 = vmatprep.subr.bf16.mxu0 0
        %2504 = vmatpush1.bf16.msra.mxu0 0
        %2505 = vmatprep.subr.bf16.mxu0 0
        %2506 = vmatpush1.bf16.msra.mxu0 0
        %2507 = vmatprep.subr.bf16.mxu0 0
        %2508 = vmatpush1.bf16.msra.mxu0 0
        %2509 = vmatprep.subr.bf16.mxu0 0
        %2510 = vmatpush1.bf16.msra.mxu0 0
        %2511 = vmatprep.subr.bf16.mxu0 0
        %2512 = vmatpush1.bf16.msra.mxu0 0
        %2513 = vmatprep.subr.bf16.mxu0 0
        %2514 = vmatpush1.bf16.msra.mxu0 0
        %2515 = vmatprep.mubr.bf16.mxu0 0
        %2516 = vmatmul.mubr.bf16.gmra.mrb[0].mxu0 %v1566
        %v2517 = vpop.f32.mrb[0].mxu0
        %v2518 = vadd.f32 0.0, %v2517
        %v2519 = vpop.f32.mrb[0].mxu0
        %v2520 = vpop.f32.mrb[0].mxu0
        %v2521 = vadd.f32 0.0, %v2520
        %v2522 = vpop.f32.mrb[0].mxu0
        %2523 = vmatprep.mubr.bf16.mxu0 0
        %2524 = vmatmul.mubr.bf16.gmra.mrb[0].mxu0 %v1569
        %v2525 = vpop.f32.mrb[0].mxu0
        %v2526 = vadd.f32 0.0, %v2525
        %v2527 = vpop.f32.mrb[0].mxu0
        %v2528 = vpop.f32.mrb[0].mxu0
        %v2529 = vadd.f32 0.0, %v2528
        %v2530 = vpop.f32.mrb[0].mxu0
        %2531 = vmatprep.mubr.bf16.mxu0 0
        %2532 = vmatmul.mubr.bf16.gmra.mrb[0].mxu0 %v1572
        %v2533 = vpop.f32.mrb[0].mxu0
        %v2534 = vadd.f32 0.0, %v2533
        %v2535 = vpop.f32.mrb[0].mxu0
        %v2536 = vpop.f32.mrb[0].mxu0
        %v2537 = vadd.f32 0.0, %v2536
        %v2538 = vpop.f32.mrb[0].mxu0
        %2539 = vmatprep.mubr.bf16.mxu0 0
        %2540 = vmatmul.mubr.bf16.gmra.mrb[0].mxu0 %v1575
        %v2541 = vpop.f32.mrb[0].mxu0
        %v2542 = vadd.f32 0.0, %v2541
        %v2543 = vpop.f32.mrb[0].mxu0
        %v2544 = vpop.f32.mrb[0].mxu0
        %v2545 = vadd.f32 0.0, %v2544
        %v2546 = vpop.f32.mrb[0].mxu0
        %2547 = vmatprep.mubr.bf16.mxu0 0
        %2548 = vmatmul.mubr.bf16.gmra.mrb[0].mxu0 %v1578
        %v2549 = vpop.f32.mrb[0].mxu0
        %v2550 = vadd.f32 0.0, %v2549
        %v2551 = vpop.f32.mrb[0].mxu0
        %v2552 = vpop.f32.mrb[0].mxu0
        %v2553 = vadd.f32 0.0, %v2552
        %v2554 = vpop.f32.mrb[0].mxu0
        %2555 = vmatprep.mubr.bf16.mxu0 0
        %2556 = vmatmul.mubr.bf16.gmra.mrb[0].mxu0 %v1581
        %v2557 = vpop.f32.mrb[0].mxu0
        %v2558 = vadd.f32 0.0, %v2557
        %v2559 = vpop.f32.mrb[0].mxu0
        %v2560 = vpop.f32.mrb[0].mxu0
        %v2561 = vadd.f32 0.0, %v2560
        %v2562 = vpop.f32.mrb[0].mxu0
        %2563 = vmatprep.mubr.bf16.mxu0 0
        %2564 = vmatmul.mubr.bf16.gmra.mrb[0].mxu0 %v1584
        %v2565 = vpop.f32.mrb[0].mxu0
        %v2566 = vadd.f32 0.0, %v2565
        %v2567 = vpop.f32.mrb[0].mxu0
        %v2568 = vpop.f32.mrb[0].mxu0
        %v2569 = vadd.f32 0.0, %v2568
        %v2570 = vpop.f32.mrb[0].mxu0
        %2571 = vmatprep.mubr.bf16.mxu0 0
        %2572 = vmatmul.mubr.bf16.gmra.mrb[0].mxu0 %v1587
        %v2573 = vpop.f32.mrb[0].mxu0
        %v2574 = vadd.f32 0.0, %v2573
        %v2575 = vpop.f32.mrb[0].mxu0
        %v2576 = vpop.f32.mrb[0].mxu0
        %v2577 = vadd.f32 0.0, %v2576
        %v2578 = vpop.f32.mrb[0].mxu0
        %2579 = vmatprep.mubr.bf16.mxu0 0
        %2580 = vmatmul.mubr.bf16.gmra.mrb[0].mxu0 %v1590
        %v2581 = vpop.f32.mrb[0].mxu0
        %v2582 = vadd.f32 0.0, %v2581
        %v2583 = vpop.f32.mrb[0].mxu0
        %v2584 = vpop.f32.mrb[0].mxu0
        %v2585 = vadd.f32 0.0, %v2584
        %v2586 = vpop.f32.mrb[0].mxu0
        %2587 = vmatprep.mubr.bf16.mxu0 0
        %2588 = vmatmul.mubr.bf16.gmra.mrb[0].mxu0 %v1593
        %v2589 = vpop.f32.mrb[0].mxu0
        %v2590 = vadd.f32 0.0, %v2589
        %v2591 = vpop.f32.mrb[0].mxu0
        %v2592 = vpop.f32.mrb[0].mxu0
        %v2593 = vadd.f32 0.0, %v2592
        %v2594 = vpop.f32.mrb[0].mxu0
        %2595 = vmatprep.mubr.bf16.mxu0 0
        %2596 = vmatmul.mubr.bf16.gmra.mrb[0].mxu0 %v1596
        %v2597 = vpop.f32.mrb[0].mxu0
        %v2598 = vadd.f32 0.0, %v2597
        %v2599 = vpop.f32.mrb[0].mxu0
        %v2600 = vpop.f32.mrb[0].mxu0
        %v2601 = vadd.f32 0.0, %v2600
        %v2602 = vpop.f32.mrb[0].mxu0
        %2603 = vmatprep.mubr.bf16.mxu0 0
        %2604 = vmatmul.mubr.bf16.gmra.mrb[0].mxu0 %v1599
        %v2605 = vpop.f32.mrb[0].mxu0
        %v2606 = vadd.f32 0.0, %v2605
        %v2607 = vpop.f32.mrb[0].mxu0
        %v2608 = vpop.f32.mrb[0].mxu0
        %v2609 = vadd.f32 0.0, %v2608
        %v2610 = vpop.f32.mrb[0].mxu0
        %2611 = vmatprep.mubr.bf16.mxu0 0
        %2612 = vmatmul.mubr.bf16.gmra.mrb[0].mxu0 %v1602
        %v2613 = vpop.f32.mrb[0].mxu0
        %v2614 = vadd.f32 0.0, %v2613
        %v2615 = vpop.f32.mrb[0].mxu0
        %v2616 = vpop.f32.mrb[0].mxu0
        %v2617 = vadd.f32 0.0, %v2616
        %v2618 = vpop.f32.mrb[0].mxu0
        %2619 = vmatprep.mubr.bf16.mxu0 0
        %2620 = vmatmul.mubr.bf16.gmra.mrb[0].mxu0 %v1605
        %v2621 = vpop.f32.mrb[0].mxu0
        %v2622 = vadd.f32 0.0, %v2621
        %v2623 = vpop.f32.mrb[0].mxu0
        %v2624 = vpop.f32.mrb[0].mxu0
        %v2625 = vadd.f32 0.0, %v2624
        %v2626 = vpop.f32.mrb[0].mxu0
        %2627 = vmatprep.mubr.bf16.mxu0 0
        %2628 = vmatmul.mubr.bf16.gmra.mrb[0].mxu0 %v1608
        %v2629 = vpop.f32.mrb[0].mxu0
        %v2630 = vadd.f32 0.0, %v2629
        %v2631 = vpop.f32.mrb[0].mxu0
        %v2632 = vpop.f32.mrb[0].mxu0
        %v2633 = vadd.f32 0.0, %v2632
        %v2634 = vpop.f32.mrb[0].mxu0
        %2635 = vmatprep.mubr.bf16.mxu0 0
        %2636 = vmatmul.mubr.bf16.gmra.mrb[0].mxu0 %v2416
        %v2637 = vpop.f32.mrb[0].mxu0
        %v2638 = vadd.f32 0.0, %v2637
        %v2639 = vpop.f32.mrb[0].mxu0
        %v2640 = vpop.f32.mrb[0].mxu0
        %v2641 = vadd.f32 0.0, %v2640
        %v2642 = vpop.f32.mrb[0].mxu0
        %2643 = vdwg.mxu0
        %v2644 = vadd.f32 %v2380, %v2518
        %v2645 = vadd.f32 %v2381, %v2521
        %v2646 = vadd.f32 %v2382, %v2526
        %v2647 = vadd.f32 %v2383, %v2529
        %v2648 = vadd.f32 %v2384, %v2534
        %v2649 = vadd.f32 %v2385, %v2537
        %v2650 = vadd.f32 %v2386, %v2542
        %v2651 = vadd.f32 %v2387, %v2545
        %v2652 = vadd.f32 %v2388, %v2550
        %v2653 = vadd.f32 %v2389, %v2553
        %v2654 = vadd.f32 %v2390, %v2558
        %v2655 = vadd.f32 %v2391, %v2561
        %v2656 = vadd.f32 %v2392, %v2566
        %v2657 = vadd.f32 %v2393, %v2569
        %v2658 = vadd.f32 %v2394, %v2574
        %v2659 = vadd.f32 %v2395, %v2577
        %v2660 = vadd.f32 %v2396, %v2582
        %v2661 = vadd.f32 %v2397, %v2585
        %v2662 = vadd.f32 %v2398, %v2590
        %v2663 = vadd.f32 %v2399, %v2593
        %v2664 = vadd.f32 %v2400, %v2598
        %v2665 = vadd.f32 %v2401, %v2601
        %v2666 = vadd.f32 %v2402, %v2606
        %v2667 = vadd.f32 %v2403, %v2609
        %v2668 = vadd.f32 %v2404, %v2614
        %v2669 = vadd.f32 %v2405, %v2617
        %v2670 = vadd.f32 %v2406, %v2622
        %v2671 = vadd.f32 %v2407, %v2625
        %v2672 = vadd.f32 %v2408, %v2630
        %v2673 = vadd.f32 %v2409, %v2633
        %v2674 = vadd.f32 %v2410, %v2638
        %v2675 = vadd.f32 %v2411, %v2641
        %s2676 = scalar_lea.vmem [#allocation5], 384
        %v2677 = vld [vmem:[%s2676] sm:$0xf]
        %v2678 = vld [vmem:[%s2676 + $0x4] sm:$0xf]
        %v2679 = vld [vmem:[%s2676 + $0x8] sm:$0xf]
        %v2680 = vld [vmem:[%s2676 + $0xc] sm:$0xf]
        %v2681 = vld [vmem:[%s2676 + $0x10] sm:$0xf]
        %v2682 = vld [vmem:[%s2676 + $0x14] sm:$0xf]
        %v2683 = vld [vmem:[%s2676 + $0x18] sm:$0xf]
        %v2684 = vld [vmem:[%s2676 + $0x1c] sm:$0xf]
        %v2685 = vld [vmem:[%s2676 + $0x20] sm:$0xf]
        %v2686 = vld [vmem:[%s2676 + $0x24] sm:$0xf]
        %v2687 = vld [vmem:[%s2676 + $0x28] sm:$0xf]
        %v2688 = vld [vmem:[%s2676 + $0x2c] sm:$0xf]
        %v2689 = vld [vmem:[%s2676 + $0x30] sm:$0xf]
        %v2690 = vld [vmem:[%s2676 + $0x34] sm:$0xf]
        %v2691 = vld [vmem:[%s2676 + $0x38] sm:$0xf]
        %v2692 = vld [vmem:[%s2676 + $0x3c] sm:$0xf]
        %v2709 = vunpack.c.l.b16 %v2677
        %v2710 = vunpack.c.l.b16 %v2678
        %v2711 = vunpack.c.l.b16 %v2679
        %v2712 = vunpack.c.l.b16 %v2680
        %v2713 = vunpack.c.l.b16 %v2681
        %v2714 = vunpack.c.l.b16 %v2682
        %v2715 = vunpack.c.l.b16 %v2683
        %v2716 = vunpack.c.l.b16 %v2684
        %v2717 = vunpack.c.l.b16 %v2685
        %v2718 = vunpack.c.l.b16 %v2686
        %v2719 = vunpack.c.l.b16 %v2687
        %v2720 = vunpack.c.l.b16 %v2688
        %v2721 = vunpack.c.l.b16 %v2689
        %v2722 = vunpack.c.l.b16 %v2690
        %v2723 = vunpack.c.l.b16 %v2691
        %v2724 = vunpack.c.l.b16 %v2692
        %v2725 = vpack.c.b16 %v2710, %v2709
        %v2726 = vpack.c.b16 %v2712, %v2711
        %v2727 = vpack.c.b16 %v2714, %v2713
        %v2728 = vpack.c.b16 %v2716, %v2715
        %v2729 = vpack.c.b16 %v2718, %v2717
        %v2730 = vpack.c.b16 %v2720, %v2719
        %v2731 = vpack.c.b16 %v2722, %v2721
        %v2732 = vpack.c.b16 %v2724, %v2723
        %2741 = vmatprep.subr.bf16.mxu0 0
        %2742 = vmatpush1.bf16.msra.mxu0 %v2725
        %2743 = vmatprep.subr.bf16.mxu0 0
        %2744 = vmatpush1.bf16.msra.mxu0 %v2726
        %2745 = vmatprep.subr.bf16.mxu0 0
        %2746 = vmatpush1.bf16.msra.mxu0 %v2727
        %2747 = vmatprep.subr.bf16.mxu0 0
        %2748 = vmatpush1.bf16.msra.mxu0 %v2728
        %2749 = vmatprep.subr.bf16.mxu0 0
        %2750 = vmatpush1.bf16.msra.mxu0 %v2729
        %2751 = vmatprep.subr.bf16.mxu0 0
        %2752 = vmatpush1.bf16.msra.mxu0 %v2730
        %2753 = vmatprep.subr.bf16.mxu0 0
        %2754 = vmatpush1.bf16.msra.mxu0 %v2731
        %2755 = vmatprep.subr.bf16.mxu0 0
        %2756 = vmatpush1.bf16.msra.mxu0 %v2732
        %2757 = vmatprep.subr.bf16.mxu0 0
        %2758 = vmatpush1.bf16.msra.mxu0 0
        %2759 = vmatprep.subr.bf16.mxu0 0
        %2760 = vmatpush1.bf16.msra.mxu0 0
        %2761 = vmatprep.subr.bf16.mxu0 0
        %2762 = vmatpush1.bf16.msra.mxu0 0
        %2763 = vmatprep.subr.bf16.mxu0 0
        %2764 = vmatpush1.bf16.msra.mxu0 0
        %2765 = vmatprep.subr.bf16.mxu0 0
        %2766 = vmatpush1.bf16.msra.mxu0 0
        %2767 = vmatprep.subr.bf16.mxu0 0
        %2768 = vmatpush1.bf16.msra.mxu0 0
        %2769 = vmatprep.subr.bf16.mxu0 0
        %2770 = vmatpush1.bf16.msra.mxu0 0
        %2771 = vmatprep.subr.bf16.mxu0 0
        %2772 = vmatpush1.bf16.msra.mxu0 0
        %2773 = vmatprep.mubr.bf16.mxu0 0
        %2774 = vmatmul.mubr.bf16.gmra.mrb[0].mxu0 %v836
        %v2775 = vpop.f32.mrb[0].mxu0
        %v2776 = vadd.f32 0.0, %v2775
        %v2777 = vpop.f32.mrb[0].mxu0
        %v2778 = vpop.f32.mrb[0].mxu0
        %v2779 = vadd.f32 0.0, %v2778
        %v2780 = vpop.f32.mrb[0].mxu0
        %2781 = vmatprep.mubr.bf16.mxu0 0
        %2782 = vmatmul.mubr.bf16.gmra.mrb[0].mxu0 %v838
        %v2783 = vpop.f32.mrb[0].mxu0
        %v2784 = vadd.f32 0.0, %v2783
        %v2785 = vpop.f32.mrb[0].mxu0
        %v2786 = vpop.f32.mrb[0].mxu0
        %v2787 = vadd.f32 0.0, %v2786
        %v2788 = vpop.f32.mrb[0].mxu0
        %2789 = vmatprep.mubr.bf16.mxu0 0
        %2790 = vmatmul.mubr.bf16.gmra.mrb[0].mxu0 %v840
        %v2791 = vpop.f32.mrb[0].mxu0
        %v2792 = vadd.f32 0.0, %v2791
        %v2793 = vpop.f32.mrb[0].mxu0
        %v2794 = vpop.f32.mrb[0].mxu0
        %v2795 = vadd.f32 0.0, %v2794
        %v2796 = vpop.f32.mrb[0].mxu0
        %2797 = vmatprep.mubr.bf16.mxu0 0
        %2798 = vmatmul.mubr.bf16.gmra.mrb[0].mxu0 %v842
        %v2799 = vpop.f32.mrb[0].mxu0
        %v2800 = vadd.f32 0.0, %v2799
        %v2801 = vpop.f32.mrb[0].mxu0
        %v2802 = vpop.f32.mrb[0].mxu0
        %v2803 = vadd.f32 0.0, %v2802
        %v2804 = vpop.f32.mrb[0].mxu0
        %2805 = vmatprep.mubr.bf16.mxu0 0
        %2806 = vmatmul.mubr.bf16.gmra.mrb[0].mxu0 %v844
        %v2807 = vpop.f32.mrb[0].mxu0
        %v2808 = vadd.f32 0.0, %v2807
        %v2809 = vpop.f32.mrb[0].mxu0
        %v2810 = vpop.f32.mrb[0].mxu0
        %v2811 = vadd.f32 0.0, %v2810
        %v2812 = vpop.f32.mrb[0].mxu0
        %2813 = vmatprep.mubr.bf16.mxu0 0
        %2814 = vmatmul.mubr.bf16.gmra.mrb[0].mxu0 %v846
        %v2815 = vpop.f32.mrb[0].mxu0
        %v2816 = vadd.f32 0.0, %v2815
        %v2817 = vpop.f32.mrb[0].mxu0
        %v2818 = vpop.f32.mrb[0].mxu0
        %v2819 = vadd.f32 0.0, %v2818
        %v2820 = vpop.f32.mrb[0].mxu0
        %2821 = vmatprep.mubr.bf16.mxu0 0
        %2822 = vmatmul.mubr.bf16.gmra.mrb[0].mxu0 %v848
        %v2823 = vpop.f32.mrb[0].mxu0
        %v2824 = vadd.f32 0.0, %v2823
        %v2825 = vpop.f32.mrb[0].mxu0
        %v2826 = vpop.f32.mrb[0].mxu0
        %v2827 = vadd.f32 0.0, %v2826
        %v2828 = vpop.f32.mrb[0].mxu0
        %2829 = vmatprep.mubr.bf16.mxu0 0
        %2830 = vmatmul.mubr.bf16.gmra.mrb[0].mxu0 %v850
        %v2831 = vpop.f32.mrb[0].mxu0
        %v2832 = vadd.f32 0.0, %v2831
        %v2833 = vpop.f32.mrb[0].mxu0
        %v2834 = vpop.f32.mrb[0].mxu0
        %v2835 = vadd.f32 0.0, %v2834
        %v2836 = vpop.f32.mrb[0].mxu0
        %2837 = vmatprep.mubr.bf16.mxu0 0
        %2838 = vmatmul.mubr.bf16.gmra.mrb[0].mxu0 %v852
        %v2839 = vpop.f32.mrb[0].mxu0
        %v2840 = vadd.f32 0.0, %v2839
        %v2841 = vpop.f32.mrb[0].mxu0
        %v2842 = vpop.f32.mrb[0].mxu0
        %v2843 = vadd.f32 0.0, %v2842
        %v2844 = vpop.f32.mrb[0].mxu0
        %2845 = vmatprep.mubr.bf16.mxu0 0
        %2846 = vmatmul.mubr.bf16.gmra.mrb[0].mxu0 %v854
        %v2847 = vpop.f32.mrb[0].mxu0
        %v2848 = vadd.f32 0.0, %v2847
        %v2849 = vpop.f32.mrb[0].mxu0
        %v2850 = vpop.f32.mrb[0].mxu0
        %v2851 = vadd.f32 0.0, %v2850
        %v2852 = vpop.f32.mrb[0].mxu0
        %2853 = vmatprep.mubr.bf16.mxu0 0
        %2854 = vmatmul.mubr.bf16.gmra.mrb[0].mxu0 %v856
        %v2855 = vpop.f32.mrb[0].mxu0
        %v2856 = vadd.f32 0.0, %v2855
        %v2857 = vpop.f32.mrb[0].mxu0
        %v2858 = vpop.f32.mrb[0].mxu0
        %v2859 = vadd.f32 0.0, %v2858
        %v2860 = vpop.f32.mrb[0].mxu0
        %2861 = vmatprep.mubr.bf16.mxu0 0
        %2862 = vmatmul.mubr.bf16.gmra.mrb[0].mxu0 %v858
        %v2863 = vpop.f32.mrb[0].mxu0
        %v2864 = vadd.f32 0.0, %v2863
        %v2865 = vpop.f32.mrb[0].mxu0
        %v2866 = vpop.f32.mrb[0].mxu0
        %v2867 = vadd.f32 0.0, %v2866
        %v2868 = vpop.f32.mrb[0].mxu0
        %2869 = vmatprep.mubr.bf16.mxu0 0
        %2870 = vmatmul.mubr.bf16.gmra.mrb[0].mxu0 %v860
        %v2871 = vpop.f32.mrb[0].mxu0
        %v2872 = vadd.f32 0.0, %v2871
        %v2873 = vpop.f32.mrb[0].mxu0
        %v2874 = vpop.f32.mrb[0].mxu0
        %v2875 = vadd.f32 0.0, %v2874
        %v2876 = vpop.f32.mrb[0].mxu0
        %2877 = vmatprep.mubr.bf16.mxu0 0
        %2878 = vmatmul.mubr.bf16.gmra.mrb[0].mxu0 %v862
        %v2879 = vpop.f32.mrb[0].mxu0
        %v2880 = vadd.f32 0.0, %v2879
        %v2881 = vpop.f32.mrb[0].mxu0
        %v2882 = vpop.f32.mrb[0].mxu0
        %v2883 = vadd.f32 0.0, %v2882
        %v2884 = vpop.f32.mrb[0].mxu0
        %2885 = vmatprep.mubr.bf16.mxu0 0
        %2886 = vmatmul.mubr.bf16.gmra.mrb[0].mxu0 %v864
        %v2887 = vpop.f32.mrb[0].mxu0
        %v2888 = vadd.f32 0.0, %v2887
        %v2889 = vpop.f32.mrb[0].mxu0
        %v2890 = vpop.f32.mrb[0].mxu0
        %v2891 = vadd.f32 0.0, %v2890
        %v2892 = vpop.f32.mrb[0].mxu0
        %2893 = vmatprep.mubr.bf16.mxu0 0
        %2894 = vmatmul.mubr.bf16.gmra.mrb[0].mxu0 %v866
        %v2895 = vpop.f32.mrb[0].mxu0
        %v2896 = vadd.f32 0.0, %v2895
        %v2897 = vpop.f32.mrb[0].mxu0
        %v2898 = vpop.f32.mrb[0].mxu0
        %v2899 = vadd.f32 0.0, %v2898
        %v2900 = vpop.f32.mrb[0].mxu0
        %2901 = vdwg.mxu0
        %v2902 = vadd.f32 %v2644, %v2776
        %v2903 = vadd.f32 %v2645, %v2779
        %v2904 = vadd.f32 %v2646, %v2784
        %v2905 = vadd.f32 %v2647, %v2787
        %v2906 = vadd.f32 %v2648, %v2792
        %v2907 = vadd.f32 %v2649, %v2795
        %v2908 = vadd.f32 %v2650, %v2800
        %v2909 = vadd.f32 %v2651, %v2803
        %v2910 = vadd.f32 %v2652, %v2808
        %v2911 = vadd.f32 %v2653, %v2811
        %v2912 = vadd.f32 %v2654, %v2816
        %v2913 = vadd.f32 %v2655, %v2819
        %v2914 = vadd.f32 %v2656, %v2824
        %v2915 = vadd.f32 %v2657, %v2827
        %v2916 = vadd.f32 %v2658, %v2832
        %v2917 = vadd.f32 %v2659, %v2835
        %v2918 = vadd.f32 %v2660, %v2840
        %v2919 = vadd.f32 %v2661, %v2843
        %v2920 = vadd.f32 %v2662, %v2848
        %v2921 = vadd.f32 %v2663, %v2851
        %v2922 = vadd.f32 %v2664, %v2856
        %v2923 = vadd.f32 %v2665, %v2859
        %v2924 = vadd.f32 %v2666, %v2864
        %v2925 = vadd.f32 %v2667, %v2867
        %v2926 = vadd.f32 %v2668, %v2872
        %v2927 = vadd.f32 %v2669, %v2875
        %v2928 = vadd.f32 %v2670, %v2880
        %v2929 = vadd.f32 %v2671, %v2883
        %v2930 = vadd.f32 %v2672, %v2888
        %v2931 = vadd.f32 %v2673, %v2891
        %v2932 = vadd.f32 %v2674, %v2896
        %v2933 = vadd.f32 %v2675, %v2899
        %v2935 = vshrl.u32 %v866, 16
        %v2937 = vshll.u32 %v866, 16
        %v2939 = vrot.slane %v2937, 1
        %v2940 = vor.u32 %v2935, %v2939
        %v2942 = vshll.u32 %v867, 16
        %v2944 = vrot.slane %v2942, 1
        %v2945 = vsel %vm884, %v2940, %v2944
        %s2947 = scalar_lea.vmem [#allocation5], 448
        %v2948 = vld [vmem:[%s2947] sm:$0xf]
        %v2949 = vld [vmem:[%s2947 + $0x4] sm:$0xf]
        %v2950 = vld [vmem:[%s2947 + $0x8] sm:$0xf]
        %v2951 = vld [vmem:[%s2947 + $0xc] sm:$0xf]
        %v2952 = vld [vmem:[%s2947 + $0x10] sm:$0xf]
        %v2953 = vld [vmem:[%s2947 + $0x14] sm:$0xf]
        %v2954 = vld [vmem:[%s2947 + $0x18] sm:$0xf]
        %v2955 = vld [vmem:[%s2947 + $0x1c] sm:$0xf]
        %v2956 = vld [vmem:[%s2947 + $0x20] sm:$0xf]
        %v2957 = vld [vmem:[%s2947 + $0x24] sm:$0xf]
        %v2958 = vld [vmem:[%s2947 + $0x28] sm:$0xf]
        %v2959 = vld [vmem:[%s2947 + $0x2c] sm:$0xf]
        %v2960 = vld [vmem:[%s2947 + $0x30] sm:$0xf]
        %v2961 = vld [vmem:[%s2947 + $0x34] sm:$0xf]
        %v2962 = vld [vmem:[%s2947 + $0x38] sm:$0xf]
        %v2963 = vld [vmem:[%s2947 + $0x3c] sm:$0xf]
        %v2980 = vunpack.c.l.b16 %v2948
        %v2981 = vunpack.c.l.b16 %v2949
        %v2982 = vunpack.c.l.b16 %v2950
        %v2983 = vunpack.c.l.b16 %v2951
        %v2984 = vunpack.c.l.b16 %v2952
        %v2985 = vunpack.c.l.b16 %v2953
        %v2986 = vunpack.c.l.b16 %v2954
        %v2987 = vunpack.c.l.b16 %v2955
        %v2988 = vunpack.c.l.b16 %v2956
        %v2989 = vunpack.c.l.b16 %v2957
        %v2990 = vunpack.c.l.b16 %v2958
        %v2991 = vunpack.c.l.b16 %v2959
        %v2992 = vunpack.c.l.b16 %v2960
        %v2993 = vunpack.c.l.b16 %v2961
        %v2994 = vunpack.c.l.b16 %v2962
        %v2995 = vunpack.c.l.b16 %v2963
        %v2996 = vpack.c.b16 %v2981, %v2980
        %v2997 = vpack.c.b16 %v2983, %v2982
        %v2998 = vpack.c.b16 %v2985, %v2984
        %v2999 = vpack.c.b16 %v2987, %v2986
        %v3000 = vpack.c.b16 %v2989, %v2988
        %v3001 = vpack.c.b16 %v2991, %v2990
        %v3002 = vpack.c.b16 %v2993, %v2992
        %v3003 = vpack.c.b16 %v2995, %v2994
        %3012 = vmatprep.subr.bf16.mxu0 0
        %3013 = vmatpush1.bf16.msra.mxu0 %v2996
        %3014 = vmatprep.subr.bf16.mxu0 0
        %3015 = vmatpush1.bf16.msra.mxu0 %v2997
        %3016 = vmatprep.subr.bf16.mxu0 0
        %3017 = vmatpush1.bf16.msra.mxu0 %v2998
        %3018 = vmatprep.subr.bf16.mxu0 0
        %3019 = vmatpush1.bf16.msra.mxu0 %v2999
        %3020 = vmatprep.subr.bf16.mxu0 0
        %3021 = vmatpush1.bf16.msra.mxu0 %v3000
        %3022 = vmatprep.subr.bf16.mxu0 0
        %3023 = vmatpush1.bf16.msra.mxu0 %v3001
        %3024 = vmatprep.subr.bf16.mxu0 0
        %3025 = vmatpush1.bf16.msra.mxu0 %v3002
        %3026 = vmatprep.subr.bf16.mxu0 0
        %3027 = vmatpush1.bf16.msra.mxu0 %v3003
        %3028 = vmatprep.subr.bf16.mxu0 0
        %3029 = vmatpush1.bf16.msra.mxu0 0
        %3030 = vmatprep.subr.bf16.mxu0 0
        %3031 = vmatpush1.bf16.msra.mxu0 0
        %3032 = vmatprep.subr.bf16.mxu0 0
        %3033 = vmatpush1.bf16.msra.mxu0 0
        %3034 = vmatprep.subr.bf16.mxu0 0
        %3035 = vmatpush1.bf16.msra.mxu0 0
        %3036 = vmatprep.subr.bf16.mxu0 0
        %3037 = vmatpush1.bf16.msra.mxu0 0
        %3038 = vmatprep.subr.bf16.mxu0 0
        %3039 = vmatpush1.bf16.msra.mxu0 0
        %3040 = vmatprep.subr.bf16.mxu0 0
        %3041 = vmatpush1.bf16.msra.mxu0 0
        %3042 = vmatprep.subr.bf16.mxu0 0
        %3043 = vmatpush1.bf16.msra.mxu0 0
        %3044 = vmatprep.mubr.bf16.mxu0 0
        %3045 = vmatmul.mubr.bf16.gmra.mrb[0].mxu0 %v920
        %v3046 = vpop.f32.mrb[0].mxu0
        %v3047 = vadd.f32 0.0, %v3046
        %v3048 = vpop.f32.mrb[0].mxu0
        %v3049 = vpop.f32.mrb[0].mxu0
        %v3050 = vadd.f32 0.0, %v3049
        %v3051 = vpop.f32.mrb[0].mxu0
        %3052 = vmatprep.mubr.bf16.mxu0 0
        %3053 = vmatmul.mubr.bf16.gmra.mrb[0].mxu0 %v932
        %v3054 = vpop.f32.mrb[0].mxu0
        %v3055 = vadd.f32 0.0, %v3054
        %v3056 = vpop.f32.mrb[0].mxu0
        %v3057 = vpop.f32.mrb[0].mxu0
        %v3058 = vadd.f32 0.0, %v3057
        %v3059 = vpop.f32.mrb[0].mxu0
        %3060 = vmatprep.mubr.bf16.mxu0 0
        %3061 = vmatmul.mubr.bf16.gmra.mrb[0].mxu0 %v944
        %v3062 = vpop.f32.mrb[0].mxu0
        %v3063 = vadd.f32 0.0, %v3062
        %v3064 = vpop.f32.mrb[0].mxu0
        %v3065 = vpop.f32.mrb[0].mxu0
        %v3066 = vadd.f32 0.0, %v3065
        %v3067 = vpop.f32.mrb[0].mxu0
        %3068 = vmatprep.mubr.bf16.mxu0 0
        %3069 = vmatmul.mubr.bf16.gmra.mrb[0].mxu0 %v956
        %v3070 = vpop.f32.mrb[0].mxu0
        %v3071 = vadd.f32 0.0, %v3070
        %v3072 = vpop.f32.mrb[0].mxu0
        %v3073 = vpop.f32.mrb[0].mxu0
        %v3074 = vadd.f32 0.0, %v3073
        %v3075 = vpop.f32.mrb[0].mxu0
        %3076 = vmatprep.mubr.bf16.mxu0 0
        %3077 = vmatmul.mubr.bf16.gmra.mrb[0].mxu0 %v968
        %v3078 = vpop.f32.mrb[0].mxu0
        %v3079 = vadd.f32 0.0, %v3078
        %v3080 = vpop.f32.mrb[0].mxu0
        %v3081 = vpop.f32.mrb[0].mxu0
        %v3082 = vadd.f32 0.0, %v3081
        %v3083 = vpop.f32.mrb[0].mxu0
        %3084 = vmatprep.mubr.bf16.mxu0 0
        %3085 = vmatmul.mubr.bf16.gmra.mrb[0].mxu0 %v980
        %v3086 = vpop.f32.mrb[0].mxu0
        %v3087 = vadd.f32 0.0, %v3086
        %v3088 = vpop.f32.mrb[0].mxu0
        %v3089 = vpop.f32.mrb[0].mxu0
        %v3090 = vadd.f32 0.0, %v3089
        %v3091 = vpop.f32.mrb[0].mxu0
        %3092 = vmatprep.mubr.bf16.mxu0 0
        %3093 = vmatmul.mubr.bf16.gmra.mrb[0].mxu0 %v992
        %v3094 = vpop.f32.mrb[0].mxu0
        %v3095 = vadd.f32 0.0, %v3094
        %v3096 = vpop.f32.mrb[0].mxu0
        %v3097 = vpop.f32.mrb[0].mxu0
        %v3098 = vadd.f32 0.0, %v3097
        %v3099 = vpop.f32.mrb[0].mxu0
        %3100 = vmatprep.mubr.bf16.mxu0 0
        %3101 = vmatmul.mubr.bf16.gmra.mrb[0].mxu0 %v1004
        %v3102 = vpop.f32.mrb[0].mxu0
        %v3103 = vadd.f32 0.0, %v3102
        %v3104 = vpop.f32.mrb[0].mxu0
        %v3105 = vpop.f32.mrb[0].mxu0
        %v3106 = vadd.f32 0.0, %v3105
        %v3107 = vpop.f32.mrb[0].mxu0
        %3108 = vmatprep.mubr.bf16.mxu0 0
        %3109 = vmatmul.mubr.bf16.gmra.mrb[0].mxu0 %v1016
        %v3110 = vpop.f32.mrb[0].mxu0
        %v3111 = vadd.f32 0.0, %v3110
        %v3112 = vpop.f32.mrb[0].mxu0
        %v3113 = vpop.f32.mrb[0].mxu0
        %v3114 = vadd.f32 0.0, %v3113
        %v3115 = vpop.f32.mrb[0].mxu0
        %3116 = vmatprep.mubr.bf16.mxu0 0
        %3117 = vmatmul.mubr.bf16.gmra.mrb[0].mxu0 %v1028
        %v3118 = vpop.f32.mrb[0].mxu0
        %v3119 = vadd.f32 0.0, %v3118
        %v3120 = vpop.f32.mrb[0].mxu0
        %v3121 = vpop.f32.mrb[0].mxu0
        %v3122 = vadd.f32 0.0, %v3121
        %v3123 = vpop.f32.mrb[0].mxu0
        %3124 = vmatprep.mubr.bf16.mxu0 0
        %3125 = vmatmul.mubr.bf16.gmra.mrb[0].mxu0 %v1040
        %v3126 = vpop.f32.mrb[0].mxu0
        %v3127 = vadd.f32 0.0, %v3126
        %v3128 = vpop.f32.mrb[0].mxu0
        %v3129 = vpop.f32.mrb[0].mxu0
        %v3130 = vadd.f32 0.0, %v3129
        %v3131 = vpop.f32.mrb[0].mxu0
        %3132 = vmatprep.mubr.bf16.mxu0 0
        %3133 = vmatmul.mubr.bf16.gmra.mrb[0].mxu0 %v1052
        %v3134 = vpop.f32.mrb[0].mxu0
        %v3135 = vadd.f32 0.0, %v3134
        %v3136 = vpop.f32.mrb[0].mxu0
        %v3137 = vpop.f32.mrb[0].mxu0
        %v3138 = vadd.f32 0.0, %v3137
        %v3139 = vpop.f32.mrb[0].mxu0
        %3140 = vmatprep.mubr.bf16.mxu0 0
        %3141 = vmatmul.mubr.bf16.gmra.mrb[0].mxu0 %v1064
        %v3142 = vpop.f32.mrb[0].mxu0
        %v3143 = vadd.f32 0.0, %v3142
        %v3144 = vpop.f32.mrb[0].mxu0
        %v3145 = vpop.f32.mrb[0].mxu0
        %v3146 = vadd.f32 0.0, %v3145
        %v3147 = vpop.f32.mrb[0].mxu0
        %3148 = vmatprep.mubr.bf16.mxu0 0
        %3149 = vmatmul.mubr.bf16.gmra.mrb[0].mxu0 %v1076
        %v3150 = vpop.f32.mrb[0].mxu0
        %v3151 = vadd.f32 0.0, %v3150
        %v3152 = vpop.f32.mrb[0].mxu0
        %v3153 = vpop.f32.mrb[0].mxu0
        %v3154 = vadd.f32 0.0, %v3153
        %v3155 = vpop.f32.mrb[0].mxu0
        %3156 = vmatprep.mubr.bf16.mxu0 0
        %3157 = vmatmul.mubr.bf16.gmra.mrb[0].mxu0 %v2152
        %v3158 = vpop.f32.mrb[0].mxu0
        %v3159 = vadd.f32 0.0, %v3158
        %v3160 = vpop.f32.mrb[0].mxu0
        %v3161 = vpop.f32.mrb[0].mxu0
        %v3162 = vadd.f32 0.0, %v3161
        %v3163 = vpop.f32.mrb[0].mxu0
        %3164 = vmatprep.mubr.bf16.mxu0 0
        %3165 = vmatmul.mubr.bf16.gmra.mrb[0].mxu0 %v2945
        %v3166 = vpop.f32.mrb[0].mxu0
        %v3167 = vadd.f32 0.0, %v3166
        %v3168 = vpop.f32.mrb[0].mxu0
        %v3169 = vpop.f32.mrb[0].mxu0
        %v3170 = vadd.f32 0.0, %v3169
        %v3171 = vpop.f32.mrb[0].mxu0
        %3172 = vdwg.mxu0
        %v3173 = vadd.f32 %v2902, %v3047
        %v3174 = vadd.f32 %v2903, %v3050
        %v3175 = vadd.f32 %v2904, %v3055
        %v3176 = vadd.f32 %v2905, %v3058
        %v3177 = vadd.f32 %v2906, %v3063
        %v3178 = vadd.f32 %v2907, %v3066
        %v3179 = vadd.f32 %v2908, %v3071
        %v3180 = vadd.f32 %v2909, %v3074
        %v3181 = vadd.f32 %v2910, %v3079
        %v3182 = vadd.f32 %v2911, %v3082
        %v3183 = vadd.f32 %v2912, %v3087
        %v3184 = vadd.f32 %v2913, %v3090
        %v3185 = vadd.f32 %v2914, %v3095
        %v3186 = vadd.f32 %v2915, %v3098
        %v3187 = vadd.f32 %v2916, %v3103
        %v3188 = vadd.f32 %v2917, %v3106
        %v3189 = vadd.f32 %v2918, %v3111
        %v3190 = vadd.f32 %v2919, %v3114
        %v3191 = vadd.f32 %v2920, %v3119
        %v3192 = vadd.f32 %v2921, %v3122
        %v3193 = vadd.f32 %v2922, %v3127
        %v3194 = vadd.f32 %v2923, %v3130
        %v3195 = vadd.f32 %v2924, %v3135
        %v3196 = vadd.f32 %v2925, %v3138
        %v3197 = vadd.f32 %v2926, %v3143
        %v3198 = vadd.f32 %v2927, %v3146
        %v3199 = vadd.f32 %v2928, %v3151
        %v3200 = vadd.f32 %v2929, %v3154
        %v3201 = vadd.f32 %v2930, %v3159
        %v3202 = vadd.f32 %v2931, %v3162
        %v3203 = vadd.f32 %v2932, %v3167
        %v3204 = vadd.f32 %v2933, %v3170
        %v3207 = vrot.slane %v866, 1
        %v3208 = vrot.slane %v867, 1
        %v3209 = vsel %vm1560, %v3207, %v3208
        %s3211 = scalar_lea.vmem [#allocation5], 512
        %v3212 = vld [vmem:[%s3211] sm:$0xf]
        %v3213 = vld [vmem:[%s3211 + $0x4] sm:$0xf]
        %v3214 = vld [vmem:[%s3211 + $0x8] sm:$0xf]
        %v3215 = vld [vmem:[%s3211 + $0xc] sm:$0xf]
        %v3216 = vld [vmem:[%s3211 + $0x10] sm:$0xf]
        %v3217 = vld [vmem:[%s3211 + $0x14] sm:$0xf]
        %v3218 = vld [vmem:[%s3211 + $0x18] sm:$0xf]
        %v3219 = vld [vmem:[%s3211 + $0x1c] sm:$0xf]
        %v3220 = vld [vmem:[%s3211 + $0x20] sm:$0xf]
        %v3221 = vld [vmem:[%s3211 + $0x24] sm:$0xf]
        %v3222 = vld [vmem:[%s3211 + $0x28] sm:$0xf]
        %v3223 = vld [vmem:[%s3211 + $0x2c] sm:$0xf]
        %v3224 = vld [vmem:[%s3211 + $0x30] sm:$0xf]
        %v3225 = vld [vmem:[%s3211 + $0x34] sm:$0xf]
        %v3226 = vld [vmem:[%s3211 + $0x38] sm:$0xf]
        %v3227 = vld [vmem:[%s3211 + $0x3c] sm:$0xf]
        %v3244 = vunpack.c.l.b16 %v3212
        %v3245 = vunpack.c.l.b16 %v3213
        %v3246 = vunpack.c.l.b16 %v3214
        %v3247 = vunpack.c.l.b16 %v3215
        %v3248 = vunpack.c.l.b16 %v3216
        %v3249 = vunpack.c.l.b16 %v3217
        %v3250 = vunpack.c.l.b16 %v3218
        %v3251 = vunpack.c.l.b16 %v3219
        %v3252 = vunpack.c.l.b16 %v3220
        %v3253 = vunpack.c.l.b16 %v3221
        %v3254 = vunpack.c.l.b16 %v3222
        %v3255 = vunpack.c.l.b16 %v3223
        %v3256 = vunpack.c.l.b16 %v3224
        %v3257 = vunpack.c.l.b16 %v3225
        %v3258 = vunpack.c.l.b16 %v3226
        %v3259 = vunpack.c.l.b16 %v3227
        %v3260 = vpack.c.b16 %v3245, %v3244
        %v3261 = vpack.c.b16 %v3247, %v3246
        %v3262 = vpack.c.b16 %v3249, %v3248
        %v3263 = vpack.c.b16 %v3251, %v3250
        %v3264 = vpack.c.b16 %v3253, %v3252
        %v3265 = vpack.c.b16 %v3255, %v3254
        %v3266 = vpack.c.b16 %v3257, %v3256
        %v3267 = vpack.c.b16 %v3259, %v3258
        %3276 = vmatprep.subr.bf16.mxu0 0
        %3277 = vmatpush1.bf16.msra.mxu0 %v3260
        %3278 = vmatprep.subr.bf16.mxu0 0
        %3279 = vmatpush1.bf16.msra.mxu0 %v3261
        %3280 = vmatprep.subr.bf16.mxu0 0
        %3281 = vmatpush1.bf16.msra.mxu0 %v3262
        %3282 = vmatprep.subr.bf16.mxu0 0
        %3283 = vmatpush1.bf16.msra.mxu0 %v3263
        %3284 = vmatprep.subr.bf16.mxu0 0
        %3285 = vmatpush1.bf16.msra.mxu0 %v3264
        %3286 = vmatprep.subr.bf16.mxu0 0
        %3287 = vmatpush1.bf16.msra.mxu0 %v3265
        %3288 = vmatprep.subr.bf16.mxu0 0
        %3289 = vmatpush1.bf16.msra.mxu0 %v3266
        %3290 = vmatprep.subr.bf16.mxu0 0
        %3291 = vmatpush1.bf16.msra.mxu0 %v3267
        %3292 = vmatprep.subr.bf16.mxu0 0
        %3293 = vmatpush1.bf16.msra.mxu0 0
        %3294 = vmatprep.subr.bf16.mxu0 0
        %3295 = vmatpush1.bf16.msra.mxu0 0
        %3296 = vmatprep.subr.bf16.mxu0 0
        %3297 = vmatpush1.bf16.msra.mxu0 0
        %3298 = vmatprep.subr.bf16.mxu0 0
        %3299 = vmatpush1.bf16.msra.mxu0 0
        %3300 = vmatprep.subr.bf16.mxu0 0
        %3301 = vmatpush1.bf16.msra.mxu0 0
        %3302 = vmatprep.subr.bf16.mxu0 0
        %3303 = vmatpush1.bf16.msra.mxu0 0
        %3304 = vmatprep.subr.bf16.mxu0 0
        %3305 = vmatpush1.bf16.msra.mxu0 0
        %3306 = vmatprep.subr.bf16.mxu0 0
        %3307 = vmatpush1.bf16.msra.mxu0 0
        %3308 = vmatprep.mubr.bf16.mxu0 0
        %3309 = vmatmul.mubr.bf16.gmra.mrb[0].mxu0 %v1569
        %v3310 = vpop.f32.mrb[0].mxu0
        %v3311 = vadd.f32 0.0, %v3310
        %v3312 = vpop.f32.mrb[0].mxu0
        %v3313 = vpop.f32.mrb[0].mxu0
        %v3314 = vadd.f32 0.0, %v3313
        %v3315 = vpop.f32.mrb[0].mxu0
        %3316 = vmatprep.mubr.bf16.mxu0 0
        %3317 = vmatmul.mubr.bf16.gmra.mrb[0].mxu0 %v1572
        %v3318 = vpop.f32.mrb[0].mxu0
        %v3319 = vadd.f32 0.0, %v3318
        %v3320 = vpop.f32.mrb[0].mxu0
        %v3321 = vpop.f32.mrb[0].mxu0
        %v3322 = vadd.f32 0.0, %v3321
        %v3323 = vpop.f32.mrb[0].mxu0
        %3324 = vmatprep.mubr.bf16.mxu0 0
        %3325 = vmatmul.mubr.bf16.gmra.mrb[0].mxu0 %v1575
        %v3326 = vpop.f32.mrb[0].mxu0
        %v3327 = vadd.f32 0.0, %v3326
        %v3328 = vpop.f32.mrb[0].mxu0
        %v3329 = vpop.f32.mrb[0].mxu0
        %v3330 = vadd.f32 0.0, %v3329
        %v3331 = vpop.f32.mrb[0].mxu0
        %3332 = vmatprep.mubr.bf16.mxu0 0
        %3333 = vmatmul.mubr.bf16.gmra.mrb[0].mxu0 %v1578
        %v3334 = vpop.f32.mrb[0].mxu0
        %v3335 = vadd.f32 0.0, %v3334
        %v3336 = vpop.f32.mrb[0].mxu0
        %v3337 = vpop.f32.mrb[0].mxu0
        %v3338 = vadd.f32 0.0, %v3337
        %v3339 = vpop.f32.mrb[0].mxu0
        %3340 = vmatprep.mubr.bf16.mxu0 0
        %3341 = vmatmul.mubr.bf16.gmra.mrb[0].mxu0 %v1581
        %v3342 = vpop.f32.mrb[0].mxu0
        %v3343 = vadd.f32 0.0, %v3342
        %v3344 = vpop.f32.mrb[0].mxu0
        %v3345 = vpop.f32.mrb[0].mxu0
        %v3346 = vadd.f32 0.0, %v3345
        %v3347 = vpop.f32.mrb[0].mxu0
        %3348 = vmatprep.mubr.bf16.mxu0 0
        %3349 = vmatmul.mubr.bf16.gmra.mrb[0].mxu0 %v1584
        %v3350 = vpop.f32.mrb[0].mxu0
        %v3351 = vadd.f32 0.0, %v3350
        %v3352 = vpop.f32.mrb[0].mxu0
        %v3353 = vpop.f32.mrb[0].mxu0
        %v3354 = vadd.f32 0.0, %v3353
        %v3355 = vpop.f32.mrb[0].mxu0
        %3356 = vmatprep.mubr.bf16.mxu0 0
        %3357 = vmatmul.mubr.bf16.gmra.mrb[0].mxu0 %v1587
        %v3358 = vpop.f32.mrb[0].mxu0
        %v3359 = vadd.f32 0.0, %v3358
        %v3360 = vpop.f32.mrb[0].mxu0
        %v3361 = vpop.f32.mrb[0].mxu0
        %v3362 = vadd.f32 0.0, %v3361
        %v3363 = vpop.f32.mrb[0].mxu0
        %3364 = vmatprep.mubr.bf16.mxu0 0
        %3365 = vmatmul.mubr.bf16.gmra.mrb[0].mxu0 %v1590
        %v3366 = vpop.f32.mrb[0].mxu0
        %v3367 = vadd.f32 0.0, %v3366
        %v3368 = vpop.f32.mrb[0].mxu0
        %v3369 = vpop.f32.mrb[0].mxu0
        %v3370 = vadd.f32 0.0, %v3369
        %v3371 = vpop.f32.mrb[0].mxu0
        %3372 = vmatprep.mubr.bf16.mxu0 0
        %3373 = vmatmul.mubr.bf16.gmra.mrb[0].mxu0 %v1593
        %v3374 = vpop.f32.mrb[0].mxu0
        %v3375 = vadd.f32 0.0, %v3374
        %v3376 = vpop.f32.mrb[0].mxu0
        %v3377 = vpop.f32.mrb[0].mxu0
        %v3378 = vadd.f32 0.0, %v3377
        %v3379 = vpop.f32.mrb[0].mxu0
        %3380 = vmatprep.mubr.bf16.mxu0 0
        %3381 = vmatmul.mubr.bf16.gmra.mrb[0].mxu0 %v1596
        %v3382 = vpop.f32.mrb[0].mxu0
        %v3383 = vadd.f32 0.0, %v3382
        %v3384 = vpop.f32.mrb[0].mxu0
        %v3385 = vpop.f32.mrb[0].mxu0
        %v3386 = vadd.f32 0.0, %v3385
        %v3387 = vpop.f32.mrb[0].mxu0
        %3388 = vmatprep.mubr.bf16.mxu0 0
        %3389 = vmatmul.mubr.bf16.gmra.mrb[0].mxu0 %v1599
        %v3390 = vpop.f32.mrb[0].mxu0
        %v3391 = vadd.f32 0.0, %v3390
        %v3392 = vpop.f32.mrb[0].mxu0
        %v3393 = vpop.f32.mrb[0].mxu0
        %v3394 = vadd.f32 0.0, %v3393
        %v3395 = vpop.f32.mrb[0].mxu0
        %3396 = vmatprep.mubr.bf16.mxu0 0
        %3397 = vmatmul.mubr.bf16.gmra.mrb[0].mxu0 %v1602
        %v3398 = vpop.f32.mrb[0].mxu0
        %v3399 = vadd.f32 0.0, %v3398
        %v3400 = vpop.f32.mrb[0].mxu0
        %v3401 = vpop.f32.mrb[0].mxu0
        %v3402 = vadd.f32 0.0, %v3401
        %v3403 = vpop.f32.mrb[0].mxu0
        %3404 = vmatprep.mubr.bf16.mxu0 0
        %3405 = vmatmul.mubr.bf16.gmra.mrb[0].mxu0 %v1605
        %v3406 = vpop.f32.mrb[0].mxu0
        %v3407 = vadd.f32 0.0, %v3406
        %v3408 = vpop.f32.mrb[0].mxu0
        %v3409 = vpop.f32.mrb[0].mxu0
        %v3410 = vadd.f32 0.0, %v3409
        %v3411 = vpop.f32.mrb[0].mxu0
        %3412 = vmatprep.mubr.bf16.mxu0 0
        %3413 = vmatmul.mubr.bf16.gmra.mrb[0].mxu0 %v1608
        %v3414 = vpop.f32.mrb[0].mxu0
        %v3415 = vadd.f32 0.0, %v3414
        %v3416 = vpop.f32.mrb[0].mxu0
        %v3417 = vpop.f32.mrb[0].mxu0
        %v3418 = vadd.f32 0.0, %v3417
        %v3419 = vpop.f32.mrb[0].mxu0
        %3420 = vmatprep.mubr.bf16.mxu0 0
        %3421 = vmatmul.mubr.bf16.gmra.mrb[0].mxu0 %v2416
        %v3422 = vpop.f32.mrb[0].mxu0
        %v3423 = vadd.f32 0.0, %v3422
        %v3424 = vpop.f32.mrb[0].mxu0
        %v3425 = vpop.f32.mrb[0].mxu0
        %v3426 = vadd.f32 0.0, %v3425
        %v3427 = vpop.f32.mrb[0].mxu0
        %3428 = vmatprep.mubr.bf16.mxu0 0
        %3429 = vmatmul.mubr.bf16.gmra.mrb[0].mxu0 %v3209
        %v3430 = vpop.f32.mrb[0].mxu0
        %v3431 = vadd.f32 0.0, %v3430
        %v3432 = vpop.f32.mrb[0].mxu0
        %v3433 = vpop.f32.mrb[0].mxu0
        %v3434 = vadd.f32 0.0, %v3433
        %v3435 = vpop.f32.mrb[0].mxu0
        %3436 = vdwg.mxu0
        %v3437 = vadd.f32 %v3173, %v3311
        %v3438 = vadd.f32 %v3174, %v3314
        %v3439 = vadd.f32 %v3175, %v3319
        %v3440 = vadd.f32 %v3176, %v3322
        %v3441 = vadd.f32 %v3177, %v3327
        %v3442 = vadd.f32 %v3178, %v3330
        %v3443 = vadd.f32 %v3179, %v3335
        %v3444 = vadd.f32 %v3180, %v3338
        %v3445 = vadd.f32 %v3181, %v3343
        %v3446 = vadd.f32 %v3182, %v3346
        %v3447 = vadd.f32 %v3183, %v3351
        %v3448 = vadd.f32 %v3184, %v3354
        %v3449 = vadd.f32 %v3185, %v3359
        %v3450 = vadd.f32 %v3186, %v3362
        %v3451 = vadd.f32 %v3187, %v3367
        %v3452 = vadd.f32 %v3188, %v3370
        %v3453 = vadd.f32 %v3189, %v3375
        %v3454 = vadd.f32 %v3190, %v3378
        %v3455 = vadd.f32 %v3191, %v3383
        %v3456 = vadd.f32 %v3192, %v3386
        %v3457 = vadd.f32 %v3193, %v3391
        %v3458 = vadd.f32 %v3194, %v3394
        %v3459 = vadd.f32 %v3195, %v3399
        %v3460 = vadd.f32 %v3196, %v3402
        %v3461 = vadd.f32 %v3197, %v3407
        %v3462 = vadd.f32 %v3198, %v3410
        %v3463 = vadd.f32 %v3199, %v3415
        %v3464 = vadd.f32 %v3200, %v3418
        %v3465 = vadd.f32 %v3201, %v3423
        %v3466 = vadd.f32 %v3202, %v3426
        %v3467 = vadd.f32 %v3203, %v3431
        %v3468 = vadd.f32 %v3204, %v3434
        %v3469 = vpack.c.bf16 %v3438, %v3437
        %v3470 = vpack.c.bf16 %v3440, %v3439
        %v3471 = vpack.c.bf16 %v3442, %v3441
        %v3472 = vpack.c.bf16 %v3444, %v3443
        %v3473 = vpack.c.bf16 %v3446, %v3445
        %v3474 = vpack.c.bf16 %v3448, %v3447
        %v3475 = vpack.c.bf16 %v3450, %v3449
        %v3476 = vpack.c.bf16 %v3452, %v3451
        %v3477 = vpack.c.bf16 %v3454, %v3453
        %v3478 = vpack.c.bf16 %v3456, %v3455
        %v3479 = vpack.c.bf16 %v3458, %v3457
        %v3480 = vpack.c.bf16 %v3460, %v3459
        %v3481 = vpack.c.bf16 %v3462, %v3461
        %v3482 = vpack.c.bf16 %v3464, %v3463
        %v3483 = vpack.c.bf16 %v3466, %v3465
        %v3484 = vpack.c.bf16 %v3468, %v3467
        %v3501 = vunpack.c.l.b16 %v3469
        %v3502 = vunpack.c.h.b16 %v3469
        %v3503 = vunpack.c.l.b16 %v3470
        %v3504 = vunpack.c.h.b16 %v3470
        %v3505 = vunpack.c.l.b16 %v3471
        %v3506 = vunpack.c.h.b16 %v3471
        %v3507 = vunpack.c.l.b16 %v3472
        %v3508 = vunpack.c.h.b16 %v3472
        %v3509 = vunpack.c.l.b16 %v3473
        %v3510 = vunpack.c.h.b16 %v3473
        %v3511 = vunpack.c.l.b16 %v3474
        %v3512 = vunpack.c.h.b16 %v3474
        %v3513 = vunpack.c.l.b16 %v3475
        %v3514 = vunpack.c.h.b16 %v3475
        %v3515 = vunpack.c.l.b16 %v3476
        %v3516 = vunpack.c.h.b16 %v3476
        %v3517 = vunpack.c.l.b16 %v3477
        %v3518 = vunpack.c.h.b16 %v3477
        %v3519 = vunpack.c.l.b16 %v3478
        %v3520 = vunpack.c.h.b16 %v3478
        %v3521 = vunpack.c.l.b16 %v3479
        %v3522 = vunpack.c.h.b16 %v3479
        %v3523 = vunpack.c.l.b16 %v3480
        %v3524 = vunpack.c.h.b16 %v3480
        %v3525 = vunpack.c.l.b16 %v3481
        %v3526 = vunpack.c.h.b16 %v3481
        %v3527 = vunpack.c.l.b16 %v3482
        %v3528 = vunpack.c.h.b16 %v3482
        %v3529 = vunpack.c.l.b16 %v3483
        %v3530 = vunpack.c.h.b16 %v3483
        %v3531 = vunpack.c.l.b16 %v3484
        %v3532 = vunpack.c.h.b16 %v3484
        %v3533 = vpack.c.b16 %v3501, %v3501
        %v3534 = vpack.c.b16 %v3502, %v3502
        %v3535 = vpack.c.b16 %v3503, %v3503
        %v3536 = vpack.c.b16 %v3504, %v3504
        %v3537 = vpack.c.b16 %v3505, %v3505
        %v3538 = vpack.c.b16 %v3506, %v3506
        %v3539 = vpack.c.b16 %v3507, %v3507
        %v3540 = vpack.c.b16 %v3508, %v3508
        %v3541 = vpack.c.b16 %v3509, %v3509
        %v3542 = vpack.c.b16 %v3510, %v3510
        %v3543 = vpack.c.b16 %v3511, %v3511
        %v3544 = vpack.c.b16 %v3512, %v3512
        %v3545 = vpack.c.b16 %v3513, %v3513
        %v3546 = vpack.c.b16 %v3514, %v3514
        %v3547 = vpack.c.b16 %v3515, %v3515
        %v3548 = vpack.c.b16 %v3516, %v3516
        %v3549 = vpack.c.b16 %v3517, %v3517
        %v3550 = vpack.c.b16 %v3518, %v3518
        %v3551 = vpack.c.b16 %v3519, %v3519
        %v3552 = vpack.c.b16 %v3520, %v3520
        %v3553 = vpack.c.b16 %v3521, %v3521
        %v3554 = vpack.c.b16 %v3522, %v3522
        %v3555 = vpack.c.b16 %v3523, %v3523
        %v3556 = vpack.c.b16 %v3524, %v3524
        %v3557 = vpack.c.b16 %v3525, %v3525
        %v3558 = vpack.c.b16 %v3526, %v3526
        %v3559 = vpack.c.b16 %v3527, %v3527
        %v3560 = vpack.c.b16 %v3528, %v3528
        %v3561 = vpack.c.b16 %v3529, %v3529
        %v3562 = vpack.c.b16 %v3530, %v3530
        %v3563 = vpack.c.b16 %v3531, %v3531
        %v3564 = vpack.c.b16 %v3532, %v3532
        %3597 = vst [vmem:[%s338] sm:$0xf] %v3533
        %3598 = vst [vmem:[%s338 + $0x4] sm:$0xf] %v3534
        %3599 = vst [vmem:[%s338 + $0x8] sm:$0xf] %v3535
        %3600 = vst [vmem:[%s338 + $0xc] sm:$0xf] %v3536
        %3601 = vst [vmem:[%s338 + $0x10] sm:$0xf] %v3537
        %3602 = vst [vmem:[%s338 + $0x14] sm:$0xf] %v3538
        %3603 = vst [vmem:[%s338 + $0x18] sm:$0xf] %v3539
        %3604 = vst [vmem:[%s338 + $0x1c] sm:$0xf] %v3540
        %3605 = vst [vmem:[%s338 + $0x20] sm:$0xf] %v3541
        %3606 = vst [vmem:[%s338 + $0x24] sm:$0xf] %v3542
        %3607 = vst [vmem:[%s338 + $0x28] sm:$0xf] %v3543
        %3608 = vst [vmem:[%s338 + $0x2c] sm:$0xf] %v3544
        %3609 = vst [vmem:[%s338 + $0x30] sm:$0xf] %v3545
        %3610 = vst [vmem:[%s338 + $0x34] sm:$0xf] %v3546
        %3611 = vst [vmem:[%s338 + $0x38] sm:$0xf] %v3547
        %3612 = vst [vmem:[%s338 + $0x3c] sm:$0xf] %v3548
        %3613 = vst [vmem:[%s338 + $0x40] sm:$0xf] %v3549
        %3614 = vst [vmem:[%s338 + $0x44] sm:$0xf] %v3550
        %3615 = vst [vmem:[%s338 + $0x48] sm:$0xf] %v3551
        %3616 = vst [vmem:[%s338 + $0x4c] sm:$0xf] %v3552
        %3617 = vst [vmem:[%s338 + $0x50] sm:$0xf] %v3553
        %3618 = vst [vmem:[%s338 + $0x54] sm:$0xf] %v3554
        %3619 = vst [vmem:[%s338 + $0x58] sm:$0xf] %v3555
        %3620 = vst [vmem:[%s338 + $0x5c] sm:$0xf] %v3556
        %3621 = vst [vmem:[%s338 + $0x60] sm:$0xf] %v3557
        %3622 = vst [vmem:[%s338 + $0x64] sm:$0xf] %v3558
        %3623 = vst [vmem:[%s338 + $0x68] sm:$0xf] %v3559
        %3624 = vst [vmem:[%s338 + $0x6c] sm:$0xf] %v3560
        %3625 = vst [vmem:[%s338 + $0x70] sm:$0xf] %v3561
        %3626 = vst [vmem:[%s338 + $0x74] sm:$0xf] %v3562
        %3627 = vst [vmem:[%s338 + $0x78] sm:$0xf] %v3563
        %3628 = vst [vmem:[%s338 + $0x7c] sm:$0xf] %v3564
        %v3629 = vadd.f32 %v3437, %v3438
        %v3630 = vadd.f32 %v3629, %v3439
        %v3631 = vadd.f32 %v3630, %v3440
        %v3632 = vadd.f32 %v3631, %v3441
        %v3633 = vadd.f32 %v3632, %v3442
        %v3634 = vadd.f32 %v3633, %v3443
        %v3635 = vadd.f32 %v3634, %v3444
        %v3636 = vadd.f32 %v3635, %v3445
        %v3637 = vadd.f32 %v3636, %v3446
        %v3638 = vadd.f32 %v3637, %v3447
        %v3639 = vadd.f32 %v3638, %v3448
        %v3640 = vadd.f32 %v3639, %v3449
        %v3641 = vadd.f32 %v3640, %v3450
        %v3642 = vadd.f32 %v3641, %v3451
        %v3643 = vadd.f32 %v3642, %v3452
        %v3644 = vadd.f32 %v3643, %v3453
        %v3645 = vadd.f32 %v3644, %v3454
        %v3646 = vadd.f32 %v3645, %v3455
        %v3647 = vadd.f32 %v3646, %v3456
        %v3648 = vadd.f32 %v3647, %v3457
        %v3649 = vadd.f32 %v3648, %v3458
        %v3650 = vadd.f32 %v3649, %v3459
        %v3651 = vadd.f32 %v3650, %v3460
        %v3652 = vadd.f32 %v3651, %v3461
        %v3653 = vadd.f32 %v3652, %v3462
        %v3654 = vadd.f32 %v3653, %v3463
        %v3655 = vadd.f32 %v3654, %v3464
        %v3656 = vadd.f32 %v3655, %v3465
        %v3657 = vadd.f32 %v3656, %v3466
        %v3658 = vadd.f32 %v3657, %v3467
        %v3659 = vadd.f32 %v3658, %v3468
        %v3660 = vrot.slane %v3659, 4
        %v3661 = vadd.f32 %v3659, %v3660
        %v3662 = vrot.slane %v3661, 2
        %v3663 = vadd.f32 %v3661, %v3662
        %v3664 = vrot.slane %v3663, 1
        %v3665 = vadd.f32 %v3663, %v3664
        %3666 = vst [vmem:[%s344] sm:$0x1] %v3665
        %v3667 = vmul.f32 %v3437, %v3437
        %v3668 = vmul.f32 %v3438, %v3438
        %v3669 = vmul.f32 %v3439, %v3439
        %v3670 = vmul.f32 %v3440, %v3440
        %v3671 = vmul.f32 %v3441, %v3441
        %v3672 = vmul.f32 %v3442, %v3442
        %v3673 = vmul.f32 %v3443, %v3443
        %v3674 = vmul.f32 %v3444, %v3444
        %v3675 = vmul.f32 %v3445, %v3445
        %v3676 = vmul.f32 %v3446, %v3446
        %v3677 = vmul.f32 %v3447, %v3447
        %v3678 = vmul.f32 %v3448, %v3448
        %v3679 = vmul.f32 %v3449, %v3449
        %v3680 = vmul.f32 %v3450, %v3450
        %v3681 = vmul.f32 %v3451, %v3451
        %v3682 = vmul.f32 %v3452, %v3452
        %v3683 = vmul.f32 %v3453, %v3453
        %v3684 = vmul.f32 %v3454, %v3454
        %v3685 = vmul.f32 %v3455, %v3455
        %v3686 = vmul.f32 %v3456, %v3456
        %v3687 = vmul.f32 %v3457, %v3457
        %v3688 = vmul.f32 %v3458, %v3458
        %v3689 = vmul.f32 %v3459, %v3459
        %v3690 = vmul.f32 %v3460, %v3460
        %v3691 = vmul.f32 %v3461, %v3461
        %v3692 = vmul.f32 %v3462, %v3462
        %v3693 = vmul.f32 %v3463, %v3463
        %v3694 = vmul.f32 %v3464, %v3464
        %v3695 = vmul.f32 %v3465, %v3465
        %v3696 = vmul.f32 %v3466, %v3466
        %v3697 = vmul.f32 %v3467, %v3467
        %v3698 = vmul.f32 %v3468, %v3468
        %v3699 = vadd.f32 %v3667, %v3668
        %v3700 = vadd.f32 %v3699, %v3669
        %v3701 = vadd.f32 %v3700, %v3670
        %v3702 = vadd.f32 %v3701, %v3671
        %v3703 = vadd.f32 %v3702, %v3672
        %v3704 = vadd.f32 %v3703, %v3673
        %v3705 = vadd.f32 %v3704, %v3674
        %v3706 = vadd.f32 %v3705, %v3675
        %v3707 = vadd.f32 %v3706, %v3676
        %v3708 = vadd.f32 %v3707, %v3677
        %v3709 = vadd.f32 %v3708, %v3678
        %v3710 = vadd.f32 %v3709, %v3679
        %v3711 = vadd.f32 %v3710, %v3680
        %v3712 = vadd.f32 %v3711, %v3681
        %v3713 = vadd.f32 %v3712, %v3682
        %v3714 = vadd.f32 %v3713, %v3683
        %v3715 = vadd.f32 %v3714, %v3684
        %v3716 = vadd.f32 %v3715, %v3685
        %v3717 = vadd.f32 %v3716, %v3686
        %v3718 = vadd.f32 %v3717, %v3687
        %v3719 = vadd.f32 %v3718, %v3688
        %v3720 = vadd.f32 %v3719, %v3689
        %v3721 = vadd.f32 %v3720, %v3690
        %v3722 = vadd.f32 %v3721, %v3691
        %v3723 = vadd.f32 %v3722, %v3692
        %v3724 = vadd.f32 %v3723, %v3693
        %v3725 = vadd.f32 %v3724, %v3694
        %v3726 = vadd.f32 %v3725, %v3695
        %v3727 = vadd.f32 %v3726, %v3696
        %v3728 = vadd.f32 %v3727, %v3697
        %v3729 = vadd.f32 %v3728, %v3698
        %v3730 = vrot.slane %v3729, 4
        %v3731 = vadd.f32 %v3729, %v3730
        %v3732 = vrot.slane %v3731, 2
        %v3733 = vadd.f32 %v3731, %v3732
        %v3734 = vrot.slane %v3733, 1
        %v3735 = vadd.f32 %v3733, %v3734
        %3736 = vst [vmem:[%s350] sm:$0x1] %v3735
        %s3737 = sand.u32 %s145, 1
        %s3738 = scalar_lea.sflag [#allocation4], %s3737
        %s3739 = sand.u32 %s145, 1
        %s3740 = smul.addr %s3739, 128
        %s3741 = scalar_lea.vmem [#allocation10], %s3740
        %s3742 = sand.u32 %s29, 1
        %s3743 = scalar_lea.sflag [#allocation12], %s3742
        %s3744 = sand.u32 %s173, 1
        %s3745 = scalar_lea.vmem [#allocation11], %s3744
        %s3746 = sand.u32 %s29, 1
        %s3747 = scalar_lea.sflag [#allocation12], %s3746
        %s3748 = sand.u32 %s201, 1
        %s3749 = scalar_lea.vmem [#allocation13], %s3748
        // Predicated region
        $region53: #{cblx5_forward.7} parent=35 // pred_check
          %p3750 = pneg %p155
        $region54: #{cblx5_forward.7} parent=35 // pred_check_branch
          %3752 = sbr.rel (%p3750) target = $region56
        $region55: #{cblx5_forward.7} parent=35 // pred_region
          %s3754 = ssub.s32 2048, 2048
          %3755 = vsyncadd %s3738, %s3754
          %s3756 = smul.addr %s33, 32
          %s3757 = sadd.s32 %s34, %s3756
          %s3758 = smul.addr %s3757, 64
          %s3759 = scalar_lea.hbm %s4, %s3758
          %s3760 = sshll.u32 %s3741, 4
          %s3761 = int_to_ptr.vmem [resolvable:$true] %s3760
          %3766 = dma.vmem_to_hbm [thread:$0]  %s3761, 2048, %s3759, %s3738, 64, 64, 4
        $region56: #{cblx5_forward.7} parent=35 // pred_fallthru
          _
        // Predicated region
        $region57: #{cblx5_forward.7} parent=35 // pred_check
          %p3767 = pneg %p183
        $region58: #{cblx5_forward.7} parent=35 // pred_check_branch
          %3769 = sbr.rel (%p3767) target = $region60
        $region59: #{cblx5_forward.7} parent=35 // pred_region
          %s3771 = ssub.s32 16, 16
          %3772 = vsyncadd %s3743, %s3771
          %s3773 = sadd.s32 %s34, %s33
          %s3774 = smul.addr %s3773, 16
          %s3775 = scalar_lea.hbm %s5, %s3774
          %s3777 = sshll.u32 %s3745, 4
          %s3778 = int_to_ptr.vmem [resolvable:$true] %s3777
          %3780 = dma.vmem_to_hbm [thread:$0]  %s3778, 16, %s3775, %s3743
        $region60: #{cblx5_forward.7} parent=35 // pred_fallthru
          _
        // Predicated region
        $region61: #{cblx5_forward.7} parent=35 // pred_check
          %p3781 = pneg %p211
        $region62: #{cblx5_forward.7} parent=35 // pred_check_branch
          %3783 = sbr.rel (%p3781) target = $region64
        $region63: #{cblx5_forward.7} parent=35 // pred_region
          %s3785 = ssub.s32 16, 16
          %3786 = vsyncadd %s3747, %s3785
          %s3787 = sadd.s32 %s34, %s33
          %s3788 = smul.addr %s3787, 16
          %s3789 = scalar_lea.hbm %s6, %s3788
          %s3791 = sshll.u32 %s3749, 4
          %s3792 = int_to_ptr.vmem [resolvable:$true] %s3791
          %3794 = dma.vmem_to_hbm [thread:$0]  %s3792, 16, %s3789, %s3747
        $region64: #{cblx5_forward.7} parent=35 // pred_fallthru
          _
      $region36: #{cblx5_forward.7} parent=5 // pred_fallthru
        _
      %p3795 = scmp.le.s32.totalorder 2, %s24
      // Predicated region
      $region65: #{cblx5_forward.7} parent=5 // pred_check
        %p3796 = pneg %p3795
      $region66: #{cblx5_forward.7} parent=5 // pred_check_branch
        %3798 = sbr.rel (%p3796) target = $region68
      $region67: #{cblx5_forward.7} parent=5 // pred_region
        %s3799 = ssub.s32 %s24, 2
        // Predicated region
        $region69: #{cblx5_forward.7} parent=67 // pred_check
          %p3800 = pneg %p161
        $region70: #{cblx5_forward.7} parent=67 // pred_check_branch
          %3802 = sbr.rel (%p3800) target = $region72
        $region71: #{cblx5_forward.7} parent=67 // pred_region
          %s3803 = sand.u32 %s146, 1
          %s3804 = scalar_lea.sflag [#allocation4], %s3803
          %s3805 = sand.u32 %s146, 1
          %s3806 = smul.addr %s3805, 128
          %s3807 = scalar_lea.vmem [#allocation10], %s3806
          %3808 = dma.done %s3804, 2048
        $region72: #{cblx5_forward.7} parent=67 // pred_fallthru
          _
        // Predicated region
        $region73: #{cblx5_forward.7} parent=67 // pred_check
          %p3809 = pneg %p189
        $region74: #{cblx5_forward.7} parent=67 // pred_check_branch
          %3811 = sbr.rel (%p3809) target = $region76
        $region75: #{cblx5_forward.7} parent=67 // pred_region
          %s3812 = sand.u32 %s30, 1
          %s3813 = scalar_lea.sflag [#allocation12], %s3812
          %s3814 = sand.u32 %s174, 1
          %s3815 = scalar_lea.vmem [#allocation11], %s3814
          %3816 = dma.done %s3813, 16
        $region76: #{cblx5_forward.7} parent=67 // pred_fallthru
          _
        // Predicated region
        $region77: #{cblx5_forward.7} parent=67 // pred_check
          %p3817 = pneg %p217
        $region78: #{cblx5_forward.7} parent=67 // pred_check_branch
          %3819 = sbr.rel (%p3817) target = $region80
        $region79: #{cblx5_forward.7} parent=67 // pred_region
          %s3820 = sand.u32 %s30, 1
          %s3821 = scalar_lea.sflag [#allocation12], %s3820
          %s3822 = sand.u32 %s202, 1
          %s3823 = scalar_lea.vmem [#allocation13], %s3822
          %3824 = dma.done %s3821, 16
        $region80: #{cblx5_forward.7} parent=67 // pred_fallthru
          _
      $region68: #{cblx5_forward.7} parent=5 // pred_fallthru
        _
    $region6: #{cblx5_forward.7} parent=1 // loop_footer
      %s28 = sadd.s32 1, %s24
    $region7: #{cblx5_forward.7} parent=1 // loop_footer_branch
      %23 = sbr.rel target = $region3
    $region8: #{cblx5_forward.7} parent=1 // loop_exit
      _
    %3825 = vsyncpa [#allocation3], 1
    %s3826 = scalar_lea.sflag [#allocation3], 1
    %3827 = vsyncpa %s3826, 1
    %3828 = vsyncpa [#allocation6], 1
    %3829 = vsyncpa [#allocation9], 1
    %3830 = vsyncpa [#allocation4], 1
    %s3831 = scalar_lea.sflag [#allocation4], 1
    %3832 = vsyncpa %s3831, 1
    %3833 = vsyncpa [#allocation12], 1
    %s3834 = scalar_lea.sflag [#allocation12], 1
    %3835 = vsyncpa %s3834, 1

</llo_original>
